<compile_context>
chip_gen: v5e
topology: v5e:2x2
jax: 0.10.0
libtpu: 0.0.40
codegen_flags: <defaults>
</compile_context>

<pallas_src>
import numpy as np
import jax
import jax.numpy as jnp
from jax import lax
from jax.experimental import pallas as pl
from jax.experimental.pallas import tpu as pltpu


def _round_up(a, m):
    return ((a + m - 1) // m) * m


# ---------------------------------------------------------------------------
# Fused Pallas kernel (Bn batch samples per grid step)
# ---------------------------------------------------------------------------
def _make_kernel(Bn, H, W, C, Wp, flatten_out):
    Hp = H + 3                 # padded rows per sample (+1 spare so taps stay in-bounds)
    R = Bn * Hp                # scratch rows (batch folded into the row axis)
    M = (R - 3) * Wp           # conv output rows computed per tap matmul
    NEED = M + 2 * Wp          # rows needed from each dw-shifted view

    def conv3x3_bn(pad_ref, w_ref, s_ref, b_ref):
        # Flat (rows, C) view of the zero-halo padded buffer. Row pitch Wp is a
        # multiple of 8 so dh*Wp slice starts are sublane-aligned.
        flat = pad_ref[...].reshape(R * Wp, C)
        # Only these two dw-shifted views are misaligned; the 9 per-tap slices
        # below are all aligned slices of them.
        shifted = [flat[dw:dw + NEED, :] for dw in range(3)]
        acc = None
        for dh in range(3):
            for dw in range(3):
                tap = jnp.dot(shifted[dw][dh * Wp:dh * Wp + M, :],
                              w_ref[3 * dh + dw],
                              preferred_element_type=jnp.float32)
                acc = tap if acc is None else acc + tap
        return acc * s_ref[...] + b_ref[...]          # folded BN, f32

    def kernel(x_ref, w1_ref, w2_ref, s1_ref, b1_ref, s2_ref, b2_ref,
               out_ref, xpad_ref, mid_ref):
        zrow = jnp.zeros((1, Wp, C), jnp.bfloat16)    # hoisted, reused
        zcol = jnp.zeros((R, 1, C), jnp.bfloat16)
        xs = [x_ref[n] for n in range(Bn)]            # (H, W, C) bf16, read once

        # ---- in-kernel 'same' padding: zero ONLY the halo, store interior ----
        xpad_ref[:, 0:1, :] = zcol                    # left halo column
        xpad_ref[:, W + 1:W + 2, :] = zcol            # right halo column
        for n in range(Bn):
            b = n * Hp
            xpad_ref[b:b + 1, :, :] = zrow            # top halo row
            xpad_ref[b + H + 1:b + H + 2, :, :] = zrow  # bottom halo row
            xpad_ref[b + 1:b + H + 1, 1:W + 1, :] = xs[n]

        # ---- conv1 + bn1 + relu: intermediate stays in VMEM (with halo) ----
        y1 = jnp.maximum(conv3x3_bn(xpad_ref, w1_ref, s1_ref, b1_ref), 0.0)
        y1 = y1.reshape(R - 3, Wp, C)
        mid_ref[:, 0:1, :] = zcol
        mid_ref[:, W + 1:W + 2, :] = zcol
        for n in range(Bn):
            b = n * Hp
            mid_ref[b:b + 1, :, :] = zrow
            mid_ref[b + H + 1:b + H + 2, :, :] = zrow
            # junk columns (w >= W) dropped here; col W+1 stays zero (conv2 halo)
            mid_ref[b + 1:b + H + 1, 1:W + 1, :] = (
                y1[b:b + H, :W, :].astype(jnp.bfloat16))

        # ---- conv2 + bn2 + residual add + relu ----
        y2 = conv3x3_bn(mid_ref, w2_ref, s2_ref, b2_ref).reshape(R - 3, Wp, C)
        for n in range(Bn):
            b = n * Hp
            o = jnp.maximum(y2[b:b + H, :W, :] + xs[n].astype(jnp.float32), 0.0)
            o = o.astype(out_ref.dtype)
            if flatten_out:
                out_ref[n] = o.reshape(H, W * C)      # lane-dense store (C < 128)
            else:
                out_ref[n] = o

    return kernel


# ---------------------------------------------------------------------------
# Parameter prep (one-time, hoisted out of the forward path)
# ---------------------------------------------------------------------------
def fold_bn(gamma, beta, mean, var, eps=1e-5):
    scale = gamma / jnp.sqrt(var + eps)
    shift = beta - mean * scale
    return scale, shift


def prepare_params(params, eps=1e-5):
    w1 = jnp.transpose(params["conv1_w"], (2, 3, 1, 0))   # OIHW -> HWIO
    w2 = jnp.transpose(params["conv2_w"], (2, 3, 1, 0))
    kh, kw, cin, cout = w1.shape
    assert (kh, kw) == (3, 3) and cin == cout, "stride=1, downsample=None block"
    s1, b1 = fold_bn(params["bn1_gamma"], params["bn1_beta"],
                     params["bn1_mean"], params["bn1_var"], eps)
    s2, b2 = fold_bn(params["bn2_gamma"], params["bn2_beta"],
                     params["bn2_mean"], params["bn2_var"], eps)
    return {
        "w1": w1.reshape(9, cin, cout).astype(jnp.bfloat16),   # (tap, Cin, Cout)
        "w2": w2.reshape(9, cout, cout).astype(jnp.bfloat16),
        "s1": s1.reshape(1, cout).astype(jnp.float32),
        "b1": b1.reshape(1, cout).astype(jnp.float32),
        "s2": s2.reshape(1, cout).astype(jnp.float32),
        "b2": b2.reshape(1, cout).astype(jnp.float32),
    }


# ---------------------------------------------------------------------------
# Wrappers
# ---------------------------------------------------------------------------
def _pick_batch_block(N, H, W, C, scratch_budget_bytes=8 << 20):
    Wp = _round_up(W + 2, 8)
    per_sample = 2 * (H + 3) * Wp * C * 2        # two bf16 padded scratches
    bn = int(max(1, min(N, scratch_budget_bytes // max(per_sample, 1))))
    while N % bn:
        bn -= 1
    return bn


def residual_block_nhwc(x_nhwc, prep, *, batch_block=None):
    """Fused ResidualBlock forward. NHWC in -> NHWC bf16 out (fast path)."""
    N, H, W, C = x_nhwc.shape
    x = x_nhwc.astype(jnp.bfloat16)
    Wp = _round_up(W + 2, 8)                     # tile-aligned padded row pitch
    Bn = batch_block or _pick_batch_block(N, H, W, C)
    assert N % Bn == 0
    flatten_out = C < 128                        # lane-flatten only for small C
    R = Bn * (H + 3)

    kernel = _make_kernel(Bn, H, W, C, Wp, flatten_out)
    if flatten_out:
        out_shape = jax.ShapeDtypeStruct((N, H, W * C), jnp.bfloat16)
        out_spec = pl.BlockSpec((Bn, H, W * C), lambda g: (g, 0, 0))
    else:
        out_shape = jax.ShapeDtypeStruct((N, H, W, C), jnp.bfloat16)
        out_spec = pl.BlockSpec((Bn, H, W, C), lambda g: (g, 0, 0, 0))

    grid_spec = pltpu.PrefetchScalarGridSpec(
        num_scalar_prefetch=0,
        grid=(N // Bn,),
        in_specs=[
            pl.BlockSpec((Bn, H, W, C), lambda g: (g, 0, 0, 0)),
            pl.BlockSpec((9, C, C), lambda g: (0, 0, 0)),
            pl.BlockSpec((9, C, C), lambda g: (0, 0, 0)),
            pl.BlockSpec((1, C), lambda g: (0, 0)),
            pl.BlockSpec((1, C), lambda g: (0, 0)),
            pl.BlockSpec((1, C), lambda g: (0, 0)),
            pl.BlockSpec((1, C), lambda g: (0, 0)),
        ],
        out_specs=out_spec,
        scratch_shapes=[
            pltpu.VMEM((R, Wp, C), jnp.bfloat16),   # padded input (halo-zeroed)
            pltpu.VMEM((R, Wp, C), jnp.bfloat16),   # padded conv1 output
        ],
    )
    out = pl.pallas_call(
        kernel,
        out_shape=out_shape,
        grid_spec=grid_spec,
        compiler_params=pltpu.CompilerParams(
            dimension_semantics=("parallel",),
            vmem_limit_bytes=32 * 1024 * 1024,      # well under v7x 64 MiB physical
        ),
    )(x, prep["w1"], prep["w2"], prep["s1"], prep["b1"], prep["s2"], prep["b2"])
    return out.reshape(N, H, W, C)


def residual_block_forward(x_nchw, prep):
    """PyTorch-interface wrapper: NCHW in -> NCHW bf16 out.
    Prefer residual_block_nhwc to skip the two transpose HBM passes."""
    x = jnp.transpose(x_nchw, (0, 2, 3, 1))
    out = residual_block_nhwc(x, prep)
    return jnp.transpose(out, (0, 3, 1, 2))


# ---------------------------------------------------------------------------
# Pure-JAX reference (bf16 inputs / f32 accumulate, matching kernel numerics)
# ---------------------------------------------------------------------------
def _reference(x_nchw, params, eps=1e-5):
    x = jnp.transpose(x_nchw, (0, 2, 3, 1)).astype(jnp.float32)
    xb = x.astype(jnp.bfloat16).astype(jnp.float32)      # same rounding as kernel
    w1 = jnp.transpose(params["conv1_w"], (2, 3, 1, 0)).astype(jnp.bfloat16)
    w2 = jnp.transpose(params["conv2_w"], (2, 3, 1, 0)).astype(jnp.bfloat16)
    s1, b1 = fold_bn(params["bn1_gamma"], params["bn1_beta"],
                     params["bn1_mean"], params["bn1_var"], eps)
    s2, b2 = fold_bn(params["bn2_gamma"], params["bn2_beta"],
                     params["bn2_mean"], params["bn2_var"], eps)

    def conv(z, w):
        return lax.conv_general_dilated(
            z.astype(jnp.bfloat16), w, window_strides=(1, 1),
            padding=((1, 1), (1, 1)),
            dimension_numbers=("NHWC", "HWIO", "NHWC"),
            preferred_element_type=jnp.float32)

    h = jnp.maximum(conv(xb, w1) * s1 + b1, 0.0)
    o = jnp.maximum(conv(h, w2) * s2 + b2 + xb, 0.0)
    return jnp.transpose(o, (0, 3, 1, 2))


# ---------------------------------------------------------------------------
if __name__ == "__main__":
    N, C, H, W = 2, 8, 16, 16        # in_channels == out_channels, stride=1
    key = jax.random.PRNGKey(0)
    kx, *kp = jax.random.split(key, 9)

    params = {
        "conv1_w": 0.1 * jax.random.normal(kp[0], (C, C, 3, 3), jnp.float32),
        "conv2_w": 0.1 * jax.random.normal(kp[1], (C, C, 3, 3), jnp.float32),
        "bn1_gamma": 1.0 + 0.1 * jax.random.normal(kp[2], (C,), jnp.float32),
        "bn1_beta": 0.1 * jax.random.normal(kp[3], (C,), jnp.float32),
        "bn1_mean": 0.1 * jax.random.normal(kp[4], (C,), jnp.float32),
        "bn1_var": jnp.abs(jax.random.normal(kp[5], (C,), jnp.float32)) + 0.5,
        "bn2_gamma": 1.0 + 0.1 * jax.random.normal(kp[6], (C,), jnp.float32),
        "bn2_beta": 0.1 * jax.random.normal(kp[7], (C,), jnp.float32),
        "bn2_mean": jnp.zeros((C,), jnp.float32),
        "bn2_var": jnp.ones((C,), jnp.float32),
    }
    x = jax.random.normal(kx, (N, C, H, W), jnp.float32)

    prep = prepare_params(params)                 # hoisted one-time prep
    out = jax.block_until_ready(residual_block_forward(x, prep))
    ref = jax.block_until_ready(_reference(x, params))

    assert out.shape == (N, C, H, W)
    np.testing.assert_allclose(
        np.asarray(out, dtype=np.float32),
        np.asarray(ref.astype(jnp.bfloat16), dtype=np.float32),
        atol=2e-2, rtol=2e-2)
    print("KERNEL_OK")
</pallas_src>

<mosaic_0001>
module attributes {stable_mosaic.version = 11 : i64} {
  func.func @kernel(%arg0: i32, %arg1: memref<2x16x16x8xbf16, #tpu.memory_space<vmem>>, %arg2: memref<9x8x8xbf16, #tpu.memory_space<vmem>>, %arg3: memref<9x8x8xbf16, #tpu.memory_space<vmem>>, %arg4: memref<1x8xf32, #tpu.memory_space<vmem>>, %arg5: memref<1x8xf32, #tpu.memory_space<vmem>>, %arg6: memref<1x8xf32, #tpu.memory_space<vmem>>, %arg7: memref<1x8xf32, #tpu.memory_space<vmem>>, %arg8: memref<2x16x128xbf16, #tpu.memory_space<vmem>>, %arg9: memref<38x24x8xbf16, #tpu.memory_space<vmem>>, %arg10: memref<38x24x8xbf16, #tpu.memory_space<vmem>>) attributes {dimension_semantics = [#tpu.dimension_semantics<parallel>], iteration_bounds = array<i64: 1>, scalar_prefetch = 0 : i64, scratch_operands = 2 : i64, tpu.core_type = #tpu.core_type<tc>, window_params = [{transform_indices = @transform_0, window_bounds = array<i64: 2, 16, 16, 8>}, {pipeline_mode = #tpu.pipeline_mode<synchronous>, transform_indices = @transform_1, window_bounds = array<i64: 9, 8, 8>}, {pipeline_mode = #tpu.pipeline_mode<synchronous>, transform_indices = @transform_2, window_bounds = array<i64: 9, 8, 8>}, {pipeline_mode = #tpu.pipeline_mode<synchronous>, transform_indices = @transform_3, window_bounds = array<i64: 1, 8>}, {pipeline_mode = #tpu.pipeline_mode<synchronous>, transform_indices = @transform_4, window_bounds = array<i64: 1, 8>}, {pipeline_mode = #tpu.pipeline_mode<synchronous>, transform_indices = @transform_5, window_bounds = array<i64: 1, 8>}, {pipeline_mode = #tpu.pipeline_mode<synchronous>, transform_indices = @transform_6, window_bounds = array<i64: 1, 8>}, {transform_indices = @transform_7, window_bounds = array<i64: 2, 16, 128>}]} {
    %cst = arith.constant 0.000000e+00 : bf16
    %0 = vector.broadcast %cst : bf16 to vector<1x24x8xbf16>
    %cst_0 = arith.constant 0.000000e+00 : bf16
    %1 = vector.broadcast %cst_0 : bf16 to vector<38x1x8xbf16>
    %c0 = arith.constant 0 : index
    %c0_1 = arith.constant 0 : index
    %c0_2 = arith.constant 0 : index
    %c0_3 = arith.constant 0 : index
    %2 = vector.load %arg1[%c0, %c0_1, %c0_2, %c0_3] : memref<2x16x16x8xbf16, #tpu.memory_space<vmem>>, vector<1x16x16x8xbf16>
    %3 = vector.shape_cast %2 : vector<1x16x16x8xbf16> to vector<16x16x8xbf16>
    %c1 = arith.constant 1 : index
    %c0_4 = arith.constant 0 : index
    %c0_5 = arith.constant 0 : index
    %c0_6 = arith.constant 0 : index
    %4 = vector.load %arg1[%c1, %c0_4, %c0_5, %c0_6] : memref<2x16x16x8xbf16, #tpu.memory_space<vmem>>, vector<1x16x16x8xbf16>
    %5 = vector.shape_cast %4 : vector<1x16x16x8xbf16> to vector<16x16x8xbf16>
    %c0_7 = arith.constant 0 : index
    %c0_8 = arith.constant 0 : index
    %c0_9 = arith.constant 0 : index
    %6 = vector.load %arg9[%c0_7, %c0_8, %c0_9] : memref<38x24x8xbf16, #tpu.memory_space<vmem>>, vector<38x1x8xbf16>
    tpu.vector_store %arg9[%c0_7, %c0_8, %c0_9], %1 {strides = array<i32>} : memref<38x24x8xbf16, #tpu.memory_space<vmem>>, vector<38x1x8xbf16>,
    %c0_10 = arith.constant 0 : index
    %c17 = arith.constant 17 : index
    %c0_11 = arith.constant 0 : index
    %7 = vector.load %arg9[%c0_10, %c17, %c0_11] : memref<38x24x8xbf16, #tpu.memory_space<vmem>>, vector<38x1x8xbf16>
    tpu.vector_store %arg9[%c0_10, %c17, %c0_11], %1 {strides = array<i32>} : memref<38x24x8xbf16, #tpu.memory_space<vmem>>, vector<38x1x8xbf16>,
    %c0_12 = arith.constant 0 : index
    %c0_13 = arith.constant 0 : index
    %c0_14 = arith.constant 0 : index
    %8 = vector.load %arg9[%c0_12, %c0_13, %c0_14] : memref<38x24x8xbf16, #tpu.memory_space<vmem>>, vector<1x24x8xbf16>
    tpu.vector_store %arg9[%c0_12, %c0_13, %c0_14], %0 {strides = array<i32>} : memref<38x24x8xbf16, #tpu.memory_space<vmem>>, vector<1x24x8xbf16>,
    %c17_15 = arith.constant 17 : index
    %c0_16 = arith.constant 0 : index
    %c0_17 = arith.constant 0 : index
    %9 = vector.load %arg9[%c17_15, %c0_16, %c0_17] : memref<38x24x8xbf16, #tpu.memory_space<vmem>>, vector<1x24x8xbf16>
    tpu.vector_store %arg9[%c17_15, %c0_16, %c0_17], %0 {strides = array<i32>} : memref<38x24x8xbf16, #tpu.memory_space<vmem>>, vector<1x24x8xbf16>,
    %c1_18 = arith.constant 1 : index
    %c1_19 = arith.constant 1 : index
    %c0_20 = arith.constant 0 : index
    %10 = vector.load %arg9[%c1_18, %c1_19, %c0_20] : memref<38x24x8xbf16, #tpu.memory_space<vmem>>, vector<16x16x8xbf16>
    tpu.vector_store %arg9[%c1_18, %c1_19, %c0_20], %3 {strides = array<i32>} : memref<38x24x8xbf16, #tpu.memory_space<vmem>>, vector<16x16x8xbf16>,
    %c19 = arith.constant 19 : index
    %c0_21 = arith.constant 0 : index
    %c0_22 = arith.constant 0 : index
    %11 = vector.load %arg9[%c19, %c0_21, %c0_22] : memref<38x24x8xbf16, #tpu.memory_space<vmem>>, vector<1x24x8xbf16>
    tpu.vector_store %arg9[%c19, %c0_21, %c0_22], %0 {strides = array<i32>} : memref<38x24x8xbf16, #tpu.memory_space<vmem>>, vector<1x24x8xbf16>,
    %c36 = arith.constant 36 : index
    %c0_23 = arith.constant 0 : index
    %c0_24 = arith.constant 0 : index
    %12 = vector.load %arg9[%c36, %c0_23, %c0_24] : memref<38x24x8xbf16, #tpu.memory_space<vmem>>, vector<1x24x8xbf16>
    tpu.vector_store %arg9[%c36, %c0_23, %c0_24], %0 {strides = array<i32>} : memref<38x24x8xbf16, #tpu.memory_space<vmem>>, vector<1x24x8xbf16>,
    %c20 = arith.constant 20 : index
    %c1_25 = arith.constant 1 : index
    %c0_26 = arith.constant 0 : index
    %13 = vector.load %arg9[%c20, %c1_25, %c0_26] : memref<38x24x8xbf16, #tpu.memory_space<vmem>>, vector<16x16x8xbf16>
    tpu.vector_store %arg9[%c20, %c1_25, %c0_26], %5 {strides = array<i32>} : memref<38x24x8xbf16, #tpu.memory_space<vmem>>, vector<16x16x8xbf16>,
    %c0_27 = arith.constant 0 : index
    %c0_28 = arith.constant 0 : index
    %c0_29 = arith.constant 0 : index
    %14 = vector.load %arg9[%c0_27, %c0_28, %c0_29] : memref<38x24x8xbf16, #tpu.memory_space<vmem>>, vector<38x24x8xbf16>
    %15 = vector.shape_cast %14 : vector<38x24x8xbf16> to vector<912x8xbf16>
    %16 = vector.extract_strided_slice %15 {offsets = [0, 0], sizes = [888, 8], strides = [1, 1]} : vector<912x8xbf16> to vector<888x8xbf16>
    %17 = vector.extract_strided_slice %15 {offsets = [1, 0], sizes = [888, 8], strides = [1, 1]} : vector<912x8xbf16> to vector<888x8xbf16>
    %18 = vector.extract_strided_slice %15 {offsets = [2, 0], sizes = [888, 8], strides = [1, 1]} : vector<912x8xbf16> to vector<888x8xbf16>
    %19 = vector.extract_strided_slice %16 {offsets = [0, 0], sizes = [840, 8], strides = [1, 1]} : vector<888x8xbf16> to vector<840x8xbf16>
    %c0_30 = arith.constant 0 : index
    %c0_31 = arith.constant 0 : index
    %c0_32 = arith.constant 0 : index
    %20 = vector.load %arg2[%c0_30, %c0_31, %c0_32] : memref<9x8x8xbf16, #tpu.memory_space<vmem>>, vector<1x8x8xbf16>
    %21 = vector.shape_cast %20 : vector<1x8x8xbf16> to vector<8x8xbf16>
    %cst_33 = arith.constant dense<0.000000e+00> : vector<840x8xf32>
    %22 = tpu.matmul %19, %21, %cst_33 {dimension_numbers = #tpu.dot_dimension_numbers<[1], [0], [0], [1], [0, 0, 1, 1], [], []>} : vector<840x8xbf16>, vector<8x8xbf16>, vector<840x8xf32> -> vector<840x8xf32>
    %23 = vector.extract_strided_slice %17 {offsets = [0, 0], sizes = [840, 8], strides = [1, 1]} : vector<888x8xbf16> to vector<840x8xbf16>
    %c1_34 = arith.constant 1 : index
    %c0_35 = arith.constant 0 : index
    %c0_36 = arith.constant 0 : index
    %24 = vector.load %arg2[%c1_34, %c0_35, %c0_36] : memref<9x8x8xbf16, #tpu.memory_space<vmem>>, vector<1x8x8xbf16>
    %25 = vector.shape_cast %24 : vector<1x8x8xbf16> to vector<8x8xbf16>
    %cst_37 = arith.constant dense<0.000000e+00> : vector<840x8xf32>
    %26 = tpu.matmul %23, %25, %cst_37 {dimension_numbers = #tpu.dot_dimension_numbers<[1], [0], [0], [1], [0, 0, 1, 1], [], []>} : vector<840x8xbf16>, vector<8x8xbf16>, vector<840x8xf32> -> vector<840x8xf32>
    %27 = arith.addf %22, %26 : vector<840x8xf32>
    %28 = vector.extract_strided_slice %18 {offsets = [0, 0], sizes = [840, 8], strides = [1, 1]} : vector<888x8xbf16> to vector<840x8xbf16>
    %c2 = arith.constant 2 : index
    %c0_38 = arith.constant 0 : index
    %c0_39 = arith.constant 0 : index
    %29 = vector.load %arg2[%c2, %c0_38, %c0_39] : memref<9x8x8xbf16, #tpu.memory_space<vmem>>, vector<1x8x8xbf16>
    %30 = vector.shape_cast %29 : vector<1x8x8xbf16> to vector<8x8xbf16>
    %cst_40 = arith.constant dense<0.000000e+00> : vector<840x8xf32>
    %31 = tpu.matmul %28, %30, %cst_40 {dimension_numbers = #tpu.dot_dimension_numbers<[1], [0], [0], [1], [0, 0, 1, 1], [], []>} : vector<840x8xbf16>, vector<8x8xbf16>, vector<840x8xf32> -> vector<840x8xf32>
    %32 = arith.addf %27, %31 : vector<840x8xf32>
    %33 = vector.extract_strided_slice %16 {offsets = [24, 0], sizes = [840, 8], strides = [1, 1]} : vector<888x8xbf16> to vector<840x8xbf16>
    %c3 = arith.constant 3 : index
    %c0_41 = arith.constant 0 : index
    %c0_42 = arith.constant 0 : index
    %34 = vector.load %arg2[%c3, %c0_41, %c0_42] : memref<9x8x8xbf16, #tpu.memory_space<vmem>>, vector<1x8x8xbf16>
    %35 = vector.shape_cast %34 : vector<1x8x8xbf16> to vector<8x8xbf16>
    %cst_43 = arith.constant dense<0.000000e+00> : vector<840x8xf32>
    %36 = tpu.matmul %33, %35, %cst_43 {dimension_numbers = #tpu.dot_dimension_numbers<[1], [0], [0], [1], [0, 0, 1, 1], [], []>} : vector<840x8xbf16>, vector<8x8xbf16>, vector<840x8xf32> -> vector<840x8xf32>
    %37 = arith.addf %32, %36 : vector<840x8xf32>
    %38 = vector.extract_strided_slice %17 {offsets = [24, 0], sizes = [840, 8], strides = [1, 1]} : vector<888x8xbf16> to vector<840x8xbf16>
    %c4 = arith.constant 4 : index
    %c0_44 = arith.constant 0 : index
    %c0_45 = arith.constant 0 : index
    %39 = vector.load %arg2[%c4, %c0_44, %c0_45] : memref<9x8x8xbf16, #tpu.memory_space<vmem>>, vector<1x8x8xbf16>
    %40 = vector.shape_cast %39 : vector<1x8x8xbf16> to vector<8x8xbf16>
    %cst_46 = arith.constant dense<0.000000e+00> : vector<840x8xf32>
    %41 = tpu.matmul %38, %40, %cst_46 {dimension_numbers = #tpu.dot_dimension_numbers<[1], [0], [0], [1], [0, 0, 1, 1], [], []>} : vector<840x8xbf16>, vector<8x8xbf16>, vector<840x8xf32> -> vector<840x8xf32>
    %42 = arith.addf %37, %41 : vector<840x8xf32>
    %43 = vector.extract_strided_slice %18 {offsets = [24, 0], sizes = [840, 8], strides = [1, 1]} : vector<888x8xbf16> to vector<840x8xbf16>
    %c5 = arith.constant 5 : index
    %c0_47 = arith.constant 0 : index
    %c0_48 = arith.constant 0 : index
    %44 = vector.load %arg2[%c5, %c0_47, %c0_48] : memref<9x8x8xbf16, #tpu.memory_space<vmem>>, vector<1x8x8xbf16>
    %45 = vector.shape_cast %44 : vector<1x8x8xbf16> to vector<8x8xbf16>
    %cst_49 = arith.constant dense<0.000000e+00> : vector<840x8xf32>
    %46 = tpu.matmul %43, %45, %cst_49 {dimension_numbers = #tpu.dot_dimension_numbers<[1], [0], [0], [1], [0, 0, 1, 1], [], []>} : vector<840x8xbf16>, vector<8x8xbf16>, vector<840x8xf32> -> vector<840x8xf32>
    %47 = arith.addf %42, %46 : vector<840x8xf32>
    %48 = vector.extract_strided_slice %16 {offsets = [48, 0], sizes = [840, 8], strides = [1, 1]} : vector<888x8xbf16> to vector<840x8xbf16>
    %c6 = arith.constant 6 : index
    %c0_50 = arith.constant 0 : index
    %c0_51 = arith.constant 0 : index
    %49 = vector.load %arg2[%c6, %c0_50, %c0_51] : memref<9x8x8xbf16, #tpu.memory_space<vmem>>, vector<1x8x8xbf16>
    %50 = vector.shape_cast %49 : vector<1x8x8xbf16> to vector<8x8xbf16>
    %cst_52 = arith.constant dense<0.000000e+00> : vector<840x8xf32>
    %51 = tpu.matmul %48, %50, %cst_52 {dimension_numbers = #tpu.dot_dimension_numbers<[1], [0], [0], [1], [0, 0, 1, 1], [], []>} : vector<840x8xbf16>, vector<8x8xbf16>, vector<840x8xf32> -> vector<840x8xf32>
    %52 = arith.addf %47, %51 : vector<840x8xf32>
    %53 = vector.extract_strided_slice %17 {offsets = [48, 0], sizes = [840, 8], strides = [1, 1]} : vector<888x8xbf16> to vector<840x8xbf16>
    %c7 = arith.constant 7 : index
    %c0_53 = arith.constant 0 : index
    %c0_54 = arith.constant 0 : index
    %54 = vector.load %arg2[%c7, %c0_53, %c0_54] : memref<9x8x8xbf16, #tpu.memory_space<vmem>>, vector<1x8x8xbf16>
    %55 = vector.shape_cast %54 : vector<1x8x8xbf16> to vector<8x8xbf16>
    %cst_55 = arith.constant dense<0.000000e+00> : vector<840x8xf32>
    %56 = tpu.matmul %53, %55, %cst_55 {dimension_numbers = #tpu.dot_dimension_numbers<[1], [0], [0], [1], [0, 0, 1, 1], [], []>} : vector<840x8xbf16>, vector<8x8xbf16>, vector<840x8xf32> -> vector<840x8xf32>
    %57 = arith.addf %52, %56 : vector<840x8xf32>
    %58 = vector.extract_strided_slice %18 {offsets = [48, 0], sizes = [840, 8], strides = [1, 1]} : vector<888x8xbf16> to vector<840x8xbf16>
    %c8 = arith.constant 8 : index
    %c0_56 = arith.constant 0 : index
    %c0_57 = arith.constant 0 : index
    %59 = vector.load %arg2[%c8, %c0_56, %c0_57] : memref<9x8x8xbf16, #tpu.memory_space<vmem>>, vector<1x8x8xbf16>
    %60 = vector.shape_cast %59 : vector<1x8x8xbf16> to vector<8x8xbf16>
    %cst_58 = arith.constant dense<0.000000e+00> : vector<840x8xf32>
    %61 = tpu.matmul %58, %60, %cst_58 {dimension_numbers = #tpu.dot_dimension_numbers<[1], [0], [0], [1], [0, 0, 1, 1], [], []>} : vector<840x8xbf16>, vector<8x8xbf16>, vector<840x8xf32> -> vector<840x8xf32>
    %62 = arith.addf %57, %61 : vector<840x8xf32>
    %c0_59 = arith.constant 0 : index
    %c0_60 = arith.constant 0 : index
    %63 = vector.load %arg4[%c0_59, %c0_60] : memref<1x8xf32, #tpu.memory_space<vmem>>, vector<1x8xf32>
    %64 = vector.broadcast %63 : vector<1x8xf32> to vector<840x8xf32>
    %65 = arith.mulf %62, %64 : vector<840x8xf32>
    %c0_61 = arith.constant 0 : index
    %c0_62 = arith.constant 0 : index
    %66 = vector.load %arg5[%c0_61, %c0_62] : memref<1x8xf32, #tpu.memory_space<vmem>>, vector<1x8xf32>
    %67 = vector.broadcast %66 : vector<1x8xf32> to vector<840x8xf32>
    %68 = arith.addf %65, %67 : vector<840x8xf32>
    %cst_63 = arith.constant 0.000000e+00 : f32
    %69 = vector.broadcast %cst_63 : f32 to vector<840x8xf32>
    %70 = arith.maximumf %68, %69 : vector<840x8xf32>
    %71 = vector.shape_cast %70 : vector<840x8xf32> to vector<35x24x8xf32>
    %c0_64 = arith.constant 0 : index
    %c0_65 = arith.constant 0 : index
    %c0_66 = arith.constant 0 : index
    %72 = vector.load %arg10[%c0_64, %c0_65, %c0_66] : memref<38x24x8xbf16, #tpu.memory_space<vmem>>, vector<38x1x8xbf16>
    tpu.vector_store %arg10[%c0_64, %c0_65, %c0_66], %1 {strides = array<i32>} : memref<38x24x8xbf16, #tpu.memory_space<vmem>>, vector<38x1x8xbf16>,
    %c0_67 = arith.constant 0 : index
    %c17_68 = arith.constant 17 : index
    %c0_69 = arith.constant 0 : index
    %73 = vector.load %arg10[%c0_67, %c17_68, %c0_69] : memref<38x24x8xbf16, #tpu.memory_space<vmem>>, vector<38x1x8xbf16>
    tpu.vector_store %arg10[%c0_67, %c17_68, %c0_69], %1 {strides = array<i32>} : memref<38x24x8xbf16, #tpu.memory_space<vmem>>, vector<38x1x8xbf16>,
    %c0_70 = arith.constant 0 : index
    %c0_71 = arith.constant 0 : index
    %c0_72 = arith.constant 0 : index
    %74 = vector.load %arg10[%c0_70, %c0_71, %c0_72] : memref<38x24x8xbf16, #tpu.memory_space<vmem>>, vector<1x24x8xbf16>
    tpu.vector_store %arg10[%c0_70, %c0_71, %c0_72], %0 {strides = array<i32>} : memref<38x24x8xbf16, #tpu.memory_space<vmem>>, vector<1x24x8xbf16>,
    %c17_73 = arith.constant 17 : index
    %c0_74 = arith.constant 0 : index
    %c0_75 = arith.constant 0 : index
    %75 = vector.load %arg10[%c17_73, %c0_74, %c0_75] : memref<38x24x8xbf16, #tpu.memory_space<vmem>>, vector<1x24x8xbf16>
    tpu.vector_store %arg10[%c17_73, %c0_74, %c0_75], %0 {strides = array<i32>} : memref<38x24x8xbf16, #tpu.memory_space<vmem>>, vector<1x24x8xbf16>,
    %76 = vector.extract_strided_slice %71 {offsets = [0, 0, 0], sizes = [16, 16, 8], strides = [1, 1, 1]} : vector<35x24x8xf32> to vector<16x16x8xf32>
    %77 = arith.truncf %76 : vector<16x16x8xf32> to vector<16x16x8xbf16>
    %c1_76 = arith.constant 1 : index
    %c1_77 = arith.constant 1 : index
    %c0_78 = arith.constant 0 : index
    %78 = vector.load %arg10[%c1_76, %c1_77, %c0_78] : memref<38x24x8xbf16, #tpu.memory_space<vmem>>, vector<16x16x8xbf16>
    tpu.vector_store %arg10[%c1_76, %c1_77, %c0_78], %77 {strides = array<i32>} : memref<38x24x8xbf16, #tpu.memory_space<vmem>>, vector<16x16x8xbf16>,
    %c19_79 = arith.constant 19 : index
    %c0_80 = arith.constant 0 : index
    %c0_81 = arith.constant 0 : index
    %79 = vector.load %arg10[%c19_79, %c0_80, %c0_81] : memref<38x24x8xbf16, #tpu.memory_space<vmem>>, vector<1x24x8xbf16>
    tpu.vector_store %arg10[%c19_79, %c0_80, %c0_81], %0 {strides = array<i32>} : memref<38x24x8xbf16, #tpu.memory_space<vmem>>, vector<1x24x8xbf16>,
    %c36_82 = arith.constant 36 : index
    %c0_83 = arith.constant 0 : index
    %c0_84 = arith.constant 0 : index
    %80 = vector.load %arg10[%c36_82, %c0_83, %c0_84] : memref<38x24x8xbf16, #tpu.memory_space<vmem>>, vector<1x24x8xbf16>
    tpu.vector_store %arg10[%c36_82, %c0_83, %c0_84], %0 {strides = array<i32>} : memref<38x24x8xbf16, #tpu.memory_space<vmem>>, vector<1x24x8xbf16>,
    %81 = vector.extract_strided_slice %71 {offsets = [19, 0, 0], sizes = [16, 16, 8], strides = [1, 1, 1]} : vector<35x24x8xf32> to vector<16x16x8xf32>
    %82 = arith.truncf %81 : vector<16x16x8xf32> to vector<16x16x8xbf16>
    %c20_85 = arith.constant 20 : index
    %c1_86 = arith.constant 1 : index
    %c0_87 = arith.constant 0 : index
    %83 = vector.load %arg10[%c20_85, %c1_86, %c0_87] : memref<38x24x8xbf16, #tpu.memory_space<vmem>>, vector<16x16x8xbf16>
    tpu.vector_store %arg10[%c20_85, %c1_86, %c0_87], %82 {strides = array<i32>} : memref<38x24x8xbf16, #tpu.memory_space<vmem>>, vector<16x16x8xbf16>,
    %c0_88 = arith.constant 0 : index
    %c0_89 = arith.constant 0 : index
    %c0_90 = arith.constant 0 : index
    %84 = vector.load %arg10[%c0_88, %c0_89, %c0_90] : memref<38x24x8xbf16, #tpu.memory_space<vmem>>, vector<38x24x8xbf16>
    %85 = vector.shape_cast %84 : vector<38x24x8xbf16> to vector<912x8xbf16>
    %86 = vector.extract_strided_slice %85 {offsets = [0, 0], sizes = [888, 8], strides = [1, 1]} : vector<912x8xbf16> to vector<888x8xbf16>
    %87 = vector.extract_strided_slice %85 {offsets = [1, 0], sizes = [888, 8], strides = [1, 1]} : vector<912x8xbf16> to vector<888x8xbf16>
    %88 = vector.extract_strided_slice %85 {offsets = [2, 0], sizes = [888, 8], strides = [1, 1]} : vector<912x8xbf16> to vector<888x8xbf16>
    %89 = vector.extract_strided_slice %86 {offsets = [0, 0], sizes = [840, 8], strides = [1, 1]} : vector<888x8xbf16> to vector<840x8xbf16>
    %c0_91 = arith.constant 0 : index
    %c0_92 = arith.constant 0 : index
    %c0_93 = arith.constant 0 : index
    %90 = vector.load %arg3[%c0_91, %c0_92, %c0_93] : memref<9x8x8xbf16, #tpu.memory_space<vmem>>, vector<1x8x8xbf16>
    %91 = vector.shape_cast %90 : vector<1x8x8xbf16> to vector<8x8xbf16>
    %cst_94 = arith.constant dense<0.000000e+00> : vector<840x8xf32>
    %92 = tpu.matmul %89, %91, %cst_94 {dimension_numbers = #tpu.dot_dimension_numbers<[1], [0], [0], [1], [0, 0, 1, 1], [], []>} : vector<840x8xbf16>, vector<8x8xbf16>, vector<840x8xf32> -> vector<840x8xf32>
    %93 = vector.extract_strided_slice %87 {offsets = [0, 0], sizes = [840, 8], strides = [1, 1]} : vector<888x8xbf16> to vector<840x8xbf16>
    %c1_95 = arith.constant 1 : index
    %c0_96 = arith.constant 0 : index
    %c0_97 = arith.constant 0 : index
    %94 = vector.load %arg3[%c1_95, %c0_96, %c0_97] : memref<9x8x8xbf16, #tpu.memory_space<vmem>>, vector<1x8x8xbf16>
    %95 = vector.shape_cast %94 : vector<1x8x8xbf16> to vector<8x8xbf16>
    %cst_98 = arith.constant dense<0.000000e+00> : vector<840x8xf32>
    %96 = tpu.matmul %93, %95, %cst_98 {dimension_numbers = #tpu.dot_dimension_numbers<[1], [0], [0], [1], [0, 0, 1, 1], [], []>} : vector<840x8xbf16>, vector<8x8xbf16>, vector<840x8xf32> -> vector<840x8xf32>
    %97 = arith.addf %92, %96 : vector<840x8xf32>
    %98 = vector.extract_strided_slice %88 {offsets = [0, 0], sizes = [840, 8], strides = [1, 1]} : vector<888x8xbf16> to vector<840x8xbf16>
    %c2_99 = arith.constant 2 : index
    %c0_100 = arith.constant 0 : index
    %c0_101 = arith.constant 0 : index
    %99 = vector.load %arg3[%c2_99, %c0_100, %c0_101] : memref<9x8x8xbf16, #tpu.memory_space<vmem>>, vector<1x8x8xbf16>
    %100 = vector.shape_cast %99 : vector<1x8x8xbf16> to vector<8x8xbf16>
    %cst_102 = arith.constant dense<0.000000e+00> : vector<840x8xf32>
    %101 = tpu.matmul %98, %100, %cst_102 {dimension_numbers = #tpu.dot_dimension_numbers<[1], [0], [0], [1], [0, 0, 1, 1], [], []>} : vector<840x8xbf16>, vector<8x8xbf16>, vector<840x8xf32> -> vector<840x8xf32>
    %102 = arith.addf %97, %101 : vector<840x8xf32>
    %103 = vector.extract_strided_slice %86 {offsets = [24, 0], sizes = [840, 8], strides = [1, 1]} : vector<888x8xbf16> to vector<840x8xbf16>
    %c3_103 = arith.constant 3 : index
    %c0_104 = arith.constant 0 : index
    %c0_105 = arith.constant 0 : index
    %104 = vector.load %arg3[%c3_103, %c0_104, %c0_105] : memref<9x8x8xbf16, #tpu.memory_space<vmem>>, vector<1x8x8xbf16>
    %105 = vector.shape_cast %104 : vector<1x8x8xbf16> to vector<8x8xbf16>
    %cst_106 = arith.constant dense<0.000000e+00> : vector<840x8xf32>
    %106 = tpu.matmul %103, %105, %cst_106 {dimension_numbers = #tpu.dot_dimension_numbers<[1], [0], [0], [1], [0, 0, 1, 1], [], []>} : vector<840x8xbf16>, vector<8x8xbf16>, vector<840x8xf32> -> vector<840x8xf32>
    %107 = arith.addf %102, %106 : vector<840x8xf32>
    %108 = vector.extract_strided_slice %87 {offsets = [24, 0], sizes = [840, 8], strides = [1, 1]} : vector<888x8xbf16> to vector<840x8xbf16>
    %c4_107 = arith.constant 4 : index
    %c0_108 = arith.constant 0 : index
    %c0_109 = arith.constant 0 : index
    %109 = vector.load %arg3[%c4_107, %c0_108, %c0_109] : memref<9x8x8xbf16, #tpu.memory_space<vmem>>, vector<1x8x8xbf16>
    %110 = vector.shape_cast %109 : vector<1x8x8xbf16> to vector<8x8xbf16>
    %cst_110 = arith.constant dense<0.000000e+00> : vector<840x8xf32>
    %111 = tpu.matmul %108, %110, %cst_110 {dimension_numbers = #tpu.dot_dimension_numbers<[1], [0], [0], [1], [0, 0, 1, 1], [], []>} : vector<840x8xbf16>, vector<8x8xbf16>, vector<840x8xf32> -> vector<840x8xf32>
    %112 = arith.addf %107, %111 : vector<840x8xf32>
    %113 = vector.extract_strided_slice %88 {offsets = [24, 0], sizes = [840, 8], strides = [1, 1]} : vector<888x8xbf16> to vector<840x8xbf16>
    %c5_111 = arith.constant 5 : index
    %c0_112 = arith.constant 0 : index
    %c0_113 = arith.constant 0 : index
    %114 = vector.load %arg3[%c5_111, %c0_112, %c0_113] : memref<9x8x8xbf16, #tpu.memory_space<vmem>>, vector<1x8x8xbf16>
    %115 = vector.shape_cast %114 : vector<1x8x8xbf16> to vector<8x8xbf16>
    %cst_114 = arith.constant dense<0.000000e+00> : vector<840x8xf32>
    %116 = tpu.matmul %113, %115, %cst_114 {dimension_numbers = #tpu.dot_dimension_numbers<[1], [0], [0], [1], [0, 0, 1, 1], [], []>} : vector<840x8xbf16>, vector<8x8xbf16>, vector<840x8xf32> -> vector<840x8xf32>
    %117 = arith.addf %112, %116 : vector<840x8xf32>
    %118 = vector.extract_strided_slice %86 {offsets = [48, 0], sizes = [840, 8], strides = [1, 1]} : vector<888x8xbf16> to vector<840x8xbf16>
    %c6_115 = arith.constant 6 : index
    %c0_116 = arith.constant 0 : index
    %c0_117 = arith.constant 0 : index
    %119 = vector.load %arg3[%c6_115, %c0_116, %c0_117] : memref<9x8x8xbf16, #tpu.memory_space<vmem>>, vector<1x8x8xbf16>
    %120 = vector.shape_cast %119 : vector<1x8x8xbf16> to vector<8x8xbf16>
    %cst_118 = arith.constant dense<0.000000e+00> : vector<840x8xf32>
    %121 = tpu.matmul %118, %120, %cst_118 {dimension_numbers = #tpu.dot_dimension_numbers<[1], [0], [0], [1], [0, 0, 1, 1], [], []>} : vector<840x8xbf16>, vector<8x8xbf16>, vector<840x8xf32> -> vector<840x8xf32>
    %122 = arith.addf %117, %121 : vector<840x8xf32>
    %123 = vector.extract_strided_slice %87 {offsets = [48, 0], sizes = [840, 8], strides = [1, 1]} : vector<888x8xbf16> to vector<840x8xbf16>
    %c7_119 = arith.constant 7 : index
    %c0_120 = arith.constant 0 : index
    %c0_121 = arith.constant 0 : index
    %124 = vector.load %arg3[%c7_119, %c0_120, %c0_121] : memref<9x8x8xbf16, #tpu.memory_space<vmem>>, vector<1x8x8xbf16>
    %125 = vector.shape_cast %124 : vector<1x8x8xbf16> to vector<8x8xbf16>
    %cst_122 = arith.constant dense<0.000000e+00> : vector<840x8xf32>
    %126 = tpu.matmul %123, %125, %cst_122 {dimension_numbers = #tpu.dot_dimension_numbers<[1], [0], [0], [1], [0, 0, 1, 1], [], []>} : vector<840x8xbf16>, vector<8x8xbf16>, vector<840x8xf32> -> vector<840x8xf32>
    %127 = arith.addf %122, %126 : vector<840x8xf32>
    %128 = vector.extract_strided_slice %88 {offsets = [48, 0], sizes = [840, 8], strides = [1, 1]} : vector<888x8xbf16> to vector<840x8xbf16>
    %c8_123 = arith.constant 8 : index
    %c0_124 = arith.constant 0 : index
    %c0_125 = arith.constant 0 : index
    %129 = vector.load %arg3[%c8_123, %c0_124, %c0_125] : memref<9x8x8xbf16, #tpu.memory_space<vmem>>, vector<1x8x8xbf16>
    %130 = vector.shape_cast %129 : vector<1x8x8xbf16> to vector<8x8xbf16>
    %cst_126 = arith.constant dense<0.000000e+00> : vector<840x8xf32>
    %131 = tpu.matmul %128, %130, %cst_126 {dimension_numbers = #tpu.dot_dimension_numbers<[1], [0], [0], [1], [0, 0, 1, 1], [], []>} : vector<840x8xbf16>, vector<8x8xbf16>, vector<840x8xf32> -> vector<840x8xf32>
    %132 = arith.addf %127, %131 : vector<840x8xf32>
    %c0_127 = arith.constant 0 : index
    %c0_128 = arith.constant 0 : index
    %133 = vector.load %arg6[%c0_127, %c0_128] : memref<1x8xf32, #tpu.memory_space<vmem>>, vector<1x8xf32>
    %134 = vector.broadcast %133 : vector<1x8xf32> to vector<840x8xf32>
    %135 = arith.mulf %132, %134 : vector<840x8xf32>
    %c0_129 = arith.constant 0 : index
    %c0_130 = arith.constant 0 : index
    %136 = vector.load %arg7[%c0_129, %c0_130] : memref<1x8xf32, #tpu.memory_space<vmem>>, vector<1x8xf32>
    %137 = vector.broadcast %136 : vector<1x8xf32> to vector<840x8xf32>
    %138 = arith.addf %135, %137 : vector<840x8xf32>
    %139 = vector.shape_cast %138 : vector<840x8xf32> to vector<35x24x8xf32>
    %140 = vector.extract_strided_slice %139 {offsets = [0, 0, 0], sizes = [16, 16, 8], strides = [1, 1, 1]} : vector<35x24x8xf32> to vector<16x16x8xf32>
    %141 = arith.extf %3 : vector<16x16x8xbf16> to vector<16x16x8xf32>
    %142 = arith.addf %140, %141 : vector<16x16x8xf32>
    %cst_131 = arith.constant 0.000000e+00 : f32
    %143 = vector.broadcast %cst_131 : f32 to vector<16x16x8xf32>
    %144 = arith.maximumf %142, %143 : vector<16x16x8xf32>
    %145 = arith.truncf %144 : vector<16x16x8xf32> to vector<16x16x8xbf16>
    %146 = vector.shape_cast %145 : vector<16x16x8xbf16> to vector<16x128xbf16>
    %c0_132 = arith.constant 0 : index
    %c0_133 = arith.constant 0 : index
    %c0_134 = arith.constant 0 : index
    %147 = vector.load %arg8[%c0_132, %c0_133, %c0_134] : memref<2x16x128xbf16, #tpu.memory_space<vmem>>, vector<1x16x128xbf16>
    %148 = vector.shape_cast %147 : vector<1x16x128xbf16> to vector<16x128xbf16>
    %149 = vector.shape_cast %146 : vector<16x128xbf16> to vector<1x16x128xbf16>
    tpu.vector_store %arg8[%c0_132, %c0_133, %c0_134], %149 {strides = array<i32>} : memref<2x16x128xbf16, #tpu.memory_space<vmem>>, vector<1x16x128xbf16>,
    %150 = vector.extract_strided_slice %139 {offsets = [19, 0, 0], sizes = [16, 16, 8], strides = [1, 1, 1]} : vector<35x24x8xf32> to vector<16x16x8xf32>
    %151 = arith.extf %5 : vector<16x16x8xbf16> to vector<16x16x8xf32>
    %152 = arith.addf %150, %151 : vector<16x16x8xf32>
    %cst_135 = arith.constant 0.000000e+00 : f32
    %153 = vector.broadcast %cst_135 : f32 to vector<16x16x8xf32>
    %154 = arith.maximumf %152, %153 : vector<16x16x8xf32>
    %155 = arith.truncf %154 : vector<16x16x8xf32> to vector<16x16x8xbf16>
    %156 = vector.shape_cast %155 : vector<16x16x8xbf16> to vector<16x128xbf16>
    %c1_136 = arith.constant 1 : index
    %c0_137 = arith.constant 0 : index
    %c0_138 = arith.constant 0 : index
    %157 = vector.load %arg8[%c1_136, %c0_137, %c0_138] : memref<2x16x128xbf16, #tpu.memory_space<vmem>>, vector<1x16x128xbf16>
    %158 = vector.shape_cast %157 : vector<1x16x128xbf16> to vector<16x128xbf16>
    %159 = vector.shape_cast %156 : vector<16x128xbf16> to vector<1x16x128xbf16>
    tpu.vector_store %arg8[%c1_136, %c0_137, %c0_138], %159 {strides = array<i32>} : memref<2x16x128xbf16, #tpu.memory_space<vmem>>, vector<1x16x128xbf16>,
    return
  }
  func.func @transform_0(%arg0: i32) -> (i32, i32, i32, i32) {
    %c0_i32 = arith.constant 0 : i32
    %c0_i32_0 = arith.constant 0 : i32
    %c0_i32_1 = arith.constant 0 : i32
    %c0_i32_2 = arith.constant 0 : i32
    return %arg0, %c0_i32, %c0_i32_0, %c0_i32_1 : i32, i32, i32, i32
  }
  func.func @transform_1(%arg0: i32) -> (i32, i32, i32) {
    %c0_i32 = arith.constant 0 : i32
    %c0_i32_0 = arith.constant 0 : i32
    %c0_i32_1 = arith.constant 0 : i32
    %c0_i32_2 = arith.constant 0 : i32
    return %c0_i32, %c0_i32_0, %c0_i32_1 : i32, i32, i32
  }
  func.func @transform_2(%arg0: i32) -> (i32, i32, i32) {
    %c0_i32 = arith.constant 0 : i32
    %c0_i32_0 = arith.constant 0 : i32
    %c0_i32_1 = arith.constant 0 : i32
    %c0_i32_2 = arith.constant 0 : i32
    return %c0_i32, %c0_i32_0, %c0_i32_1 : i32, i32, i32
  }
  func.func @transform_3(%arg0: i32) -> (i32, i32) {
    %c0_i32 = arith.constant 0 : i32
    %c0_i32_0 = arith.constant 0 : i32
    %c0_i32_1 = arith.constant 0 : i32
    return %c0_i32, %c0_i32_0 : i32, i32
  }
  func.func @transform_4(%arg0: i32) -> (i32, i32) {
    %c0_i32 = arith.constant 0 : i32
    %c0_i32_0 = arith.constant 0 : i32
    %c0_i32_1 = arith.constant 0 : i32
    return %c0_i32, %c0_i32_0 : i32, i32
  }
  func.func @transform_5(%arg0: i32) -> (i32, i32) {
    %c0_i32 = arith.constant 0 : i32
    %c0_i32_0 = arith.constant 0 : i32
    %c0_i32_1 = arith.constant 0 : i32
    return %c0_i32, %c0_i32_0 : i32, i32
  }
  func.func @transform_6(%arg0: i32) -> (i32, i32) {
    %c0_i32 = arith.constant 0 : i32
    %c0_i32_0 = arith.constant 0 : i32
    %c0_i32_1 = arith.constant 0 : i32
    return %c0_i32, %c0_i32_0 : i32, i32
  }
  func.func @transform_7(%arg0: i32) -> (i32, i32, i32) {
    %c0_i32 = arith.constant 0 : i32
    %c0_i32_0 = arith.constant 0 : i32
    %c0_i32_1 = arith.constant 0 : i32
    return %arg0, %c0_i32, %c0_i32_0 : i32, i32, i32
  }
}

</mosaic_0001>

<llo_original>
// kernel: tpu_custom_call.1
$region0: #{tpu_custom_call.1}
  #allocation0 [shape = 'u32[]', space=smem, size = 0x4, offset = 0x4, fixed_abs, tag = 'smem constant byte address 0x4 - core index']
  #allocation1 [shape = 'u32[72,128]{1,0:T(1,128)}', space=vmem, size = 0x9000, scoped, tag = 'internal scratch']
  #allocation2 [shape = 'bf16[38,24,8]{2,1,0:T(8,128)(2,1)}', space=vmem, size = 0x39000, scoped, tag = 'scratch operand']
  #allocation3 [shape = 'bf16[38,24,8]{2,1,0:T(8,128)(2,1)}', space=vmem, size = 0x39000, scoped, tag = 'scratch operand']
  %s0 = inlined_call_operand.vmem [shape: bf16[2,16,16,8], index: 0, kind: input, shape index: {}]
  %s1 = inlined_call_operand.vmem [shape: bf16[9,8,8], index: 1, kind: input, shape index: {}]
  %s2 = inlined_call_operand.vmem [shape: bf16[9,8,8], index: 2, kind: input, shape index: {}]
  %s3 = inlined_call_operand.vmem [shape: f32[1,8], index: 3, kind: input, shape index: {}]
  %s4 = inlined_call_operand.vmem [shape: f32[1,8], index: 4, kind: input, shape index: {}]
  %s5 = inlined_call_operand.vmem [shape: f32[1,8], index: 5, kind: input, shape index: {}]
  %s6 = inlined_call_operand.vmem [shape: f32[1,8], index: 6, kind: input, shape index: {}]
  %s7 = inlined_call_operand.hbm [shape: bf16[2,16,128], index: 7, kind: output, shape index: {}]
  %s8 = sld [smem:[#allocation0]]
  $region38: #{tpu_custom_call.1} parent=0
    _
  %s10 = ssub.s32 1, %s8
  %s11 = scalar_select 0, %s10, %s8
  $region1: #{tpu_custom_call.1} parent=0
    #allocation4 [shape = 'u8[8192]{0}', space=vmem, size = 0x2000, scoped, tag = 'output window, operand 0, single buffered']
    #allocation5 [shape = 's32[1]{0}', space=sflag, size = 0x4, scoped, tag = 'scoped memory for tpu_custom_call.1']
    %12 = vsyncpa [#allocation5], 0
    // Predicated region
    $region2: #{tpu_custom_call.1} parent=1 // pred_check
      _
    $region3: #{tpu_custom_call.1} parent=1 // pred_check_branch
      %14 = sbr.rel (0) target = $region5
    $region4: #{tpu_custom_call.1} parent=1 // pred_region
      _
    $region5: #{tpu_custom_call.1} parent=1 // pred_fallthru
      _
    // Predicated region
    $region6: #{tpu_custom_call.1} parent=1 // pred_check
      _
    $region7: #{tpu_custom_call.1} parent=1 // pred_check_branch
      %16 = sbr.rel (0) target = $region9
    $region8: #{tpu_custom_call.1} parent=1 // pred_region
      _
    $region9: #{tpu_custom_call.1} parent=1 // pred_fallthru
      _
    // Predicated region
    $region10: #{tpu_custom_call.1} parent=1 // pred_check
      _
    $region11: #{tpu_custom_call.1} parent=1 // pred_check_branch
      %18 = sbr.rel (0) target = $region13
    $region12: #{tpu_custom_call.1} parent=1 // pred_region
      _
    $region13: #{tpu_custom_call.1} parent=1 // pred_fallthru
      _
    // Predicated region
    $region14: #{tpu_custom_call.1} parent=1 // pred_check
      _
    $region15: #{tpu_custom_call.1} parent=1 // pred_check_branch
      %20 = sbr.rel (0) target = $region17
    $region16: #{tpu_custom_call.1} parent=1 // pred_region
      _
    $region17: #{tpu_custom_call.1} parent=1 // pred_fallthru
      _
    // Predicated region
    $region18: #{tpu_custom_call.1} parent=1 // pred_check
      _
    $region19: #{tpu_custom_call.1} parent=1 // pred_check_branch
      %22 = sbr.rel (0) target = $region21
    $region20: #{tpu_custom_call.1} parent=1 // pred_region
      _
    $region21: #{tpu_custom_call.1} parent=1 // pred_fallthru
      _
    // Predicated region
    $region22: #{tpu_custom_call.1} parent=1 // pred_check
      _
    $region23: #{tpu_custom_call.1} parent=1 // pred_check_branch
      %24 = sbr.rel (0) target = $region25
    $region24: #{tpu_custom_call.1} parent=1 // pred_region
      _
    $region25: #{tpu_custom_call.1} parent=1 // pred_fallthru
      _
    // Predicated region
    $region26: #{tpu_custom_call.1} parent=1 // pred_check
      _
    $region27: #{tpu_custom_call.1} parent=1 // pred_check_branch
      %26 = sbr.rel (0) target = $region29
    $region28: #{tpu_custom_call.1} parent=1 // pred_region
      _
    $region29: #{tpu_custom_call.1} parent=1 // pred_fallthru
      _
    %v28 = vld [vmem:[%s0] sm:$0xf]
    %v29 = vld [vmem:[%s0 + $0x4] sm:$0xf]
    %v30 = vld [vmem:[%s0 + $0x8] sm:$0xf]
    %v31 = vld [vmem:[%s0 + $0xc] sm:$0xf]
    %v32 = vld [vmem:[%s0 + $0x10] sm:$0xf]
    %v33 = vld [vmem:[%s0 + $0x14] sm:$0xf]
    %v34 = vld [vmem:[%s0 + $0x18] sm:$0xf]
    %v35 = vld [vmem:[%s0 + $0x1c] sm:$0xf]
    %v36 = vld [vmem:[%s0 + $0x20] sm:$0xf]
    %v37 = vld [vmem:[%s0 + $0x24] sm:$0xf]
    %v38 = vld [vmem:[%s0 + $0x28] sm:$0xf]
    %v39 = vld [vmem:[%s0 + $0x2c] sm:$0xf]
    %v40 = vld [vmem:[%s0 + $0x30] sm:$0xf]
    %v41 = vld [vmem:[%s0 + $0x34] sm:$0xf]
    %v42 = vld [vmem:[%s0 + $0x38] sm:$0xf]
    %v43 = vld [vmem:[%s0 + $0x3c] sm:$0xf]
    %v44 = vld [vmem:[%s0 + $0x40] sm:$0xf]
    %v45 = vld [vmem:[%s0 + $0x44] sm:$0xf]
    %v46 = vld [vmem:[%s0 + $0x48] sm:$0xf]
    %v47 = vld [vmem:[%s0 + $0x4c] sm:$0xf]
    %v48 = vld [vmem:[%s0 + $0x50] sm:$0xf]
    %v49 = vld [vmem:[%s0 + $0x54] sm:$0xf]
    %v50 = vld [vmem:[%s0 + $0x58] sm:$0xf]
    %v51 = vld [vmem:[%s0 + $0x5c] sm:$0xf]
    %v52 = vld [vmem:[%s0 + $0x60] sm:$0xf]
    %v53 = vld [vmem:[%s0 + $0x64] sm:$0xf]
    %v54 = vld [vmem:[%s0 + $0x68] sm:$0xf]
    %v55 = vld [vmem:[%s0 + $0x6c] sm:$0xf]
    %v56 = vld [vmem:[%s0 + $0x70] sm:$0xf]
    %v57 = vld [vmem:[%s0 + $0x74] sm:$0xf]
    %v58 = vld [vmem:[%s0 + $0x78] sm:$0xf]
    %v59 = vld [vmem:[%s0 + $0x7c] sm:$0xf]
    %s60 = scalar_lea.vmem %s0, 128
    %v61 = vld [vmem:[%s60] sm:$0xf]
    %v62 = vld [vmem:[%s60 + $0x4] sm:$0xf]
    %v63 = vld [vmem:[%s60 + $0x8] sm:$0xf]
    %v64 = vld [vmem:[%s60 + $0xc] sm:$0xf]
    %v65 = vld [vmem:[%s60 + $0x10] sm:$0xf]
    %v66 = vld [vmem:[%s60 + $0x14] sm:$0xf]
    %v67 = vld [vmem:[%s60 + $0x18] sm:$0xf]
    %v68 = vld [vmem:[%s60 + $0x1c] sm:$0xf]
    %v69 = vld [vmem:[%s60 + $0x20] sm:$0xf]
    %v70 = vld [vmem:[%s60 + $0x24] sm:$0xf]
    %v71 = vld [vmem:[%s60 + $0x28] sm:$0xf]
    %v72 = vld [vmem:[%s60 + $0x2c] sm:$0xf]
    %v73 = vld [vmem:[%s60 + $0x30] sm:$0xf]
    %v74 = vld [vmem:[%s60 + $0x34] sm:$0xf]
    %v75 = vld [vmem:[%s60 + $0x38] sm:$0xf]
    %v76 = vld [vmem:[%s60 + $0x3c] sm:$0xf]
    %v77 = vld [vmem:[%s60 + $0x40] sm:$0xf]
    %v78 = vld [vmem:[%s60 + $0x44] sm:$0xf]
    %v79 = vld [vmem:[%s60 + $0x48] sm:$0xf]
    %v80 = vld [vmem:[%s60 + $0x4c] sm:$0xf]
    %v81 = vld [vmem:[%s60 + $0x50] sm:$0xf]
    %v82 = vld [vmem:[%s60 + $0x54] sm:$0xf]
    %v83 = vld [vmem:[%s60 + $0x58] sm:$0xf]
    %v84 = vld [vmem:[%s60 + $0x5c] sm:$0xf]
    %v85 = vld [vmem:[%s60 + $0x60] sm:$0xf]
    %v86 = vld [vmem:[%s60 + $0x64] sm:$0xf]
    %v87 = vld [vmem:[%s60 + $0x68] sm:$0xf]
    %v88 = vld [vmem:[%s60 + $0x6c] sm:$0xf]
    %v89 = vld [vmem:[%s60 + $0x70] sm:$0xf]
    %v90 = vld [vmem:[%s60 + $0x74] sm:$0xf]
    %v91 = vld [vmem:[%s60 + $0x78] sm:$0xf]
    %v92 = vld [vmem:[%s60 + $0x7c] sm:$0xf]
    %vm93 = vcmask 57344
    %vm94 = vsmask.f32 256
    %vm95 = vmand %vm93, %vm94
    %v96 = vld [vmem:[#allocation2] sm:$0x1]
    %v97 = vsel %vm95, 0, %v96
    %98 = vst [vmem:[#allocation2] sm:$0x1] %v97
    %v99 = vld [vmem:[#allocation2 + $0xc] sm:$0x1]
    %v100 = vsel %vm95, 0, %v99
    %101 = vst [vmem:[#allocation2 + $0xc] sm:$0x1] %v100
    %v102 = vld [vmem:[#allocation2 + $0x18] sm:$0x1]
    %v103 = vsel %vm95, 0, %v102
    %104 = vst [vmem:[#allocation2 + $0x18] sm:$0x1] %v103
    %v105 = vld [vmem:[#allocation2 + $0x24] sm:$0x1]
    %v106 = vsel %vm95, 0, %v105
    %107 = vst [vmem:[#allocation2 + $0x24] sm:$0x1] %v106
    %v108 = vld [vmem:[#allocation2 + $0x30] sm:$0x1]
    %v109 = vsel %vm95, 0, %v108
    %110 = vst [vmem:[#allocation2 + $0x30] sm:$0x1] %v109
    %v111 = vld [vmem:[#allocation2 + $0x3c] sm:$0x1]
    %v112 = vsel %vm95, 0, %v111
    %113 = vst [vmem:[#allocation2 + $0x3c] sm:$0x1] %v112
    %v114 = vld [vmem:[#allocation2 + $0x48] sm:$0x1]
    %v115 = vsel %vm95, 0, %v114
    %116 = vst [vmem:[#allocation2 + $0x48] sm:$0x1] %v115
    %v117 = vld [vmem:[#allocation2 + $0x54] sm:$0x1]
    %v118 = vsel %vm95, 0, %v117
    %119 = vst [vmem:[#allocation2 + $0x54] sm:$0x1] %v118
    %v120 = vld [vmem:[#allocation2 + $0x60] sm:$0x1]
    %v121 = vsel %vm95, 0, %v120
    %122 = vst [vmem:[#allocation2 + $0x60] sm:$0x1] %v121
    %v123 = vld [vmem:[#allocation2 + $0x6c] sm:$0x1]
    %v124 = vsel %vm95, 0, %v123
    %125 = vst [vmem:[#allocation2 + $0x6c] sm:$0x1] %v124
    %v126 = vld [vmem:[#allocation2 + $0x78] sm:$0x1]
    %v127 = vsel %vm95, 0, %v126
    %128 = vst [vmem:[#allocation2 + $0x78] sm:$0x1] %v127
    %v129 = vld [vmem:[#allocation2 + $0x84] sm:$0x1]
    %v130 = vsel %vm95, 0, %v129
    %131 = vst [vmem:[#allocation2 + $0x84] sm:$0x1] %v130
    %v132 = vld [vmem:[#allocation2 + $0x90] sm:$0x1]
    %v133 = vsel %vm95, 0, %v132
    %134 = vst [vmem:[#allocation2 + $0x90] sm:$0x1] %v133
    %v135 = vld [vmem:[#allocation2 + $0x9c] sm:$0x1]
    %v136 = vsel %vm95, 0, %v135
    %137 = vst [vmem:[#allocation2 + $0x9c] sm:$0x1] %v136
    %v138 = vld [vmem:[#allocation2 + $0xa8] sm:$0x1]
    %v139 = vsel %vm95, 0, %v138
    %140 = vst [vmem:[#allocation2 + $0xa8] sm:$0x1] %v139
    %v141 = vld [vmem:[#allocation2 + $0xb4] sm:$0x1]
    %v142 = vsel %vm95, 0, %v141
    %143 = vst [vmem:[#allocation2 + $0xb4] sm:$0x1] %v142
    %v144 = vld [vmem:[#allocation2 + $0xc0] sm:$0x1]
    %v145 = vsel %vm95, 0, %v144
    %146 = vst [vmem:[#allocation2 + $0xc0] sm:$0x1] %v145
    %v147 = vld [vmem:[#allocation2 + $0xcc] sm:$0x1]
    %v148 = vsel %vm95, 0, %v147
    %149 = vst [vmem:[#allocation2 + $0xcc] sm:$0x1] %v148
    %v150 = vld [vmem:[#allocation2 + $0xd8] sm:$0x1]
    %v151 = vsel %vm95, 0, %v150
    %152 = vst [vmem:[#allocation2 + $0xd8] sm:$0x1] %v151
    %v153 = vld [vmem:[#allocation2 + $0xe4] sm:$0x1]
    %v154 = vsel %vm95, 0, %v153
    %155 = vst [vmem:[#allocation2 + $0xe4] sm:$0x1] %v154
    %v156 = vld [vmem:[#allocation2 + $0xf0] sm:$0x1]
    %v157 = vsel %vm95, 0, %v156
    %158 = vst [vmem:[#allocation2 + $0xf0] sm:$0x1] %v157
    %v159 = vld [vmem:[#allocation2 + $0xfc] sm:$0x1]
    %v160 = vsel %vm95, 0, %v159
    %161 = vst [vmem:[#allocation2 + $0xfc] sm:$0x1] %v160
    %v162 = vld [vmem:[#allocation2 + $0x108] sm:$0x1]
    %v163 = vsel %vm95, 0, %v162
    %164 = vst [vmem:[#allocation2 + $0x108] sm:$0x1] %v163
    %v165 = vld [vmem:[#allocation2 + $0x114] sm:$0x1]
    %v166 = vsel %vm95, 0, %v165
    %167 = vst [vmem:[#allocation2 + $0x114] sm:$0x1] %v166
    %v168 = vld [vmem:[#allocation2 + $0x120] sm:$0x1]
    %v169 = vsel %vm95, 0, %v168
    %170 = vst [vmem:[#allocation2 + $0x120] sm:$0x1] %v169
    %v171 = vld [vmem:[#allocation2 + $0x12c] sm:$0x1]
    %v172 = vsel %vm95, 0, %v171
    %173 = vst [vmem:[#allocation2 + $0x12c] sm:$0x1] %v172
    %v174 = vld [vmem:[#allocation2 + $0x138] sm:$0x1]
    %v175 = vsel %vm95, 0, %v174
    %176 = vst [vmem:[#allocation2 + $0x138] sm:$0x1] %v175
    %v177 = vld [vmem:[#allocation2 + $0x144] sm:$0x1]
    %v178 = vsel %vm95, 0, %v177
    %179 = vst [vmem:[#allocation2 + $0x144] sm:$0x1] %v178
    %v180 = vld [vmem:[#allocation2 + $0x150] sm:$0x1]
    %v181 = vsel %vm95, 0, %v180
    %182 = vst [vmem:[#allocation2 + $0x150] sm:$0x1] %v181
    %v183 = vld [vmem:[#allocation2 + $0x15c] sm:$0x1]
    %v184 = vsel %vm95, 0, %v183
    %185 = vst [vmem:[#allocation2 + $0x15c] sm:$0x1] %v184
    %v186 = vld [vmem:[#allocation2 + $0x168] sm:$0x1]
    %v187 = vsel %vm95, 0, %v186
    %188 = vst [vmem:[#allocation2 + $0x168] sm:$0x1] %v187
    %v189 = vld [vmem:[#allocation2 + $0x174] sm:$0x1]
    %v190 = vsel %vm95, 0, %v189
    %191 = vst [vmem:[#allocation2 + $0x174] sm:$0x1] %v190
    %v192 = vld [vmem:[#allocation2 + $0x180] sm:$0x1]
    %v193 = vsel %vm95, 0, %v192
    %194 = vst [vmem:[#allocation2 + $0x180] sm:$0x1] %v193
    %v195 = vld [vmem:[#allocation2 + $0x18c] sm:$0x1]
    %v196 = vsel %vm95, 0, %v195
    %197 = vst [vmem:[#allocation2 + $0x18c] sm:$0x1] %v196
    %v198 = vld [vmem:[#allocation2 + $0x198] sm:$0x1]
    %v199 = vsel %vm95, 0, %v198
    %200 = vst [vmem:[#allocation2 + $0x198] sm:$0x1] %v199
    %v201 = vld [vmem:[#allocation2 + $0x1a4] sm:$0x1]
    %v202 = vsel %vm95, 0, %v201
    %203 = vst [vmem:[#allocation2 + $0x1a4] sm:$0x1] %v202
    %v204 = vld [vmem:[#allocation2 + $0x1b0] sm:$0x1]
    %v205 = vsel %vm95, 0, %v204
    %206 = vst [vmem:[#allocation2 + $0x1b0] sm:$0x1] %v205
    %v207 = vld [vmem:[#allocation2 + $0x1bc] sm:$0x1]
    %v208 = vsel %vm95, 0, %v207
    %209 = vst [vmem:[#allocation2 + $0x1bc] sm:$0x1] %v208
    %vm210 = vsmask.f32 7938
    %vm211 = vmand %vm93, %vm210
    %v212 = vld [vmem:[#allocation2 + $0x8] sm:$0x1]
    %v213 = vsel %vm211, 0, %v212
    %214 = vst [vmem:[#allocation2 + $0x8] sm:$0x1] %v213
    %v215 = vld [vmem:[#allocation2 + $0x14] sm:$0x1]
    %v216 = vsel %vm211, 0, %v215
    %217 = vst [vmem:[#allocation2 + $0x14] sm:$0x1] %v216
    %v218 = vld [vmem:[#allocation2 + $0x20] sm:$0x1]
    %v219 = vsel %vm211, 0, %v218
    %220 = vst [vmem:[#allocation2 + $0x20] sm:$0x1] %v219
    %v221 = vld [vmem:[#allocation2 + $0x2c] sm:$0x1]
    %v222 = vsel %vm211, 0, %v221
    %223 = vst [vmem:[#allocation2 + $0x2c] sm:$0x1] %v222
    %v224 = vld [vmem:[#allocation2 + $0x38] sm:$0x1]
    %v225 = vsel %vm211, 0, %v224
    %226 = vst [vmem:[#allocation2 + $0x38] sm:$0x1] %v225
    %v227 = vld [vmem:[#allocation2 + $0x44] sm:$0x1]
    %v228 = vsel %vm211, 0, %v227
    %229 = vst [vmem:[#allocation2 + $0x44] sm:$0x1] %v228
    %v230 = vld [vmem:[#allocation2 + $0x50] sm:$0x1]
    %v231 = vsel %vm211, 0, %v230
    %232 = vst [vmem:[#allocation2 + $0x50] sm:$0x1] %v231
    %v233 = vld [vmem:[#allocation2 + $0x5c] sm:$0x1]
    %v234 = vsel %vm211, 0, %v233
    %235 = vst [vmem:[#allocation2 + $0x5c] sm:$0x1] %v234
    %v236 = vld [vmem:[#allocation2 + $0x68] sm:$0x1]
    %v237 = vsel %vm211, 0, %v236
    %238 = vst [vmem:[#allocation2 + $0x68] sm:$0x1] %v237
    %v239 = vld [vmem:[#allocation2 + $0x74] sm:$0x1]
    %v240 = vsel %vm211, 0, %v239
    %241 = vst [vmem:[#allocation2 + $0x74] sm:$0x1] %v240
    %v242 = vld [vmem:[#allocation2 + $0x80] sm:$0x1]
    %v243 = vsel %vm211, 0, %v242
    %244 = vst [vmem:[#allocation2 + $0x80] sm:$0x1] %v243
    %v245 = vld [vmem:[#allocation2 + $0x8c] sm:$0x1]
    %v246 = vsel %vm211, 0, %v245
    %247 = vst [vmem:[#allocation2 + $0x8c] sm:$0x1] %v246
    %v248 = vld [vmem:[#allocation2 + $0x98] sm:$0x1]
    %v249 = vsel %vm211, 0, %v248
    %250 = vst [vmem:[#allocation2 + $0x98] sm:$0x1] %v249
    %v251 = vld [vmem:[#allocation2 + $0xa4] sm:$0x1]
    %v252 = vsel %vm211, 0, %v251
    %253 = vst [vmem:[#allocation2 + $0xa4] sm:$0x1] %v252
    %v254 = vld [vmem:[#allocation2 + $0xb0] sm:$0x1]
    %v255 = vsel %vm211, 0, %v254
    %256 = vst [vmem:[#allocation2 + $0xb0] sm:$0x1] %v255
    %v257 = vld [vmem:[#allocation2 + $0xbc] sm:$0x1]
    %v258 = vsel %vm211, 0, %v257
    %259 = vst [vmem:[#allocation2 + $0xbc] sm:$0x1] %v258
    %v260 = vld [vmem:[#allocation2 + $0xc8] sm:$0x1]
    %v261 = vsel %vm211, 0, %v260
    %262 = vst [vmem:[#allocation2 + $0xc8] sm:$0x1] %v261
    %v263 = vld [vmem:[#allocation2 + $0xd4] sm:$0x1]
    %v264 = vsel %vm211, 0, %v263
    %265 = vst [vmem:[#allocation2 + $0xd4] sm:$0x1] %v264
    %v266 = vld [vmem:[#allocation2 + $0xe0] sm:$0x1]
    %v267 = vsel %vm211, 0, %v266
    %268 = vst [vmem:[#allocation2 + $0xe0] sm:$0x1] %v267
    %v269 = vld [vmem:[#allocation2 + $0xec] sm:$0x1]
    %v270 = vsel %vm211, 0, %v269
    %271 = vst [vmem:[#allocation2 + $0xec] sm:$0x1] %v270
    %v272 = vld [vmem:[#allocation2 + $0xf8] sm:$0x1]
    %v273 = vsel %vm211, 0, %v272
    %274 = vst [vmem:[#allocation2 + $0xf8] sm:$0x1] %v273
    %v275 = vld [vmem:[#allocation2 + $0x104] sm:$0x1]
    %v276 = vsel %vm211, 0, %v275
    %277 = vst [vmem:[#allocation2 + $0x104] sm:$0x1] %v276
    %v278 = vld [vmem:[#allocation2 + $0x110] sm:$0x1]
    %v279 = vsel %vm211, 0, %v278
    %280 = vst [vmem:[#allocation2 + $0x110] sm:$0x1] %v279
    %v281 = vld [vmem:[#allocation2 + $0x11c] sm:$0x1]
    %v282 = vsel %vm211, 0, %v281
    %283 = vst [vmem:[#allocation2 + $0x11c] sm:$0x1] %v282
    %v284 = vld [vmem:[#allocation2 + $0x128] sm:$0x1]
    %v285 = vsel %vm211, 0, %v284
    %286 = vst [vmem:[#allocation2 + $0x128] sm:$0x1] %v285
    %v287 = vld [vmem:[#allocation2 + $0x134] sm:$0x1]
    %v288 = vsel %vm211, 0, %v287
    %289 = vst [vmem:[#allocation2 + $0x134] sm:$0x1] %v288
    %v290 = vld [vmem:[#allocation2 + $0x140] sm:$0x1]
    %v291 = vsel %vm211, 0, %v290
    %292 = vst [vmem:[#allocation2 + $0x140] sm:$0x1] %v291
    %v293 = vld [vmem:[#allocation2 + $0x14c] sm:$0x1]
    %v294 = vsel %vm211, 0, %v293
    %295 = vst [vmem:[#allocation2 + $0x14c] sm:$0x1] %v294
    %v296 = vld [vmem:[#allocation2 + $0x158] sm:$0x1]
    %v297 = vsel %vm211, 0, %v296
    %298 = vst [vmem:[#allocation2 + $0x158] sm:$0x1] %v297
    %v299 = vld [vmem:[#allocation2 + $0x164] sm:$0x1]
    %v300 = vsel %vm211, 0, %v299
    %301 = vst [vmem:[#allocation2 + $0x164] sm:$0x1] %v300
    %v302 = vld [vmem:[#allocation2 + $0x170] sm:$0x1]
    %v303 = vsel %vm211, 0, %v302
    %304 = vst [vmem:[#allocation2 + $0x170] sm:$0x1] %v303
    %v305 = vld [vmem:[#allocation2 + $0x17c] sm:$0x1]
    %v306 = vsel %vm211, 0, %v305
    %307 = vst [vmem:[#allocation2 + $0x17c] sm:$0x1] %v306
    %v308 = vld [vmem:[#allocation2 + $0x188] sm:$0x1]
    %v309 = vsel %vm211, 0, %v308
    %310 = vst [vmem:[#allocation2 + $0x188] sm:$0x1] %v309
    %v311 = vld [vmem:[#allocation2 + $0x194] sm:$0x1]
    %v312 = vsel %vm211, 0, %v311
    %313 = vst [vmem:[#allocation2 + $0x194] sm:$0x1] %v312
    %v314 = vld [vmem:[#allocation2 + $0x1a0] sm:$0x1]
    %v315 = vsel %vm211, 0, %v314
    %316 = vst [vmem:[#allocation2 + $0x1a0] sm:$0x1] %v315
    %v317 = vld [vmem:[#allocation2 + $0x1ac] sm:$0x1]
    %v318 = vsel %vm211, 0, %v317
    %319 = vst [vmem:[#allocation2 + $0x1ac] sm:$0x1] %v318
    %v320 = vld [vmem:[#allocation2 + $0x1b8] sm:$0x1]
    %v321 = vsel %vm211, 0, %v320
    %322 = vst [vmem:[#allocation2 + $0x1b8] sm:$0x1] %v321
    %v323 = vld [vmem:[#allocation2 + $0x1c4] sm:$0x1]
    %v324 = vsel %vm211, 0, %v323
    %325 = vst [vmem:[#allocation2 + $0x1c4] sm:$0x1] %v324
    %vm326 = vcmask 60416
    %327 = vst.msk [vmem:[#allocation2] sm:$0xf] %vm326, 0
    %328 = vst.msk [vmem:[#allocation2 + $0x4] sm:$0xf] %vm326, 0
    %329 = vst.msk [vmem:[#allocation2 + $0x8] sm:$0xf] %vm326, 0
    %s330 = scalar_lea.vmem [#allocation2], 204
    %331 = vst.msk [vmem:[%s330] sm:$0xf] %vm326, 0
    %332 = vst.msk [vmem:[%s330 + $0x4] sm:$0xf] %vm326, 0
    %333 = vst.msk [vmem:[%s330 + $0x8] sm:$0xf] %vm326, 0
    %vm334 = vsmask.f32 4368
    %vm335 = vmor %vm94, %vm334
    %v337 = vshrl.u32 %v28, 16
    %v339 = vrot.slane %v337, 7
    %v340 = vshll.u32 %v28, 16
    %v342 = vor.u32 %v339, %v340
    %v343 = vrot.slane %v339, 4
    %v345 = vshrl.u32 %v29, 16
    %v347 = vrot.slane %v345, 7
    %v348 = vshll.u32 %v29, 16
    %v350 = vor.u32 %v347, %v348
    %v351 = vsel %vm335, %v343, %v350
    %v352 = vrot.slane %v347, 4
    %v354 = vshrl.u32 %v30, 16
    %v356 = vrot.slane %v354, 7
    %v357 = vshll.u32 %v30, 16
    %v359 = vor.u32 %v356, %v357
    %v360 = vrot.slane %v356, 4
    %v362 = vshrl.u32 %v31, 16
    %v364 = vrot.slane %v362, 7
    %v365 = vshll.u32 %v31, 16
    %v367 = vor.u32 %v364, %v365
    %v368 = vsel %vm335, %v360, %v367
    %v369 = vrot.slane %v364, 4
    %v371 = vshrl.u32 %v32, 16
    %v373 = vrot.slane %v371, 7
    %v374 = vshll.u32 %v32, 16
    %v376 = vor.u32 %v373, %v374
    %v377 = vrot.slane %v373, 4
    %v379 = vshrl.u32 %v33, 16
    %v381 = vrot.slane %v379, 7
    %v382 = vshll.u32 %v33, 16
    %v384 = vor.u32 %v381, %v382
    %v385 = vsel %vm335, %v377, %v384
    %v386 = vrot.slane %v381, 4
    %v388 = vshrl.u32 %v34, 16
    %v390 = vrot.slane %v388, 7
    %v391 = vshll.u32 %v34, 16
    %v393 = vor.u32 %v390, %v391
    %v394 = vrot.slane %v390, 4
    %v396 = vshrl.u32 %v35, 16
    %v398 = vrot.slane %v396, 7
    %v399 = vshll.u32 %v35, 16
    %v401 = vor.u32 %v398, %v399
    %v402 = vsel %vm335, %v394, %v401
    %v403 = vrot.slane %v398, 4
    %v405 = vshrl.u32 %v36, 16
    %v407 = vrot.slane %v405, 7
    %v408 = vshll.u32 %v36, 16
    %v410 = vor.u32 %v407, %v408
    %v411 = vrot.slane %v407, 4
    %v413 = vshrl.u32 %v37, 16
    %v415 = vrot.slane %v413, 7
    %v416 = vshll.u32 %v37, 16
    %v418 = vor.u32 %v415, %v416
    %v419 = vsel %vm335, %v411, %v418
    %v420 = vrot.slane %v415, 4
    %v422 = vshrl.u32 %v38, 16
    %v424 = vrot.slane %v422, 7
    %v425 = vshll.u32 %v38, 16
    %v427 = vor.u32 %v424, %v425
    %v428 = vrot.slane %v424, 4
    %v430 = vshrl.u32 %v39, 16
    %v432 = vrot.slane %v430, 7
    %v433 = vshll.u32 %v39, 16
    %v435 = vor.u32 %v432, %v433
    %v436 = vsel %vm335, %v428, %v435
    %v437 = vrot.slane %v432, 4
    %v439 = vshrl.u32 %v40, 16
    %v441 = vrot.slane %v439, 7
    %v442 = vshll.u32 %v40, 16
    %v444 = vor.u32 %v441, %v442
    %v445 = vrot.slane %v441, 4
    %v447 = vshrl.u32 %v41, 16
    %v449 = vrot.slane %v447, 7
    %v450 = vshll.u32 %v41, 16
    %v452 = vor.u32 %v449, %v450
    %v453 = vsel %vm335, %v445, %v452
    %v454 = vrot.slane %v449, 4
    %v456 = vshrl.u32 %v42, 16
    %v458 = vrot.slane %v456, 7
    %v459 = vshll.u32 %v42, 16
    %v461 = vor.u32 %v458, %v459
    %v462 = vrot.slane %v458, 4
    %v464 = vshrl.u32 %v43, 16
    %v466 = vrot.slane %v464, 7
    %v467 = vshll.u32 %v43, 16
    %v469 = vor.u32 %v466, %v467
    %v470 = vsel %vm335, %v462, %v469
    %v471 = vrot.slane %v466, 4
    %v473 = vshrl.u32 %v44, 16
    %v475 = vrot.slane %v473, 7
    %v476 = vshll.u32 %v44, 16
    %v478 = vor.u32 %v475, %v476
    %v479 = vrot.slane %v475, 4
    %v481 = vshrl.u32 %v45, 16
    %v483 = vrot.slane %v481, 7
    %v484 = vshll.u32 %v45, 16
    %v486 = vor.u32 %v483, %v484
    %v487 = vsel %vm335, %v479, %v486
    %v488 = vrot.slane %v483, 4
    %v490 = vshrl.u32 %v46, 16
    %v492 = vrot.slane %v490, 7
    %v493 = vshll.u32 %v46, 16
    %v495 = vor.u32 %v492, %v493
    %v496 = vrot.slane %v492, 4
    %v498 = vshrl.u32 %v47, 16
    %v500 = vrot.slane %v498, 7
    %v501 = vshll.u32 %v47, 16
    %v503 = vor.u32 %v500, %v501
    %v504 = vsel %vm335, %v496, %v503
    %v505 = vrot.slane %v500, 4
    %v507 = vshrl.u32 %v48, 16
    %v509 = vrot.slane %v507, 7
    %v510 = vshll.u32 %v48, 16
    %v512 = vor.u32 %v509, %v510
    %v513 = vrot.slane %v509, 4
    %v515 = vshrl.u32 %v49, 16
    %v517 = vrot.slane %v515, 7
    %v518 = vshll.u32 %v49, 16
    %v520 = vor.u32 %v517, %v518
    %v521 = vsel %vm335, %v513, %v520
    %v522 = vrot.slane %v517, 4
    %v524 = vshrl.u32 %v50, 16
    %v526 = vrot.slane %v524, 7
    %v527 = vshll.u32 %v50, 16
    %v529 = vor.u32 %v526, %v527
    %v530 = vrot.slane %v526, 4
    %v532 = vshrl.u32 %v51, 16
    %v534 = vrot.slane %v532, 7
    %v535 = vshll.u32 %v51, 16
    %v537 = vor.u32 %v534, %v535
    %v538 = vsel %vm335, %v530, %v537
    %v539 = vrot.slane %v534, 4
    %v541 = vshrl.u32 %v52, 16
    %v543 = vrot.slane %v541, 7
    %v544 = vshll.u32 %v52, 16
    %v546 = vor.u32 %v543, %v544
    %v547 = vrot.slane %v543, 4
    %v549 = vshrl.u32 %v53, 16
    %v551 = vrot.slane %v549, 7
    %v552 = vshll.u32 %v53, 16
    %v554 = vor.u32 %v551, %v552
    %v555 = vsel %vm335, %v547, %v554
    %v556 = vrot.slane %v551, 4
    %v558 = vshrl.u32 %v54, 16
    %v560 = vrot.slane %v558, 7
    %v561 = vshll.u32 %v54, 16
    %v563 = vor.u32 %v560, %v561
    %v564 = vrot.slane %v560, 4
    %v566 = vshrl.u32 %v55, 16
    %v568 = vrot.slane %v566, 7
    %v569 = vshll.u32 %v55, 16
    %v571 = vor.u32 %v568, %v569
    %v572 = vsel %vm335, %v564, %v571
    %v573 = vrot.slane %v568, 4
    %v575 = vshrl.u32 %v56, 16
    %v577 = vrot.slane %v575, 7
    %v578 = vshll.u32 %v56, 16
    %v580 = vor.u32 %v577, %v578
    %v581 = vrot.slane %v577, 4
    %v583 = vshrl.u32 %v57, 16
    %v585 = vrot.slane %v583, 7
    %v586 = vshll.u32 %v57, 16
    %v588 = vor.u32 %v585, %v586
    %v589 = vsel %vm335, %v581, %v588
    %v590 = vrot.slane %v585, 4
    %v592 = vshrl.u32 %v58, 16
    %v594 = vrot.slane %v592, 7
    %v595 = vshll.u32 %v58, 16
    %v597 = vor.u32 %v594, %v595
    %v598 = vrot.slane %v594, 4
    %v600 = vshrl.u32 %v59, 16
    %v602 = vrot.slane %v600, 7
    %v603 = vshll.u32 %v59, 16
    %v605 = vor.u32 %v602, %v603
    %v606 = vsel %vm335, %v598, %v605
    %v607 = vrot.slane %v602, 4
    %s656 = scalar_lea.vmem [#allocation2], 12
    %vm657 = vcmask 60416
    %vm658 = vmand %vm657, %vm210
    %v659 = vld [vmem:[%s656] sm:$0xf]
    %v660 = vsel %vm658, %v342, %v659
    %661 = vst [vmem:[%s656] sm:$0xf] %v660
    %662 = vst.msk [vmem:[%s656 + $0x4] sm:$0xf] %vm326, %v351
    %v663 = vld [vmem:[%s656 + $0x8] sm:$0x1]
    %v664 = vsel %vm95, %v352, %v663
    %665 = vst [vmem:[%s656 + $0x8] sm:$0x1] %v664
    %v666 = vld [vmem:[%s656 + $0xc] sm:$0xf]
    %v667 = vsel %vm658, %v359, %v666
    %668 = vst [vmem:[%s656 + $0xc] sm:$0xf] %v667
    %669 = vst.msk [vmem:[%s656 + $0x10] sm:$0xf] %vm326, %v368
    %v670 = vld [vmem:[%s656 + $0x14] sm:$0x1]
    %v671 = vsel %vm95, %v369, %v670
    %672 = vst [vmem:[%s656 + $0x14] sm:$0x1] %v671
    %v673 = vld [vmem:[%s656 + $0x18] sm:$0xf]
    %v674 = vsel %vm658, %v376, %v673
    %675 = vst [vmem:[%s656 + $0x18] sm:$0xf] %v674
    %676 = vst.msk [vmem:[%s656 + $0x1c] sm:$0xf] %vm326, %v385
    %v677 = vld [vmem:[%s656 + $0x20] sm:$0x1]
    %v678 = vsel %vm95, %v386, %v677
    %679 = vst [vmem:[%s656 + $0x20] sm:$0x1] %v678
    %v680 = vld [vmem:[%s656 + $0x24] sm:$0xf]
    %v681 = vsel %vm658, %v393, %v680
    %682 = vst [vmem:[%s656 + $0x24] sm:$0xf] %v681
    %683 = vst.msk [vmem:[%s656 + $0x28] sm:$0xf] %vm326, %v402
    %v684 = vld [vmem:[%s656 + $0x2c] sm:$0x1]
    %v685 = vsel %vm95, %v403, %v684
    %686 = vst [vmem:[%s656 + $0x2c] sm:$0x1] %v685
    %v687 = vld [vmem:[%s656 + $0x30] sm:$0xf]
    %v688 = vsel %vm658, %v410, %v687
    %689 = vst [vmem:[%s656 + $0x30] sm:$0xf] %v688
    %690 = vst.msk [vmem:[%s656 + $0x34] sm:$0xf] %vm326, %v419
    %v691 = vld [vmem:[%s656 + $0x38] sm:$0x1]
    %v692 = vsel %vm95, %v420, %v691
    %693 = vst [vmem:[%s656 + $0x38] sm:$0x1] %v692
    %v694 = vld [vmem:[%s656 + $0x3c] sm:$0xf]
    %v695 = vsel %vm658, %v427, %v694
    %696 = vst [vmem:[%s656 + $0x3c] sm:$0xf] %v695
    %697 = vst.msk [vmem:[%s656 + $0x40] sm:$0xf] %vm326, %v436
    %v698 = vld [vmem:[%s656 + $0x44] sm:$0x1]
    %v699 = vsel %vm95, %v437, %v698
    %700 = vst [vmem:[%s656 + $0x44] sm:$0x1] %v699
    %v701 = vld [vmem:[%s656 + $0x48] sm:$0xf]
    %v702 = vsel %vm658, %v444, %v701
    %703 = vst [vmem:[%s656 + $0x48] sm:$0xf] %v702
    %704 = vst.msk [vmem:[%s656 + $0x4c] sm:$0xf] %vm326, %v453
    %v705 = vld [vmem:[%s656 + $0x50] sm:$0x1]
    %v706 = vsel %vm95, %v454, %v705
    %707 = vst [vmem:[%s656 + $0x50] sm:$0x1] %v706
    %v708 = vld [vmem:[%s656 + $0x54] sm:$0xf]
    %v709 = vsel %vm658, %v461, %v708
    %710 = vst [vmem:[%s656 + $0x54] sm:$0xf] %v709
    %711 = vst.msk [vmem:[%s656 + $0x58] sm:$0xf] %vm326, %v470
    %v712 = vld [vmem:[%s656 + $0x5c] sm:$0x1]
    %v713 = vsel %vm95, %v471, %v712
    %714 = vst [vmem:[%s656 + $0x5c] sm:$0x1] %v713
    %v715 = vld [vmem:[%s656 + $0x60] sm:$0xf]
    %v716 = vsel %vm658, %v478, %v715
    %717 = vst [vmem:[%s656 + $0x60] sm:$0xf] %v716
    %718 = vst.msk [vmem:[%s656 + $0x64] sm:$0xf] %vm326, %v487
    %v719 = vld [vmem:[%s656 + $0x68] sm:$0x1]
    %v720 = vsel %vm95, %v488, %v719
    %721 = vst [vmem:[%s656 + $0x68] sm:$0x1] %v720
    %v722 = vld [vmem:[%s656 + $0x6c] sm:$0xf]
    %v723 = vsel %vm658, %v495, %v722
    %724 = vst [vmem:[%s656 + $0x6c] sm:$0xf] %v723
    %725 = vst.msk [vmem:[%s656 + $0x70] sm:$0xf] %vm326, %v504
    %v726 = vld [vmem:[%s656 + $0x74] sm:$0x1]
    %v727 = vsel %vm95, %v505, %v726
    %728 = vst [vmem:[%s656 + $0x74] sm:$0x1] %v727
    %v729 = vld [vmem:[%s656 + $0x78] sm:$0xf]
    %v730 = vsel %vm658, %v512, %v729
    %731 = vst [vmem:[%s656 + $0x78] sm:$0xf] %v730
    %732 = vst.msk [vmem:[%s656 + $0x7c] sm:$0xf] %vm326, %v521
    %v733 = vld [vmem:[%s656 + $0x80] sm:$0x1]
    %v734 = vsel %vm95, %v522, %v733
    %735 = vst [vmem:[%s656 + $0x80] sm:$0x1] %v734
    %v736 = vld [vmem:[%s656 + $0x84] sm:$0xf]
    %v737 = vsel %vm658, %v529, %v736
    %738 = vst [vmem:[%s656 + $0x84] sm:$0xf] %v737
    %739 = vst.msk [vmem:[%s656 + $0x88] sm:$0xf] %vm326, %v538
    %v740 = vld [vmem:[%s656 + $0x8c] sm:$0x1]
    %v741 = vsel %vm95, %v539, %v740
    %742 = vst [vmem:[%s656 + $0x8c] sm:$0x1] %v741
    %v743 = vld [vmem:[%s656 + $0x90] sm:$0xf]
    %v744 = vsel %vm658, %v546, %v743
    %745 = vst [vmem:[%s656 + $0x90] sm:$0xf] %v744
    %746 = vst.msk [vmem:[%s656 + $0x94] sm:$0xf] %vm326, %v555
    %v747 = vld [vmem:[%s656 + $0x98] sm:$0x1]
    %v748 = vsel %vm95, %v556, %v747
    %749 = vst [vmem:[%s656 + $0x98] sm:$0x1] %v748
    %v750 = vld [vmem:[%s656 + $0x9c] sm:$0xf]
    %v751 = vsel %vm658, %v563, %v750
    %752 = vst [vmem:[%s656 + $0x9c] sm:$0xf] %v751
    %753 = vst.msk [vmem:[%s656 + $0xa0] sm:$0xf] %vm326, %v572
    %v754 = vld [vmem:[%s656 + $0xa4] sm:$0x1]
    %v755 = vsel %vm95, %v573, %v754
    %756 = vst [vmem:[%s656 + $0xa4] sm:$0x1] %v755
    %v757 = vld [vmem:[%s656 + $0xa8] sm:$0xf]
    %v758 = vsel %vm658, %v580, %v757
    %759 = vst [vmem:[%s656 + $0xa8] sm:$0xf] %v758
    %760 = vst.msk [vmem:[%s656 + $0xac] sm:$0xf] %vm326, %v589
    %v761 = vld [vmem:[%s656 + $0xb0] sm:$0x1]
    %v762 = vsel %vm95, %v590, %v761
    %763 = vst [vmem:[%s656 + $0xb0] sm:$0x1] %v762
    %v764 = vld [vmem:[%s656 + $0xb4] sm:$0xf]
    %v765 = vsel %vm658, %v597, %v764
    %766 = vst [vmem:[%s656 + $0xb4] sm:$0xf] %v765
    %767 = vst.msk [vmem:[%s656 + $0xb8] sm:$0xf] %vm326, %v606
    %v768 = vld [vmem:[%s656 + $0xbc] sm:$0x1]
    %v769 = vsel %vm95, %v607, %v768
    %770 = vst [vmem:[%s656 + $0xbc] sm:$0x1] %v769
    %s771 = scalar_lea.vmem [#allocation2], 228
    %772 = vst.msk [vmem:[%s771] sm:$0xf] %vm326, 0
    %773 = vst.msk [vmem:[%s771 + $0x4] sm:$0xf] %vm326, 0
    %774 = vst.msk [vmem:[%s771 + $0x8] sm:$0xf] %vm326, 0
    %s775 = scalar_lea.vmem [#allocation2], 432
    %776 = vst.msk [vmem:[%s775] sm:$0xf] %vm326, 0
    %777 = vst.msk [vmem:[%s775 + $0x4] sm:$0xf] %vm326, 0
    %778 = vst.msk [vmem:[%s775 + $0x8] sm:$0xf] %vm326, 0
    %v780 = vshrl.u32 %v61, 16
    %v782 = vrot.slane %v780, 7
    %v783 = vshll.u32 %v61, 16
    %v785 = vor.u32 %v782, %v783
    %v786 = vrot.slane %v782, 4
    %v788 = vshrl.u32 %v62, 16
    %v790 = vrot.slane %v788, 7
    %v791 = vshll.u32 %v62, 16
    %v793 = vor.u32 %v790, %v791
    %v794 = vsel %vm335, %v786, %v793
    %v795 = vrot.slane %v790, 4
    %v797 = vshrl.u32 %v63, 16
    %v799 = vrot.slane %v797, 7
    %v800 = vshll.u32 %v63, 16
    %v802 = vor.u32 %v799, %v800
    %v803 = vrot.slane %v799, 4
    %v805 = vshrl.u32 %v64, 16
    %v807 = vrot.slane %v805, 7
    %v808 = vshll.u32 %v64, 16
    %v810 = vor.u32 %v807, %v808
    %v811 = vsel %vm335, %v803, %v810
    %v812 = vrot.slane %v807, 4
    %v814 = vshrl.u32 %v65, 16
    %v816 = vrot.slane %v814, 7
    %v817 = vshll.u32 %v65, 16
    %v819 = vor.u32 %v816, %v817
    %v820 = vrot.slane %v816, 4
    %v822 = vshrl.u32 %v66, 16
    %v824 = vrot.slane %v822, 7
    %v825 = vshll.u32 %v66, 16
    %v827 = vor.u32 %v824, %v825
    %v828 = vsel %vm335, %v820, %v827
    %v829 = vrot.slane %v824, 4
    %v831 = vshrl.u32 %v67, 16
    %v833 = vrot.slane %v831, 7
    %v834 = vshll.u32 %v67, 16
    %v836 = vor.u32 %v833, %v834
    %v837 = vrot.slane %v833, 4
    %v839 = vshrl.u32 %v68, 16
    %v841 = vrot.slane %v839, 7
    %v842 = vshll.u32 %v68, 16
    %v844 = vor.u32 %v841, %v842
    %v845 = vsel %vm335, %v837, %v844
    %v846 = vrot.slane %v841, 4
    %v848 = vshrl.u32 %v69, 16
    %v850 = vrot.slane %v848, 7
    %v851 = vshll.u32 %v69, 16
    %v853 = vor.u32 %v850, %v851
    %v854 = vrot.slane %v850, 4
    %v856 = vshrl.u32 %v70, 16
    %v858 = vrot.slane %v856, 7
    %v859 = vshll.u32 %v70, 16
    %v861 = vor.u32 %v858, %v859
    %v862 = vsel %vm335, %v854, %v861
    %v863 = vrot.slane %v858, 4
    %v865 = vshrl.u32 %v71, 16
    %v867 = vrot.slane %v865, 7
    %v868 = vshll.u32 %v71, 16
    %v870 = vor.u32 %v867, %v868
    %v871 = vrot.slane %v867, 4
    %v873 = vshrl.u32 %v72, 16
    %v875 = vrot.slane %v873, 7
    %v876 = vshll.u32 %v72, 16
    %v878 = vor.u32 %v875, %v876
    %v879 = vsel %vm335, %v871, %v878
    %v880 = vrot.slane %v875, 4
    %v882 = vshrl.u32 %v73, 16
    %v884 = vrot.slane %v882, 7
    %v885 = vshll.u32 %v73, 16
    %v887 = vor.u32 %v884, %v885
    %v888 = vrot.slane %v884, 4
    %v890 = vshrl.u32 %v74, 16
    %v892 = vrot.slane %v890, 7
    %v893 = vshll.u32 %v74, 16
    %v895 = vor.u32 %v892, %v893
    %v896 = vsel %vm335, %v888, %v895
    %v897 = vrot.slane %v892, 4
    %v899 = vshrl.u32 %v75, 16
    %v901 = vrot.slane %v899, 7
    %v902 = vshll.u32 %v75, 16
    %v904 = vor.u32 %v901, %v902
    %v905 = vrot.slane %v901, 4
    %v907 = vshrl.u32 %v76, 16
    %v909 = vrot.slane %v907, 7
    %v910 = vshll.u32 %v76, 16
    %v912 = vor.u32 %v909, %v910
    %v913 = vsel %vm335, %v905, %v912
    %v914 = vrot.slane %v909, 4
    %v916 = vshrl.u32 %v77, 16
    %v918 = vrot.slane %v916, 7
    %v919 = vshll.u32 %v77, 16
    %v921 = vor.u32 %v918, %v919
    %v922 = vrot.slane %v918, 4
    %v924 = vshrl.u32 %v78, 16
    %v926 = vrot.slane %v924, 7
    %v927 = vshll.u32 %v78, 16
    %v929 = vor.u32 %v926, %v927
    %v930 = vsel %vm335, %v922, %v929
    %v931 = vrot.slane %v926, 4
    %v933 = vshrl.u32 %v79, 16
    %v935 = vrot.slane %v933, 7
    %v936 = vshll.u32 %v79, 16
    %v938 = vor.u32 %v935, %v936
    %v939 = vrot.slane %v935, 4
    %v941 = vshrl.u32 %v80, 16
    %v943 = vrot.slane %v941, 7
    %v944 = vshll.u32 %v80, 16
    %v946 = vor.u32 %v943, %v944
    %v947 = vsel %vm335, %v939, %v946
    %v948 = vrot.slane %v943, 4
    %v950 = vshrl.u32 %v81, 16
    %v952 = vrot.slane %v950, 7
    %v953 = vshll.u32 %v81, 16
    %v955 = vor.u32 %v952, %v953
    %v956 = vrot.slane %v952, 4
    %v958 = vshrl.u32 %v82, 16
    %v960 = vrot.slane %v958, 7
    %v961 = vshll.u32 %v82, 16
    %v963 = vor.u32 %v960, %v961
    %v964 = vsel %vm335, %v956, %v963
    %v965 = vrot.slane %v960, 4
    %v967 = vshrl.u32 %v83, 16
    %v969 = vrot.slane %v967, 7
    %v970 = vshll.u32 %v83, 16
    %v972 = vor.u32 %v969, %v970
    %v973 = vrot.slane %v969, 4
    %v975 = vshrl.u32 %v84, 16
    %v977 = vrot.slane %v975, 7
    %v978 = vshll.u32 %v84, 16
    %v980 = vor.u32 %v977, %v978
    %v981 = vsel %vm335, %v973, %v980
    %v982 = vrot.slane %v977, 4
    %v984 = vshrl.u32 %v85, 16
    %v986 = vrot.slane %v984, 7
    %v987 = vshll.u32 %v85, 16
    %v989 = vor.u32 %v986, %v987
    %v990 = vrot.slane %v986, 4
    %v992 = vshrl.u32 %v86, 16
    %v994 = vrot.slane %v992, 7
    %v995 = vshll.u32 %v86, 16
    %v997 = vor.u32 %v994, %v995
    %v998 = vsel %vm335, %v990, %v997
    %v999 = vrot.slane %v994, 4
    %v1001 = vshrl.u32 %v87, 16
    %v1003 = vrot.slane %v1001, 7
    %v1004 = vshll.u32 %v87, 16
    %v1006 = vor.u32 %v1003, %v1004
    %v1007 = vrot.slane %v1003, 4
    %v1009 = vshrl.u32 %v88, 16
    %v1011 = vrot.slane %v1009, 7
    %v1012 = vshll.u32 %v88, 16
    %v1014 = vor.u32 %v1011, %v1012
    %v1015 = vsel %vm335, %v1007, %v1014
    %v1016 = vrot.slane %v1011, 4
    %v1018 = vshrl.u32 %v89, 16
    %v1020 = vrot.slane %v1018, 7
    %v1021 = vshll.u32 %v89, 16
    %v1023 = vor.u32 %v1020, %v1021
    %v1024 = vrot.slane %v1020, 4
    %v1026 = vshrl.u32 %v90, 16
    %v1028 = vrot.slane %v1026, 7
    %v1029 = vshll.u32 %v90, 16
    %v1031 = vor.u32 %v1028, %v1029
    %v1032 = vsel %vm335, %v1024, %v1031
    %v1033 = vrot.slane %v1028, 4
    %v1035 = vshrl.u32 %v91, 16
    %v1037 = vrot.slane %v1035, 7
    %v1038 = vshll.u32 %v91, 16
    %v1040 = vor.u32 %v1037, %v1038
    %v1041 = vrot.slane %v1037, 4
    %v1043 = vshrl.u32 %v92, 16
    %v1045 = vrot.slane %v1043, 7
    %v1046 = vshll.u32 %v92, 16
    %v1048 = vor.u32 %v1045, %v1046
    %v1049 = vsel %vm335, %v1041, %v1048
    %v1050 = vrot.slane %v1045, 4
    %s1099 = scalar_lea.vmem [#allocation2], 240
    %v1100 = vld [vmem:[%s1099] sm:$0xf]
    %v1101 = vsel %vm658, %v785, %v1100
    %1102 = vst [vmem:[%s1099] sm:$0xf] %v1101
    %1103 = vst.msk [vmem:[%s1099 + $0x4] sm:$0xf] %vm326, %v794
    %v1104 = vld [vmem:[%s1099 + $0x8] sm:$0x1]
    %v1105 = vsel %vm95, %v795, %v1104
    %1106 = vst [vmem:[%s1099 + $0x8] sm:$0x1] %v1105
    %v1107 = vld [vmem:[%s1099 + $0xc] sm:$0xf]
    %v1108 = vsel %vm658, %v802, %v1107
    %1109 = vst [vmem:[%s1099 + $0xc] sm:$0xf] %v1108
    %1110 = vst.msk [vmem:[%s1099 + $0x10] sm:$0xf] %vm326, %v811
    %v1111 = vld [vmem:[%s1099 + $0x14] sm:$0x1]
    %v1112 = vsel %vm95, %v812, %v1111
    %1113 = vst [vmem:[%s1099 + $0x14] sm:$0x1] %v1112
    %v1114 = vld [vmem:[%s1099 + $0x18] sm:$0xf]
    %v1115 = vsel %vm658, %v819, %v1114
    %1116 = vst [vmem:[%s1099 + $0x18] sm:$0xf] %v1115
    %1117 = vst.msk [vmem:[%s1099 + $0x1c] sm:$0xf] %vm326, %v828
    %v1118 = vld [vmem:[%s1099 + $0x20] sm:$0x1]
    %v1119 = vsel %vm95, %v829, %v1118
    %1120 = vst [vmem:[%s1099 + $0x20] sm:$0x1] %v1119
    %v1121 = vld [vmem:[%s1099 + $0x24] sm:$0xf]
    %v1122 = vsel %vm658, %v836, %v1121
    %1123 = vst [vmem:[%s1099 + $0x24] sm:$0xf] %v1122
    %1124 = vst.msk [vmem:[%s1099 + $0x28] sm:$0xf] %vm326, %v845
    %v1125 = vld [vmem:[%s1099 + $0x2c] sm:$0x1]
    %v1126 = vsel %vm95, %v846, %v1125
    %1127 = vst [vmem:[%s1099 + $0x2c] sm:$0x1] %v1126
    %v1128 = vld [vmem:[%s1099 + $0x30] sm:$0xf]
    %v1129 = vsel %vm658, %v853, %v1128
    %1130 = vst [vmem:[%s1099 + $0x30] sm:$0xf] %v1129
    %1131 = vst.msk [vmem:[%s1099 + $0x34] sm:$0xf] %vm326, %v862
    %v1132 = vld [vmem:[%s1099 + $0x38] sm:$0x1]
    %v1133 = vsel %vm95, %v863, %v1132
    %1134 = vst [vmem:[%s1099 + $0x38] sm:$0x1] %v1133
    %v1135 = vld [vmem:[%s1099 + $0x3c] sm:$0xf]
    %v1136 = vsel %vm658, %v870, %v1135
    %1137 = vst [vmem:[%s1099 + $0x3c] sm:$0xf] %v1136
    %1138 = vst.msk [vmem:[%s1099 + $0x40] sm:$0xf] %vm326, %v879
    %v1139 = vld [vmem:[%s1099 + $0x44] sm:$0x1]
    %v1140 = vsel %vm95, %v880, %v1139
    %1141 = vst [vmem:[%s1099 + $0x44] sm:$0x1] %v1140
    %v1142 = vld [vmem:[%s1099 + $0x48] sm:$0xf]
    %v1143 = vsel %vm658, %v887, %v1142
    %1144 = vst [vmem:[%s1099 + $0x48] sm:$0xf] %v1143
    %1145 = vst.msk [vmem:[%s1099 + $0x4c] sm:$0xf] %vm326, %v896
    %v1146 = vld [vmem:[%s1099 + $0x50] sm:$0x1]
    %v1147 = vsel %vm95, %v897, %v1146
    %1148 = vst [vmem:[%s1099 + $0x50] sm:$0x1] %v1147
    %v1149 = vld [vmem:[%s1099 + $0x54] sm:$0xf]
    %v1150 = vsel %vm658, %v904, %v1149
    %1151 = vst [vmem:[%s1099 + $0x54] sm:$0xf] %v1150
    %1152 = vst.msk [vmem:[%s1099 + $0x58] sm:$0xf] %vm326, %v913
    %v1153 = vld [vmem:[%s1099 + $0x5c] sm:$0x1]
    %v1154 = vsel %vm95, %v914, %v1153
    %1155 = vst [vmem:[%s1099 + $0x5c] sm:$0x1] %v1154
    %v1156 = vld [vmem:[%s1099 + $0x60] sm:$0xf]
    %v1157 = vsel %vm658, %v921, %v1156
    %1158 = vst [vmem:[%s1099 + $0x60] sm:$0xf] %v1157
    %1159 = vst.msk [vmem:[%s1099 + $0x64] sm:$0xf] %vm326, %v930
    %v1160 = vld [vmem:[%s1099 + $0x68] sm:$0x1]
    %v1161 = vsel %vm95, %v931, %v1160
    %1162 = vst [vmem:[%s1099 + $0x68] sm:$0x1] %v1161
    %v1163 = vld [vmem:[%s1099 + $0x6c] sm:$0xf]
    %v1164 = vsel %vm658, %v938, %v1163
    %1165 = vst [vmem:[%s1099 + $0x6c] sm:$0xf] %v1164
    %1166 = vst.msk [vmem:[%s1099 + $0x70] sm:$0xf] %vm326, %v947
    %v1167 = vld [vmem:[%s1099 + $0x74] sm:$0x1]
    %v1168 = vsel %vm95, %v948, %v1167
    %1169 = vst [vmem:[%s1099 + $0x74] sm:$0x1] %v1168
    %v1170 = vld [vmem:[%s1099 + $0x78] sm:$0xf]
    %v1171 = vsel %vm658, %v955, %v1170
    %1172 = vst [vmem:[%s1099 + $0x78] sm:$0xf] %v1171
    %1173 = vst.msk [vmem:[%s1099 + $0x7c] sm:$0xf] %vm326, %v964
    %v1174 = vld [vmem:[%s1099 + $0x80] sm:$0x1]
    %v1175 = vsel %vm95, %v965, %v1174
    %1176 = vst [vmem:[%s1099 + $0x80] sm:$0x1] %v1175
    %v1177 = vld [vmem:[%s1099 + $0x84] sm:$0xf]
    %v1178 = vsel %vm658, %v972, %v1177
    %1179 = vst [vmem:[%s1099 + $0x84] sm:$0xf] %v1178
    %1180 = vst.msk [vmem:[%s1099 + $0x88] sm:$0xf] %vm326, %v981
    %v1181 = vld [vmem:[%s1099 + $0x8c] sm:$0x1]
    %v1182 = vsel %vm95, %v982, %v1181
    %1183 = vst [vmem:[%s1099 + $0x8c] sm:$0x1] %v1182
    %v1184 = vld [vmem:[%s1099 + $0x90] sm:$0xf]
    %v1185 = vsel %vm658, %v989, %v1184
    %1186 = vst [vmem:[%s1099 + $0x90] sm:$0xf] %v1185
    %1187 = vst.msk [vmem:[%s1099 + $0x94] sm:$0xf] %vm326, %v998
    %v1188 = vld [vmem:[%s1099 + $0x98] sm:$0x1]
    %v1189 = vsel %vm95, %v999, %v1188
    %1190 = vst [vmem:[%s1099 + $0x98] sm:$0x1] %v1189
    %v1191 = vld [vmem:[%s1099 + $0x9c] sm:$0xf]
    %v1192 = vsel %vm658, %v1006, %v1191
    %1193 = vst [vmem:[%s1099 + $0x9c] sm:$0xf] %v1192
    %1194 = vst.msk [vmem:[%s1099 + $0xa0] sm:$0xf] %vm326, %v1015
    %v1195 = vld [vmem:[%s1099 + $0xa4] sm:$0x1]
    %v1196 = vsel %vm95, %v1016, %v1195
    %1197 = vst [vmem:[%s1099 + $0xa4] sm:$0x1] %v1196
    %v1198 = vld [vmem:[%s1099 + $0xa8] sm:$0xf]
    %v1199 = vsel %vm658, %v1023, %v1198
    %1200 = vst [vmem:[%s1099 + $0xa8] sm:$0xf] %v1199
    %1201 = vst.msk [vmem:[%s1099 + $0xac] sm:$0xf] %vm326, %v1032
    %v1202 = vld [vmem:[%s1099 + $0xb0] sm:$0x1]
    %v1203 = vsel %vm95, %v1033, %v1202
    %1204 = vst [vmem:[%s1099 + $0xb0] sm:$0x1] %v1203
    %v1205 = vld [vmem:[%s1099 + $0xb4] sm:$0xf]
    %v1206 = vsel %vm658, %v1040, %v1205
    %1207 = vst [vmem:[%s1099 + $0xb4] sm:$0xf] %v1206
    %1208 = vst.msk [vmem:[%s1099 + $0xb8] sm:$0xf] %vm326, %v1049
    %v1209 = vld [vmem:[%s1099 + $0xbc] sm:$0x1]
    %v1210 = vsel %vm95, %v1050, %v1209
    %1211 = vst [vmem:[%s1099 + $0xbc] sm:$0x1] %v1210
    %v1212 = vld [vmem:[#allocation2] sm:$0xf]
    %v1213 = vld [vmem:[#allocation2 + $0x4] sm:$0xf]
    %v1214 = vld [vmem:[#allocation2 + $0x8] sm:$0xf]
    %v1215 = vld [vmem:[#allocation2 + $0xc] sm:$0xf]
    %v1216 = vld [vmem:[#allocation2 + $0x10] sm:$0xf]
    %v1217 = vld [vmem:[#allocation2 + $0x14] sm:$0xf]
    %v1218 = vld [vmem:[#allocation2 + $0x18] sm:$0xf]
    %v1219 = vld [vmem:[#allocation2 + $0x1c] sm:$0xf]
    %v1220 = vld [vmem:[#allocation2 + $0x20] sm:$0xf]
    %v1221 = vld [vmem:[#allocation2 + $0x24] sm:$0xf]
    %v1222 = vld [vmem:[#allocation2 + $0x28] sm:$0xf]
    %v1223 = vld [vmem:[#allocation2 + $0x2c] sm:$0xf]
    %v1224 = vld [vmem:[#allocation2 + $0x30] sm:$0xf]
    %v1225 = vld [vmem:[#allocation2 + $0x34] sm:$0xf]
    %v1226 = vld [vmem:[#allocation2 + $0x38] sm:$0xf]
    %v1227 = vld [vmem:[#allocation2 + $0x3c] sm:$0xf]
    %v1228 = vld [vmem:[#allocation2 + $0x40] sm:$0xf]
    %v1229 = vld [vmem:[#allocation2 + $0x44] sm:$0xf]
    %v1230 = vld [vmem:[#allocation2 + $0x48] sm:$0xf]
    %v1231 = vld [vmem:[#allocation2 + $0x4c] sm:$0xf]
    %v1232 = vld [vmem:[#allocation2 + $0x50] sm:$0xf]
    %v1233 = vld [vmem:[#allocation2 + $0x54] sm:$0xf]
    %v1234 = vld [vmem:[#allocation2 + $0x58] sm:$0xf]
    %v1235 = vld [vmem:[#allocation2 + $0x5c] sm:$0xf]
    %v1236 = vld [vmem:[#allocation2 + $0x60] sm:$0xf]
    %v1237 = vld [vmem:[#allocation2 + $0x64] sm:$0xf]
    %v1238 = vld [vmem:[#allocation2 + $0x68] sm:$0xf]
    %v1239 = vld [vmem:[#allocation2 + $0x6c] sm:$0xf]
    %v1240 = vld [vmem:[#allocation2 + $0x70] sm:$0xf]
    %v1241 = vld [vmem:[#allocation2 + $0x74] sm:$0xf]
    %v1242 = vld [vmem:[#allocation2 + $0x78] sm:$0xf]
    %v1243 = vld [vmem:[#allocation2 + $0x7c] sm:$0xf]
    %v1244 = vld [vmem:[#allocation2 + $0x80] sm:$0xf]
    %v1245 = vld [vmem:[#allocation2 + $0x84] sm:$0xf]
    %v1246 = vld [vmem:[#allocation2 + $0x88] sm:$0xf]
    %v1247 = vld [vmem:[#allocation2 + $0x8c] sm:$0xf]
    %v1248 = vld [vmem:[#allocation2 + $0x90] sm:$0xf]
    %v1249 = vld [vmem:[#allocation2 + $0x94] sm:$0xf]
    %v1250 = vld [vmem:[#allocation2 + $0x98] sm:$0xf]
    %v1251 = vld [vmem:[#allocation2 + $0x9c] sm:$0xf]
    %v1252 = vld [vmem:[#allocation2 + $0xa0] sm:$0xf]
    %v1253 = vld [vmem:[#allocation2 + $0xa4] sm:$0xf]
    %v1254 = vld [vmem:[#allocation2 + $0xa8] sm:$0xf]
    %v1255 = vld [vmem:[#allocation2 + $0xac] sm:$0xf]
    %v1256 = vld [vmem:[#allocation2 + $0xb0] sm:$0xf]
    %v1257 = vld [vmem:[#allocation2 + $0xb4] sm:$0xf]
    %v1258 = vld [vmem:[#allocation2 + $0xb8] sm:$0xf]
    %v1259 = vld [vmem:[#allocation2 + $0xbc] sm:$0xf]
    %v1260 = vld [vmem:[#allocation2 + $0xc0] sm:$0xf]
    %v1261 = vld [vmem:[#allocation2 + $0xc4] sm:$0xf]
    %v1262 = vld [vmem:[#allocation2 + $0xc8] sm:$0xf]
    %v1263 = vld [vmem:[#allocation2 + $0xcc] sm:$0xf]
    %v1264 = vld [vmem:[#allocation2 + $0xd0] sm:$0xf]
    %v1265 = vld [vmem:[#allocation2 + $0xd4] sm:$0xf]
    %v1266 = vld [vmem:[#allocation2 + $0xd8] sm:$0xf]
    %v1267 = vld [vmem:[#allocation2 + $0xdc] sm:$0xf]
    %v1268 = vld [vmem:[#allocation2 + $0xe0] sm:$0xf]
    %v1269 = vld [vmem:[#allocation2 + $0xe4] sm:$0xf]
    %v1270 = vld [vmem:[#allocation2 + $0xe8] sm:$0xf]
    %v1271 = vld [vmem:[#allocation2 + $0xec] sm:$0xf]
    %v1272 = vld [vmem:[#allocation2 + $0xf0] sm:$0xf]
    %v1273 = vld [vmem:[#allocation2 + $0xf4] sm:$0xf]
    %v1274 = vld [vmem:[#allocation2 + $0xf8] sm:$0xf]
    %v1275 = vld [vmem:[#allocation2 + $0xfc] sm:$0xf]
    %v1276 = vld [vmem:[#allocation2 + $0x100] sm:$0xf]
    %v1277 = vld [vmem:[#allocation2 + $0x104] sm:$0xf]
    %v1278 = vld [vmem:[#allocation2 + $0x108] sm:$0xf]
    %v1279 = vld [vmem:[#allocation2 + $0x10c] sm:$0xf]
    %v1280 = vld [vmem:[#allocation2 + $0x110] sm:$0xf]
    %v1281 = vld [vmem:[#allocation2 + $0x114] sm:$0xf]
    %v1282 = vld [vmem:[#allocation2 + $0x118] sm:$0xf]
    %v1283 = vld [vmem:[#allocation2 + $0x11c] sm:$0xf]
    %v1284 = vld [vmem:[#allocation2 + $0x120] sm:$0xf]
    %v1285 = vld [vmem:[#allocation2 + $0x124] sm:$0xf]
    %v1286 = vld [vmem:[#allocation2 + $0x128] sm:$0xf]
    %v1287 = vld [vmem:[#allocation2 + $0x12c] sm:$0xf]
    %v1288 = vld [vmem:[#allocation2 + $0x130] sm:$0xf]
    %v1289 = vld [vmem:[#allocation2 + $0x134] sm:$0xf]
    %v1290 = vld [vmem:[#allocation2 + $0x138] sm:$0xf]
    %v1291 = vld [vmem:[#allocation2 + $0x13c] sm:$0xf]
    %v1292 = vld [vmem:[#allocation2 + $0x140] sm:$0xf]
    %v1293 = vld [vmem:[#allocation2 + $0x144] sm:$0xf]
    %v1294 = vld [vmem:[#allocation2 + $0x148] sm:$0xf]
    %v1295 = vld [vmem:[#allocation2 + $0x14c] sm:$0xf]
    %v1296 = vld [vmem:[#allocation2 + $0x150] sm:$0xf]
    %v1297 = vld [vmem:[#allocation2 + $0x154] sm:$0xf]
    %v1298 = vld [vmem:[#allocation2 + $0x158] sm:$0xf]
    %v1299 = vld [vmem:[#allocation2 + $0x15c] sm:$0xf]
    %v1300 = vld [vmem:[#allocation2 + $0x160] sm:$0xf]
    %v1301 = vld [vmem:[#allocation2 + $0x164] sm:$0xf]
    %v1302 = vld [vmem:[#allocation2 + $0x168] sm:$0xf]
    %v1303 = vld [vmem:[#allocation2 + $0x16c] sm:$0xf]
    %v1304 = vld [vmem:[#allocation2 + $0x170] sm:$0xf]
    %v1305 = vld [vmem:[#allocation2 + $0x174] sm:$0xf]
    %v1306 = vld [vmem:[#allocation2 + $0x178] sm:$0xf]
    %v1307 = vld [vmem:[#allocation2 + $0x17c] sm:$0xf]
    %v1308 = vld [vmem:[#allocation2 + $0x180] sm:$0xf]
    %v1309 = vld [vmem:[#allocation2 + $0x184] sm:$0xf]
    %v1310 = vld [vmem:[#allocation2 + $0x188] sm:$0xf]
    %v1311 = vld [vmem:[#allocation2 + $0x18c] sm:$0xf]
    %v1312 = vld [vmem:[#allocation2 + $0x190] sm:$0xf]
    %v1313 = vld [vmem:[#allocation2 + $0x194] sm:$0xf]
    %v1314 = vld [vmem:[#allocation2 + $0x198] sm:$0xf]
    %v1315 = vld [vmem:[#allocation2 + $0x19c] sm:$0xf]
    %v1316 = vld [vmem:[#allocation2 + $0x1a0] sm:$0xf]
    %v1317 = vld [vmem:[#allocation2 + $0x1a4] sm:$0xf]
    %v1318 = vld [vmem:[#allocation2 + $0x1a8] sm:$0xf]
    %v1319 = vld [vmem:[#allocation2 + $0x1ac] sm:$0xf]
    %v1320 = vld [vmem:[#allocation2 + $0x1b0] sm:$0xf]
    %v1321 = vld [vmem:[#allocation2 + $0x1b4] sm:$0xf]
    %v1322 = vld [vmem:[#allocation2 + $0x1b8] sm:$0xf]
    %v1323 = vld [vmem:[#allocation2 + $0x1bc] sm:$0xf]
    %v1324 = vld [vmem:[%s1] sm:$0xf]
    %s1325 = scalar_lea.vmem %s1, 4
    %v1326 = vld [vmem:[%s1325] sm:$0xf]
    %v1433 = vunpack.c.l.b16 %v1212
    %v1434 = vunpack.c.l.b16 %v1213
    %v1435 = vunpack.c.l.b16 %v1214
    %v1436 = vunpack.c.l.b16 %v1215
    %v1437 = vunpack.c.l.b16 %v1216
    %v1438 = vunpack.c.l.b16 %v1217
    %v1439 = vunpack.c.l.b16 %v1218
    %v1440 = vunpack.c.l.b16 %v1219
    %v1441 = vunpack.c.l.b16 %v1220
    %v1442 = vunpack.c.l.b16 %v1221
    %v1443 = vunpack.c.l.b16 %v1222
    %v1444 = vunpack.c.l.b16 %v1223
    %v1445 = vunpack.c.l.b16 %v1224
    %v1446 = vunpack.c.l.b16 %v1225
    %v1447 = vunpack.c.l.b16 %v1226
    %v1448 = vunpack.c.l.b16 %v1227
    %v1449 = vunpack.c.l.b16 %v1228
    %v1450 = vunpack.c.l.b16 %v1229
    %v1451 = vunpack.c.l.b16 %v1230
    %v1452 = vunpack.c.l.b16 %v1231
    %v1453 = vunpack.c.l.b16 %v1232
    %v1454 = vunpack.c.l.b16 %v1233
    %v1455 = vunpack.c.l.b16 %v1234
    %v1456 = vunpack.c.l.b16 %v1235
    %v1457 = vunpack.c.l.b16 %v1236
    %v1458 = vunpack.c.l.b16 %v1237
    %v1459 = vunpack.c.l.b16 %v1238
    %v1460 = vunpack.c.l.b16 %v1239
    %v1461 = vunpack.c.l.b16 %v1240
    %v1462 = vunpack.c.l.b16 %v1241
    %v1463 = vunpack.c.l.b16 %v1242
    %v1464 = vunpack.c.l.b16 %v1243
    %v1465 = vunpack.c.l.b16 %v1244
    %v1466 = vunpack.c.l.b16 %v1245
    %v1467 = vunpack.c.l.b16 %v1246
    %v1468 = vunpack.c.l.b16 %v1247
    %v1469 = vunpack.c.l.b16 %v1248
    %v1470 = vunpack.c.l.b16 %v1249
    %v1471 = vunpack.c.l.b16 %v1250
    %v1472 = vunpack.c.l.b16 %v1251
    %v1473 = vunpack.c.l.b16 %v1252
    %v1474 = vunpack.c.l.b16 %v1253
    %v1475 = vunpack.c.l.b16 %v1254
    %v1476 = vunpack.c.l.b16 %v1255
    %v1477 = vunpack.c.l.b16 %v1256
    %v1478 = vunpack.c.l.b16 %v1257
    %v1479 = vunpack.c.l.b16 %v1258
    %v1480 = vunpack.c.l.b16 %v1259
    %v1481 = vunpack.c.l.b16 %v1260
    %v1482 = vunpack.c.l.b16 %v1261
    %v1483 = vunpack.c.l.b16 %v1262
    %v1484 = vunpack.c.l.b16 %v1263
    %v1485 = vunpack.c.l.b16 %v1264
    %v1486 = vunpack.c.l.b16 %v1265
    %v1487 = vunpack.c.l.b16 %v1266
    %v1488 = vunpack.c.l.b16 %v1267
    %v1489 = vunpack.c.l.b16 %v1268
    %v1490 = vunpack.c.l.b16 %v1269
    %v1491 = vunpack.c.l.b16 %v1270
    %v1492 = vunpack.c.l.b16 %v1271
    %v1493 = vunpack.c.l.b16 %v1272
    %v1494 = vunpack.c.l.b16 %v1273
    %v1495 = vunpack.c.l.b16 %v1274
    %v1496 = vunpack.c.l.b16 %v1275
    %v1497 = vunpack.c.l.b16 %v1276
    %v1498 = vunpack.c.l.b16 %v1277
    %v1499 = vunpack.c.l.b16 %v1278
    %v1500 = vunpack.c.l.b16 %v1279
    %v1501 = vunpack.c.l.b16 %v1280
    %v1502 = vunpack.c.l.b16 %v1281
    %v1503 = vunpack.c.l.b16 %v1282
    %v1504 = vunpack.c.l.b16 %v1283
    %v1505 = vunpack.c.l.b16 %v1284
    %v1506 = vunpack.c.l.b16 %v1285
    %v1507 = vunpack.c.l.b16 %v1286
    %v1508 = vunpack.c.l.b16 %v1287
    %v1509 = vunpack.c.l.b16 %v1288
    %v1510 = vunpack.c.l.b16 %v1289
    %v1511 = vunpack.c.l.b16 %v1290
    %v1512 = vunpack.c.l.b16 %v1291
    %v1513 = vunpack.c.l.b16 %v1292
    %v1514 = vunpack.c.l.b16 %v1293
    %v1515 = vunpack.c.l.b16 %v1294
    %v1516 = vunpack.c.l.b16 %v1295
    %v1517 = vunpack.c.l.b16 %v1296
    %v1518 = vunpack.c.l.b16 %v1297
    %v1519 = vunpack.c.l.b16 %v1298
    %v1520 = vunpack.c.l.b16 %v1299
    %v1521 = vunpack.c.l.b16 %v1300
    %v1522 = vunpack.c.l.b16 %v1301
    %v1523 = vunpack.c.l.b16 %v1302
    %v1524 = vunpack.c.l.b16 %v1303
    %v1525 = vunpack.c.l.b16 %v1304
    %v1526 = vunpack.c.l.b16 %v1305
    %v1527 = vunpack.c.l.b16 %v1306
    %v1528 = vunpack.c.l.b16 %v1307
    %v1529 = vunpack.c.l.b16 %v1308
    %v1530 = vunpack.c.l.b16 %v1309
    %v1531 = vunpack.c.l.b16 %v1310
    %v1532 = vunpack.c.l.b16 %v1311
    %v1533 = vunpack.c.l.b16 %v1312
    %v1534 = vunpack.c.l.b16 %v1313
    %v1535 = vunpack.c.l.b16 %v1314
    %v1536 = vunpack.c.l.b16 %v1315
    %v1537 = vunpack.c.l.b16 %v1316
    %v1538 = vunpack.c.l.b16 %v1317
    %v1539 = vpack.c.b16 %v1434, %v1433
    %v1540 = vpack.c.b16 %v1436, %v1435
    %v1541 = vpack.c.b16 %v1438, %v1437
    %v1542 = vpack.c.b16 %v1440, %v1439
    %v1543 = vpack.c.b16 %v1442, %v1441
    %v1544 = vpack.c.b16 %v1444, %v1443
    %v1545 = vpack.c.b16 %v1446, %v1445
    %v1546 = vpack.c.b16 %v1448, %v1447
    %v1547 = vpack.c.b16 %v1450, %v1449
    %v1548 = vpack.c.b16 %v1452, %v1451
    %v1549 = vpack.c.b16 %v1454, %v1453
    %v1550 = vpack.c.b16 %v1456, %v1455
    %v1551 = vpack.c.b16 %v1458, %v1457
    %v1552 = vpack.c.b16 %v1460, %v1459
    %v1553 = vpack.c.b16 %v1462, %v1461
    %v1554 = vpack.c.b16 %v1464, %v1463
    %v1555 = vpack.c.b16 %v1466, %v1465
    %v1556 = vpack.c.b16 %v1468, %v1467
    %v1557 = vpack.c.b16 %v1470, %v1469
    %v1558 = vpack.c.b16 %v1472, %v1471
    %v1559 = vpack.c.b16 %v1474, %v1473
    %v1560 = vpack.c.b16 %v1476, %v1475
    %v1561 = vpack.c.b16 %v1478, %v1477
    %v1562 = vpack.c.b16 %v1480, %v1479
    %v1563 = vpack.c.b16 %v1482, %v1481
    %v1564 = vpack.c.b16 %v1484, %v1483
    %v1565 = vpack.c.b16 %v1486, %v1485
    %v1566 = vpack.c.b16 %v1488, %v1487
    %v1567 = vpack.c.b16 %v1490, %v1489
    %v1568 = vpack.c.b16 %v1492, %v1491
    %v1569 = vpack.c.b16 %v1494, %v1493
    %v1570 = vpack.c.b16 %v1496, %v1495
    %v1571 = vpack.c.b16 %v1498, %v1497
    %v1572 = vpack.c.b16 %v1500, %v1499
    %v1573 = vpack.c.b16 %v1502, %v1501
    %v1574 = vpack.c.b16 %v1504, %v1503
    %v1575 = vpack.c.b16 %v1506, %v1505
    %v1576 = vpack.c.b16 %v1508, %v1507
    %v1577 = vpack.c.b16 %v1510, %v1509
    %v1578 = vpack.c.b16 %v1512, %v1511
    %v1579 = vpack.c.b16 %v1514, %v1513
    %v1580 = vpack.c.b16 %v1516, %v1515
    %v1581 = vpack.c.b16 %v1518, %v1517
    %v1582 = vpack.c.b16 %v1520, %v1519
    %v1583 = vpack.c.b16 %v1522, %v1521
    %v1584 = vpack.c.b16 %v1524, %v1523
    %v1585 = vpack.c.b16 %v1526, %v1525
    %v1586 = vpack.c.b16 %v1528, %v1527
    %v1587 = vpack.c.b16 %v1530, %v1529
    %v1588 = vpack.c.b16 %v1532, %v1531
    %v1589 = vpack.c.b16 %v1534, %v1533
    %v1590 = vpack.c.b16 %v1536, %v1535
    %v1591 = vpack.c.b16 %v1538, %v1537
    %vm1592 = vsmask.f32 7424
    %v1594 = vshrl.u32 %v1539, 16
    %v1596 = vshll.u32 %v1539, 16
    %v1598 = vrot.slane %v1596, 1
    %v1599 = vor.u32 %v1594, %v1598
    %v1601 = vshll.u32 %v1540, 16
    %v1603 = vrot.slane %v1601, 1
    %v1604 = vsel %vm1592, %v1599, %v1603
    %v1605 = vshrl.u32 %v1540, 16
    %v1607 = vor.u32 %v1605, %v1603
    %v1609 = vshll.u32 %v1541, 16
    %v1611 = vrot.slane %v1609, 1
    %v1612 = vsel %vm1592, %v1607, %v1611
    %v1613 = vshrl.u32 %v1541, 16
    %v1615 = vor.u32 %v1613, %v1611
    %v1617 = vshll.u32 %v1542, 16
    %v1619 = vrot.slane %v1617, 1
    %v1620 = vsel %vm1592, %v1615, %v1619
    %v1621 = vshrl.u32 %v1542, 16
    %v1623 = vor.u32 %v1621, %v1619
    %v1625 = vshll.u32 %v1543, 16
    %v1627 = vrot.slane %v1625, 1
    %v1628 = vsel %vm1592, %v1623, %v1627
    %v1629 = vshrl.u32 %v1543, 16
    %v1631 = vor.u32 %v1629, %v1627
    %v1633 = vshll.u32 %v1544, 16
    %v1635 = vrot.slane %v1633, 1
    %v1636 = vsel %vm1592, %v1631, %v1635
    %v1637 = vshrl.u32 %v1544, 16
    %v1639 = vor.u32 %v1637, %v1635
    %v1641 = vshll.u32 %v1545, 16
    %v1643 = vrot.slane %v1641, 1
    %v1644 = vsel %vm1592, %v1639, %v1643
    %v1645 = vshrl.u32 %v1545, 16
    %v1647 = vor.u32 %v1645, %v1643
    %v1649 = vshll.u32 %v1546, 16
    %v1651 = vrot.slane %v1649, 1
    %v1652 = vsel %vm1592, %v1647, %v1651
    %v1653 = vshrl.u32 %v1546, 16
    %v1655 = vor.u32 %v1653, %v1651
    %v1657 = vshll.u32 %v1547, 16
    %v1659 = vrot.slane %v1657, 1
    %v1660 = vsel %vm1592, %v1655, %v1659
    %v1661 = vshrl.u32 %v1547, 16
    %v1663 = vor.u32 %v1661, %v1659
    %v1665 = vshll.u32 %v1548, 16
    %v1667 = vrot.slane %v1665, 1
    %v1668 = vsel %vm1592, %v1663, %v1667
    %v1669 = vshrl.u32 %v1548, 16
    %v1671 = vor.u32 %v1669, %v1667
    %v1673 = vshll.u32 %v1549, 16
    %v1675 = vrot.slane %v1673, 1
    %v1676 = vsel %vm1592, %v1671, %v1675
    %v1677 = vshrl.u32 %v1549, 16
    %v1679 = vor.u32 %v1677, %v1675
    %v1681 = vshll.u32 %v1550, 16
    %v1683 = vrot.slane %v1681, 1
    %v1684 = vsel %vm1592, %v1679, %v1683
    %v1685 = vshrl.u32 %v1550, 16
    %v1687 = vor.u32 %v1685, %v1683
    %v1689 = vshll.u32 %v1551, 16
    %v1691 = vrot.slane %v1689, 1
    %v1692 = vsel %vm1592, %v1687, %v1691
    %v1693 = vshrl.u32 %v1551, 16
    %v1695 = vor.u32 %v1693, %v1691
    %v1697 = vshll.u32 %v1552, 16
    %v1699 = vrot.slane %v1697, 1
    %v1700 = vsel %vm1592, %v1695, %v1699
    %v1701 = vshrl.u32 %v1552, 16
    %v1703 = vor.u32 %v1701, %v1699
    %v1705 = vshll.u32 %v1553, 16
    %v1707 = vrot.slane %v1705, 1
    %v1708 = vsel %vm1592, %v1703, %v1707
    %v1709 = vshrl.u32 %v1553, 16
    %v1711 = vor.u32 %v1709, %v1707
    %v1713 = vshll.u32 %v1554, 16
    %v1715 = vrot.slane %v1713, 1
    %v1716 = vsel %vm1592, %v1711, %v1715
    %v1717 = vshrl.u32 %v1554, 16
    %v1719 = vor.u32 %v1717, %v1715
    %v1721 = vshll.u32 %v1555, 16
    %v1723 = vrot.slane %v1721, 1
    %v1724 = vsel %vm1592, %v1719, %v1723
    %v1725 = vshrl.u32 %v1555, 16
    %v1727 = vor.u32 %v1725, %v1723
    %v1729 = vshll.u32 %v1556, 16
    %v1731 = vrot.slane %v1729, 1
    %v1732 = vsel %vm1592, %v1727, %v1731
    %v1733 = vshrl.u32 %v1556, 16
    %v1735 = vor.u32 %v1733, %v1731
    %v1737 = vshll.u32 %v1557, 16
    %v1739 = vrot.slane %v1737, 1
    %v1740 = vsel %vm1592, %v1735, %v1739
    %v1741 = vshrl.u32 %v1557, 16
    %v1743 = vor.u32 %v1741, %v1739
    %v1745 = vshll.u32 %v1558, 16
    %v1747 = vrot.slane %v1745, 1
    %v1748 = vsel %vm1592, %v1743, %v1747
    %v1749 = vshrl.u32 %v1558, 16
    %v1751 = vor.u32 %v1749, %v1747
    %v1753 = vshll.u32 %v1559, 16
    %v1755 = vrot.slane %v1753, 1
    %v1756 = vsel %vm1592, %v1751, %v1755
    %v1757 = vshrl.u32 %v1559, 16
    %v1759 = vor.u32 %v1757, %v1755
    %v1761 = vshll.u32 %v1560, 16
    %v1763 = vrot.slane %v1761, 1
    %v1764 = vsel %vm1592, %v1759, %v1763
    %v1765 = vshrl.u32 %v1560, 16
    %v1767 = vor.u32 %v1765, %v1763
    %v1769 = vshll.u32 %v1561, 16
    %v1771 = vrot.slane %v1769, 1
    %v1772 = vsel %vm1592, %v1767, %v1771
    %v1773 = vshrl.u32 %v1561, 16
    %v1775 = vor.u32 %v1773, %v1771
    %v1777 = vshll.u32 %v1562, 16
    %v1779 = vrot.slane %v1777, 1
    %v1780 = vsel %vm1592, %v1775, %v1779
    %v1781 = vshrl.u32 %v1562, 16
    %v1783 = vor.u32 %v1781, %v1779
    %v1785 = vshll.u32 %v1563, 16
    %v1787 = vrot.slane %v1785, 1
    %v1788 = vsel %vm1592, %v1783, %v1787
    %v1789 = vshrl.u32 %v1563, 16
    %v1791 = vor.u32 %v1789, %v1787
    %v1793 = vshll.u32 %v1564, 16
    %v1795 = vrot.slane %v1793, 1
    %v1796 = vsel %vm1592, %v1791, %v1795
    %v1797 = vshrl.u32 %v1564, 16
    %v1799 = vor.u32 %v1797, %v1795
    %v1801 = vshll.u32 %v1565, 16
    %v1803 = vrot.slane %v1801, 1
    %v1804 = vsel %vm1592, %v1799, %v1803
    %v1805 = vshrl.u32 %v1565, 16
    %v1807 = vor.u32 %v1805, %v1803
    %v1809 = vshll.u32 %v1566, 16
    %v1811 = vrot.slane %v1809, 1
    %v1812 = vsel %vm1592, %v1807, %v1811
    %v1813 = vshrl.u32 %v1566, 16
    %v1815 = vor.u32 %v1813, %v1811
    %v1817 = vshll.u32 %v1567, 16
    %v1819 = vrot.slane %v1817, 1
    %v1820 = vsel %vm1592, %v1815, %v1819
    %v1821 = vshrl.u32 %v1567, 16
    %v1823 = vor.u32 %v1821, %v1819
    %v1825 = vshll.u32 %v1568, 16
    %v1827 = vrot.slane %v1825, 1
    %v1828 = vsel %vm1592, %v1823, %v1827
    %v1829 = vshrl.u32 %v1568, 16
    %v1831 = vor.u32 %v1829, %v1827
    %v1833 = vshll.u32 %v1569, 16
    %v1835 = vrot.slane %v1833, 1
    %v1836 = vsel %vm1592, %v1831, %v1835
    %v1837 = vshrl.u32 %v1569, 16
    %v1839 = vor.u32 %v1837, %v1835
    %v1841 = vshll.u32 %v1570, 16
    %v1843 = vrot.slane %v1841, 1
    %v1844 = vsel %vm1592, %v1839, %v1843
    %v1845 = vshrl.u32 %v1570, 16
    %v1847 = vor.u32 %v1845, %v1843
    %v1849 = vshll.u32 %v1571, 16
    %v1851 = vrot.slane %v1849, 1
    %v1852 = vsel %vm1592, %v1847, %v1851
    %v1853 = vshrl.u32 %v1571, 16
    %v1855 = vor.u32 %v1853, %v1851
    %v1857 = vshll.u32 %v1572, 16
    %v1859 = vrot.slane %v1857, 1
    %v1860 = vsel %vm1592, %v1855, %v1859
    %v1861 = vshrl.u32 %v1572, 16
    %v1863 = vor.u32 %v1861, %v1859
    %v1865 = vshll.u32 %v1573, 16
    %v1867 = vrot.slane %v1865, 1
    %v1868 = vsel %vm1592, %v1863, %v1867
    %v1869 = vshrl.u32 %v1573, 16
    %v1871 = vor.u32 %v1869, %v1867
    %v1873 = vshll.u32 %v1574, 16
    %v1875 = vrot.slane %v1873, 1
    %v1876 = vsel %vm1592, %v1871, %v1875
    %v1877 = vshrl.u32 %v1574, 16
    %v1879 = vor.u32 %v1877, %v1875
    %v1881 = vshll.u32 %v1575, 16
    %v1883 = vrot.slane %v1881, 1
    %v1884 = vsel %vm1592, %v1879, %v1883
    %v1885 = vshrl.u32 %v1575, 16
    %v1887 = vor.u32 %v1885, %v1883
    %v1889 = vshll.u32 %v1576, 16
    %v1891 = vrot.slane %v1889, 1
    %v1892 = vsel %vm1592, %v1887, %v1891
    %v1893 = vshrl.u32 %v1576, 16
    %v1895 = vor.u32 %v1893, %v1891
    %v1897 = vshll.u32 %v1577, 16
    %v1899 = vrot.slane %v1897, 1
    %v1900 = vsel %vm1592, %v1895, %v1899
    %v1901 = vshrl.u32 %v1577, 16
    %v1903 = vor.u32 %v1901, %v1899
    %v1905 = vshll.u32 %v1578, 16
    %v1907 = vrot.slane %v1905, 1
    %v1908 = vsel %vm1592, %v1903, %v1907
    %v1909 = vshrl.u32 %v1578, 16
    %v1911 = vor.u32 %v1909, %v1907
    %v1913 = vshll.u32 %v1579, 16
    %v1915 = vrot.slane %v1913, 1
    %v1916 = vsel %vm1592, %v1911, %v1915
    %v1917 = vshrl.u32 %v1579, 16
    %v1919 = vor.u32 %v1917, %v1915
    %v1921 = vshll.u32 %v1580, 16
    %v1923 = vrot.slane %v1921, 1
    %v1924 = vsel %vm1592, %v1919, %v1923
    %v1925 = vshrl.u32 %v1580, 16
    %v1927 = vor.u32 %v1925, %v1923
    %v1929 = vshll.u32 %v1581, 16
    %v1931 = vrot.slane %v1929, 1
    %v1932 = vsel %vm1592, %v1927, %v1931
    %v1933 = vshrl.u32 %v1581, 16
    %v1935 = vor.u32 %v1933, %v1931
    %v1937 = vshll.u32 %v1582, 16
    %v1939 = vrot.slane %v1937, 1
    %v1940 = vsel %vm1592, %v1935, %v1939
    %v1941 = vshrl.u32 %v1582, 16
    %v1943 = vor.u32 %v1941, %v1939
    %v1945 = vshll.u32 %v1583, 16
    %v1947 = vrot.slane %v1945, 1
    %v1948 = vsel %vm1592, %v1943, %v1947
    %v1949 = vshrl.u32 %v1583, 16
    %v1951 = vor.u32 %v1949, %v1947
    %v1953 = vshll.u32 %v1584, 16
    %v1955 = vrot.slane %v1953, 1
    %v1956 = vsel %vm1592, %v1951, %v1955
    %v1957 = vshrl.u32 %v1584, 16
    %v1959 = vor.u32 %v1957, %v1955
    %v1961 = vshll.u32 %v1585, 16
    %v1963 = vrot.slane %v1961, 1
    %v1964 = vsel %vm1592, %v1959, %v1963
    %v1965 = vshrl.u32 %v1585, 16
    %v1967 = vor.u32 %v1965, %v1963
    %v1969 = vshll.u32 %v1586, 16
    %v1971 = vrot.slane %v1969, 1
    %v1972 = vsel %vm1592, %v1967, %v1971
    %v1973 = vshrl.u32 %v1586, 16
    %v1975 = vor.u32 %v1973, %v1971
    %v1977 = vshll.u32 %v1587, 16
    %v1979 = vrot.slane %v1977, 1
    %v1980 = vsel %vm1592, %v1975, %v1979
    %v1981 = vshrl.u32 %v1587, 16
    %v1983 = vor.u32 %v1981, %v1979
    %v1985 = vshll.u32 %v1588, 16
    %v1987 = vrot.slane %v1985, 1
    %v1988 = vsel %vm1592, %v1983, %v1987
    %v1989 = vshrl.u32 %v1588, 16
    %v1991 = vor.u32 %v1989, %v1987
    %v1993 = vshll.u32 %v1589, 16
    %v1995 = vrot.slane %v1993, 1
    %v1996 = vsel %vm1592, %v1991, %v1995
    %v1997 = vshrl.u32 %v1589, 16
    %v1999 = vor.u32 %v1997, %v1995
    %v2001 = vshll.u32 %v1590, 16
    %v2003 = vrot.slane %v2001, 1
    %v2004 = vsel %vm1592, %v1999, %v2003
    %v2005 = vshrl.u32 %v1590, 16
    %v2007 = vor.u32 %v2005, %v2003
    %v2009 = vshll.u32 %v1591, 16
    %v2011 = vrot.slane %v2009, 1
    %v2012 = vsel %vm1592, %v2007, %v2011
    %v2013 = vshrl.u32 %v1591, 16
    %v2015 = vor.u32 %v2013, %v2011
    %vm2016 = vcmask 64512
    %v2018 = vsel %vm2016, %v1604, 0
    %v2021 = vsel %vm2016, %v1612, 0
    %v2024 = vsel %vm2016, %v1620, 0
    %v2027 = vsel %vm2016, %v1628, 0
    %v2030 = vsel %vm2016, %v1636, 0
    %v2033 = vsel %vm2016, %v1644, 0
    %v2036 = vsel %vm2016, %v1652, 0
    %v2039 = vsel %vm2016, %v1660, 0
    %v2042 = vsel %vm2016, %v1668, 0
    %v2045 = vsel %vm2016, %v1676, 0
    %v2048 = vsel %vm2016, %v1684, 0
    %v2051 = vsel %vm2016, %v1692, 0
    %v2054 = vsel %vm2016, %v1700, 0
    %v2057 = vsel %vm2016, %v1708, 0
    %v2060 = vsel %vm2016, %v1716, 0
    %v2063 = vsel %vm2016, %v1724, 0
    %v2066 = vsel %vm2016, %v1732, 0
    %v2069 = vsel %vm2016, %v1740, 0
    %v2072 = vsel %vm2016, %v1748, 0
    %v2075 = vsel %vm2016, %v1756, 0
    %v2078 = vsel %vm2016, %v1764, 0
    %v2081 = vsel %vm2016, %v1772, 0
    %v2084 = vsel %vm2016, %v1780, 0
    %v2087 = vsel %vm2016, %v1788, 0
    %v2090 = vsel %vm2016, %v1796, 0
    %v2093 = vsel %vm2016, %v1804, 0
    %v2096 = vsel %vm2016, %v1812, 0
    %v2099 = vsel %vm2016, %v1820, 0
    %v2102 = vsel %vm2016, %v1828, 0
    %v2105 = vsel %vm2016, %v1836, 0
    %v2108 = vsel %vm2016, %v1844, 0
    %v2111 = vsel %vm2016, %v1852, 0
    %v2114 = vsel %vm2016, %v1860, 0
    %v2117 = vsel %vm2016, %v1868, 0
    %v2120 = vsel %vm2016, %v1876, 0
    %v2123 = vsel %vm2016, %v1884, 0
    %v2126 = vsel %vm2016, %v1892, 0
    %v2129 = vsel %vm2016, %v1900, 0
    %v2132 = vsel %vm2016, %v1908, 0
    %v2135 = vsel %vm2016, %v1916, 0
    %v2138 = vsel %vm2016, %v1924, 0
    %v2141 = vsel %vm2016, %v1932, 0
    %v2144 = vsel %vm2016, %v1940, 0
    %v2147 = vsel %vm2016, %v1948, 0
    %v2150 = vsel %vm2016, %v1956, 0
    %v2153 = vsel %vm2016, %v1964, 0
    %v2156 = vsel %vm2016, %v1972, 0
    %v2159 = vsel %vm2016, %v1980, 0
    %v2162 = vsel %vm2016, %v1988, 0
    %v2165 = vsel %vm2016, %v1996, 0
    %v2168 = vsel %vm2016, %v2004, 0
    %v2171 = vsel %vm2016, %v2012, 0
    %v2174 = vsel %vm2016, %v2015, 0
    %vm2176 = vcmask 1043456
    %v2178 = vsel %vm2176, %v1326, 0
    %2180 = vmatpush.bf16.msra.mxu0 0
    %2181 = vmatpush.bf16.msra.mxu0 0
    %2182 = vmatpush.bf16.msra.mxu0 0
    %2183 = vmatpush.bf16.msra.mxu0 0
    %2184 = vmatpush.bf16.msra.mxu0 0
    %2185 = vmatpush.bf16.msra.mxu0 0
    %2186 = vmatpush.bf16.msra.mxu0 0
    %2187 = vmatpush.bf16.msra.mxu0 %v2178
    %2188 = vmatmul.bf16.gmra.mxu0 %v2018
    %v2189 = vpop.f32.mrf.mxu0
    %v2190 = vadd.f32 0.0, %v2189
    %v2191 = vpop.f32.mrf.mxu0
    %v2192 = vadd.f32 0.0, %v2191
    %2193 = vmatmul.bf16.gmra.mxu0 %v2021
    %v2194 = vpop.f32.mrf.mxu0
    %v2195 = vpop.f32.mrf.mxu0
    %v2196 = vadd.f32 0.0, %v2195
    %2197 = vmatmul.bf16.gmra.mxu0 %v2024
    %v2198 = vpop.f32.mrf.mxu0
    %v2199 = vadd.f32 0.0, %v2198
    %v2200 = vpop.f32.mrf.mxu0
    %2201 = vmatmul.bf16.gmra.mxu0 %v2027
    %v2202 = vpop.f32.mrf.mxu0
    %v2203 = vadd.f32 0.0, %v2202
    %v2204 = vpop.f32.mrf.mxu0
    %v2205 = vadd.f32 0.0, %v2204
    %2206 = vmatmul.bf16.gmra.mxu0 %v2030
    %v2207 = vpop.f32.mrf.mxu0
    %v2208 = vpop.f32.mrf.mxu0
    %v2209 = vadd.f32 0.0, %v2208
    %2210 = vmatmul.bf16.gmra.mxu0 %v2033
    %v2211 = vpop.f32.mrf.mxu0
    %v2212 = vadd.f32 0.0, %v2211
    %v2213 = vpop.f32.mrf.mxu0
    %2214 = vmatmul.bf16.gmra.mxu0 %v2036
    %v2215 = vpop.f32.mrf.mxu0
    %v2216 = vadd.f32 0.0, %v2215
    %v2217 = vpop.f32.mrf.mxu0
    %v2218 = vadd.f32 0.0, %v2217
    %2219 = vmatmul.bf16.gmra.mxu0 %v2039
    %v2220 = vpop.f32.mrf.mxu0
    %v2221 = vpop.f32.mrf.mxu0
    %v2222 = vadd.f32 0.0, %v2221
    %2223 = vmatmul.bf16.gmra.mxu0 %v2042
    %v2224 = vpop.f32.mrf.mxu0
    %v2225 = vadd.f32 0.0, %v2224
    %v2226 = vpop.f32.mrf.mxu0
    %2227 = vmatmul.bf16.gmra.mxu0 %v2045
    %v2228 = vpop.f32.mrf.mxu0
    %v2229 = vadd.f32 0.0, %v2228
    %v2230 = vpop.f32.mrf.mxu0
    %v2231 = vadd.f32 0.0, %v2230
    %2232 = vmatmul.bf16.gmra.mxu0 %v2048
    %v2233 = vpop.f32.mrf.mxu0
    %v2234 = vpop.f32.mrf.mxu0
    %v2235 = vadd.f32 0.0, %v2234
    %2236 = vmatmul.bf16.gmra.mxu0 %v2051
    %v2237 = vpop.f32.mrf.mxu0
    %v2238 = vadd.f32 0.0, %v2237
    %v2239 = vpop.f32.mrf.mxu0
    %2240 = vmatmul.bf16.gmra.mxu0 %v2054
    %v2241 = vpop.f32.mrf.mxu0
    %v2242 = vadd.f32 0.0, %v2241
    %v2243 = vpop.f32.mrf.mxu0
    %v2244 = vadd.f32 0.0, %v2243
    %2245 = vmatmul.bf16.gmra.mxu0 %v2057
    %v2246 = vpop.f32.mrf.mxu0
    %v2247 = vpop.f32.mrf.mxu0
    %v2248 = vadd.f32 0.0, %v2247
    %2249 = vmatmul.bf16.gmra.mxu0 %v2060
    %v2250 = vpop.f32.mrf.mxu0
    %v2251 = vadd.f32 0.0, %v2250
    %v2252 = vpop.f32.mrf.mxu0
    %2253 = vmatmul.bf16.gmra.mxu0 %v2063
    %v2254 = vpop.f32.mrf.mxu0
    %v2255 = vadd.f32 0.0, %v2254
    %v2256 = vpop.f32.mrf.mxu0
    %v2257 = vadd.f32 0.0, %v2256
    %2258 = vmatmul.bf16.gmra.mxu0 %v2066
    %v2259 = vpop.f32.mrf.mxu0
    %v2260 = vpop.f32.mrf.mxu0
    %v2261 = vadd.f32 0.0, %v2260
    %2262 = vmatmul.bf16.gmra.mxu0 %v2069
    %v2263 = vpop.f32.mrf.mxu0
    %v2264 = vadd.f32 0.0, %v2263
    %v2265 = vpop.f32.mrf.mxu0
    %2266 = vmatmul.bf16.gmra.mxu0 %v2072
    %v2267 = vpop.f32.mrf.mxu0
    %v2268 = vadd.f32 0.0, %v2267
    %v2269 = vpop.f32.mrf.mxu0
    %v2270 = vadd.f32 0.0, %v2269
    %2271 = vmatmul.bf16.gmra.mxu0 %v2075
    %v2272 = vpop.f32.mrf.mxu0
    %v2273 = vpop.f32.mrf.mxu0
    %v2274 = vadd.f32 0.0, %v2273
    %2275 = vmatmul.bf16.gmra.mxu0 %v2078
    %v2276 = vpop.f32.mrf.mxu0
    %v2277 = vadd.f32 0.0, %v2276
    %v2278 = vpop.f32.mrf.mxu0
    %2279 = vmatmul.bf16.gmra.mxu0 %v2081
    %v2280 = vpop.f32.mrf.mxu0
    %v2281 = vadd.f32 0.0, %v2280
    %v2282 = vpop.f32.mrf.mxu0
    %v2283 = vadd.f32 0.0, %v2282
    %2284 = vmatmul.bf16.gmra.mxu0 %v2084
    %v2285 = vpop.f32.mrf.mxu0
    %v2286 = vpop.f32.mrf.mxu0
    %v2287 = vadd.f32 0.0, %v2286
    %2288 = vmatmul.bf16.gmra.mxu0 %v2087
    %v2289 = vpop.f32.mrf.mxu0
    %v2290 = vadd.f32 0.0, %v2289
    %v2291 = vpop.f32.mrf.mxu0
    %2292 = vmatmul.bf16.gmra.mxu0 %v2090
    %v2293 = vpop.f32.mrf.mxu0
    %v2294 = vpop.f32.mrf.mxu0
    %2295 = vmatmul.bf16.gmra.mxu0 %v2093
    %v2296 = vpop.f32.mrf.mxu0
    %v2297 = vpop.f32.mrf.mxu0
    %2298 = vmatmul.bf16.gmra.mxu0 %v2096
    %v2299 = vpop.f32.mrf.mxu0
    %v2300 = vpop.f32.mrf.mxu0
    %2301 = vmatmul.bf16.gmra.mxu0 %v2099
    %v2302 = vpop.f32.mrf.mxu0
    %v2303 = vpop.f32.mrf.mxu0
    %2304 = vmatmul.bf16.gmra.mxu0 %v2102
    %v2305 = vpop.f32.mrf.mxu0
    %v2306 = vpop.f32.mrf.mxu0
    %v2307 = vadd.f32 0.0, %v2306
    %2308 = vmatmul.bf16.gmra.mxu0 %v2105
    %v2309 = vpop.f32.mrf.mxu0
    %v2310 = vadd.f32 0.0, %v2309
    %v2311 = vpop.f32.mrf.mxu0
    %2312 = vmatmul.bf16.gmra.mxu0 %v2108
    %v2313 = vpop.f32.mrf.mxu0
    %v2314 = vadd.f32 0.0, %v2313
    %v2315 = vpop.f32.mrf.mxu0
    %v2316 = vadd.f32 0.0, %v2315
    %2317 = vmatmul.bf16.gmra.mxu0 %v2111
    %v2318 = vpop.f32.mrf.mxu0
    %v2319 = vpop.f32.mrf.mxu0
    %v2320 = vadd.f32 0.0, %v2319
    %2321 = vmatmul.bf16.gmra.mxu0 %v2114
    %v2322 = vpop.f32.mrf.mxu0
    %v2323 = vadd.f32 0.0, %v2322
    %v2324 = vpop.f32.mrf.mxu0
    %2325 = vmatmul.bf16.gmra.mxu0 %v2117
    %v2326 = vpop.f32.mrf.mxu0
    %v2327 = vadd.f32 0.0, %v2326
    %v2328 = vpop.f32.mrf.mxu0
    %v2329 = vadd.f32 0.0, %v2328
    %2330 = vmatmul.bf16.gmra.mxu0 %v2120
    %v2331 = vpop.f32.mrf.mxu0
    %v2332 = vpop.f32.mrf.mxu0
    %v2333 = vadd.f32 0.0, %v2332
    %2334 = vmatmul.bf16.gmra.mxu0 %v2123
    %v2335 = vpop.f32.mrf.mxu0
    %v2336 = vadd.f32 0.0, %v2335
    %v2337 = vpop.f32.mrf.mxu0
    %2338 = vmatmul.bf16.gmra.mxu0 %v2126
    %v2339 = vpop.f32.mrf.mxu0
    %v2340 = vadd.f32 0.0, %v2339
    %v2341 = vpop.f32.mrf.mxu0
    %v2342 = vadd.f32 0.0, %v2341
    %2343 = vmatmul.bf16.gmra.mxu0 %v2129
    %v2344 = vpop.f32.mrf.mxu0
    %v2345 = vpop.f32.mrf.mxu0
    %v2346 = vadd.f32 0.0, %v2345
    %2347 = vmatmul.bf16.gmra.mxu0 %v2132
    %v2348 = vpop.f32.mrf.mxu0
    %v2349 = vadd.f32 0.0, %v2348
    %v2350 = vpop.f32.mrf.mxu0
    %2351 = vmatmul.bf16.gmra.mxu0 %v2135
    %v2352 = vpop.f32.mrf.mxu0
    %v2353 = vadd.f32 0.0, %v2352
    %v2354 = vpop.f32.mrf.mxu0
    %v2355 = vadd.f32 0.0, %v2354
    %2356 = vmatmul.bf16.gmra.mxu0 %v2138
    %v2357 = vpop.f32.mrf.mxu0
    %v2358 = vpop.f32.mrf.mxu0
    %v2359 = vadd.f32 0.0, %v2358
    %2360 = vmatmul.bf16.gmra.mxu0 %v2141
    %v2361 = vpop.f32.mrf.mxu0
    %v2362 = vadd.f32 0.0, %v2361
    %v2363 = vpop.f32.mrf.mxu0
    %2364 = vmatmul.bf16.gmra.mxu0 %v2144
    %v2365 = vpop.f32.mrf.mxu0
    %v2366 = vadd.f32 0.0, %v2365
    %v2367 = vpop.f32.mrf.mxu0
    %v2368 = vadd.f32 0.0, %v2367
    %2369 = vmatmul.bf16.gmra.mxu0 %v2147
    %v2370 = vpop.f32.mrf.mxu0
    %v2371 = vpop.f32.mrf.mxu0
    %v2372 = vadd.f32 0.0, %v2371
    %2373 = vmatmul.bf16.gmra.mxu0 %v2150
    %v2374 = vpop.f32.mrf.mxu0
    %v2375 = vadd.f32 0.0, %v2374
    %v2376 = vpop.f32.mrf.mxu0
    %2377 = vmatmul.bf16.gmra.mxu0 %v2153
    %v2378 = vpop.f32.mrf.mxu0
    %v2379 = vadd.f32 0.0, %v2378
    %v2380 = vpop.f32.mrf.mxu0
    %v2381 = vadd.f32 0.0, %v2380
    %2382 = vmatmul.bf16.gmra.mxu0 %v2156
    %v2383 = vpop.f32.mrf.mxu0
    %v2384 = vpop.f32.mrf.mxu0
    %v2385 = vadd.f32 0.0, %v2384
    %2386 = vmatmul.bf16.gmra.mxu0 %v2159
    %v2387 = vpop.f32.mrf.mxu0
    %v2388 = vadd.f32 0.0, %v2387
    %v2389 = vpop.f32.mrf.mxu0
    %2390 = vmatmul.bf16.gmra.mxu0 %v2162
    %v2391 = vpop.f32.mrf.mxu0
    %v2392 = vadd.f32 0.0, %v2391
    %v2393 = vpop.f32.mrf.mxu0
    %v2394 = vadd.f32 0.0, %v2393
    %2395 = vmatmul.bf16.gmra.mxu0 %v2165
    %v2396 = vpop.f32.mrf.mxu0
    %v2397 = vpop.f32.mrf.mxu0
    %v2398 = vadd.f32 0.0, %v2397
    %2399 = vmatmul.bf16.gmra.mxu0 %v2168
    %v2400 = vpop.f32.mrf.mxu0
    %v2401 = vadd.f32 0.0, %v2400
    %v2402 = vpop.f32.mrf.mxu0
    %2403 = vmatmul.bf16.gmra.mxu0 %v2171
    %v2404 = vpop.f32.mrf.mxu0
    %v2405 = vadd.f32 0.0, %v2404
    %v2406 = vpop.f32.mrf.mxu0
    %v2407 = vadd.f32 0.0, %v2406
    %2408 = vmatmul.bf16.gmra.mxu0 %v2174
    %v2409 = vpop.f32.mrf.mxu0
    %v2410 = vpop.f32.mrf.mxu0
    %2411 = vdwg.mxu0
    %v2412 = vpack.c.b16 %v1537, %v1537
    %v2413 = vsel %vm2016, %v1539, 0
    %v2415 = vsel %vm2016, %v1540, 0
    %v2417 = vsel %vm2016, %v1541, 0
    %v2419 = vsel %vm2016, %v1542, 0
    %v2421 = vsel %vm2016, %v1543, 0
    %v2423 = vsel %vm2016, %v1544, 0
    %v2425 = vsel %vm2016, %v1545, 0
    %v2427 = vsel %vm2016, %v1546, 0
    %v2429 = vsel %vm2016, %v1547, 0
    %v2431 = vsel %vm2016, %v1548, 0
    %v2433 = vsel %vm2016, %v1549, 0
    %v2435 = vsel %vm2016, %v1550, 0
    %v2437 = vsel %vm2016, %v1551, 0
    %v2439 = vsel %vm2016, %v1552, 0
    %v2441 = vsel %vm2016, %v1553, 0
    %v2443 = vsel %vm2016, %v1554, 0
    %v2445 = vsel %vm2016, %v1555, 0
    %v2447 = vsel %vm2016, %v1556, 0
    %v2449 = vsel %vm2016, %v1557, 0
    %v2451 = vsel %vm2016, %v1558, 0
    %v2453 = vsel %vm2016, %v1559, 0
    %v2455 = vsel %vm2016, %v1560, 0
    %v2457 = vsel %vm2016, %v1561, 0
    %v2459 = vsel %vm2016, %v1562, 0
    %v2461 = vsel %vm2016, %v1563, 0
    %v2463 = vsel %vm2016, %v1564, 0
    %v2465 = vsel %vm2016, %v1565, 0
    %v2467 = vsel %vm2016, %v1566, 0
    %v2469 = vsel %vm2016, %v1567, 0
    %v2471 = vsel %vm2016, %v1568, 0
    %v2473 = vsel %vm2016, %v1569, 0
    %v2475 = vsel %vm2016, %v1570, 0
    %v2477 = vsel %vm2016, %v1571, 0
    %v2479 = vsel %vm2016, %v1572, 0
    %v2481 = vsel %vm2016, %v1573, 0
    %v2483 = vsel %vm2016, %v1574, 0
    %v2485 = vsel %vm2016, %v1575, 0
    %v2487 = vsel %vm2016, %v1576, 0
    %v2489 = vsel %vm2016, %v1577, 0
    %v2491 = vsel %vm2016, %v1578, 0
    %v2493 = vsel %vm2016, %v1579, 0
    %v2495 = vsel %vm2016, %v1580, 0
    %v2497 = vsel %vm2016, %v1581, 0
    %v2499 = vsel %vm2016, %v1582, 0
    %v2501 = vsel %vm2016, %v1583, 0
    %v2503 = vsel %vm2016, %v1584, 0
    %v2505 = vsel %vm2016, %v1585, 0
    %v2507 = vsel %vm2016, %v1586, 0
    %v2509 = vsel %vm2016, %v1587, 0
    %v2511 = vsel %vm2016, %v1588, 0
    %v2513 = vsel %vm2016, %v1589, 0
    %v2515 = vsel %vm2016, %v1590, 0
    %v2518 = vsel %vm2016, %v2412, 0
    %v2521 = vsel %vm2176, %v1324, 0
    %2523 = vmatpush.bf16.msra.mxu0 0
    %2524 = vmatpush.bf16.msra.mxu0 0
    %2525 = vmatpush.bf16.msra.mxu0 0
    %2526 = vmatpush.bf16.msra.mxu0 0
    %2527 = vmatpush.bf16.msra.mxu0 0
    %2528 = vmatpush.bf16.msra.mxu0 0
    %2529 = vmatpush.bf16.msra.mxu0 0
    %2530 = vmatpush.bf16.msra.mxu0 %v2521
    %2531 = vmatmul.bf16.gmra.mxu0 %v2413
    %v2532 = vpop.f32.mrf.mxu0
    %v2533 = vadd.f32 %v2190, %v2532
    %v2534 = vpop.f32.mrf.mxu0
    %v2535 = vadd.f32 %v2192, %v2534
    %2536 = vmatmul.bf16.gmra.mxu0 %v2415
    %v2537 = vpop.f32.mrf.mxu0
    %v2538 = vpop.f32.mrf.mxu0
    %v2539 = vadd.f32 %v2196, %v2538
    %2540 = vmatmul.bf16.gmra.mxu0 %v2417
    %v2541 = vpop.f32.mrf.mxu0
    %v2542 = vadd.f32 %v2199, %v2541
    %v2543 = vpop.f32.mrf.mxu0
    %2544 = vmatmul.bf16.gmra.mxu0 %v2419
    %v2545 = vpop.f32.mrf.mxu0
    %v2546 = vadd.f32 %v2203, %v2545
    %v2547 = vpop.f32.mrf.mxu0
    %v2548 = vadd.f32 %v2205, %v2547
    %2549 = vmatmul.bf16.gmra.mxu0 %v2421
    %v2550 = vpop.f32.mrf.mxu0
    %v2551 = vpop.f32.mrf.mxu0
    %v2552 = vadd.f32 %v2209, %v2551
    %2553 = vmatmul.bf16.gmra.mxu0 %v2423
    %v2554 = vpop.f32.mrf.mxu0
    %v2555 = vadd.f32 %v2212, %v2554
    %v2556 = vpop.f32.mrf.mxu0
    %2557 = vmatmul.bf16.gmra.mxu0 %v2425
    %v2558 = vpop.f32.mrf.mxu0
    %v2559 = vadd.f32 %v2216, %v2558
    %v2560 = vpop.f32.mrf.mxu0
    %v2561 = vadd.f32 %v2218, %v2560
    %2562 = vmatmul.bf16.gmra.mxu0 %v2427
    %v2563 = vpop.f32.mrf.mxu0
    %v2564 = vpop.f32.mrf.mxu0
    %v2565 = vadd.f32 %v2222, %v2564
    %2566 = vmatmul.bf16.gmra.mxu0 %v2429
    %v2567 = vpop.f32.mrf.mxu0
    %v2568 = vadd.f32 %v2225, %v2567
    %v2569 = vpop.f32.mrf.mxu0
    %2570 = vmatmul.bf16.gmra.mxu0 %v2431
    %v2571 = vpop.f32.mrf.mxu0
    %v2572 = vadd.f32 %v2229, %v2571
    %v2573 = vpop.f32.mrf.mxu0
    %v2574 = vadd.f32 %v2231, %v2573
    %2575 = vmatmul.bf16.gmra.mxu0 %v2433
    %v2576 = vpop.f32.mrf.mxu0
    %v2577 = vpop.f32.mrf.mxu0
    %v2578 = vadd.f32 %v2235, %v2577
    %2579 = vmatmul.bf16.gmra.mxu0 %v2435
    %v2580 = vpop.f32.mrf.mxu0
    %v2581 = vadd.f32 %v2238, %v2580
    %v2582 = vpop.f32.mrf.mxu0
    %2583 = vmatmul.bf16.gmra.mxu0 %v2437
    %v2584 = vpop.f32.mrf.mxu0
    %v2585 = vadd.f32 %v2242, %v2584
    %v2586 = vpop.f32.mrf.mxu0
    %v2587 = vadd.f32 %v2244, %v2586
    %2588 = vmatmul.bf16.gmra.mxu0 %v2439
    %v2589 = vpop.f32.mrf.mxu0
    %v2590 = vpop.f32.mrf.mxu0
    %v2591 = vadd.f32 %v2248, %v2590
    %2592 = vmatmul.bf16.gmra.mxu0 %v2441
    %v2593 = vpop.f32.mrf.mxu0
    %v2594 = vadd.f32 %v2251, %v2593
    %v2595 = vpop.f32.mrf.mxu0
    %2596 = vmatmul.bf16.gmra.mxu0 %v2443
    %v2597 = vpop.f32.mrf.mxu0
    %v2598 = vadd.f32 %v2255, %v2597
    %v2599 = vpop.f32.mrf.mxu0
    %v2600 = vadd.f32 %v2257, %v2599
    %2601 = vmatmul.bf16.gmra.mxu0 %v2445
    %v2602 = vpop.f32.mrf.mxu0
    %v2603 = vpop.f32.mrf.mxu0
    %v2604 = vadd.f32 %v2261, %v2603
    %2605 = vmatmul.bf16.gmra.mxu0 %v2447
    %v2606 = vpop.f32.mrf.mxu0
    %v2607 = vadd.f32 %v2264, %v2606
    %v2608 = vpop.f32.mrf.mxu0
    %2609 = vmatmul.bf16.gmra.mxu0 %v2449
    %v2610 = vpop.f32.mrf.mxu0
    %v2611 = vadd.f32 %v2268, %v2610
    %v2612 = vpop.f32.mrf.mxu0
    %v2613 = vadd.f32 %v2270, %v2612
    %2614 = vmatmul.bf16.gmra.mxu0 %v2451
    %v2615 = vpop.f32.mrf.mxu0
    %v2616 = vpop.f32.mrf.mxu0
    %v2617 = vadd.f32 %v2274, %v2616
    %2618 = vmatmul.bf16.gmra.mxu0 %v2453
    %v2619 = vpop.f32.mrf.mxu0
    %v2620 = vadd.f32 %v2277, %v2619
    %v2621 = vpop.f32.mrf.mxu0
    %2622 = vmatmul.bf16.gmra.mxu0 %v2455
    %v2623 = vpop.f32.mrf.mxu0
    %v2624 = vadd.f32 %v2281, %v2623
    %v2625 = vpop.f32.mrf.mxu0
    %v2626 = vadd.f32 %v2283, %v2625
    %2627 = vmatmul.bf16.gmra.mxu0 %v2457
    %v2628 = vpop.f32.mrf.mxu0
    %v2629 = vpop.f32.mrf.mxu0
    %v2630 = vadd.f32 %v2287, %v2629
    %2631 = vmatmul.bf16.gmra.mxu0 %v2459
    %v2632 = vpop.f32.mrf.mxu0
    %v2633 = vadd.f32 %v2290, %v2632
    %v2634 = vpop.f32.mrf.mxu0
    %2635 = vmatmul.bf16.gmra.mxu0 %v2461
    %v2636 = vpop.f32.mrf.mxu0
    %v2637 = vpop.f32.mrf.mxu0
    %2638 = vmatmul.bf16.gmra.mxu0 %v2463
    %v2639 = vpop.f32.mrf.mxu0
    %v2640 = vpop.f32.mrf.mxu0
    %2641 = vmatmul.bf16.gmra.mxu0 %v2465
    %v2642 = vpop.f32.mrf.mxu0
    %v2643 = vpop.f32.mrf.mxu0
    %2644 = vmatmul.bf16.gmra.mxu0 %v2467
    %v2645 = vpop.f32.mrf.mxu0
    %v2646 = vpop.f32.mrf.mxu0
    %2647 = vmatmul.bf16.gmra.mxu0 %v2469
    %v2648 = vpop.f32.mrf.mxu0
    %v2649 = vpop.f32.mrf.mxu0
    %v2650 = vadd.f32 %v2307, %v2649
    %2651 = vmatmul.bf16.gmra.mxu0 %v2471
    %v2652 = vpop.f32.mrf.mxu0
    %v2653 = vadd.f32 %v2310, %v2652
    %v2654 = vpop.f32.mrf.mxu0
    %2655 = vmatmul.bf16.gmra.mxu0 %v2473
    %v2656 = vpop.f32.mrf.mxu0
    %v2657 = vadd.f32 %v2314, %v2656
    %v2658 = vpop.f32.mrf.mxu0
    %v2659 = vadd.f32 %v2316, %v2658
    %2660 = vmatmul.bf16.gmra.mxu0 %v2475
    %v2661 = vpop.f32.mrf.mxu0
    %v2662 = vpop.f32.mrf.mxu0
    %v2663 = vadd.f32 %v2320, %v2662
    %2664 = vmatmul.bf16.gmra.mxu0 %v2477
    %v2665 = vpop.f32.mrf.mxu0
    %v2666 = vadd.f32 %v2323, %v2665
    %v2667 = vpop.f32.mrf.mxu0
    %2668 = vmatmul.bf16.gmra.mxu0 %v2479
    %v2669 = vpop.f32.mrf.mxu0
    %v2670 = vadd.f32 %v2327, %v2669
    %v2671 = vpop.f32.mrf.mxu0
    %v2672 = vadd.f32 %v2329, %v2671
    %2673 = vmatmul.bf16.gmra.mxu0 %v2481
    %v2674 = vpop.f32.mrf.mxu0
    %v2675 = vpop.f32.mrf.mxu0
    %v2676 = vadd.f32 %v2333, %v2675
    %2677 = vmatmul.bf16.gmra.mxu0 %v2483
    %v2678 = vpop.f32.mrf.mxu0
    %v2679 = vadd.f32 %v2336, %v2678
    %v2680 = vpop.f32.mrf.mxu0
    %2681 = vmatmul.bf16.gmra.mxu0 %v2485
    %v2682 = vpop.f32.mrf.mxu0
    %v2683 = vadd.f32 %v2340, %v2682
    %v2684 = vpop.f32.mrf.mxu0
    %v2685 = vadd.f32 %v2342, %v2684
    %2686 = vmatmul.bf16.gmra.mxu0 %v2487
    %v2687 = vpop.f32.mrf.mxu0
    %v2688 = vpop.f32.mrf.mxu0
    %v2689 = vadd.f32 %v2346, %v2688
    %2690 = vmatmul.bf16.gmra.mxu0 %v2489
    %v2691 = vpop.f32.mrf.mxu0
    %v2692 = vadd.f32 %v2349, %v2691
    %v2693 = vpop.f32.mrf.mxu0
    %2694 = vmatmul.bf16.gmra.mxu0 %v2491
    %v2695 = vpop.f32.mrf.mxu0
    %v2696 = vadd.f32 %v2353, %v2695
    %v2697 = vpop.f32.mrf.mxu0
    %v2698 = vadd.f32 %v2355, %v2697
    %2699 = vmatmul.bf16.gmra.mxu0 %v2493
    %v2700 = vpop.f32.mrf.mxu0
    %v2701 = vpop.f32.mrf.mxu0
    %v2702 = vadd.f32 %v2359, %v2701
    %2703 = vmatmul.bf16.gmra.mxu0 %v2495
    %v2704 = vpop.f32.mrf.mxu0
    %v2705 = vadd.f32 %v2362, %v2704
    %v2706 = vpop.f32.mrf.mxu0
    %2707 = vmatmul.bf16.gmra.mxu0 %v2497
    %v2708 = vpop.f32.mrf.mxu0
    %v2709 = vadd.f32 %v2366, %v2708
    %v2710 = vpop.f32.mrf.mxu0
    %v2711 = vadd.f32 %v2368, %v2710
    %2712 = vmatmul.bf16.gmra.mxu0 %v2499
    %v2713 = vpop.f32.mrf.mxu0
    %v2714 = vpop.f32.mrf.mxu0
    %v2715 = vadd.f32 %v2372, %v2714
    %2716 = vmatmul.bf16.gmra.mxu0 %v2501
    %v2717 = vpop.f32.mrf.mxu0
    %v2718 = vadd.f32 %v2375, %v2717
    %v2719 = vpop.f32.mrf.mxu0
    %2720 = vmatmul.bf16.gmra.mxu0 %v2503
    %v2721 = vpop.f32.mrf.mxu0
    %v2722 = vadd.f32 %v2379, %v2721
    %v2723 = vpop.f32.mrf.mxu0
    %v2724 = vadd.f32 %v2381, %v2723
    %2725 = vmatmul.bf16.gmra.mxu0 %v2505
    %v2726 = vpop.f32.mrf.mxu0
    %v2727 = vpop.f32.mrf.mxu0
    %v2728 = vadd.f32 %v2385, %v2727
    %2729 = vmatmul.bf16.gmra.mxu0 %v2507
    %v2730 = vpop.f32.mrf.mxu0
    %v2731 = vadd.f32 %v2388, %v2730
    %v2732 = vpop.f32.mrf.mxu0
    %2733 = vmatmul.bf16.gmra.mxu0 %v2509
    %v2734 = vpop.f32.mrf.mxu0
    %v2735 = vadd.f32 %v2392, %v2734
    %v2736 = vpop.f32.mrf.mxu0
    %v2737 = vadd.f32 %v2394, %v2736
    %2738 = vmatmul.bf16.gmra.mxu0 %v2511
    %v2739 = vpop.f32.mrf.mxu0
    %v2740 = vpop.f32.mrf.mxu0
    %v2741 = vadd.f32 %v2398, %v2740
    %2742 = vmatmul.bf16.gmra.mxu0 %v2513
    %v2743 = vpop.f32.mrf.mxu0
    %v2744 = vadd.f32 %v2401, %v2743
    %v2745 = vpop.f32.mrf.mxu0
    %2746 = vmatmul.bf16.gmra.mxu0 %v2515
    %v2747 = vpop.f32.mrf.mxu0
    %v2748 = vadd.f32 %v2405, %v2747
    %v2749 = vpop.f32.mrf.mxu0
    %v2750 = vadd.f32 %v2407, %v2749
    %2751 = vmatmul.bf16.gmra.mxu0 %v2518
    %v2752 = vpop.f32.mrf.mxu0
    %v2753 = vpop.f32.mrf.mxu0
    %2754 = vdwg.mxu0
    %s2755 = scalar_lea.vmem %s1, 8
    %v2756 = vld [vmem:[%s2755] sm:$0xf]
    %vm2757 = vcmask 1046528
    %v2758 = vrot.slane %v1539, 1
    %v2759 = vrot.slane %v1540, 1
    %v2760 = vsel %vm2757, %v2758, %v2759
    %v2761 = vrot.slane %v1541, 1
    %v2762 = vsel %vm2757, %v2759, %v2761
    %v2763 = vrot.slane %v1542, 1
    %v2764 = vsel %vm2757, %v2761, %v2763
    %v2765 = vrot.slane %v1543, 1
    %v2766 = vsel %vm2757, %v2763, %v2765
    %v2767 = vrot.slane %v1544, 1
    %v2768 = vsel %vm2757, %v2765, %v2767
    %v2769 = vrot.slane %v1545, 1
    %v2770 = vsel %vm2757, %v2767, %v2769
    %v2771 = vrot.slane %v1546, 1
    %v2772 = vsel %vm2757, %v2769, %v2771
    %v2773 = vrot.slane %v1547, 1
    %v2774 = vsel %vm2757, %v2771, %v2773
    %v2775 = vrot.slane %v1548, 1
    %v2776 = vsel %vm2757, %v2773, %v2775
    %v2777 = vrot.slane %v1549, 1
    %v2778 = vsel %vm2757, %v2775, %v2777
    %v2779 = vrot.slane %v1550, 1
    %v2780 = vsel %vm2757, %v2777, %v2779
    %v2781 = vrot.slane %v1551, 1
    %v2782 = vsel %vm2757, %v2779, %v2781
    %v2783 = vrot.slane %v1552, 1
    %v2784 = vsel %vm2757, %v2781, %v2783
    %v2785 = vrot.slane %v1553, 1
    %v2786 = vsel %vm2757, %v2783, %v2785
    %v2787 = vrot.slane %v1554, 1
    %v2788 = vsel %vm2757, %v2785, %v2787
    %v2789 = vrot.slane %v1555, 1
    %v2790 = vsel %vm2757, %v2787, %v2789
    %v2791 = vrot.slane %v1556, 1
    %v2792 = vsel %vm2757, %v2789, %v2791
    %v2793 = vrot.slane %v1557, 1
    %v2794 = vsel %vm2757, %v2791, %v2793
    %v2795 = vrot.slane %v1558, 1
    %v2796 = vsel %vm2757, %v2793, %v2795
    %v2797 = vrot.slane %v1559, 1
    %v2798 = vsel %vm2757, %v2795, %v2797
    %v2799 = vrot.slane %v1560, 1
    %v2800 = vsel %vm2757, %v2797, %v2799
    %v2801 = vrot.slane %v1561, 1
    %v2802 = vsel %vm2757, %v2799, %v2801
    %v2803 = vrot.slane %v1562, 1
    %v2804 = vsel %vm2757, %v2801, %v2803
    %v2805 = vrot.slane %v1563, 1
    %v2806 = vsel %vm2757, %v2803, %v2805
    %v2807 = vrot.slane %v1564, 1
    %v2808 = vsel %vm2757, %v2805, %v2807
    %v2809 = vrot.slane %v1565, 1
    %v2810 = vsel %vm2757, %v2807, %v2809
    %v2811 = vrot.slane %v1566, 1
    %v2812 = vsel %vm2757, %v2809, %v2811
    %v2813 = vrot.slane %v1567, 1
    %v2814 = vsel %vm2757, %v2811, %v2813
    %v2815 = vrot.slane %v1568, 1
    %v2816 = vsel %vm2757, %v2813, %v2815
    %v2817 = vrot.slane %v1569, 1
    %v2818 = vsel %vm2757, %v2815, %v2817
    %v2819 = vrot.slane %v1570, 1
    %v2820 = vsel %vm2757, %v2817, %v2819
    %v2821 = vrot.slane %v1571, 1
    %v2822 = vsel %vm2757, %v2819, %v2821
    %v2823 = vrot.slane %v1572, 1
    %v2824 = vsel %vm2757, %v2821, %v2823
    %v2825 = vrot.slane %v1573, 1
    %v2826 = vsel %vm2757, %v2823, %v2825
    %v2827 = vrot.slane %v1574, 1
    %v2828 = vsel %vm2757, %v2825, %v2827
    %v2829 = vrot.slane %v1575, 1
    %v2830 = vsel %vm2757, %v2827, %v2829
    %v2831 = vrot.slane %v1576, 1
    %v2832 = vsel %vm2757, %v2829, %v2831
    %v2833 = vrot.slane %v1577, 1
    %v2834 = vsel %vm2757, %v2831, %v2833
    %v2835 = vrot.slane %v1578, 1
    %v2836 = vsel %vm2757, %v2833, %v2835
    %v2837 = vrot.slane %v1579, 1
    %v2838 = vsel %vm2757, %v2835, %v2837
    %v2839 = vrot.slane %v1580, 1
    %v2840 = vsel %vm2757, %v2837, %v2839
    %v2841 = vrot.slane %v1581, 1
    %v2842 = vsel %vm2757, %v2839, %v2841
    %v2843 = vrot.slane %v1582, 1
    %v2844 = vsel %vm2757, %v2841, %v2843
    %v2845 = vrot.slane %v1583, 1
    %v2846 = vsel %vm2757, %v2843, %v2845
    %v2847 = vrot.slane %v1584, 1
    %v2848 = vsel %vm2757, %v2845, %v2847
    %v2849 = vrot.slane %v1585, 1
    %v2850 = vsel %vm2757, %v2847, %v2849
    %v2851 = vrot.slane %v1586, 1
    %v2852 = vsel %vm2757, %v2849, %v2851
    %v2853 = vrot.slane %v1587, 1
    %v2854 = vsel %vm2757, %v2851, %v2853
    %v2855 = vrot.slane %v1588, 1
    %v2856 = vsel %vm2757, %v2853, %v2855
    %v2857 = vrot.slane %v1589, 1
    %v2858 = vsel %vm2757, %v2855, %v2857
    %v2859 = vrot.slane %v1590, 1
    %v2860 = vsel %vm2757, %v2857, %v2859
    %v2861 = vrot.slane %v1591, 1
    %v2862 = vsel %vm2757, %v2859, %v2861
    %v2864 = vsel %vm2016, %v2760, 0
    %v2867 = vsel %vm2016, %v2762, 0
    %v2870 = vsel %vm2016, %v2764, 0
    %v2873 = vsel %vm2016, %v2766, 0
    %v2876 = vsel %vm2016, %v2768, 0
    %v2879 = vsel %vm2016, %v2770, 0
    %v2882 = vsel %vm2016, %v2772, 0
    %v2885 = vsel %vm2016, %v2774, 0
    %v2888 = vsel %vm2016, %v2776, 0
    %v2891 = vsel %vm2016, %v2778, 0
    %v2894 = vsel %vm2016, %v2780, 0
    %v2897 = vsel %vm2016, %v2782, 0
    %v2900 = vsel %vm2016, %v2784, 0
    %v2903 = vsel %vm2016, %v2786, 0
    %v2906 = vsel %vm2016, %v2788, 0
    %v2909 = vsel %vm2016, %v2790, 0
    %v2912 = vsel %vm2016, %v2792, 0
    %v2915 = vsel %vm2016, %v2794, 0
    %v2918 = vsel %vm2016, %v2796, 0
    %v2921 = vsel %vm2016, %v2798, 0
    %v2924 = vsel %vm2016, %v2800, 0
    %v2927 = vsel %vm2016, %v2802, 0
    %v2930 = vsel %vm2016, %v2804, 0
    %v2933 = vsel %vm2016, %v2806, 0
    %v2936 = vsel %vm2016, %v2808, 0
    %v2939 = vsel %vm2016, %v2810, 0
    %v2942 = vsel %vm2016, %v2812, 0
    %v2945 = vsel %vm2016, %v2814, 0
    %v2948 = vsel %vm2016, %v2816, 0
    %v2951 = vsel %vm2016, %v2818, 0
    %v2954 = vsel %vm2016, %v2820, 0
    %v2957 = vsel %vm2016, %v2822, 0
    %v2960 = vsel %vm2016, %v2824, 0
    %v2963 = vsel %vm2016, %v2826, 0
    %v2966 = vsel %vm2016, %v2828, 0
    %v2969 = vsel %vm2016, %v2830, 0
    %v2972 = vsel %vm2016, %v2832, 0
    %v2975 = vsel %vm2016, %v2834, 0
    %v2978 = vsel %vm2016, %v2836, 0
    %v2981 = vsel %vm2016, %v2838, 0
    %v2984 = vsel %vm2016, %v2840, 0
    %v2987 = vsel %vm2016, %v2842, 0
    %v2990 = vsel %vm2016, %v2844, 0
    %v2993 = vsel %vm2016, %v2846, 0
    %v2996 = vsel %vm2016, %v2848, 0
    %v2999 = vsel %vm2016, %v2850, 0
    %v3002 = vsel %vm2016, %v2852, 0
    %v3005 = vsel %vm2016, %v2854, 0
    %v3008 = vsel %vm2016, %v2856, 0
    %v3011 = vsel %vm2016, %v2858, 0
    %v3014 = vsel %vm2016, %v2860, 0
    %v3017 = vsel %vm2016, %v2862, 0
    %v3020 = vsel %vm2016, %v2861, 0
    %v3023 = vsel %vm2176, %v2756, 0
    %3025 = vmatpush.bf16.msra.mxu0 0
    %3026 = vmatpush.bf16.msra.mxu0 0
    %3027 = vmatpush.bf16.msra.mxu0 0
    %3028 = vmatpush.bf16.msra.mxu0 0
    %3029 = vmatpush.bf16.msra.mxu0 0
    %3030 = vmatpush.bf16.msra.mxu0 0
    %3031 = vmatpush.bf16.msra.mxu0 0
    %3032 = vmatpush.bf16.msra.mxu0 %v3023
    %3033 = vmatmul.bf16.gmra.mxu0 %v2864
    %v3034 = vpop.f32.mrf.mxu0
    %v3035 = vadd.f32 0.0, %v3034
    %v3036 = vpop.f32.mrf.mxu0
    %v3037 = vadd.f32 0.0, %v3036
    %3038 = vmatmul.bf16.gmra.mxu0 %v2867
    %v3039 = vpop.f32.mrf.mxu0
    %v3040 = vpop.f32.mrf.mxu0
    %v3041 = vadd.f32 0.0, %v3040
    %3042 = vmatmul.bf16.gmra.mxu0 %v2870
    %v3043 = vpop.f32.mrf.mxu0
    %v3044 = vadd.f32 0.0, %v3043
    %v3045 = vpop.f32.mrf.mxu0
    %3046 = vmatmul.bf16.gmra.mxu0 %v2873
    %v3047 = vpop.f32.mrf.mxu0
    %v3048 = vadd.f32 0.0, %v3047
    %v3049 = vpop.f32.mrf.mxu0
    %v3050 = vadd.f32 0.0, %v3049
    %3051 = vmatmul.bf16.gmra.mxu0 %v2876
    %v3052 = vpop.f32.mrf.mxu0
    %v3053 = vpop.f32.mrf.mxu0
    %v3054 = vadd.f32 0.0, %v3053
    %3055 = vmatmul.bf16.gmra.mxu0 %v2879
    %v3056 = vpop.f32.mrf.mxu0
    %v3057 = vadd.f32 0.0, %v3056
    %v3058 = vpop.f32.mrf.mxu0
    %3059 = vmatmul.bf16.gmra.mxu0 %v2882
    %v3060 = vpop.f32.mrf.mxu0
    %v3061 = vadd.f32 0.0, %v3060
    %v3062 = vpop.f32.mrf.mxu0
    %v3063 = vadd.f32 0.0, %v3062
    %3064 = vmatmul.bf16.gmra.mxu0 %v2885
    %v3065 = vpop.f32.mrf.mxu0
    %v3066 = vpop.f32.mrf.mxu0
    %v3067 = vadd.f32 0.0, %v3066
    %3068 = vmatmul.bf16.gmra.mxu0 %v2888
    %v3069 = vpop.f32.mrf.mxu0
    %v3070 = vadd.f32 0.0, %v3069
    %v3071 = vpop.f32.mrf.mxu0
    %3072 = vmatmul.bf16.gmra.mxu0 %v2891
    %v3073 = vpop.f32.mrf.mxu0
    %v3074 = vadd.f32 0.0, %v3073
    %v3075 = vpop.f32.mrf.mxu0
    %v3076 = vadd.f32 0.0, %v3075
    %3077 = vmatmul.bf16.gmra.mxu0 %v2894
    %v3078 = vpop.f32.mrf.mxu0
    %v3079 = vpop.f32.mrf.mxu0
    %v3080 = vadd.f32 0.0, %v3079
    %3081 = vmatmul.bf16.gmra.mxu0 %v2897
    %v3082 = vpop.f32.mrf.mxu0
    %v3083 = vadd.f32 0.0, %v3082
    %v3084 = vpop.f32.mrf.mxu0
    %3085 = vmatmul.bf16.gmra.mxu0 %v2900
    %v3086 = vpop.f32.mrf.mxu0
    %v3087 = vadd.f32 0.0, %v3086
    %v3088 = vpop.f32.mrf.mxu0
    %v3089 = vadd.f32 0.0, %v3088
    %3090 = vmatmul.bf16.gmra.mxu0 %v2903
    %v3091 = vpop.f32.mrf.mxu0
    %v3092 = vpop.f32.mrf.mxu0
    %v3093 = vadd.f32 0.0, %v3092
    %3094 = vmatmul.bf16.gmra.mxu0 %v2906
    %v3095 = vpop.f32.mrf.mxu0
    %v3096 = vadd.f32 0.0, %v3095
    %v3097 = vpop.f32.mrf.mxu0
    %3098 = vmatmul.bf16.gmra.mxu0 %v2909
    %v3099 = vpop.f32.mrf.mxu0
    %v3100 = vadd.f32 0.0, %v3099
    %v3101 = vpop.f32.mrf.mxu0
    %v3102 = vadd.f32 0.0, %v3101
    %3103 = vmatmul.bf16.gmra.mxu0 %v2912
    %v3104 = vpop.f32.mrf.mxu0
    %v3105 = vpop.f32.mrf.mxu0
    %v3106 = vadd.f32 0.0, %v3105
    %3107 = vmatmul.bf16.gmra.mxu0 %v2915
    %v3108 = vpop.f32.mrf.mxu0
    %v3109 = vadd.f32 0.0, %v3108
    %v3110 = vpop.f32.mrf.mxu0
    %3111 = vmatmul.bf16.gmra.mxu0 %v2918
    %v3112 = vpop.f32.mrf.mxu0
    %v3113 = vadd.f32 0.0, %v3112
    %v3114 = vpop.f32.mrf.mxu0
    %v3115 = vadd.f32 0.0, %v3114
    %3116 = vmatmul.bf16.gmra.mxu0 %v2921
    %v3117 = vpop.f32.mrf.mxu0
    %v3118 = vpop.f32.mrf.mxu0
    %v3119 = vadd.f32 0.0, %v3118
    %3120 = vmatmul.bf16.gmra.mxu0 %v2924
    %v3121 = vpop.f32.mrf.mxu0
    %v3122 = vadd.f32 0.0, %v3121
    %v3123 = vpop.f32.mrf.mxu0
    %3124 = vmatmul.bf16.gmra.mxu0 %v2927
    %v3125 = vpop.f32.mrf.mxu0
    %v3126 = vadd.f32 0.0, %v3125
    %v3127 = vpop.f32.mrf.mxu0
    %v3128 = vadd.f32 0.0, %v3127
    %3129 = vmatmul.bf16.gmra.mxu0 %v2930
    %v3130 = vpop.f32.mrf.mxu0
    %v3131 = vpop.f32.mrf.mxu0
    %v3132 = vadd.f32 0.0, %v3131
    %3133 = vmatmul.bf16.gmra.mxu0 %v2933
    %v3134 = vpop.f32.mrf.mxu0
    %v3135 = vadd.f32 0.0, %v3134
    %v3136 = vpop.f32.mrf.mxu0
    %3137 = vmatmul.bf16.gmra.mxu0 %v2936
    %v3138 = vpop.f32.mrf.mxu0
    %v3139 = vpop.f32.mrf.mxu0
    %3140 = vmatmul.bf16.gmra.mxu0 %v2939
    %v3141 = vpop.f32.mrf.mxu0
    %v3142 = vpop.f32.mrf.mxu0
    %3143 = vmatmul.bf16.gmra.mxu0 %v2942
    %v3144 = vpop.f32.mrf.mxu0
    %v3145 = vpop.f32.mrf.mxu0
    %3146 = vmatmul.bf16.gmra.mxu0 %v2945
    %v3147 = vpop.f32.mrf.mxu0
    %v3148 = vpop.f32.mrf.mxu0
    %3149 = vmatmul.bf16.gmra.mxu0 %v2948
    %v3150 = vpop.f32.mrf.mxu0
    %v3151 = vpop.f32.mrf.mxu0
    %v3152 = vadd.f32 0.0, %v3151
    %3153 = vmatmul.bf16.gmra.mxu0 %v2951
    %v3154 = vpop.f32.mrf.mxu0
    %v3155 = vadd.f32 0.0, %v3154
    %v3156 = vpop.f32.mrf.mxu0
    %3157 = vmatmul.bf16.gmra.mxu0 %v2954
    %v3158 = vpop.f32.mrf.mxu0
    %v3159 = vadd.f32 0.0, %v3158
    %v3160 = vpop.f32.mrf.mxu0
    %v3161 = vadd.f32 0.0, %v3160
    %3162 = vmatmul.bf16.gmra.mxu0 %v2957
    %v3163 = vpop.f32.mrf.mxu0
    %v3164 = vpop.f32.mrf.mxu0
    %v3165 = vadd.f32 0.0, %v3164
    %3166 = vmatmul.bf16.gmra.mxu0 %v2960
    %v3167 = vpop.f32.mrf.mxu0
    %v3168 = vadd.f32 0.0, %v3167
    %v3169 = vpop.f32.mrf.mxu0
    %3170 = vmatmul.bf16.gmra.mxu0 %v2963
    %v3171 = vpop.f32.mrf.mxu0
    %v3172 = vadd.f32 0.0, %v3171
    %v3173 = vpop.f32.mrf.mxu0
    %v3174 = vadd.f32 0.0, %v3173
    %3175 = vmatmul.bf16.gmra.mxu0 %v2966
    %v3176 = vpop.f32.mrf.mxu0
    %v3177 = vpop.f32.mrf.mxu0
    %v3178 = vadd.f32 0.0, %v3177
    %3179 = vmatmul.bf16.gmra.mxu0 %v2969
    %v3180 = vpop.f32.mrf.mxu0
    %v3181 = vadd.f32 0.0, %v3180
    %v3182 = vpop.f32.mrf.mxu0
    %3183 = vmatmul.bf16.gmra.mxu0 %v2972
    %v3184 = vpop.f32.mrf.mxu0
    %v3185 = vadd.f32 0.0, %v3184
    %v3186 = vpop.f32.mrf.mxu0
    %v3187 = vadd.f32 0.0, %v3186
    %3188 = vmatmul.bf16.gmra.mxu0 %v2975
    %v3189 = vpop.f32.mrf.mxu0
    %v3190 = vpop.f32.mrf.mxu0
    %v3191 = vadd.f32 0.0, %v3190
    %3192 = vmatmul.bf16.gmra.mxu0 %v2978
    %v3193 = vpop.f32.mrf.mxu0
    %v3194 = vadd.f32 0.0, %v3193
    %v3195 = vpop.f32.mrf.mxu0
    %3196 = vmatmul.bf16.gmra.mxu0 %v2981
    %v3197 = vpop.f32.mrf.mxu0
    %v3198 = vadd.f32 0.0, %v3197
    %v3199 = vpop.f32.mrf.mxu0
    %v3200 = vadd.f32 0.0, %v3199
    %3201 = vmatmul.bf16.gmra.mxu0 %v2984
    %v3202 = vpop.f32.mrf.mxu0
    %v3203 = vpop.f32.mrf.mxu0
    %v3204 = vadd.f32 0.0, %v3203
    %3205 = vmatmul.bf16.gmra.mxu0 %v2987
    %v3206 = vpop.f32.mrf.mxu0
    %v3207 = vadd.f32 0.0, %v3206
    %v3208 = vpop.f32.mrf.mxu0
    %3209 = vmatmul.bf16.gmra.mxu0 %v2990
    %v3210 = vpop.f32.mrf.mxu0
    %v3211 = vadd.f32 0.0, %v3210
    %v3212 = vpop.f32.mrf.mxu0
    %v3213 = vadd.f32 0.0, %v3212
    %3214 = vmatmul.bf16.gmra.mxu0 %v2993
    %v3215 = vpop.f32.mrf.mxu0
    %v3216 = vpop.f32.mrf.mxu0
    %v3217 = vadd.f32 0.0, %v3216
    %3218 = vmatmul.bf16.gmra.mxu0 %v2996
    %v3219 = vpop.f32.mrf.mxu0
    %v3220 = vadd.f32 0.0, %v3219
    %v3221 = vpop.f32.mrf.mxu0
    %3222 = vmatmul.bf16.gmra.mxu0 %v2999
    %v3223 = vpop.f32.mrf.mxu0
    %v3224 = vadd.f32 0.0, %v3223
    %v3225 = vpop.f32.mrf.mxu0
    %v3226 = vadd.f32 0.0, %v3225
    %3227 = vmatmul.bf16.gmra.mxu0 %v3002
    %v3228 = vpop.f32.mrf.mxu0
    %v3229 = vpop.f32.mrf.mxu0
    %v3230 = vadd.f32 0.0, %v3229
    %3231 = vmatmul.bf16.gmra.mxu0 %v3005
    %v3232 = vpop.f32.mrf.mxu0
    %v3233 = vadd.f32 0.0, %v3232
    %v3234 = vpop.f32.mrf.mxu0
    %3235 = vmatmul.bf16.gmra.mxu0 %v3008
    %v3236 = vpop.f32.mrf.mxu0
    %v3237 = vadd.f32 0.0, %v3236
    %v3238 = vpop.f32.mrf.mxu0
    %v3239 = vadd.f32 0.0, %v3238
    %3240 = vmatmul.bf16.gmra.mxu0 %v3011
    %v3241 = vpop.f32.mrf.mxu0
    %v3242 = vpop.f32.mrf.mxu0
    %v3243 = vadd.f32 0.0, %v3242
    %3244 = vmatmul.bf16.gmra.mxu0 %v3014
    %v3245 = vpop.f32.mrf.mxu0
    %v3246 = vadd.f32 0.0, %v3245
    %v3247 = vpop.f32.mrf.mxu0
    %3248 = vmatmul.bf16.gmra.mxu0 %v3017
    %v3249 = vpop.f32.mrf.mxu0
    %v3250 = vadd.f32 0.0, %v3249
    %v3251 = vpop.f32.mrf.mxu0
    %v3252 = vadd.f32 0.0, %v3251
    %3253 = vmatmul.bf16.gmra.mxu0 %v3020
    %v3254 = vpop.f32.mrf.mxu0
    %v3255 = vpop.f32.mrf.mxu0
    %3256 = vdwg.mxu0
    %v3257 = vadd.f32 %v2533, %v3035
    %v3258 = vadd.f32 %v2535, %v3037
    %v3259 = vadd.f32 %v2539, %v3041
    %v3260 = vadd.f32 %v2542, %v3044
    %v3261 = vadd.f32 %v2546, %v3048
    %v3262 = vadd.f32 %v2548, %v3050
    %v3263 = vadd.f32 %v2552, %v3054
    %v3264 = vadd.f32 %v2555, %v3057
    %v3265 = vadd.f32 %v2559, %v3061
    %v3266 = vadd.f32 %v2561, %v3063
    %v3267 = vadd.f32 %v2565, %v3067
    %v3268 = vadd.f32 %v2568, %v3070
    %v3269 = vadd.f32 %v2572, %v3074
    %v3270 = vadd.f32 %v2574, %v3076
    %v3271 = vadd.f32 %v2578, %v3080
    %v3272 = vadd.f32 %v2581, %v3083
    %v3273 = vadd.f32 %v2585, %v3087
    %v3274 = vadd.f32 %v2587, %v3089
    %v3275 = vadd.f32 %v2591, %v3093
    %v3276 = vadd.f32 %v2594, %v3096
    %v3277 = vadd.f32 %v2598, %v3100
    %v3278 = vadd.f32 %v2600, %v3102
    %v3279 = vadd.f32 %v2604, %v3106
    %v3280 = vadd.f32 %v2607, %v3109
    %v3281 = vadd.f32 %v2611, %v3113
    %v3282 = vadd.f32 %v2613, %v3115
    %v3283 = vadd.f32 %v2617, %v3119
    %v3284 = vadd.f32 %v2620, %v3122
    %v3285 = vadd.f32 %v2624, %v3126
    %v3286 = vadd.f32 %v2626, %v3128
    %v3287 = vadd.f32 %v2630, %v3132
    %v3288 = vadd.f32 %v2633, %v3135
    %v3289 = vadd.f32 %v2650, %v3152
    %v3290 = vadd.f32 %v2653, %v3155
    %v3291 = vadd.f32 %v2657, %v3159
    %v3292 = vadd.f32 %v2659, %v3161
    %v3293 = vadd.f32 %v2663, %v3165
    %v3294 = vadd.f32 %v2666, %v3168
    %v3295 = vadd.f32 %v2670, %v3172
    %v3296 = vadd.f32 %v2672, %v3174
    %v3297 = vadd.f32 %v2676, %v3178
    %v3298 = vadd.f32 %v2679, %v3181
    %v3299 = vadd.f32 %v2683, %v3185
    %v3300 = vadd.f32 %v2685, %v3187
    %v3301 = vadd.f32 %v2689, %v3191
    %v3302 = vadd.f32 %v2692, %v3194
    %v3303 = vadd.f32 %v2696, %v3198
    %v3304 = vadd.f32 %v2698, %v3200
    %v3305 = vadd.f32 %v2702, %v3204
    %v3306 = vadd.f32 %v2705, %v3207
    %v3307 = vadd.f32 %v2709, %v3211
    %v3308 = vadd.f32 %v2711, %v3213
    %v3309 = vadd.f32 %v2715, %v3217
    %v3310 = vadd.f32 %v2718, %v3220
    %v3311 = vadd.f32 %v2722, %v3224
    %v3312 = vadd.f32 %v2724, %v3226
    %v3313 = vadd.f32 %v2728, %v3230
    %v3314 = vadd.f32 %v2731, %v3233
    %v3315 = vadd.f32 %v2735, %v3237
    %v3316 = vadd.f32 %v2737, %v3239
    %v3317 = vadd.f32 %v2741, %v3243
    %v3318 = vadd.f32 %v2744, %v3246
    %v3319 = vadd.f32 %v2748, %v3250
    %v3320 = vadd.f32 %v2750, %v3252
    %s3321 = scalar_lea.vmem %s1, 12
    %v3322 = vld [vmem:[%s3321] sm:$0xf]
    %v3325 = vunpack.c.l.b16 %v1318
    %v3326 = vunpack.c.l.b16 %v1319
    %v3327 = vpack.c.b16 %v1437, %v1436
    %v3328 = vpack.c.b16 %v1439, %v1438
    %v3329 = vpack.c.b16 %v1441, %v1440
    %v3330 = vpack.c.b16 %v1443, %v1442
    %v3331 = vpack.c.b16 %v1445, %v1444
    %v3332 = vpack.c.b16 %v1447, %v1446
    %v3333 = vpack.c.b16 %v1449, %v1448
    %v3334 = vpack.c.b16 %v1451, %v1450
    %v3335 = vpack.c.b16 %v1453, %v1452
    %v3336 = vpack.c.b16 %v1455, %v1454
    %v3337 = vpack.c.b16 %v1457, %v1456
    %v3338 = vpack.c.b16 %v1459, %v1458
    %v3339 = vpack.c.b16 %v1461, %v1460
    %v3340 = vpack.c.b16 %v1463, %v1462
    %v3341 = vpack.c.b16 %v1465, %v1464
    %v3342 = vpack.c.b16 %v1467, %v1466
    %v3343 = vpack.c.b16 %v1469, %v1468
    %v3344 = vpack.c.b16 %v1471, %v1470
    %v3345 = vpack.c.b16 %v1473, %v1472
    %v3346 = vpack.c.b16 %v1475, %v1474
    %v3347 = vpack.c.b16 %v1477, %v1476
    %v3348 = vpack.c.b16 %v1479, %v1478
    %v3349 = vpack.c.b16 %v1481, %v1480
    %v3350 = vpack.c.b16 %v1483, %v1482
    %v3351 = vpack.c.b16 %v1485, %v1484
    %v3352 = vpack.c.b16 %v1487, %v1486
    %v3353 = vpack.c.b16 %v1489, %v1488
    %v3354 = vpack.c.b16 %v1491, %v1490
    %v3355 = vpack.c.b16 %v1493, %v1492
    %v3356 = vpack.c.b16 %v1495, %v1494
    %v3357 = vpack.c.b16 %v1497, %v1496
    %v3358 = vpack.c.b16 %v1499, %v1498
    %v3359 = vpack.c.b16 %v1501, %v1500
    %v3360 = vpack.c.b16 %v1503, %v1502
    %v3361 = vpack.c.b16 %v1505, %v1504
    %v3362 = vpack.c.b16 %v1507, %v1506
    %v3363 = vpack.c.b16 %v1509, %v1508
    %v3364 = vpack.c.b16 %v1511, %v1510
    %v3365 = vpack.c.b16 %v1513, %v1512
    %v3366 = vpack.c.b16 %v1515, %v1514
    %v3367 = vpack.c.b16 %v1517, %v1516
    %v3368 = vpack.c.b16 %v1519, %v1518
    %v3369 = vpack.c.b16 %v1521, %v1520
    %v3370 = vpack.c.b16 %v1523, %v1522
    %v3371 = vpack.c.b16 %v1525, %v1524
    %v3372 = vpack.c.b16 %v1527, %v1526
    %v3373 = vpack.c.b16 %v1529, %v1528
    %v3374 = vpack.c.b16 %v1531, %v1530
    %v3375 = vpack.c.b16 %v1533, %v1532
    %v3376 = vpack.c.b16 %v1535, %v1534
    %v3377 = vpack.c.b16 %v1537, %v1536
    %v3378 = vpack.c.b16 %v3325, %v1538
    %v3379 = vpack.c.b16 %v3326, %v3326
    %v3381 = vsel %vm2016, %v3327, 0
    %v3384 = vsel %vm2016, %v3328, 0
    %v3387 = vsel %vm2016, %v3329, 0
    %v3390 = vsel %vm2016, %v3330, 0
    %v3393 = vsel %vm2016, %v3331, 0
    %v3396 = vsel %vm2016, %v3332, 0
    %v3399 = vsel %vm2016, %v3333, 0
    %v3402 = vsel %vm2016, %v3334, 0
    %v3405 = vsel %vm2016, %v3335, 0
    %v3408 = vsel %vm2016, %v3336, 0
    %v3411 = vsel %vm2016, %v3337, 0
    %v3414 = vsel %vm2016, %v3338, 0
    %v3417 = vsel %vm2016, %v3339, 0
    %v3420 = vsel %vm2016, %v3340, 0
    %v3423 = vsel %vm2016, %v3341, 0
    %v3426 = vsel %vm2016, %v3342, 0
    %v3429 = vsel %vm2016, %v3343, 0
    %v3432 = vsel %vm2016, %v3344, 0
    %v3435 = vsel %vm2016, %v3345, 0
    %v3438 = vsel %vm2016, %v3346, 0
    %v3441 = vsel %vm2016, %v3347, 0
    %v3444 = vsel %vm2016, %v3348, 0
    %v3447 = vsel %vm2016, %v3349, 0
    %v3450 = vsel %vm2016, %v3350, 0
    %v3453 = vsel %vm2016, %v3351, 0
    %v3456 = vsel %vm2016, %v3352, 0
    %v3459 = vsel %vm2016, %v3353, 0
    %v3462 = vsel %vm2016, %v3354, 0
    %v3465 = vsel %vm2016, %v3355, 0
    %v3468 = vsel %vm2016, %v3356, 0
    %v3471 = vsel %vm2016, %v3357, 0
    %v3474 = vsel %vm2016, %v3358, 0
    %v3477 = vsel %vm2016, %v3359, 0
    %v3480 = vsel %vm2016, %v3360, 0
    %v3483 = vsel %vm2016, %v3361, 0
    %v3486 = vsel %vm2016, %v3362, 0
    %v3489 = vsel %vm2016, %v3363, 0
    %v3492 = vsel %vm2016, %v3364, 0
    %v3495 = vsel %vm2016, %v3365, 0
    %v3498 = vsel %vm2016, %v3366, 0
    %v3501 = vsel %vm2016, %v3367, 0
    %v3504 = vsel %vm2016, %v3368, 0
    %v3507 = vsel %vm2016, %v3369, 0
    %v3510 = vsel %vm2016, %v3370, 0
    %v3513 = vsel %vm2016, %v3371, 0
    %v3516 = vsel %vm2016, %v3372, 0
    %v3519 = vsel %vm2016, %v3373, 0
    %v3522 = vsel %vm2016, %v3374, 0
    %v3525 = vsel %vm2016, %v3375, 0
    %v3528 = vsel %vm2016, %v3376, 0
    %v3531 = vsel %vm2016, %v3377, 0
    %v3534 = vsel %vm2016, %v3378, 0
    %v3537 = vsel %vm2016, %v3379, 0
    %v3540 = vsel %vm2176, %v3322, 0
    %3542 = vmatpush.bf16.msra.mxu0 0
    %3543 = vmatpush.bf16.msra.mxu0 0
    %3544 = vmatpush.bf16.msra.mxu0 0
    %3545 = vmatpush.bf16.msra.mxu0 0
    %3546 = vmatpush.bf16.msra.mxu0 0
    %3547 = vmatpush.bf16.msra.mxu0 0
    %3548 = vmatpush.bf16.msra.mxu0 0
    %3549 = vmatpush.bf16.msra.mxu0 %v3540
    %3550 = vmatmul.bf16.gmra.mxu0 %v3381
    %v3551 = vpop.f32.mrf.mxu0
    %v3552 = vadd.f32 0.0, %v3551
    %v3553 = vpop.f32.mrf.mxu0
    %v3554 = vadd.f32 0.0, %v3553
    %3555 = vmatmul.bf16.gmra.mxu0 %v3384
    %v3556 = vpop.f32.mrf.mxu0
    %v3557 = vpop.f32.mrf.mxu0
    %v3558 = vadd.f32 0.0, %v3557
    %3559 = vmatmul.bf16.gmra.mxu0 %v3387
    %v3560 = vpop.f32.mrf.mxu0
    %v3561 = vadd.f32 0.0, %v3560
    %v3562 = vpop.f32.mrf.mxu0
    %3563 = vmatmul.bf16.gmra.mxu0 %v3390
    %v3564 = vpop.f32.mrf.mxu0
    %v3565 = vadd.f32 0.0, %v3564
    %v3566 = vpop.f32.mrf.mxu0
    %v3567 = vadd.f32 0.0, %v3566
    %3568 = vmatmul.bf16.gmra.mxu0 %v3393
    %v3569 = vpop.f32.mrf.mxu0
    %v3570 = vpop.f32.mrf.mxu0
    %v3571 = vadd.f32 0.0, %v3570
    %3572 = vmatmul.bf16.gmra.mxu0 %v3396
    %v3573 = vpop.f32.mrf.mxu0
    %v3574 = vadd.f32 0.0, %v3573
    %v3575 = vpop.f32.mrf.mxu0
    %3576 = vmatmul.bf16.gmra.mxu0 %v3399
    %v3577 = vpop.f32.mrf.mxu0
    %v3578 = vadd.f32 0.0, %v3577
    %v3579 = vpop.f32.mrf.mxu0
    %v3580 = vadd.f32 0.0, %v3579
    %3581 = vmatmul.bf16.gmra.mxu0 %v3402
    %v3582 = vpop.f32.mrf.mxu0
    %v3583 = vpop.f32.mrf.mxu0
    %v3584 = vadd.f32 0.0, %v3583
    %3585 = vmatmul.bf16.gmra.mxu0 %v3405
    %v3586 = vpop.f32.mrf.mxu0
    %v3587 = vadd.f32 0.0, %v3586
    %v3588 = vpop.f32.mrf.mxu0
    %3589 = vmatmul.bf16.gmra.mxu0 %v3408
    %v3590 = vpop.f32.mrf.mxu0
    %v3591 = vadd.f32 0.0, %v3590
    %v3592 = vpop.f32.mrf.mxu0
    %v3593 = vadd.f32 0.0, %v3592
    %3594 = vmatmul.bf16.gmra.mxu0 %v3411
    %v3595 = vpop.f32.mrf.mxu0
    %v3596 = vpop.f32.mrf.mxu0
    %v3597 = vadd.f32 0.0, %v3596
    %3598 = vmatmul.bf16.gmra.mxu0 %v3414
    %v3599 = vpop.f32.mrf.mxu0
    %v3600 = vadd.f32 0.0, %v3599
    %v3601 = vpop.f32.mrf.mxu0
    %3602 = vmatmul.bf16.gmra.mxu0 %v3417
    %v3603 = vpop.f32.mrf.mxu0
    %v3604 = vadd.f32 0.0, %v3603
    %v3605 = vpop.f32.mrf.mxu0
    %v3606 = vadd.f32 0.0, %v3605
    %3607 = vmatmul.bf16.gmra.mxu0 %v3420
    %v3608 = vpop.f32.mrf.mxu0
    %v3609 = vpop.f32.mrf.mxu0
    %v3610 = vadd.f32 0.0, %v3609
    %3611 = vmatmul.bf16.gmra.mxu0 %v3423
    %v3612 = vpop.f32.mrf.mxu0
    %v3613 = vadd.f32 0.0, %v3612
    %v3614 = vpop.f32.mrf.mxu0
    %3615 = vmatmul.bf16.gmra.mxu0 %v3426
    %v3616 = vpop.f32.mrf.mxu0
    %v3617 = vadd.f32 0.0, %v3616
    %v3618 = vpop.f32.mrf.mxu0
    %v3619 = vadd.f32 0.0, %v3618
    %3620 = vmatmul.bf16.gmra.mxu0 %v3429
    %v3621 = vpop.f32.mrf.mxu0
    %v3622 = vpop.f32.mrf.mxu0
    %v3623 = vadd.f32 0.0, %v3622
    %3624 = vmatmul.bf16.gmra.mxu0 %v3432
    %v3625 = vpop.f32.mrf.mxu0
    %v3626 = vadd.f32 0.0, %v3625
    %v3627 = vpop.f32.mrf.mxu0
    %3628 = vmatmul.bf16.gmra.mxu0 %v3435
    %v3629 = vpop.f32.mrf.mxu0
    %v3630 = vadd.f32 0.0, %v3629
    %v3631 = vpop.f32.mrf.mxu0
    %v3632 = vadd.f32 0.0, %v3631
    %3633 = vmatmul.bf16.gmra.mxu0 %v3438
    %v3634 = vpop.f32.mrf.mxu0
    %v3635 = vpop.f32.mrf.mxu0
    %v3636 = vadd.f32 0.0, %v3635
    %3637 = vmatmul.bf16.gmra.mxu0 %v3441
    %v3638 = vpop.f32.mrf.mxu0
    %v3639 = vadd.f32 0.0, %v3638
    %v3640 = vpop.f32.mrf.mxu0
    %3641 = vmatmul.bf16.gmra.mxu0 %v3444
    %v3642 = vpop.f32.mrf.mxu0
    %v3643 = vadd.f32 0.0, %v3642
    %v3644 = vpop.f32.mrf.mxu0
    %v3645 = vadd.f32 0.0, %v3644
    %3646 = vmatmul.bf16.gmra.mxu0 %v3447
    %v3647 = vpop.f32.mrf.mxu0
    %v3648 = vpop.f32.mrf.mxu0
    %v3649 = vadd.f32 0.0, %v3648
    %3650 = vmatmul.bf16.gmra.mxu0 %v3450
    %v3651 = vpop.f32.mrf.mxu0
    %v3652 = vadd.f32 0.0, %v3651
    %v3653 = vpop.f32.mrf.mxu0
    %3654 = vmatmul.bf16.gmra.mxu0 %v3453
    %v3655 = vpop.f32.mrf.mxu0
    %v3656 = vpop.f32.mrf.mxu0
    %3657 = vmatmul.bf16.gmra.mxu0 %v3456
    %v3658 = vpop.f32.mrf.mxu0
    %v3659 = vpop.f32.mrf.mxu0
    %3660 = vmatmul.bf16.gmra.mxu0 %v3459
    %v3661 = vpop.f32.mrf.mxu0
    %v3662 = vpop.f32.mrf.mxu0
    %3663 = vmatmul.bf16.gmra.mxu0 %v3462
    %v3664 = vpop.f32.mrf.mxu0
    %v3665 = vpop.f32.mrf.mxu0
    %3666 = vmatmul.bf16.gmra.mxu0 %v3465
    %v3667 = vpop.f32.mrf.mxu0
    %v3668 = vpop.f32.mrf.mxu0
    %v3669 = vadd.f32 0.0, %v3668
    %3670 = vmatmul.bf16.gmra.mxu0 %v3468
    %v3671 = vpop.f32.mrf.mxu0
    %v3672 = vadd.f32 0.0, %v3671
    %v3673 = vpop.f32.mrf.mxu0
    %3674 = vmatmul.bf16.gmra.mxu0 %v3471
    %v3675 = vpop.f32.mrf.mxu0
    %v3676 = vadd.f32 0.0, %v3675
    %v3677 = vpop.f32.mrf.mxu0
    %v3678 = vadd.f32 0.0, %v3677
    %3679 = vmatmul.bf16.gmra.mxu0 %v3474
    %v3680 = vpop.f32.mrf.mxu0
    %v3681 = vpop.f32.mrf.mxu0
    %v3682 = vadd.f32 0.0, %v3681
    %3683 = vmatmul.bf16.gmra.mxu0 %v3477
    %v3684 = vpop.f32.mrf.mxu0
    %v3685 = vadd.f32 0.0, %v3684
    %v3686 = vpop.f32.mrf.mxu0
    %3687 = vmatmul.bf16.gmra.mxu0 %v3480
    %v3688 = vpop.f32.mrf.mxu0
    %v3689 = vadd.f32 0.0, %v3688
    %v3690 = vpop.f32.mrf.mxu0
    %v3691 = vadd.f32 0.0, %v3690
    %3692 = vmatmul.bf16.gmra.mxu0 %v3483
    %v3693 = vpop.f32.mrf.mxu0
    %v3694 = vpop.f32.mrf.mxu0
    %v3695 = vadd.f32 0.0, %v3694
    %3696 = vmatmul.bf16.gmra.mxu0 %v3486
    %v3697 = vpop.f32.mrf.mxu0
    %v3698 = vadd.f32 0.0, %v3697
    %v3699 = vpop.f32.mrf.mxu0
    %3700 = vmatmul.bf16.gmra.mxu0 %v3489
    %v3701 = vpop.f32.mrf.mxu0
    %v3702 = vadd.f32 0.0, %v3701
    %v3703 = vpop.f32.mrf.mxu0
    %v3704 = vadd.f32 0.0, %v3703
    %3705 = vmatmul.bf16.gmra.mxu0 %v3492
    %v3706 = vpop.f32.mrf.mxu0
    %v3707 = vpop.f32.mrf.mxu0
    %v3708 = vadd.f32 0.0, %v3707
    %3709 = vmatmul.bf16.gmra.mxu0 %v3495
    %v3710 = vpop.f32.mrf.mxu0
    %v3711 = vadd.f32 0.0, %v3710
    %v3712 = vpop.f32.mrf.mxu0
    %3713 = vmatmul.bf16.gmra.mxu0 %v3498
    %v3714 = vpop.f32.mrf.mxu0
    %v3715 = vadd.f32 0.0, %v3714
    %v3716 = vpop.f32.mrf.mxu0
    %v3717 = vadd.f32 0.0, %v3716
    %3718 = vmatmul.bf16.gmra.mxu0 %v3501
    %v3719 = vpop.f32.mrf.mxu0
    %v3720 = vpop.f32.mrf.mxu0
    %v3721 = vadd.f32 0.0, %v3720
    %3722 = vmatmul.bf16.gmra.mxu0 %v3504
    %v3723 = vpop.f32.mrf.mxu0
    %v3724 = vadd.f32 0.0, %v3723
    %v3725 = vpop.f32.mrf.mxu0
    %3726 = vmatmul.bf16.gmra.mxu0 %v3507
    %v3727 = vpop.f32.mrf.mxu0
    %v3728 = vadd.f32 0.0, %v3727
    %v3729 = vpop.f32.mrf.mxu0
    %v3730 = vadd.f32 0.0, %v3729
    %3731 = vmatmul.bf16.gmra.mxu0 %v3510
    %v3732 = vpop.f32.mrf.mxu0
    %v3733 = vpop.f32.mrf.mxu0
    %v3734 = vadd.f32 0.0, %v3733
    %3735 = vmatmul.bf16.gmra.mxu0 %v3513
    %v3736 = vpop.f32.mrf.mxu0
    %v3737 = vadd.f32 0.0, %v3736
    %v3738 = vpop.f32.mrf.mxu0
    %3739 = vmatmul.bf16.gmra.mxu0 %v3516
    %v3740 = vpop.f32.mrf.mxu0
    %v3741 = vadd.f32 0.0, %v3740
    %v3742 = vpop.f32.mrf.mxu0
    %v3743 = vadd.f32 0.0, %v3742
    %3744 = vmatmul.bf16.gmra.mxu0 %v3519
    %v3745 = vpop.f32.mrf.mxu0
    %v3746 = vpop.f32.mrf.mxu0
    %v3747 = vadd.f32 0.0, %v3746
    %3748 = vmatmul.bf16.gmra.mxu0 %v3522
    %v3749 = vpop.f32.mrf.mxu0
    %v3750 = vadd.f32 0.0, %v3749
    %v3751 = vpop.f32.mrf.mxu0
    %3752 = vmatmul.bf16.gmra.mxu0 %v3525
    %v3753 = vpop.f32.mrf.mxu0
    %v3754 = vadd.f32 0.0, %v3753
    %v3755 = vpop.f32.mrf.mxu0
    %v3756 = vadd.f32 0.0, %v3755
    %3757 = vmatmul.bf16.gmra.mxu0 %v3528
    %v3758 = vpop.f32.mrf.mxu0
    %v3759 = vpop.f32.mrf.mxu0
    %v3760 = vadd.f32 0.0, %v3759
    %3761 = vmatmul.bf16.gmra.mxu0 %v3531
    %v3762 = vpop.f32.mrf.mxu0
    %v3763 = vadd.f32 0.0, %v3762
    %v3764 = vpop.f32.mrf.mxu0
    %3765 = vmatmul.bf16.gmra.mxu0 %v3534
    %v3766 = vpop.f32.mrf.mxu0
    %v3767 = vadd.f32 0.0, %v3766
    %v3768 = vpop.f32.mrf.mxu0
    %v3769 = vadd.f32 0.0, %v3768
    %3770 = vmatmul.bf16.gmra.mxu0 %v3537
    %v3771 = vpop.f32.mrf.mxu0
    %v3772 = vpop.f32.mrf.mxu0
    %3773 = vdwg.mxu0
    %v3774 = vadd.f32 %v3257, %v3552
    %v3775 = vadd.f32 %v3258, %v3554
    %v3776 = vadd.f32 %v3259, %v3558
    %v3777 = vadd.f32 %v3260, %v3561
    %v3778 = vadd.f32 %v3261, %v3565
    %v3779 = vadd.f32 %v3262, %v3567
    %v3780 = vadd.f32 %v3263, %v3571
    %v3781 = vadd.f32 %v3264, %v3574
    %v3782 = vadd.f32 %v3265, %v3578
    %v3783 = vadd.f32 %v3266, %v3580
    %v3784 = vadd.f32 %v3267, %v3584
    %v3785 = vadd.f32 %v3268, %v3587
    %v3786 = vadd.f32 %v3269, %v3591
    %v3787 = vadd.f32 %v3270, %v3593
    %v3788 = vadd.f32 %v3271, %v3597
    %v3789 = vadd.f32 %v3272, %v3600
    %v3790 = vadd.f32 %v3273, %v3604
    %v3791 = vadd.f32 %v3274, %v3606
    %v3792 = vadd.f32 %v3275, %v3610
    %v3793 = vadd.f32 %v3276, %v3613
    %v3794 = vadd.f32 %v3277, %v3617
    %v3795 = vadd.f32 %v3278, %v3619
    %v3796 = vadd.f32 %v3279, %v3623
    %v3797 = vadd.f32 %v3280, %v3626
    %v3798 = vadd.f32 %v3281, %v3630
    %v3799 = vadd.f32 %v3282, %v3632
    %v3800 = vadd.f32 %v3283, %v3636
    %v3801 = vadd.f32 %v3284, %v3639
    %v3802 = vadd.f32 %v3285, %v3643
    %v3803 = vadd.f32 %v3286, %v3645
    %v3804 = vadd.f32 %v3287, %v3649
    %v3805 = vadd.f32 %v3288, %v3652
    %v3806 = vadd.f32 %v3289, %v3669
    %v3807 = vadd.f32 %v3290, %v3672
    %v3808 = vadd.f32 %v3291, %v3676
    %v3809 = vadd.f32 %v3292, %v3678
    %v3810 = vadd.f32 %v3293, %v3682
    %v3811 = vadd.f32 %v3294, %v3685
    %v3812 = vadd.f32 %v3295, %v3689
    %v3813 = vadd.f32 %v3296, %v3691
    %v3814 = vadd.f32 %v3297, %v3695
    %v3815 = vadd.f32 %v3298, %v3698
    %v3816 = vadd.f32 %v3299, %v3702
    %v3817 = vadd.f32 %v3300, %v3704
    %v3818 = vadd.f32 %v3301, %v3708
    %v3819 = vadd.f32 %v3302, %v3711
    %v3820 = vadd.f32 %v3303, %v3715
    %v3821 = vadd.f32 %v3304, %v3717
    %v3822 = vadd.f32 %v3305, %v3721
    %v3823 = vadd.f32 %v3306, %v3724
    %v3824 = vadd.f32 %v3307, %v3728
    %v3825 = vadd.f32 %v3308, %v3730
    %v3826 = vadd.f32 %v3309, %v3734
    %v3827 = vadd.f32 %v3310, %v3737
    %v3828 = vadd.f32 %v3311, %v3741
    %v3829 = vadd.f32 %v3312, %v3743
    %v3830 = vadd.f32 %v3313, %v3747
    %v3831 = vadd.f32 %v3314, %v3750
    %v3832 = vadd.f32 %v3315, %v3754
    %v3833 = vadd.f32 %v3316, %v3756
    %v3834 = vadd.f32 %v3317, %v3760
    %v3835 = vadd.f32 %v3318, %v3763
    %v3836 = vadd.f32 %v3319, %v3767
    %v3837 = vadd.f32 %v3320, %v3769
    %s3838 = scalar_lea.vmem %s1, 16
    %v3839 = vld [vmem:[%s3838] sm:$0xf]
    %v3841 = vunpack.c.l.b16 %v1320
    %v3842 = vpack.c.b16 %v3841, %v3326
    %v3843 = vshrl.u32 %v3327, 16
    %v3845 = vshll.u32 %v3327, 16
    %v3847 = vrot.slane %v3845, 1
    %v3848 = vor.u32 %v3843, %v3847
    %v3849 = vshll.u32 %v3328, 16
    %v3851 = vrot.slane %v3849, 1
    %v3852 = vsel %vm1592, %v3848, %v3851
    %v3853 = vshrl.u32 %v3328, 16
    %v3855 = vor.u32 %v3853, %v3851
    %v3856 = vshll.u32 %v3329, 16
    %v3858 = vrot.slane %v3856, 1
    %v3859 = vsel %vm1592, %v3855, %v3858
    %v3860 = vshrl.u32 %v3329, 16
    %v3862 = vor.u32 %v3860, %v3858
    %v3863 = vshll.u32 %v3330, 16
    %v3865 = vrot.slane %v3863, 1
    %v3866 = vsel %vm1592, %v3862, %v3865
    %v3867 = vshrl.u32 %v3330, 16
    %v3869 = vor.u32 %v3867, %v3865
    %v3870 = vshll.u32 %v3331, 16
    %v3872 = vrot.slane %v3870, 1
    %v3873 = vsel %vm1592, %v3869, %v3872
    %v3874 = vshrl.u32 %v3331, 16
    %v3876 = vor.u32 %v3874, %v3872
    %v3877 = vshll.u32 %v3332, 16
    %v3879 = vrot.slane %v3877, 1
    %v3880 = vsel %vm1592, %v3876, %v3879
    %v3881 = vshrl.u32 %v3332, 16
    %v3883 = vor.u32 %v3881, %v3879
    %v3884 = vshll.u32 %v3333, 16
    %v3886 = vrot.slane %v3884, 1
    %v3887 = vsel %vm1592, %v3883, %v3886
    %v3888 = vshrl.u32 %v3333, 16
    %v3890 = vor.u32 %v3888, %v3886
    %v3891 = vshll.u32 %v3334, 16
    %v3893 = vrot.slane %v3891, 1
    %v3894 = vsel %vm1592, %v3890, %v3893
    %v3895 = vshrl.u32 %v3334, 16
    %v3897 = vor.u32 %v3895, %v3893
    %v3898 = vshll.u32 %v3335, 16
    %v3900 = vrot.slane %v3898, 1
    %v3901 = vsel %vm1592, %v3897, %v3900
    %v3902 = vshrl.u32 %v3335, 16
    %v3904 = vor.u32 %v3902, %v3900
    %v3905 = vshll.u32 %v3336, 16
    %v3907 = vrot.slane %v3905, 1
    %v3908 = vsel %vm1592, %v3904, %v3907
    %v3909 = vshrl.u32 %v3336, 16
    %v3911 = vor.u32 %v3909, %v3907
    %v3912 = vshll.u32 %v3337, 16
    %v3914 = vrot.slane %v3912, 1
    %v3915 = vsel %vm1592, %v3911, %v3914
    %v3916 = vshrl.u32 %v3337, 16
    %v3918 = vor.u32 %v3916, %v3914
    %v3919 = vshll.u32 %v3338, 16
    %v3921 = vrot.slane %v3919, 1
    %v3922 = vsel %vm1592, %v3918, %v3921
    %v3923 = vshrl.u32 %v3338, 16
    %v3925 = vor.u32 %v3923, %v3921
    %v3926 = vshll.u32 %v3339, 16
    %v3928 = vrot.slane %v3926, 1
    %v3929 = vsel %vm1592, %v3925, %v3928
    %v3930 = vshrl.u32 %v3339, 16
    %v3932 = vor.u32 %v3930, %v3928
    %v3933 = vshll.u32 %v3340, 16
    %v3935 = vrot.slane %v3933, 1
    %v3936 = vsel %vm1592, %v3932, %v3935
    %v3937 = vshrl.u32 %v3340, 16
    %v3939 = vor.u32 %v3937, %v3935
    %v3940 = vshll.u32 %v3341, 16
    %v3942 = vrot.slane %v3940, 1
    %v3943 = vsel %vm1592, %v3939, %v3942
    %v3944 = vshrl.u32 %v3341, 16
    %v3946 = vor.u32 %v3944, %v3942
    %v3947 = vshll.u32 %v3342, 16
    %v3949 = vrot.slane %v3947, 1
    %v3950 = vsel %vm1592, %v3946, %v3949
    %v3951 = vshrl.u32 %v3342, 16
    %v3953 = vor.u32 %v3951, %v3949
    %v3954 = vshll.u32 %v3343, 16
    %v3956 = vrot.slane %v3954, 1
    %v3957 = vsel %vm1592, %v3953, %v3956
    %v3958 = vshrl.u32 %v3343, 16
    %v3960 = vor.u32 %v3958, %v3956
    %v3961 = vshll.u32 %v3344, 16
    %v3963 = vrot.slane %v3961, 1
    %v3964 = vsel %vm1592, %v3960, %v3963
    %v3965 = vshrl.u32 %v3344, 16
    %v3967 = vor.u32 %v3965, %v3963
    %v3968 = vshll.u32 %v3345, 16
    %v3970 = vrot.slane %v3968, 1
    %v3971 = vsel %vm1592, %v3967, %v3970
    %v3972 = vshrl.u32 %v3345, 16
    %v3974 = vor.u32 %v3972, %v3970
    %v3975 = vshll.u32 %v3346, 16
    %v3977 = vrot.slane %v3975, 1
    %v3978 = vsel %vm1592, %v3974, %v3977
    %v3979 = vshrl.u32 %v3346, 16
    %v3981 = vor.u32 %v3979, %v3977
    %v3982 = vshll.u32 %v3347, 16
    %v3984 = vrot.slane %v3982, 1
    %v3985 = vsel %vm1592, %v3981, %v3984
    %v3986 = vshrl.u32 %v3347, 16
    %v3988 = vor.u32 %v3986, %v3984
    %v3989 = vshll.u32 %v3348, 16
    %v3991 = vrot.slane %v3989, 1
    %v3992 = vsel %vm1592, %v3988, %v3991
    %v3993 = vshrl.u32 %v3348, 16
    %v3995 = vor.u32 %v3993, %v3991
    %v3996 = vshll.u32 %v3349, 16
    %v3998 = vrot.slane %v3996, 1
    %v3999 = vsel %vm1592, %v3995, %v3998
    %v4000 = vshrl.u32 %v3349, 16
    %v4002 = vor.u32 %v4000, %v3998
    %v4003 = vshll.u32 %v3350, 16
    %v4005 = vrot.slane %v4003, 1
    %v4006 = vsel %vm1592, %v4002, %v4005
    %v4007 = vshrl.u32 %v3350, 16
    %v4009 = vor.u32 %v4007, %v4005
    %v4010 = vshll.u32 %v3351, 16
    %v4012 = vrot.slane %v4010, 1
    %v4013 = vsel %vm1592, %v4009, %v4012
    %v4014 = vshrl.u32 %v3351, 16
    %v4016 = vor.u32 %v4014, %v4012
    %v4017 = vshll.u32 %v3352, 16
    %v4019 = vrot.slane %v4017, 1
    %v4020 = vsel %vm1592, %v4016, %v4019
    %v4021 = vshrl.u32 %v3352, 16
    %v4023 = vor.u32 %v4021, %v4019
    %v4024 = vshll.u32 %v3353, 16
    %v4026 = vrot.slane %v4024, 1
    %v4027 = vsel %vm1592, %v4023, %v4026
    %v4028 = vshrl.u32 %v3353, 16
    %v4030 = vor.u32 %v4028, %v4026
    %v4031 = vshll.u32 %v3354, 16
    %v4033 = vrot.slane %v4031, 1
    %v4034 = vsel %vm1592, %v4030, %v4033
    %v4035 = vshrl.u32 %v3354, 16
    %v4037 = vor.u32 %v4035, %v4033
    %v4038 = vshll.u32 %v3355, 16
    %v4040 = vrot.slane %v4038, 1
    %v4041 = vsel %vm1592, %v4037, %v4040
    %v4042 = vshrl.u32 %v3355, 16
    %v4044 = vor.u32 %v4042, %v4040
    %v4045 = vshll.u32 %v3356, 16
    %v4047 = vrot.slane %v4045, 1
    %v4048 = vsel %vm1592, %v4044, %v4047
    %v4049 = vshrl.u32 %v3356, 16
    %v4051 = vor.u32 %v4049, %v4047
    %v4052 = vshll.u32 %v3357, 16
    %v4054 = vrot.slane %v4052, 1
    %v4055 = vsel %vm1592, %v4051, %v4054
    %v4056 = vshrl.u32 %v3357, 16
    %v4058 = vor.u32 %v4056, %v4054
    %v4059 = vshll.u32 %v3358, 16
    %v4061 = vrot.slane %v4059, 1
    %v4062 = vsel %vm1592, %v4058, %v4061
    %v4063 = vshrl.u32 %v3358, 16
    %v4065 = vor.u32 %v4063, %v4061
    %v4066 = vshll.u32 %v3359, 16
    %v4068 = vrot.slane %v4066, 1
    %v4069 = vsel %vm1592, %v4065, %v4068
    %v4070 = vshrl.u32 %v3359, 16
    %v4072 = vor.u32 %v4070, %v4068
    %v4073 = vshll.u32 %v3360, 16
    %v4075 = vrot.slane %v4073, 1
    %v4076 = vsel %vm1592, %v4072, %v4075
    %v4077 = vshrl.u32 %v3360, 16
    %v4079 = vor.u32 %v4077, %v4075
    %v4080 = vshll.u32 %v3361, 16
    %v4082 = vrot.slane %v4080, 1
    %v4083 = vsel %vm1592, %v4079, %v4082
    %v4084 = vshrl.u32 %v3361, 16
    %v4086 = vor.u32 %v4084, %v4082
    %v4087 = vshll.u32 %v3362, 16
    %v4089 = vrot.slane %v4087, 1
    %v4090 = vsel %vm1592, %v4086, %v4089
    %v4091 = vshrl.u32 %v3362, 16
    %v4093 = vor.u32 %v4091, %v4089
    %v4094 = vshll.u32 %v3363, 16
    %v4096 = vrot.slane %v4094, 1
    %v4097 = vsel %vm1592, %v4093, %v4096
    %v4098 = vshrl.u32 %v3363, 16
    %v4100 = vor.u32 %v4098, %v4096
    %v4101 = vshll.u32 %v3364, 16
    %v4103 = vrot.slane %v4101, 1
    %v4104 = vsel %vm1592, %v4100, %v4103
    %v4105 = vshrl.u32 %v3364, 16
    %v4107 = vor.u32 %v4105, %v4103
    %v4108 = vshll.u32 %v3365, 16
    %v4110 = vrot.slane %v4108, 1
    %v4111 = vsel %vm1592, %v4107, %v4110
    %v4112 = vshrl.u32 %v3365, 16
    %v4114 = vor.u32 %v4112, %v4110
    %v4115 = vshll.u32 %v3366, 16
    %v4117 = vrot.slane %v4115, 1
    %v4118 = vsel %vm1592, %v4114, %v4117
    %v4119 = vshrl.u32 %v3366, 16
    %v4121 = vor.u32 %v4119, %v4117
    %v4122 = vshll.u32 %v3367, 16
    %v4124 = vrot.slane %v4122, 1
    %v4125 = vsel %vm1592, %v4121, %v4124
    %v4126 = vshrl.u32 %v3367, 16
    %v4128 = vor.u32 %v4126, %v4124
    %v4129 = vshll.u32 %v3368, 16
    %v4131 = vrot.slane %v4129, 1
    %v4132 = vsel %vm1592, %v4128, %v4131
    %v4133 = vshrl.u32 %v3368, 16
    %v4135 = vor.u32 %v4133, %v4131
    %v4136 = vshll.u32 %v3369, 16
    %v4138 = vrot.slane %v4136, 1
    %v4139 = vsel %vm1592, %v4135, %v4138
    %v4140 = vshrl.u32 %v3369, 16
    %v4142 = vor.u32 %v4140, %v4138
    %v4143 = vshll.u32 %v3370, 16
    %v4145 = vrot.slane %v4143, 1
    %v4146 = vsel %vm1592, %v4142, %v4145
    %v4147 = vshrl.u32 %v3370, 16
    %v4149 = vor.u32 %v4147, %v4145
    %v4150 = vshll.u32 %v3371, 16
    %v4152 = vrot.slane %v4150, 1
    %v4153 = vsel %vm1592, %v4149, %v4152
    %v4154 = vshrl.u32 %v3371, 16
    %v4156 = vor.u32 %v4154, %v4152
    %v4157 = vshll.u32 %v3372, 16
    %v4159 = vrot.slane %v4157, 1
    %v4160 = vsel %vm1592, %v4156, %v4159
    %v4161 = vshrl.u32 %v3372, 16
    %v4163 = vor.u32 %v4161, %v4159
    %v4164 = vshll.u32 %v3373, 16
    %v4166 = vrot.slane %v4164, 1
    %v4167 = vsel %vm1592, %v4163, %v4166
    %v4168 = vshrl.u32 %v3373, 16
    %v4170 = vor.u32 %v4168, %v4166
    %v4171 = vshll.u32 %v3374, 16
    %v4173 = vrot.slane %v4171, 1
    %v4174 = vsel %vm1592, %v4170, %v4173
    %v4175 = vshrl.u32 %v3374, 16
    %v4177 = vor.u32 %v4175, %v4173
    %v4178 = vshll.u32 %v3375, 16
    %v4180 = vrot.slane %v4178, 1
    %v4181 = vsel %vm1592, %v4177, %v4180
    %v4182 = vshrl.u32 %v3375, 16
    %v4184 = vor.u32 %v4182, %v4180
    %v4185 = vshll.u32 %v3376, 16
    %v4187 = vrot.slane %v4185, 1
    %v4188 = vsel %vm1592, %v4184, %v4187
    %v4189 = vshrl.u32 %v3376, 16
    %v4191 = vor.u32 %v4189, %v4187
    %v4192 = vshll.u32 %v3377, 16
    %v4194 = vrot.slane %v4192, 1
    %v4195 = vsel %vm1592, %v4191, %v4194
    %v4196 = vshrl.u32 %v3377, 16
    %v4198 = vor.u32 %v4196, %v4194
    %v4199 = vshll.u32 %v3378, 16
    %v4201 = vrot.slane %v4199, 1
    %v4202 = vsel %vm1592, %v4198, %v4201
    %v4203 = vshrl.u32 %v3378, 16
    %v4205 = vor.u32 %v4203, %v4201
    %v4207 = vshll.u32 %v3842, 16
    %v4209 = vrot.slane %v4207, 1
    %v4210 = vsel %vm1592, %v4205, %v4209
    %v4211 = vshrl.u32 %v3842, 16
    %v4213 = vor.u32 %v4211, %v4209
    %v4215 = vsel %vm2016, %v3852, 0
    %v4218 = vsel %vm2016, %v3859, 0
    %v4221 = vsel %vm2016, %v3866, 0
    %v4224 = vsel %vm2016, %v3873, 0
    %v4227 = vsel %vm2016, %v3880, 0
    %v4230 = vsel %vm2016, %v3887, 0
    %v4233 = vsel %vm2016, %v3894, 0
    %v4236 = vsel %vm2016, %v3901, 0
    %v4239 = vsel %vm2016, %v3908, 0
    %v4242 = vsel %vm2016, %v3915, 0
    %v4245 = vsel %vm2016, %v3922, 0
    %v4248 = vsel %vm2016, %v3929, 0
    %v4251 = vsel %vm2016, %v3936, 0
    %v4254 = vsel %vm2016, %v3943, 0
    %v4257 = vsel %vm2016, %v3950, 0
    %v4260 = vsel %vm2016, %v3957, 0
    %v4263 = vsel %vm2016, %v3964, 0
    %v4266 = vsel %vm2016, %v3971, 0
    %v4269 = vsel %vm2016, %v3978, 0
    %v4272 = vsel %vm2016, %v3985, 0
    %v4275 = vsel %vm2016, %v3992, 0
    %v4278 = vsel %vm2016, %v3999, 0
    %v4281 = vsel %vm2016, %v4006, 0
    %v4284 = vsel %vm2016, %v4013, 0
    %v4287 = vsel %vm2016, %v4020, 0
    %v4290 = vsel %vm2016, %v4027, 0
    %v4293 = vsel %vm2016, %v4034, 0
    %v4296 = vsel %vm2016, %v4041, 0
    %v4299 = vsel %vm2016, %v4048, 0
    %v4302 = vsel %vm2016, %v4055, 0
    %v4305 = vsel %vm2016, %v4062, 0
    %v4308 = vsel %vm2016, %v4069, 0
    %v4311 = vsel %vm2016, %v4076, 0
    %v4314 = vsel %vm2016, %v4083, 0
    %v4317 = vsel %vm2016, %v4090, 0
    %v4320 = vsel %vm2016, %v4097, 0
    %v4323 = vsel %vm2016, %v4104, 0
    %v4326 = vsel %vm2016, %v4111, 0
    %v4329 = vsel %vm2016, %v4118, 0
    %v4332 = vsel %vm2016, %v4125, 0
    %v4335 = vsel %vm2016, %v4132, 0
    %v4338 = vsel %vm2016, %v4139, 0
    %v4341 = vsel %vm2016, %v4146, 0
    %v4344 = vsel %vm2016, %v4153, 0
    %v4347 = vsel %vm2016, %v4160, 0
    %v4350 = vsel %vm2016, %v4167, 0
    %v4353 = vsel %vm2016, %v4174, 0
    %v4356 = vsel %vm2016, %v4181, 0
    %v4359 = vsel %vm2016, %v4188, 0
    %v4362 = vsel %vm2016, %v4195, 0
    %v4365 = vsel %vm2016, %v4202, 0
    %v4368 = vsel %vm2016, %v4210, 0
    %v4371 = vsel %vm2016, %v4213, 0
    %v4374 = vsel %vm2176, %v3839, 0
    %4376 = vmatpush.bf16.msra.mxu0 0
    %4377 = vmatpush.bf16.msra.mxu0 0
    %4378 = vmatpush.bf16.msra.mxu0 0
    %4379 = vmatpush.bf16.msra.mxu0 0
    %4380 = vmatpush.bf16.msra.mxu0 0
    %4381 = vmatpush.bf16.msra.mxu0 0
    %4382 = vmatpush.bf16.msra.mxu0 0
    %4383 = vmatpush.bf16.msra.mxu0 %v4374
    %4384 = vmatmul.bf16.gmra.mxu0 %v4215
    %v4385 = vpop.f32.mrf.mxu0
    %v4386 = vadd.f32 0.0, %v4385
    %v4387 = vpop.f32.mrf.mxu0
    %v4388 = vadd.f32 0.0, %v4387
    %4389 = vmatmul.bf16.gmra.mxu0 %v4218
    %v4390 = vpop.f32.mrf.mxu0
    %v4391 = vpop.f32.mrf.mxu0
    %v4392 = vadd.f32 0.0, %v4391
    %4393 = vmatmul.bf16.gmra.mxu0 %v4221
    %v4394 = vpop.f32.mrf.mxu0
    %v4395 = vadd.f32 0.0, %v4394
    %v4396 = vpop.f32.mrf.mxu0
    %4397 = vmatmul.bf16.gmra.mxu0 %v4224
    %v4398 = vpop.f32.mrf.mxu0
    %v4399 = vadd.f32 0.0, %v4398
    %v4400 = vpop.f32.mrf.mxu0
    %v4401 = vadd.f32 0.0, %v4400
    %4402 = vmatmul.bf16.gmra.mxu0 %v4227
    %v4403 = vpop.f32.mrf.mxu0
    %v4404 = vpop.f32.mrf.mxu0
    %v4405 = vadd.f32 0.0, %v4404
    %4406 = vmatmul.bf16.gmra.mxu0 %v4230
    %v4407 = vpop.f32.mrf.mxu0
    %v4408 = vadd.f32 0.0, %v4407
    %v4409 = vpop.f32.mrf.mxu0
    %4410 = vmatmul.bf16.gmra.mxu0 %v4233
    %v4411 = vpop.f32.mrf.mxu0
    %v4412 = vadd.f32 0.0, %v4411
    %v4413 = vpop.f32.mrf.mxu0
    %v4414 = vadd.f32 0.0, %v4413
    %4415 = vmatmul.bf16.gmra.mxu0 %v4236
    %v4416 = vpop.f32.mrf.mxu0
    %v4417 = vpop.f32.mrf.mxu0
    %v4418 = vadd.f32 0.0, %v4417
    %4419 = vmatmul.bf16.gmra.mxu0 %v4239
    %v4420 = vpop.f32.mrf.mxu0
    %v4421 = vadd.f32 0.0, %v4420
    %v4422 = vpop.f32.mrf.mxu0
    %4423 = vmatmul.bf16.gmra.mxu0 %v4242
    %v4424 = vpop.f32.mrf.mxu0
    %v4425 = vadd.f32 0.0, %v4424
    %v4426 = vpop.f32.mrf.mxu0
    %v4427 = vadd.f32 0.0, %v4426
    %4428 = vmatmul.bf16.gmra.mxu0 %v4245
    %v4429 = vpop.f32.mrf.mxu0
    %v4430 = vpop.f32.mrf.mxu0
    %v4431 = vadd.f32 0.0, %v4430
    %4432 = vmatmul.bf16.gmra.mxu0 %v4248
    %v4433 = vpop.f32.mrf.mxu0
    %v4434 = vadd.f32 0.0, %v4433
    %v4435 = vpop.f32.mrf.mxu0
    %4436 = vmatmul.bf16.gmra.mxu0 %v4251
    %v4437 = vpop.f32.mrf.mxu0
    %v4438 = vadd.f32 0.0, %v4437
    %v4439 = vpop.f32.mrf.mxu0
    %v4440 = vadd.f32 0.0, %v4439
    %4441 = vmatmul.bf16.gmra.mxu0 %v4254
    %v4442 = vpop.f32.mrf.mxu0
    %v4443 = vpop.f32.mrf.mxu0
    %v4444 = vadd.f32 0.0, %v4443
    %4445 = vmatmul.bf16.gmra.mxu0 %v4257
    %v4446 = vpop.f32.mrf.mxu0
    %v4447 = vadd.f32 0.0, %v4446
    %v4448 = vpop.f32.mrf.mxu0
    %4449 = vmatmul.bf16.gmra.mxu0 %v4260
    %v4450 = vpop.f32.mrf.mxu0
    %v4451 = vadd.f32 0.0, %v4450
    %v4452 = vpop.f32.mrf.mxu0
    %v4453 = vadd.f32 0.0, %v4452
    %4454 = vmatmul.bf16.gmra.mxu0 %v4263
    %v4455 = vpop.f32.mrf.mxu0
    %v4456 = vpop.f32.mrf.mxu0
    %v4457 = vadd.f32 0.0, %v4456
    %4458 = vmatmul.bf16.gmra.mxu0 %v4266
    %v4459 = vpop.f32.mrf.mxu0
    %v4460 = vadd.f32 0.0, %v4459
    %v4461 = vpop.f32.mrf.mxu0
    %4462 = vmatmul.bf16.gmra.mxu0 %v4269
    %v4463 = vpop.f32.mrf.mxu0
    %v4464 = vadd.f32 0.0, %v4463
    %v4465 = vpop.f32.mrf.mxu0
    %v4466 = vadd.f32 0.0, %v4465
    %4467 = vmatmul.bf16.gmra.mxu0 %v4272
    %v4468 = vpop.f32.mrf.mxu0
    %v4469 = vpop.f32.mrf.mxu0
    %v4470 = vadd.f32 0.0, %v4469
    %4471 = vmatmul.bf16.gmra.mxu0 %v4275
    %v4472 = vpop.f32.mrf.mxu0
    %v4473 = vadd.f32 0.0, %v4472
    %v4474 = vpop.f32.mrf.mxu0
    %4475 = vmatmul.bf16.gmra.mxu0 %v4278
    %v4476 = vpop.f32.mrf.mxu0
    %v4477 = vadd.f32 0.0, %v4476
    %v4478 = vpop.f32.mrf.mxu0
    %v4479 = vadd.f32 0.0, %v4478
    %4480 = vmatmul.bf16.gmra.mxu0 %v4281
    %v4481 = vpop.f32.mrf.mxu0
    %v4482 = vpop.f32.mrf.mxu0
    %v4483 = vadd.f32 0.0, %v4482
    %4484 = vmatmul.bf16.gmra.mxu0 %v4284
    %v4485 = vpop.f32.mrf.mxu0
    %v4486 = vadd.f32 0.0, %v4485
    %v4487 = vpop.f32.mrf.mxu0
    %4488 = vmatmul.bf16.gmra.mxu0 %v4287
    %v4489 = vpop.f32.mrf.mxu0
    %v4490 = vpop.f32.mrf.mxu0
    %4491 = vmatmul.bf16.gmra.mxu0 %v4290
    %v4492 = vpop.f32.mrf.mxu0
    %v4493 = vpop.f32.mrf.mxu0
    %4494 = vmatmul.bf16.gmra.mxu0 %v4293
    %v4495 = vpop.f32.mrf.mxu0
    %v4496 = vpop.f32.mrf.mxu0
    %4497 = vmatmul.bf16.gmra.mxu0 %v4296
    %v4498 = vpop.f32.mrf.mxu0
    %v4499 = vpop.f32.mrf.mxu0
    %4500 = vmatmul.bf16.gmra.mxu0 %v4299
    %v4501 = vpop.f32.mrf.mxu0
    %v4502 = vpop.f32.mrf.mxu0
    %v4503 = vadd.f32 0.0, %v4502
    %4504 = vmatmul.bf16.gmra.mxu0 %v4302
    %v4505 = vpop.f32.mrf.mxu0
    %v4506 = vadd.f32 0.0, %v4505
    %v4507 = vpop.f32.mrf.mxu0
    %4508 = vmatmul.bf16.gmra.mxu0 %v4305
    %v4509 = vpop.f32.mrf.mxu0
    %v4510 = vadd.f32 0.0, %v4509
    %v4511 = vpop.f32.mrf.mxu0
    %v4512 = vadd.f32 0.0, %v4511
    %4513 = vmatmul.bf16.gmra.mxu0 %v4308
    %v4514 = vpop.f32.mrf.mxu0
    %v4515 = vpop.f32.mrf.mxu0
    %v4516 = vadd.f32 0.0, %v4515
    %4517 = vmatmul.bf16.gmra.mxu0 %v4311
    %v4518 = vpop.f32.mrf.mxu0
    %v4519 = vadd.f32 0.0, %v4518
    %v4520 = vpop.f32.mrf.mxu0
    %4521 = vmatmul.bf16.gmra.mxu0 %v4314
    %v4522 = vpop.f32.mrf.mxu0
    %v4523 = vadd.f32 0.0, %v4522
    %v4524 = vpop.f32.mrf.mxu0
    %v4525 = vadd.f32 0.0, %v4524
    %4526 = vmatmul.bf16.gmra.mxu0 %v4317
    %v4527 = vpop.f32.mrf.mxu0
    %v4528 = vpop.f32.mrf.mxu0
    %v4529 = vadd.f32 0.0, %v4528
    %4530 = vmatmul.bf16.gmra.mxu0 %v4320
    %v4531 = vpop.f32.mrf.mxu0
    %v4532 = vadd.f32 0.0, %v4531
    %v4533 = vpop.f32.mrf.mxu0
    %4534 = vmatmul.bf16.gmra.mxu0 %v4323
    %v4535 = vpop.f32.mrf.mxu0
    %v4536 = vadd.f32 0.0, %v4535
    %v4537 = vpop.f32.mrf.mxu0
    %v4538 = vadd.f32 0.0, %v4537
    %4539 = vmatmul.bf16.gmra.mxu0 %v4326
    %v4540 = vpop.f32.mrf.mxu0
    %v4541 = vpop.f32.mrf.mxu0
    %v4542 = vadd.f32 0.0, %v4541
    %4543 = vmatmul.bf16.gmra.mxu0 %v4329
    %v4544 = vpop.f32.mrf.mxu0
    %v4545 = vadd.f32 0.0, %v4544
    %v4546 = vpop.f32.mrf.mxu0
    %4547 = vmatmul.bf16.gmra.mxu0 %v4332
    %v4548 = vpop.f32.mrf.mxu0
    %v4549 = vadd.f32 0.0, %v4548
    %v4550 = vpop.f32.mrf.mxu0
    %v4551 = vadd.f32 0.0, %v4550
    %4552 = vmatmul.bf16.gmra.mxu0 %v4335
    %v4553 = vpop.f32.mrf.mxu0
    %v4554 = vpop.f32.mrf.mxu0
    %v4555 = vadd.f32 0.0, %v4554
    %4556 = vmatmul.bf16.gmra.mxu0 %v4338
    %v4557 = vpop.f32.mrf.mxu0
    %v4558 = vadd.f32 0.0, %v4557
    %v4559 = vpop.f32.mrf.mxu0
    %4560 = vmatmul.bf16.gmra.mxu0 %v4341
    %v4561 = vpop.f32.mrf.mxu0
    %v4562 = vadd.f32 0.0, %v4561
    %v4563 = vpop.f32.mrf.mxu0
    %v4564 = vadd.f32 0.0, %v4563
    %4565 = vmatmul.bf16.gmra.mxu0 %v4344
    %v4566 = vpop.f32.mrf.mxu0
    %v4567 = vpop.f32.mrf.mxu0
    %v4568 = vadd.f32 0.0, %v4567
    %4569 = vmatmul.bf16.gmra.mxu0 %v4347
    %v4570 = vpop.f32.mrf.mxu0
    %v4571 = vadd.f32 0.0, %v4570
    %v4572 = vpop.f32.mrf.mxu0
    %4573 = vmatmul.bf16.gmra.mxu0 %v4350
    %v4574 = vpop.f32.mrf.mxu0
    %v4575 = vadd.f32 0.0, %v4574
    %v4576 = vpop.f32.mrf.mxu0
    %v4577 = vadd.f32 0.0, %v4576
    %4578 = vmatmul.bf16.gmra.mxu0 %v4353
    %v4579 = vpop.f32.mrf.mxu0
    %v4580 = vpop.f32.mrf.mxu0
    %v4581 = vadd.f32 0.0, %v4580
    %4582 = vmatmul.bf16.gmra.mxu0 %v4356
    %v4583 = vpop.f32.mrf.mxu0
    %v4584 = vadd.f32 0.0, %v4583
    %v4585 = vpop.f32.mrf.mxu0
    %4586 = vmatmul.bf16.gmra.mxu0 %v4359
    %v4587 = vpop.f32.mrf.mxu0
    %v4588 = vadd.f32 0.0, %v4587
    %v4589 = vpop.f32.mrf.mxu0
    %v4590 = vadd.f32 0.0, %v4589
    %4591 = vmatmul.bf16.gmra.mxu0 %v4362
    %v4592 = vpop.f32.mrf.mxu0
    %v4593 = vpop.f32.mrf.mxu0
    %v4594 = vadd.f32 0.0, %v4593
    %4595 = vmatmul.bf16.gmra.mxu0 %v4365
    %v4596 = vpop.f32.mrf.mxu0
    %v4597 = vadd.f32 0.0, %v4596
    %v4598 = vpop.f32.mrf.mxu0
    %4599 = vmatmul.bf16.gmra.mxu0 %v4368
    %v4600 = vpop.f32.mrf.mxu0
    %v4601 = vadd.f32 0.0, %v4600
    %v4602 = vpop.f32.mrf.mxu0
    %v4603 = vadd.f32 0.0, %v4602
    %4604 = vmatmul.bf16.gmra.mxu0 %v4371
    %v4605 = vpop.f32.mrf.mxu0
    %v4606 = vpop.f32.mrf.mxu0
    %4607 = vdwg.mxu0
    %v4608 = vadd.f32 %v3774, %v4386
    %v4609 = vadd.f32 %v3775, %v4388
    %v4610 = vadd.f32 %v3776, %v4392
    %v4611 = vadd.f32 %v3777, %v4395
    %v4612 = vadd.f32 %v3778, %v4399
    %v4613 = vadd.f32 %v3779, %v4401
    %v4614 = vadd.f32 %v3780, %v4405
    %v4615 = vadd.f32 %v3781, %v4408
    %v4616 = vadd.f32 %v3782, %v4412
    %v4617 = vadd.f32 %v3783, %v4414
    %v4618 = vadd.f32 %v3784, %v4418
    %v4619 = vadd.f32 %v3785, %v4421
    %v4620 = vadd.f32 %v3786, %v4425
    %v4621 = vadd.f32 %v3787, %v4427
    %v4622 = vadd.f32 %v3788, %v4431
    %v4623 = vadd.f32 %v3789, %v4434
    %v4624 = vadd.f32 %v3790, %v4438
    %v4625 = vadd.f32 %v3791, %v4440
    %v4626 = vadd.f32 %v3792, %v4444
    %v4627 = vadd.f32 %v3793, %v4447
    %v4628 = vadd.f32 %v3794, %v4451
    %v4629 = vadd.f32 %v3795, %v4453
    %v4630 = vadd.f32 %v3796, %v4457
    %v4631 = vadd.f32 %v3797, %v4460
    %v4632 = vadd.f32 %v3798, %v4464
    %v4633 = vadd.f32 %v3799, %v4466
    %v4634 = vadd.f32 %v3800, %v4470
    %v4635 = vadd.f32 %v3801, %v4473
    %v4636 = vadd.f32 %v3802, %v4477
    %v4637 = vadd.f32 %v3803, %v4479
    %v4638 = vadd.f32 %v3804, %v4483
    %v4639 = vadd.f32 %v3805, %v4486
    %v4640 = vadd.f32 %v3806, %v4503
    %v4641 = vadd.f32 %v3807, %v4506
    %v4642 = vadd.f32 %v3808, %v4510
    %v4643 = vadd.f32 %v3809, %v4512
    %v4644 = vadd.f32 %v3810, %v4516
    %v4645 = vadd.f32 %v3811, %v4519
    %v4646 = vadd.f32 %v3812, %v4523
    %v4647 = vadd.f32 %v3813, %v4525
    %v4648 = vadd.f32 %v3814, %v4529
    %v4649 = vadd.f32 %v3815, %v4532
    %v4650 = vadd.f32 %v3816, %v4536
    %v4651 = vadd.f32 %v3817, %v4538
    %v4652 = vadd.f32 %v3818, %v4542
    %v4653 = vadd.f32 %v3819, %v4545
    %v4654 = vadd.f32 %v3820, %v4549
    %v4655 = vadd.f32 %v3821, %v4551
    %v4656 = vadd.f32 %v3822, %v4555
    %v4657 = vadd.f32 %v3823, %v4558
    %v4658 = vadd.f32 %v3824, %v4562
    %v4659 = vadd.f32 %v3825, %v4564
    %v4660 = vadd.f32 %v3826, %v4568
    %v4661 = vadd.f32 %v3827, %v4571
    %v4662 = vadd.f32 %v3828, %v4575
    %v4663 = vadd.f32 %v3829, %v4577
    %v4664 = vadd.f32 %v3830, %v4581
    %v4665 = vadd.f32 %v3831, %v4584
    %v4666 = vadd.f32 %v3832, %v4588
    %v4667 = vadd.f32 %v3833, %v4590
    %v4668 = vadd.f32 %v3834, %v4594
    %v4669 = vadd.f32 %v3835, %v4597
    %v4670 = vadd.f32 %v3836, %v4601
    %v4671 = vadd.f32 %v3837, %v4603
    %s4672 = scalar_lea.vmem %s1, 20
    %v4673 = vld [vmem:[%s4672] sm:$0xf]
    %v4674 = vrot.slane %v3327, 1
    %v4675 = vrot.slane %v3328, 1
    %v4676 = vsel %vm2757, %v4674, %v4675
    %v4677 = vrot.slane %v3329, 1
    %v4678 = vsel %vm2757, %v4675, %v4677
    %v4679 = vrot.slane %v3330, 1
    %v4680 = vsel %vm2757, %v4677, %v4679
    %v4681 = vrot.slane %v3331, 1
    %v4682 = vsel %vm2757, %v4679, %v4681
    %v4683 = vrot.slane %v3332, 1
    %v4684 = vsel %vm2757, %v4681, %v4683
    %v4685 = vrot.slane %v3333, 1
    %v4686 = vsel %vm2757, %v4683, %v4685
    %v4687 = vrot.slane %v3334, 1
    %v4688 = vsel %vm2757, %v4685, %v4687
    %v4689 = vrot.slane %v3335, 1
    %v4690 = vsel %vm2757, %v4687, %v4689
    %v4691 = vrot.slane %v3336, 1
    %v4692 = vsel %vm2757, %v4689, %v4691
    %v4693 = vrot.slane %v3337, 1
    %v4694 = vsel %vm2757, %v4691, %v4693
    %v4695 = vrot.slane %v3338, 1
    %v4696 = vsel %vm2757, %v4693, %v4695
    %v4697 = vrot.slane %v3339, 1
    %v4698 = vsel %vm2757, %v4695, %v4697
    %v4699 = vrot.slane %v3340, 1
    %v4700 = vsel %vm2757, %v4697, %v4699
    %v4701 = vrot.slane %v3341, 1
    %v4702 = vsel %vm2757, %v4699, %v4701
    %v4703 = vrot.slane %v3342, 1
    %v4704 = vsel %vm2757, %v4701, %v4703
    %v4705 = vrot.slane %v3343, 1
    %v4706 = vsel %vm2757, %v4703, %v4705
    %v4707 = vrot.slane %v3344, 1
    %v4708 = vsel %vm2757, %v4705, %v4707
    %v4709 = vrot.slane %v3345, 1
    %v4710 = vsel %vm2757, %v4707, %v4709
    %v4711 = vrot.slane %v3346, 1
    %v4712 = vsel %vm2757, %v4709, %v4711
    %v4713 = vrot.slane %v3347, 1
    %v4714 = vsel %vm2757, %v4711, %v4713
    %v4715 = vrot.slane %v3348, 1
    %v4716 = vsel %vm2757, %v4713, %v4715
    %v4717 = vrot.slane %v3349, 1
    %v4718 = vsel %vm2757, %v4715, %v4717
    %v4719 = vrot.slane %v3350, 1
    %v4720 = vsel %vm2757, %v4717, %v4719
    %v4721 = vrot.slane %v3351, 1
    %v4722 = vsel %vm2757, %v4719, %v4721
    %v4723 = vrot.slane %v3352, 1
    %v4724 = vsel %vm2757, %v4721, %v4723
    %v4725 = vrot.slane %v3353, 1
    %v4726 = vsel %vm2757, %v4723, %v4725
    %v4727 = vrot.slane %v3354, 1
    %v4728 = vsel %vm2757, %v4725, %v4727
    %v4729 = vrot.slane %v3355, 1
    %v4730 = vsel %vm2757, %v4727, %v4729
    %v4731 = vrot.slane %v3356, 1
    %v4732 = vsel %vm2757, %v4729, %v4731
    %v4733 = vrot.slane %v3357, 1
    %v4734 = vsel %vm2757, %v4731, %v4733
    %v4735 = vrot.slane %v3358, 1
    %v4736 = vsel %vm2757, %v4733, %v4735
    %v4737 = vrot.slane %v3359, 1
    %v4738 = vsel %vm2757, %v4735, %v4737
    %v4739 = vrot.slane %v3360, 1
    %v4740 = vsel %vm2757, %v4737, %v4739
    %v4741 = vrot.slane %v3361, 1
    %v4742 = vsel %vm2757, %v4739, %v4741
    %v4743 = vrot.slane %v3362, 1
    %v4744 = vsel %vm2757, %v4741, %v4743
    %v4745 = vrot.slane %v3363, 1
    %v4746 = vsel %vm2757, %v4743, %v4745
    %v4747 = vrot.slane %v3364, 1
    %v4748 = vsel %vm2757, %v4745, %v4747
    %v4749 = vrot.slane %v3365, 1
    %v4750 = vsel %vm2757, %v4747, %v4749
    %v4751 = vrot.slane %v3366, 1
    %v4752 = vsel %vm2757, %v4749, %v4751
    %v4753 = vrot.slane %v3367, 1
    %v4754 = vsel %vm2757, %v4751, %v4753
    %v4755 = vrot.slane %v3368, 1
    %v4756 = vsel %vm2757, %v4753, %v4755
    %v4757 = vrot.slane %v3369, 1
    %v4758 = vsel %vm2757, %v4755, %v4757
    %v4759 = vrot.slane %v3370, 1
    %v4760 = vsel %vm2757, %v4757, %v4759
    %v4761 = vrot.slane %v3371, 1
    %v4762 = vsel %vm2757, %v4759, %v4761
    %v4763 = vrot.slane %v3372, 1
    %v4764 = vsel %vm2757, %v4761, %v4763
    %v4765 = vrot.slane %v3373, 1
    %v4766 = vsel %vm2757, %v4763, %v4765
    %v4767 = vrot.slane %v3374, 1
    %v4768 = vsel %vm2757, %v4765, %v4767
    %v4769 = vrot.slane %v3375, 1
    %v4770 = vsel %vm2757, %v4767, %v4769
    %v4771 = vrot.slane %v3376, 1
    %v4772 = vsel %vm2757, %v4769, %v4771
    %v4773 = vrot.slane %v3377, 1
    %v4774 = vsel %vm2757, %v4771, %v4773
    %v4775 = vrot.slane %v3378, 1
    %v4776 = vsel %vm2757, %v4773, %v4775
    %v4777 = vrot.slane %v3842, 1
    %v4778 = vsel %vm2757, %v4775, %v4777
    %v4780 = vsel %vm2016, %v4676, 0
    %v4783 = vsel %vm2016, %v4678, 0
    %v4786 = vsel %vm2016, %v4680, 0
    %v4789 = vsel %vm2016, %v4682, 0
    %v4792 = vsel %vm2016, %v4684, 0
    %v4795 = vsel %vm2016, %v4686, 0
    %v4798 = vsel %vm2016, %v4688, 0
    %v4801 = vsel %vm2016, %v4690, 0
    %v4804 = vsel %vm2016, %v4692, 0
    %v4807 = vsel %vm2016, %v4694, 0
    %v4810 = vsel %vm2016, %v4696, 0
    %v4813 = vsel %vm2016, %v4698, 0
    %v4816 = vsel %vm2016, %v4700, 0
    %v4819 = vsel %vm2016, %v4702, 0
    %v4822 = vsel %vm2016, %v4704, 0
    %v4825 = vsel %vm2016, %v4706, 0
    %v4828 = vsel %vm2016, %v4708, 0
    %v4831 = vsel %vm2016, %v4710, 0
    %v4834 = vsel %vm2016, %v4712, 0
    %v4837 = vsel %vm2016, %v4714, 0
    %v4840 = vsel %vm2016, %v4716, 0
    %v4843 = vsel %vm2016, %v4718, 0
    %v4846 = vsel %vm2016, %v4720, 0
    %v4849 = vsel %vm2016, %v4722, 0
    %v4852 = vsel %vm2016, %v4724, 0
    %v4855 = vsel %vm2016, %v4726, 0
    %v4858 = vsel %vm2016, %v4728, 0
    %v4861 = vsel %vm2016, %v4730, 0
    %v4864 = vsel %vm2016, %v4732, 0
    %v4867 = vsel %vm2016, %v4734, 0
    %v4870 = vsel %vm2016, %v4736, 0
    %v4873 = vsel %vm2016, %v4738, 0
    %v4876 = vsel %vm2016, %v4740, 0
    %v4879 = vsel %vm2016, %v4742, 0
    %v4882 = vsel %vm2016, %v4744, 0
    %v4885 = vsel %vm2016, %v4746, 0
    %v4888 = vsel %vm2016, %v4748, 0
    %v4891 = vsel %vm2016, %v4750, 0
    %v4894 = vsel %vm2016, %v4752, 0
    %v4897 = vsel %vm2016, %v4754, 0
    %v4900 = vsel %vm2016, %v4756, 0
    %v4903 = vsel %vm2016, %v4758, 0
    %v4906 = vsel %vm2016, %v4760, 0
    %v4909 = vsel %vm2016, %v4762, 0
    %v4912 = vsel %vm2016, %v4764, 0
    %v4915 = vsel %vm2016, %v4766, 0
    %v4918 = vsel %vm2016, %v4768, 0
    %v4921 = vsel %vm2016, %v4770, 0
    %v4924 = vsel %vm2016, %v4772, 0
    %v4927 = vsel %vm2016, %v4774, 0
    %v4930 = vsel %vm2016, %v4776, 0
    %v4933 = vsel %vm2016, %v4778, 0
    %v4936 = vsel %vm2016, %v4777, 0
    %v4939 = vsel %vm2176, %v4673, 0
    %4941 = vmatpush.bf16.msra.mxu0 0
    %4942 = vmatpush.bf16.msra.mxu0 0
    %4943 = vmatpush.bf16.msra.mxu0 0
    %4944 = vmatpush.bf16.msra.mxu0 0
    %4945 = vmatpush.bf16.msra.mxu0 0
    %4946 = vmatpush.bf16.msra.mxu0 0
    %4947 = vmatpush.bf16.msra.mxu0 0
    %4948 = vmatpush.bf16.msra.mxu0 %v4939
    %4949 = vmatmul.bf16.gmra.mxu0 %v4780
    %v4950 = vpop.f32.mrf.mxu0
    %v4951 = vadd.f32 0.0, %v4950
    %v4952 = vpop.f32.mrf.mxu0
    %v4953 = vadd.f32 0.0, %v4952
    %4954 = vmatmul.bf16.gmra.mxu0 %v4783
    %v4955 = vpop.f32.mrf.mxu0
    %v4956 = vpop.f32.mrf.mxu0
    %v4957 = vadd.f32 0.0, %v4956
    %4958 = vmatmul.bf16.gmra.mxu0 %v4786
    %v4959 = vpop.f32.mrf.mxu0
    %v4960 = vadd.f32 0.0, %v4959
    %v4961 = vpop.f32.mrf.mxu0
    %4962 = vmatmul.bf16.gmra.mxu0 %v4789
    %v4963 = vpop.f32.mrf.mxu0
    %v4964 = vadd.f32 0.0, %v4963
    %v4965 = vpop.f32.mrf.mxu0
    %v4966 = vadd.f32 0.0, %v4965
    %4967 = vmatmul.bf16.gmra.mxu0 %v4792
    %v4968 = vpop.f32.mrf.mxu0
    %v4969 = vpop.f32.mrf.mxu0
    %v4970 = vadd.f32 0.0, %v4969
    %4971 = vmatmul.bf16.gmra.mxu0 %v4795
    %v4972 = vpop.f32.mrf.mxu0
    %v4973 = vadd.f32 0.0, %v4972
    %v4974 = vpop.f32.mrf.mxu0
    %4975 = vmatmul.bf16.gmra.mxu0 %v4798
    %v4976 = vpop.f32.mrf.mxu0
    %v4977 = vadd.f32 0.0, %v4976
    %v4978 = vpop.f32.mrf.mxu0
    %v4979 = vadd.f32 0.0, %v4978
    %4980 = vmatmul.bf16.gmra.mxu0 %v4801
    %v4981 = vpop.f32.mrf.mxu0
    %v4982 = vpop.f32.mrf.mxu0
    %v4983 = vadd.f32 0.0, %v4982
    %4984 = vmatmul.bf16.gmra.mxu0 %v4804
    %v4985 = vpop.f32.mrf.mxu0
    %v4986 = vadd.f32 0.0, %v4985
    %v4987 = vpop.f32.mrf.mxu0
    %4988 = vmatmul.bf16.gmra.mxu0 %v4807
    %v4989 = vpop.f32.mrf.mxu0
    %v4990 = vadd.f32 0.0, %v4989
    %v4991 = vpop.f32.mrf.mxu0
    %v4992 = vadd.f32 0.0, %v4991
    %4993 = vmatmul.bf16.gmra.mxu0 %v4810
    %v4994 = vpop.f32.mrf.mxu0
    %v4995 = vpop.f32.mrf.mxu0
    %v4996 = vadd.f32 0.0, %v4995
    %4997 = vmatmul.bf16.gmra.mxu0 %v4813
    %v4998 = vpop.f32.mrf.mxu0
    %v4999 = vadd.f32 0.0, %v4998
    %v5000 = vpop.f32.mrf.mxu0
    %5001 = vmatmul.bf16.gmra.mxu0 %v4816
    %v5002 = vpop.f32.mrf.mxu0
    %v5003 = vadd.f32 0.0, %v5002
    %v5004 = vpop.f32.mrf.mxu0
    %v5005 = vadd.f32 0.0, %v5004
    %5006 = vmatmul.bf16.gmra.mxu0 %v4819
    %v5007 = vpop.f32.mrf.mxu0
    %v5008 = vpop.f32.mrf.mxu0
    %v5009 = vadd.f32 0.0, %v5008
    %5010 = vmatmul.bf16.gmra.mxu0 %v4822
    %v5011 = vpop.f32.mrf.mxu0
    %v5012 = vadd.f32 0.0, %v5011
    %v5013 = vpop.f32.mrf.mxu0
    %5014 = vmatmul.bf16.gmra.mxu0 %v4825
    %v5015 = vpop.f32.mrf.mxu0
    %v5016 = vadd.f32 0.0, %v5015
    %v5017 = vpop.f32.mrf.mxu0
    %v5018 = vadd.f32 0.0, %v5017
    %5019 = vmatmul.bf16.gmra.mxu0 %v4828
    %v5020 = vpop.f32.mrf.mxu0
    %v5021 = vpop.f32.mrf.mxu0
    %v5022 = vadd.f32 0.0, %v5021
    %5023 = vmatmul.bf16.gmra.mxu0 %v4831
    %v5024 = vpop.f32.mrf.mxu0
    %v5025 = vadd.f32 0.0, %v5024
    %v5026 = vpop.f32.mrf.mxu0
    %5027 = vmatmul.bf16.gmra.mxu0 %v4834
    %v5028 = vpop.f32.mrf.mxu0
    %v5029 = vadd.f32 0.0, %v5028
    %v5030 = vpop.f32.mrf.mxu0
    %v5031 = vadd.f32 0.0, %v5030
    %5032 = vmatmul.bf16.gmra.mxu0 %v4837
    %v5033 = vpop.f32.mrf.mxu0
    %v5034 = vpop.f32.mrf.mxu0
    %v5035 = vadd.f32 0.0, %v5034
    %5036 = vmatmul.bf16.gmra.mxu0 %v4840
    %v5037 = vpop.f32.mrf.mxu0
    %v5038 = vadd.f32 0.0, %v5037
    %v5039 = vpop.f32.mrf.mxu0
    %5040 = vmatmul.bf16.gmra.mxu0 %v4843
    %v5041 = vpop.f32.mrf.mxu0
    %v5042 = vadd.f32 0.0, %v5041
    %v5043 = vpop.f32.mrf.mxu0
    %v5044 = vadd.f32 0.0, %v5043
    %5045 = vmatmul.bf16.gmra.mxu0 %v4846
    %v5046 = vpop.f32.mrf.mxu0
    %v5047 = vpop.f32.mrf.mxu0
    %v5048 = vadd.f32 0.0, %v5047
    %5049 = vmatmul.bf16.gmra.mxu0 %v4849
    %v5050 = vpop.f32.mrf.mxu0
    %v5051 = vadd.f32 0.0, %v5050
    %v5052 = vpop.f32.mrf.mxu0
    %5053 = vmatmul.bf16.gmra.mxu0 %v4852
    %v5054 = vpop.f32.mrf.mxu0
    %v5055 = vpop.f32.mrf.mxu0
    %5056 = vmatmul.bf16.gmra.mxu0 %v4855
    %v5057 = vpop.f32.mrf.mxu0
    %v5058 = vpop.f32.mrf.mxu0
    %5059 = vmatmul.bf16.gmra.mxu0 %v4858
    %v5060 = vpop.f32.mrf.mxu0
    %v5061 = vpop.f32.mrf.mxu0
    %5062 = vmatmul.bf16.gmra.mxu0 %v4861
    %v5063 = vpop.f32.mrf.mxu0
    %v5064 = vpop.f32.mrf.mxu0
    %5065 = vmatmul.bf16.gmra.mxu0 %v4864
    %v5066 = vpop.f32.mrf.mxu0
    %v5067 = vpop.f32.mrf.mxu0
    %v5068 = vadd.f32 0.0, %v5067
    %5069 = vmatmul.bf16.gmra.mxu0 %v4867
    %v5070 = vpop.f32.mrf.mxu0
    %v5071 = vadd.f32 0.0, %v5070
    %v5072 = vpop.f32.mrf.mxu0
    %5073 = vmatmul.bf16.gmra.mxu0 %v4870
    %v5074 = vpop.f32.mrf.mxu0
    %v5075 = vadd.f32 0.0, %v5074
    %v5076 = vpop.f32.mrf.mxu0
    %v5077 = vadd.f32 0.0, %v5076
    %5078 = vmatmul.bf16.gmra.mxu0 %v4873
    %v5079 = vpop.f32.mrf.mxu0
    %v5080 = vpop.f32.mrf.mxu0
    %v5081 = vadd.f32 0.0, %v5080
    %5082 = vmatmul.bf16.gmra.mxu0 %v4876
    %v5083 = vpop.f32.mrf.mxu0
    %v5084 = vadd.f32 0.0, %v5083
    %v5085 = vpop.f32.mrf.mxu0
    %5086 = vmatmul.bf16.gmra.mxu0 %v4879
    %v5087 = vpop.f32.mrf.mxu0
    %v5088 = vadd.f32 0.0, %v5087
    %v5089 = vpop.f32.mrf.mxu0
    %v5090 = vadd.f32 0.0, %v5089
    %5091 = vmatmul.bf16.gmra.mxu0 %v4882
    %v5092 = vpop.f32.mrf.mxu0
    %v5093 = vpop.f32.mrf.mxu0
    %v5094 = vadd.f32 0.0, %v5093
    %5095 = vmatmul.bf16.gmra.mxu0 %v4885
    %v5096 = vpop.f32.mrf.mxu0
    %v5097 = vadd.f32 0.0, %v5096
    %v5098 = vpop.f32.mrf.mxu0
    %5099 = vmatmul.bf16.gmra.mxu0 %v4888
    %v5100 = vpop.f32.mrf.mxu0
    %v5101 = vadd.f32 0.0, %v5100
    %v5102 = vpop.f32.mrf.mxu0
    %v5103 = vadd.f32 0.0, %v5102
    %5104 = vmatmul.bf16.gmra.mxu0 %v4891
    %v5105 = vpop.f32.mrf.mxu0
    %v5106 = vpop.f32.mrf.mxu0
    %v5107 = vadd.f32 0.0, %v5106
    %5108 = vmatmul.bf16.gmra.mxu0 %v4894
    %v5109 = vpop.f32.mrf.mxu0
    %v5110 = vadd.f32 0.0, %v5109
    %v5111 = vpop.f32.mrf.mxu0
    %5112 = vmatmul.bf16.gmra.mxu0 %v4897
    %v5113 = vpop.f32.mrf.mxu0
    %v5114 = vadd.f32 0.0, %v5113
    %v5115 = vpop.f32.mrf.mxu0
    %v5116 = vadd.f32 0.0, %v5115
    %5117 = vmatmul.bf16.gmra.mxu0 %v4900
    %v5118 = vpop.f32.mrf.mxu0
    %v5119 = vpop.f32.mrf.mxu0
    %v5120 = vadd.f32 0.0, %v5119
    %5121 = vmatmul.bf16.gmra.mxu0 %v4903
    %v5122 = vpop.f32.mrf.mxu0
    %v5123 = vadd.f32 0.0, %v5122
    %v5124 = vpop.f32.mrf.mxu0
    %5125 = vmatmul.bf16.gmra.mxu0 %v4906
    %v5126 = vpop.f32.mrf.mxu0
    %v5127 = vadd.f32 0.0, %v5126
    %v5128 = vpop.f32.mrf.mxu0
    %v5129 = vadd.f32 0.0, %v5128
    %5130 = vmatmul.bf16.gmra.mxu0 %v4909
    %v5131 = vpop.f32.mrf.mxu0
    %v5132 = vpop.f32.mrf.mxu0
    %v5133 = vadd.f32 0.0, %v5132
    %5134 = vmatmul.bf16.gmra.mxu0 %v4912
    %v5135 = vpop.f32.mrf.mxu0
    %v5136 = vadd.f32 0.0, %v5135
    %v5137 = vpop.f32.mrf.mxu0
    %5138 = vmatmul.bf16.gmra.mxu0 %v4915
    %v5139 = vpop.f32.mrf.mxu0
    %v5140 = vadd.f32 0.0, %v5139
    %v5141 = vpop.f32.mrf.mxu0
    %v5142 = vadd.f32 0.0, %v5141
    %5143 = vmatmul.bf16.gmra.mxu0 %v4918
    %v5144 = vpop.f32.mrf.mxu0
    %v5145 = vpop.f32.mrf.mxu0
    %v5146 = vadd.f32 0.0, %v5145
    %5147 = vmatmul.bf16.gmra.mxu0 %v4921
    %v5148 = vpop.f32.mrf.mxu0
    %v5149 = vadd.f32 0.0, %v5148
    %v5150 = vpop.f32.mrf.mxu0
    %5151 = vmatmul.bf16.gmra.mxu0 %v4924
    %v5152 = vpop.f32.mrf.mxu0
    %v5153 = vadd.f32 0.0, %v5152
    %v5154 = vpop.f32.mrf.mxu0
    %v5155 = vadd.f32 0.0, %v5154
    %5156 = vmatmul.bf16.gmra.mxu0 %v4927
    %v5157 = vpop.f32.mrf.mxu0
    %v5158 = vpop.f32.mrf.mxu0
    %v5159 = vadd.f32 0.0, %v5158
    %5160 = vmatmul.bf16.gmra.mxu0 %v4930
    %v5161 = vpop.f32.mrf.mxu0
    %v5162 = vadd.f32 0.0, %v5161
    %v5163 = vpop.f32.mrf.mxu0
    %5164 = vmatmul.bf16.gmra.mxu0 %v4933
    %v5165 = vpop.f32.mrf.mxu0
    %v5166 = vadd.f32 0.0, %v5165
    %v5167 = vpop.f32.mrf.mxu0
    %v5168 = vadd.f32 0.0, %v5167
    %5169 = vmatmul.bf16.gmra.mxu0 %v4936
    %v5170 = vpop.f32.mrf.mxu0
    %v5171 = vpop.f32.mrf.mxu0
    %5172 = vdwg.mxu0
    %v5173 = vadd.f32 %v4608, %v4951
    %v5174 = vadd.f32 %v4609, %v4953
    %v5175 = vadd.f32 %v4610, %v4957
    %v5176 = vadd.f32 %v4611, %v4960
    %v5177 = vadd.f32 %v4612, %v4964
    %v5178 = vadd.f32 %v4613, %v4966
    %v5179 = vadd.f32 %v4614, %v4970
    %v5180 = vadd.f32 %v4615, %v4973
    %v5181 = vadd.f32 %v4616, %v4977
    %v5182 = vadd.f32 %v4617, %v4979
    %v5183 = vadd.f32 %v4618, %v4983
    %v5184 = vadd.f32 %v4619, %v4986
    %v5185 = vadd.f32 %v4620, %v4990
    %v5186 = vadd.f32 %v4621, %v4992
    %v5187 = vadd.f32 %v4622, %v4996
    %v5188 = vadd.f32 %v4623, %v4999
    %v5189 = vadd.f32 %v4624, %v5003
    %v5190 = vadd.f32 %v4625, %v5005
    %v5191 = vadd.f32 %v4626, %v5009
    %v5192 = vadd.f32 %v4627, %v5012
    %v5193 = vadd.f32 %v4628, %v5016
    %v5194 = vadd.f32 %v4629, %v5018
    %v5195 = vadd.f32 %v4630, %v5022
    %v5196 = vadd.f32 %v4631, %v5025
    %v5197 = vadd.f32 %v4632, %v5029
    %v5198 = vadd.f32 %v4633, %v5031
    %v5199 = vadd.f32 %v4634, %v5035
    %v5200 = vadd.f32 %v4635, %v5038
    %v5201 = vadd.f32 %v4636, %v5042
    %v5202 = vadd.f32 %v4637, %v5044
    %v5203 = vadd.f32 %v4638, %v5048
    %v5204 = vadd.f32 %v4639, %v5051
    %v5205 = vadd.f32 %v4640, %v5068
    %v5206 = vadd.f32 %v4641, %v5071
    %v5207 = vadd.f32 %v4642, %v5075
    %v5208 = vadd.f32 %v4643, %v5077
    %v5209 = vadd.f32 %v4644, %v5081
    %v5210 = vadd.f32 %v4645, %v5084
    %v5211 = vadd.f32 %v4646, %v5088
    %v5212 = vadd.f32 %v4647, %v5090
    %v5213 = vadd.f32 %v4648, %v5094
    %v5214 = vadd.f32 %v4649, %v5097
    %v5215 = vadd.f32 %v4650, %v5101
    %v5216 = vadd.f32 %v4651, %v5103
    %v5217 = vadd.f32 %v4652, %v5107
    %v5218 = vadd.f32 %v4653, %v5110
    %v5219 = vadd.f32 %v4654, %v5114
    %v5220 = vadd.f32 %v4655, %v5116
    %v5221 = vadd.f32 %v4656, %v5120
    %v5222 = vadd.f32 %v4657, %v5123
    %v5223 = vadd.f32 %v4658, %v5127
    %v5224 = vadd.f32 %v4659, %v5129
    %v5225 = vadd.f32 %v4660, %v5133
    %v5226 = vadd.f32 %v4661, %v5136
    %v5227 = vadd.f32 %v4662, %v5140
    %v5228 = vadd.f32 %v4663, %v5142
    %v5229 = vadd.f32 %v4664, %v5146
    %v5230 = vadd.f32 %v4665, %v5149
    %v5231 = vadd.f32 %v4666, %v5153
    %v5232 = vadd.f32 %v4667, %v5155
    %v5233 = vadd.f32 %v4668, %v5159
    %v5234 = vadd.f32 %v4669, %v5162
    %v5235 = vadd.f32 %v4670, %v5166
    %v5236 = vadd.f32 %v4671, %v5168
    %s5237 = scalar_lea.vmem %s1, 24
    %v5238 = vld [vmem:[%s5237] sm:$0xf]
    %v5241 = vunpack.c.l.b16 %v1321
    %v5242 = vunpack.c.l.b16 %v1322
    %v5243 = vpack.c.b16 %v3326, %v3325
    %v5244 = vpack.c.b16 %v5241, %v3841
    %v5245 = vpack.c.b16 %v5242, %v5242
    %v5246 = vsel %vm2016, %v1591, 0
    %v5249 = vsel %vm2016, %v5243, 0
    %v5252 = vsel %vm2016, %v5244, 0
    %v5255 = vsel %vm2016, %v5245, 0
    %v5258 = vsel %vm2176, %v5238, 0
    %5260 = vmatpush.bf16.msra.mxu0 0
    %5261 = vmatpush.bf16.msra.mxu0 0
    %5262 = vmatpush.bf16.msra.mxu0 0
    %5263 = vmatpush.bf16.msra.mxu0 0
    %5264 = vmatpush.bf16.msra.mxu0 0
    %5265 = vmatpush.bf16.msra.mxu0 0
    %5266 = vmatpush.bf16.msra.mxu0 0
    %5267 = vmatpush.bf16.msra.mxu0 %v5258
    %5268 = vmatmul.bf16.gmra.mxu0 %v2419
    %v5269 = vpop.f32.mrf.mxu0
    %v5270 = vadd.f32 0.0, %v5269
    %v5271 = vpop.f32.mrf.mxu0
    %v5272 = vadd.f32 0.0, %v5271
    %5273 = vmatmul.bf16.gmra.mxu0 %v2421
    %v5274 = vpop.f32.mrf.mxu0
    %v5275 = vpop.f32.mrf.mxu0
    %v5276 = vadd.f32 0.0, %v5275
    %5277 = vmatmul.bf16.gmra.mxu0 %v2423
    %v5278 = vpop.f32.mrf.mxu0
    %v5279 = vadd.f32 0.0, %v5278
    %v5280 = vpop.f32.mrf.mxu0
    %5281 = vmatmul.bf16.gmra.mxu0 %v2425
    %v5282 = vpop.f32.mrf.mxu0
    %v5283 = vadd.f32 0.0, %v5282
    %v5284 = vpop.f32.mrf.mxu0
    %v5285 = vadd.f32 0.0, %v5284
    %5286 = vmatmul.bf16.gmra.mxu0 %v2427
    %v5287 = vpop.f32.mrf.mxu0
    %v5288 = vpop.f32.mrf.mxu0
    %v5289 = vadd.f32 0.0, %v5288
    %5290 = vmatmul.bf16.gmra.mxu0 %v2429
    %v5291 = vpop.f32.mrf.mxu0
    %v5292 = vadd.f32 0.0, %v5291
    %v5293 = vpop.f32.mrf.mxu0
    %5294 = vmatmul.bf16.gmra.mxu0 %v2431
    %v5295 = vpop.f32.mrf.mxu0
    %v5296 = vadd.f32 0.0, %v5295
    %v5297 = vpop.f32.mrf.mxu0
    %v5298 = vadd.f32 0.0, %v5297
    %5299 = vmatmul.bf16.gmra.mxu0 %v2433
    %v5300 = vpop.f32.mrf.mxu0
    %v5301 = vpop.f32.mrf.mxu0
    %v5302 = vadd.f32 0.0, %v5301
    %5303 = vmatmul.bf16.gmra.mxu0 %v2435
    %v5304 = vpop.f32.mrf.mxu0
    %v5305 = vadd.f32 0.0, %v5304
    %v5306 = vpop.f32.mrf.mxu0
    %5307 = vmatmul.bf16.gmra.mxu0 %v2437
    %v5308 = vpop.f32.mrf.mxu0
    %v5309 = vadd.f32 0.0, %v5308
    %v5310 = vpop.f32.mrf.mxu0
    %v5311 = vadd.f32 0.0, %v5310
    %5312 = vmatmul.bf16.gmra.mxu0 %v2439
    %v5313 = vpop.f32.mrf.mxu0
    %v5314 = vpop.f32.mrf.mxu0
    %v5315 = vadd.f32 0.0, %v5314
    %5316 = vmatmul.bf16.gmra.mxu0 %v2441
    %v5317 = vpop.f32.mrf.mxu0
    %v5318 = vadd.f32 0.0, %v5317
    %v5319 = vpop.f32.mrf.mxu0
    %5320 = vmatmul.bf16.gmra.mxu0 %v2443
    %v5321 = vpop.f32.mrf.mxu0
    %v5322 = vadd.f32 0.0, %v5321
    %v5323 = vpop.f32.mrf.mxu0
    %v5324 = vadd.f32 0.0, %v5323
    %5325 = vmatmul.bf16.gmra.mxu0 %v2445
    %v5326 = vpop.f32.mrf.mxu0
    %v5327 = vpop.f32.mrf.mxu0
    %v5328 = vadd.f32 0.0, %v5327
    %5329 = vmatmul.bf16.gmra.mxu0 %v2447
    %v5330 = vpop.f32.mrf.mxu0
    %v5331 = vadd.f32 0.0, %v5330
    %v5332 = vpop.f32.mrf.mxu0
    %5333 = vmatmul.bf16.gmra.mxu0 %v2449
    %v5334 = vpop.f32.mrf.mxu0
    %v5335 = vadd.f32 0.0, %v5334
    %v5336 = vpop.f32.mrf.mxu0
    %v5337 = vadd.f32 0.0, %v5336
    %5338 = vmatmul.bf16.gmra.mxu0 %v2451
    %v5339 = vpop.f32.mrf.mxu0
    %v5340 = vpop.f32.mrf.mxu0
    %v5341 = vadd.f32 0.0, %v5340
    %5342 = vmatmul.bf16.gmra.mxu0 %v2453
    %v5343 = vpop.f32.mrf.mxu0
    %v5344 = vadd.f32 0.0, %v5343
    %v5345 = vpop.f32.mrf.mxu0
    %5346 = vmatmul.bf16.gmra.mxu0 %v2455
    %v5347 = vpop.f32.mrf.mxu0
    %v5348 = vadd.f32 0.0, %v5347
    %v5349 = vpop.f32.mrf.mxu0
    %v5350 = vadd.f32 0.0, %v5349
    %5351 = vmatmul.bf16.gmra.mxu0 %v2457
    %v5352 = vpop.f32.mrf.mxu0
    %v5353 = vpop.f32.mrf.mxu0
    %v5354 = vadd.f32 0.0, %v5353
    %5355 = vmatmul.bf16.gmra.mxu0 %v2459
    %v5356 = vpop.f32.mrf.mxu0
    %v5357 = vadd.f32 0.0, %v5356
    %v5358 = vpop.f32.mrf.mxu0
    %5359 = vmatmul.bf16.gmra.mxu0 %v2461
    %v5360 = vpop.f32.mrf.mxu0
    %v5361 = vadd.f32 0.0, %v5360
    %v5362 = vpop.f32.mrf.mxu0
    %v5363 = vadd.f32 0.0, %v5362
    %5364 = vmatmul.bf16.gmra.mxu0 %v2463
    %v5365 = vpop.f32.mrf.mxu0
    %v5366 = vpop.f32.mrf.mxu0
    %v5367 = vadd.f32 0.0, %v5366
    %5368 = vmatmul.bf16.gmra.mxu0 %v2465
    %v5369 = vpop.f32.mrf.mxu0
    %v5370 = vadd.f32 0.0, %v5369
    %v5371 = vpop.f32.mrf.mxu0
    %5372 = vmatmul.bf16.gmra.mxu0 %v2467
    %v5373 = vpop.f32.mrf.mxu0
    %v5374 = vpop.f32.mrf.mxu0
    %5375 = vmatmul.bf16.gmra.mxu0 %v2469
    %v5376 = vpop.f32.mrf.mxu0
    %v5377 = vpop.f32.mrf.mxu0
    %5378 = vmatmul.bf16.gmra.mxu0 %v2471
    %v5379 = vpop.f32.mrf.mxu0
    %v5380 = vpop.f32.mrf.mxu0
    %5381 = vmatmul.bf16.gmra.mxu0 %v2473
    %v5382 = vpop.f32.mrf.mxu0
    %v5383 = vpop.f32.mrf.mxu0
    %5384 = vmatmul.bf16.gmra.mxu0 %v2475
    %v5385 = vpop.f32.mrf.mxu0
    %v5386 = vpop.f32.mrf.mxu0
    %v5387 = vadd.f32 0.0, %v5386
    %5388 = vmatmul.bf16.gmra.mxu0 %v2477
    %v5389 = vpop.f32.mrf.mxu0
    %v5390 = vadd.f32 0.0, %v5389
    %v5391 = vpop.f32.mrf.mxu0
    %5392 = vmatmul.bf16.gmra.mxu0 %v2479
    %v5393 = vpop.f32.mrf.mxu0
    %v5394 = vadd.f32 0.0, %v5393
    %v5395 = vpop.f32.mrf.mxu0
    %v5396 = vadd.f32 0.0, %v5395
    %5397 = vmatmul.bf16.gmra.mxu0 %v2481
    %v5398 = vpop.f32.mrf.mxu0
    %v5399 = vpop.f32.mrf.mxu0
    %v5400 = vadd.f32 0.0, %v5399
    %5401 = vmatmul.bf16.gmra.mxu0 %v2483
    %v5402 = vpop.f32.mrf.mxu0
    %v5403 = vadd.f32 0.0, %v5402
    %v5404 = vpop.f32.mrf.mxu0
    %5405 = vmatmul.bf16.gmra.mxu0 %v2485
    %v5406 = vpop.f32.mrf.mxu0
    %v5407 = vadd.f32 0.0, %v5406
    %v5408 = vpop.f32.mrf.mxu0
    %v5409 = vadd.f32 0.0, %v5408
    %5410 = vmatmul.bf16.gmra.mxu0 %v2487
    %v5411 = vpop.f32.mrf.mxu0
    %v5412 = vpop.f32.mrf.mxu0
    %v5413 = vadd.f32 0.0, %v5412
    %5414 = vmatmul.bf16.gmra.mxu0 %v2489
    %v5415 = vpop.f32.mrf.mxu0
    %v5416 = vadd.f32 0.0, %v5415
    %v5417 = vpop.f32.mrf.mxu0
    %5418 = vmatmul.bf16.gmra.mxu0 %v2491
    %v5419 = vpop.f32.mrf.mxu0
    %v5420 = vadd.f32 0.0, %v5419
    %v5421 = vpop.f32.mrf.mxu0
    %v5422 = vadd.f32 0.0, %v5421
    %5423 = vmatmul.bf16.gmra.mxu0 %v2493
    %v5424 = vpop.f32.mrf.mxu0
    %v5425 = vpop.f32.mrf.mxu0
    %v5426 = vadd.f32 0.0, %v5425
    %5427 = vmatmul.bf16.gmra.mxu0 %v2495
    %v5428 = vpop.f32.mrf.mxu0
    %v5429 = vadd.f32 0.0, %v5428
    %v5430 = vpop.f32.mrf.mxu0
    %5431 = vmatmul.bf16.gmra.mxu0 %v2497
    %v5432 = vpop.f32.mrf.mxu0
    %v5433 = vadd.f32 0.0, %v5432
    %v5434 = vpop.f32.mrf.mxu0
    %v5435 = vadd.f32 0.0, %v5434
    %5436 = vmatmul.bf16.gmra.mxu0 %v2499
    %v5437 = vpop.f32.mrf.mxu0
    %v5438 = vpop.f32.mrf.mxu0
    %v5439 = vadd.f32 0.0, %v5438
    %5440 = vmatmul.bf16.gmra.mxu0 %v2501
    %v5441 = vpop.f32.mrf.mxu0
    %v5442 = vadd.f32 0.0, %v5441
    %v5443 = vpop.f32.mrf.mxu0
    %5444 = vmatmul.bf16.gmra.mxu0 %v2503
    %v5445 = vpop.f32.mrf.mxu0
    %v5446 = vadd.f32 0.0, %v5445
    %v5447 = vpop.f32.mrf.mxu0
    %v5448 = vadd.f32 0.0, %v5447
    %5449 = vmatmul.bf16.gmra.mxu0 %v2505
    %v5450 = vpop.f32.mrf.mxu0
    %v5451 = vpop.f32.mrf.mxu0
    %v5452 = vadd.f32 0.0, %v5451
    %5453 = vmatmul.bf16.gmra.mxu0 %v2507
    %v5454 = vpop.f32.mrf.mxu0
    %v5455 = vadd.f32 0.0, %v5454
    %v5456 = vpop.f32.mrf.mxu0
    %5457 = vmatmul.bf16.gmra.mxu0 %v2509
    %v5458 = vpop.f32.mrf.mxu0
    %v5459 = vadd.f32 0.0, %v5458
    %v5460 = vpop.f32.mrf.mxu0
    %v5461 = vadd.f32 0.0, %v5460
    %5462 = vmatmul.bf16.gmra.mxu0 %v2511
    %v5463 = vpop.f32.mrf.mxu0
    %v5464 = vpop.f32.mrf.mxu0
    %v5465 = vadd.f32 0.0, %v5464
    %5466 = vmatmul.bf16.gmra.mxu0 %v2513
    %v5467 = vpop.f32.mrf.mxu0
    %v5468 = vadd.f32 0.0, %v5467
    %v5469 = vpop.f32.mrf.mxu0
    %5470 = vmatmul.bf16.gmra.mxu0 %v2515
    %v5471 = vpop.f32.mrf.mxu0
    %v5472 = vadd.f32 0.0, %v5471
    %v5473 = vpop.f32.mrf.mxu0
    %v5474 = vadd.f32 0.0, %v5473
    %5475 = vmatmul.bf16.gmra.mxu0 %v5246
    %v5476 = vpop.f32.mrf.mxu0
    %v5477 = vpop.f32.mrf.mxu0
    %v5478 = vadd.f32 0.0, %v5477
    %5479 = vmatmul.bf16.gmra.mxu0 %v5249
    %v5480 = vpop.f32.mrf.mxu0
    %v5481 = vadd.f32 0.0, %v5480
    %v5482 = vpop.f32.mrf.mxu0
    %5483 = vmatmul.bf16.gmra.mxu0 %v5252
    %v5484 = vpop.f32.mrf.mxu0
    %v5485 = vadd.f32 0.0, %v5484
    %v5486 = vpop.f32.mrf.mxu0
    %v5487 = vadd.f32 0.0, %v5486
    %5488 = vmatmul.bf16.gmra.mxu0 %v5255
    %v5489 = vpop.f32.mrf.mxu0
    %v5490 = vpop.f32.mrf.mxu0
    %5491 = vdwg.mxu0
    %v5492 = vadd.f32 %v5173, %v5270
    %v5493 = vadd.f32 %v5174, %v5272
    %v5494 = vadd.f32 %v5175, %v5276
    %v5495 = vadd.f32 %v5176, %v5279
    %v5496 = vadd.f32 %v5177, %v5283
    %v5497 = vadd.f32 %v5178, %v5285
    %v5498 = vadd.f32 %v5179, %v5289
    %v5499 = vadd.f32 %v5180, %v5292
    %v5500 = vadd.f32 %v5181, %v5296
    %v5501 = vadd.f32 %v5182, %v5298
    %v5502 = vadd.f32 %v5183, %v5302
    %v5503 = vadd.f32 %v5184, %v5305
    %v5504 = vadd.f32 %v5185, %v5309
    %v5505 = vadd.f32 %v5186, %v5311
    %v5506 = vadd.f32 %v5187, %v5315
    %v5507 = vadd.f32 %v5188, %v5318
    %v5508 = vadd.f32 %v5189, %v5322
    %v5509 = vadd.f32 %v5190, %v5324
    %v5510 = vadd.f32 %v5191, %v5328
    %v5511 = vadd.f32 %v5192, %v5331
    %v5512 = vadd.f32 %v5193, %v5335
    %v5513 = vadd.f32 %v5194, %v5337
    %v5514 = vadd.f32 %v5195, %v5341
    %v5515 = vadd.f32 %v5196, %v5344
    %v5516 = vadd.f32 %v5197, %v5348
    %v5517 = vadd.f32 %v5198, %v5350
    %v5518 = vadd.f32 %v5199, %v5354
    %v5519 = vadd.f32 %v5200, %v5357
    %v5520 = vadd.f32 %v5201, %v5361
    %v5521 = vadd.f32 %v5202, %v5363
    %v5522 = vadd.f32 %v5203, %v5367
    %v5523 = vadd.f32 %v5204, %v5370
    %v5524 = vadd.f32 %v5205, %v5387
    %v5525 = vadd.f32 %v5206, %v5390
    %v5526 = vadd.f32 %v5207, %v5394
    %v5527 = vadd.f32 %v5208, %v5396
    %v5528 = vadd.f32 %v5209, %v5400
    %v5529 = vadd.f32 %v5210, %v5403
    %v5530 = vadd.f32 %v5211, %v5407
    %v5531 = vadd.f32 %v5212, %v5409
    %v5532 = vadd.f32 %v5213, %v5413
    %v5533 = vadd.f32 %v5214, %v5416
    %v5534 = vadd.f32 %v5215, %v5420
    %v5535 = vadd.f32 %v5216, %v5422
    %v5536 = vadd.f32 %v5217, %v5426
    %v5537 = vadd.f32 %v5218, %v5429
    %v5538 = vadd.f32 %v5219, %v5433
    %v5539 = vadd.f32 %v5220, %v5435
    %v5540 = vadd.f32 %v5221, %v5439
    %v5541 = vadd.f32 %v5222, %v5442
    %v5542 = vadd.f32 %v5223, %v5446
    %v5543 = vadd.f32 %v5224, %v5448
    %v5544 = vadd.f32 %v5225, %v5452
    %v5545 = vadd.f32 %v5226, %v5455
    %v5546 = vadd.f32 %v5227, %v5459
    %v5547 = vadd.f32 %v5228, %v5461
    %v5548 = vadd.f32 %v5229, %v5465
    %v5549 = vadd.f32 %v5230, %v5468
    %v5550 = vadd.f32 %v5231, %v5472
    %v5551 = vadd.f32 %v5232, %v5474
    %v5552 = vadd.f32 %v5233, %v5478
    %v5553 = vadd.f32 %v5234, %v5481
    %v5554 = vadd.f32 %v5235, %v5485
    %v5555 = vadd.f32 %v5236, %v5487
    %s5556 = scalar_lea.vmem %s1, 28
    %v5557 = vld [vmem:[%s5556] sm:$0xf]
    %v5559 = vunpack.c.l.b16 %v1323
    %v5560 = vpack.c.b16 %v5559, %v5242
    %v5561 = vshll.u32 %v5243, 16
    %v5563 = vrot.slane %v5561, 1
    %v5564 = vsel %vm1592, %v2015, %v5563
    %v5565 = vshrl.u32 %v5243, 16
    %v5567 = vor.u32 %v5565, %v5563
    %v5568 = vshll.u32 %v5244, 16
    %v5570 = vrot.slane %v5568, 1
    %v5571 = vsel %vm1592, %v5567, %v5570
    %v5572 = vshrl.u32 %v5244, 16
    %v5574 = vor.u32 %v5572, %v5570
    %v5576 = vshll.u32 %v5560, 16
    %v5578 = vrot.slane %v5576, 1
    %v5579 = vsel %vm1592, %v5574, %v5578
    %v5580 = vshrl.u32 %v5560, 16
    %v5582 = vor.u32 %v5580, %v5578
    %v5584 = vsel %vm2016, %v5564, 0
    %v5587 = vsel %vm2016, %v5571, 0
    %v5590 = vsel %vm2016, %v5579, 0
    %v5593 = vsel %vm2016, %v5582, 0
    %v5596 = vsel %vm2176, %v5557, 0
    %5598 = vmatpush.bf16.msra.mxu0 0
    %5599 = vmatpush.bf16.msra.mxu0 0
    %5600 = vmatpush.bf16.msra.mxu0 0
    %5601 = vmatpush.bf16.msra.mxu0 0
    %5602 = vmatpush.bf16.msra.mxu0 0
    %5603 = vmatpush.bf16.msra.mxu0 0
    %5604 = vmatpush.bf16.msra.mxu0 0
    %5605 = vmatpush.bf16.msra.mxu0 %v5596
    %5606 = vmatmul.bf16.gmra.mxu0 %v2027
    %v5607 = vpop.f32.mrf.mxu0
    %v5608 = vadd.f32 0.0, %v5607
    %v5609 = vpop.f32.mrf.mxu0
    %v5610 = vadd.f32 0.0, %v5609
    %5611 = vmatmul.bf16.gmra.mxu0 %v2030
    %v5612 = vpop.f32.mrf.mxu0
    %v5613 = vpop.f32.mrf.mxu0
    %v5614 = vadd.f32 0.0, %v5613
    %5615 = vmatmul.bf16.gmra.mxu0 %v2033
    %v5616 = vpop.f32.mrf.mxu0
    %v5617 = vadd.f32 0.0, %v5616
    %v5618 = vpop.f32.mrf.mxu0
    %5619 = vmatmul.bf16.gmra.mxu0 %v2036
    %v5620 = vpop.f32.mrf.mxu0
    %v5621 = vadd.f32 0.0, %v5620
    %v5622 = vpop.f32.mrf.mxu0
    %v5623 = vadd.f32 0.0, %v5622
    %5624 = vmatmul.bf16.gmra.mxu0 %v2039
    %v5625 = vpop.f32.mrf.mxu0
    %v5626 = vpop.f32.mrf.mxu0
    %v5627 = vadd.f32 0.0, %v5626
    %5628 = vmatmul.bf16.gmra.mxu0 %v2042
    %v5629 = vpop.f32.mrf.mxu0
    %v5630 = vadd.f32 0.0, %v5629
    %v5631 = vpop.f32.mrf.mxu0
    %5632 = vmatmul.bf16.gmra.mxu0 %v2045
    %v5633 = vpop.f32.mrf.mxu0
    %v5634 = vadd.f32 0.0, %v5633
    %v5635 = vpop.f32.mrf.mxu0
    %v5636 = vadd.f32 0.0, %v5635
    %5637 = vmatmul.bf16.gmra.mxu0 %v2048
    %v5638 = vpop.f32.mrf.mxu0
    %v5639 = vpop.f32.mrf.mxu0
    %v5640 = vadd.f32 0.0, %v5639
    %5641 = vmatmul.bf16.gmra.mxu0 %v2051
    %v5642 = vpop.f32.mrf.mxu0
    %v5643 = vadd.f32 0.0, %v5642
    %v5644 = vpop.f32.mrf.mxu0
    %5645 = vmatmul.bf16.gmra.mxu0 %v2054
    %v5646 = vpop.f32.mrf.mxu0
    %v5647 = vadd.f32 0.0, %v5646
    %v5648 = vpop.f32.mrf.mxu0
    %v5649 = vadd.f32 0.0, %v5648
    %5650 = vmatmul.bf16.gmra.mxu0 %v2057
    %v5651 = vpop.f32.mrf.mxu0
    %v5652 = vpop.f32.mrf.mxu0
    %v5653 = vadd.f32 0.0, %v5652
    %5654 = vmatmul.bf16.gmra.mxu0 %v2060
    %v5655 = vpop.f32.mrf.mxu0
    %v5656 = vadd.f32 0.0, %v5655
    %v5657 = vpop.f32.mrf.mxu0
    %5658 = vmatmul.bf16.gmra.mxu0 %v2063
    %v5659 = vpop.f32.mrf.mxu0
    %v5660 = vadd.f32 0.0, %v5659
    %v5661 = vpop.f32.mrf.mxu0
    %v5662 = vadd.f32 0.0, %v5661
    %5663 = vmatmul.bf16.gmra.mxu0 %v2066
    %v5664 = vpop.f32.mrf.mxu0
    %v5665 = vpop.f32.mrf.mxu0
    %v5666 = vadd.f32 0.0, %v5665
    %5667 = vmatmul.bf16.gmra.mxu0 %v2069
    %v5668 = vpop.f32.mrf.mxu0
    %v5669 = vadd.f32 0.0, %v5668
    %v5670 = vpop.f32.mrf.mxu0
    %5671 = vmatmul.bf16.gmra.mxu0 %v2072
    %v5672 = vpop.f32.mrf.mxu0
    %v5673 = vadd.f32 0.0, %v5672
    %v5674 = vpop.f32.mrf.mxu0
    %v5675 = vadd.f32 0.0, %v5674
    %5676 = vmatmul.bf16.gmra.mxu0 %v2075
    %v5677 = vpop.f32.mrf.mxu0
    %v5678 = vpop.f32.mrf.mxu0
    %v5679 = vadd.f32 0.0, %v5678
    %5680 = vmatmul.bf16.gmra.mxu0 %v2078
    %v5681 = vpop.f32.mrf.mxu0
    %v5682 = vadd.f32 0.0, %v5681
    %v5683 = vpop.f32.mrf.mxu0
    %5684 = vmatmul.bf16.gmra.mxu0 %v2081
    %v5685 = vpop.f32.mrf.mxu0
    %v5686 = vadd.f32 0.0, %v5685
    %v5687 = vpop.f32.mrf.mxu0
    %v5688 = vadd.f32 0.0, %v5687
    %5689 = vmatmul.bf16.gmra.mxu0 %v2084
    %v5690 = vpop.f32.mrf.mxu0
    %v5691 = vpop.f32.mrf.mxu0
    %v5692 = vadd.f32 0.0, %v5691
    %5693 = vmatmul.bf16.gmra.mxu0 %v2087
    %v5694 = vpop.f32.mrf.mxu0
    %v5695 = vadd.f32 0.0, %v5694
    %v5696 = vpop.f32.mrf.mxu0
    %5697 = vmatmul.bf16.gmra.mxu0 %v2090
    %v5698 = vpop.f32.mrf.mxu0
    %v5699 = vadd.f32 0.0, %v5698
    %v5700 = vpop.f32.mrf.mxu0
    %v5701 = vadd.f32 0.0, %v5700
    %5702 = vmatmul.bf16.gmra.mxu0 %v2093
    %v5703 = vpop.f32.mrf.mxu0
    %v5704 = vpop.f32.mrf.mxu0
    %v5705 = vadd.f32 0.0, %v5704
    %5706 = vmatmul.bf16.gmra.mxu0 %v2096
    %v5707 = vpop.f32.mrf.mxu0
    %v5708 = vadd.f32 0.0, %v5707
    %v5709 = vpop.f32.mrf.mxu0
    %5710 = vmatmul.bf16.gmra.mxu0 %v2099
    %v5711 = vpop.f32.mrf.mxu0
    %v5712 = vpop.f32.mrf.mxu0
    %5713 = vmatmul.bf16.gmra.mxu0 %v2102
    %v5714 = vpop.f32.mrf.mxu0
    %v5715 = vpop.f32.mrf.mxu0
    %5716 = vmatmul.bf16.gmra.mxu0 %v2105
    %v5717 = vpop.f32.mrf.mxu0
    %v5718 = vpop.f32.mrf.mxu0
    %5719 = vmatmul.bf16.gmra.mxu0 %v2108
    %v5720 = vpop.f32.mrf.mxu0
    %v5721 = vpop.f32.mrf.mxu0
    %5722 = vmatmul.bf16.gmra.mxu0 %v2111
    %v5723 = vpop.f32.mrf.mxu0
    %v5724 = vpop.f32.mrf.mxu0
    %v5725 = vadd.f32 0.0, %v5724
    %5726 = vmatmul.bf16.gmra.mxu0 %v2114
    %v5727 = vpop.f32.mrf.mxu0
    %v5728 = vadd.f32 0.0, %v5727
    %v5729 = vpop.f32.mrf.mxu0
    %5730 = vmatmul.bf16.gmra.mxu0 %v2117
    %v5731 = vpop.f32.mrf.mxu0
    %v5732 = vadd.f32 0.0, %v5731
    %v5733 = vpop.f32.mrf.mxu0
    %v5734 = vadd.f32 0.0, %v5733
    %5735 = vmatmul.bf16.gmra.mxu0 %v2120
    %v5736 = vpop.f32.mrf.mxu0
    %v5737 = vpop.f32.mrf.mxu0
    %v5738 = vadd.f32 0.0, %v5737
    %5739 = vmatmul.bf16.gmra.mxu0 %v2123
    %v5740 = vpop.f32.mrf.mxu0
    %v5741 = vadd.f32 0.0, %v5740
    %v5742 = vpop.f32.mrf.mxu0
    %5743 = vmatmul.bf16.gmra.mxu0 %v2126
    %v5744 = vpop.f32.mrf.mxu0
    %v5745 = vadd.f32 0.0, %v5744
    %v5746 = vpop.f32.mrf.mxu0
    %v5747 = vadd.f32 0.0, %v5746
    %5748 = vmatmul.bf16.gmra.mxu0 %v2129
    %v5749 = vpop.f32.mrf.mxu0
    %v5750 = vpop.f32.mrf.mxu0
    %v5751 = vadd.f32 0.0, %v5750
    %5752 = vmatmul.bf16.gmra.mxu0 %v2132
    %v5753 = vpop.f32.mrf.mxu0
    %v5754 = vadd.f32 0.0, %v5753
    %v5755 = vpop.f32.mrf.mxu0
    %5756 = vmatmul.bf16.gmra.mxu0 %v2135
    %v5757 = vpop.f32.mrf.mxu0
    %v5758 = vadd.f32 0.0, %v5757
    %v5759 = vpop.f32.mrf.mxu0
    %v5760 = vadd.f32 0.0, %v5759
    %5761 = vmatmul.bf16.gmra.mxu0 %v2138
    %v5762 = vpop.f32.mrf.mxu0
    %v5763 = vpop.f32.mrf.mxu0
    %v5764 = vadd.f32 0.0, %v5763
    %5765 = vmatmul.bf16.gmra.mxu0 %v2141
    %v5766 = vpop.f32.mrf.mxu0
    %v5767 = vadd.f32 0.0, %v5766
    %v5768 = vpop.f32.mrf.mxu0
    %5769 = vmatmul.bf16.gmra.mxu0 %v2144
    %v5770 = vpop.f32.mrf.mxu0
    %v5771 = vadd.f32 0.0, %v5770
    %v5772 = vpop.f32.mrf.mxu0
    %v5773 = vadd.f32 0.0, %v5772
    %5774 = vmatmul.bf16.gmra.mxu0 %v2147
    %v5775 = vpop.f32.mrf.mxu0
    %v5776 = vpop.f32.mrf.mxu0
    %v5777 = vadd.f32 0.0, %v5776
    %5778 = vmatmul.bf16.gmra.mxu0 %v2150
    %v5779 = vpop.f32.mrf.mxu0
    %v5780 = vadd.f32 0.0, %v5779
    %v5781 = vpop.f32.mrf.mxu0
    %5782 = vmatmul.bf16.gmra.mxu0 %v2153
    %v5783 = vpop.f32.mrf.mxu0
    %v5784 = vadd.f32 0.0, %v5783
    %v5785 = vpop.f32.mrf.mxu0
    %v5786 = vadd.f32 0.0, %v5785
    %5787 = vmatmul.bf16.gmra.mxu0 %v2156
    %v5788 = vpop.f32.mrf.mxu0
    %v5789 = vpop.f32.mrf.mxu0
    %v5790 = vadd.f32 0.0, %v5789
    %5791 = vmatmul.bf16.gmra.mxu0 %v2159
    %v5792 = vpop.f32.mrf.mxu0
    %v5793 = vadd.f32 0.0, %v5792
    %v5794 = vpop.f32.mrf.mxu0
    %5795 = vmatmul.bf16.gmra.mxu0 %v2162
    %v5796 = vpop.f32.mrf.mxu0
    %v5797 = vadd.f32 0.0, %v5796
    %v5798 = vpop.f32.mrf.mxu0
    %v5799 = vadd.f32 0.0, %v5798
    %5800 = vmatmul.bf16.gmra.mxu0 %v2165
    %v5801 = vpop.f32.mrf.mxu0
    %v5802 = vpop.f32.mrf.mxu0
    %v5803 = vadd.f32 0.0, %v5802
    %5804 = vmatmul.bf16.gmra.mxu0 %v2168
    %v5805 = vpop.f32.mrf.mxu0
    %v5806 = vadd.f32 0.0, %v5805
    %v5807 = vpop.f32.mrf.mxu0
    %5808 = vmatmul.bf16.gmra.mxu0 %v2171
    %v5809 = vpop.f32.mrf.mxu0
    %v5810 = vadd.f32 0.0, %v5809
    %v5811 = vpop.f32.mrf.mxu0
    %v5812 = vadd.f32 0.0, %v5811
    %5813 = vmatmul.bf16.gmra.mxu0 %v5584
    %v5814 = vpop.f32.mrf.mxu0
    %v5815 = vpop.f32.mrf.mxu0
    %v5816 = vadd.f32 0.0, %v5815
    %5817 = vmatmul.bf16.gmra.mxu0 %v5587
    %v5818 = vpop.f32.mrf.mxu0
    %v5819 = vadd.f32 0.0, %v5818
    %v5820 = vpop.f32.mrf.mxu0
    %5821 = vmatmul.bf16.gmra.mxu0 %v5590
    %v5822 = vpop.f32.mrf.mxu0
    %v5823 = vadd.f32 0.0, %v5822
    %v5824 = vpop.f32.mrf.mxu0
    %v5825 = vadd.f32 0.0, %v5824
    %5826 = vmatmul.bf16.gmra.mxu0 %v5593
    %v5827 = vpop.f32.mrf.mxu0
    %v5828 = vpop.f32.mrf.mxu0
    %5829 = vdwg.mxu0
    %v5830 = vadd.f32 %v5492, %v5608
    %v5831 = vadd.f32 %v5493, %v5610
    %v5832 = vadd.f32 %v5494, %v5614
    %v5833 = vadd.f32 %v5495, %v5617
    %v5834 = vadd.f32 %v5496, %v5621
    %v5835 = vadd.f32 %v5497, %v5623
    %v5836 = vadd.f32 %v5498, %v5627
    %v5837 = vadd.f32 %v5499, %v5630
    %v5838 = vadd.f32 %v5500, %v5634
    %v5839 = vadd.f32 %v5501, %v5636
    %v5840 = vadd.f32 %v5502, %v5640
    %v5841 = vadd.f32 %v5503, %v5643
    %v5842 = vadd.f32 %v5504, %v5647
    %v5843 = vadd.f32 %v5505, %v5649
    %v5844 = vadd.f32 %v5506, %v5653
    %v5845 = vadd.f32 %v5507, %v5656
    %v5846 = vadd.f32 %v5508, %v5660
    %v5847 = vadd.f32 %v5509, %v5662
    %v5848 = vadd.f32 %v5510, %v5666
    %v5849 = vadd.f32 %v5511, %v5669
    %v5850 = vadd.f32 %v5512, %v5673
    %v5851 = vadd.f32 %v5513, %v5675
    %v5852 = vadd.f32 %v5514, %v5679
    %v5853 = vadd.f32 %v5515, %v5682
    %v5854 = vadd.f32 %v5516, %v5686
    %v5855 = vadd.f32 %v5517, %v5688
    %v5856 = vadd.f32 %v5518, %v5692
    %v5857 = vadd.f32 %v5519, %v5695
    %v5858 = vadd.f32 %v5520, %v5699
    %v5859 = vadd.f32 %v5521, %v5701
    %v5860 = vadd.f32 %v5522, %v5705
    %v5861 = vadd.f32 %v5523, %v5708
    %v5862 = vadd.f32 %v5524, %v5725
    %v5863 = vadd.f32 %v5525, %v5728
    %v5864 = vadd.f32 %v5526, %v5732
    %v5865 = vadd.f32 %v5527, %v5734
    %v5866 = vadd.f32 %v5528, %v5738
    %v5867 = vadd.f32 %v5529, %v5741
    %v5868 = vadd.f32 %v5530, %v5745
    %v5869 = vadd.f32 %v5531, %v5747
    %v5870 = vadd.f32 %v5532, %v5751
    %v5871 = vadd.f32 %v5533, %v5754
    %v5872 = vadd.f32 %v5534, %v5758
    %v5873 = vadd.f32 %v5535, %v5760
    %v5874 = vadd.f32 %v5536, %v5764
    %v5875 = vadd.f32 %v5537, %v5767
    %v5876 = vadd.f32 %v5538, %v5771
    %v5877 = vadd.f32 %v5539, %v5773
    %v5878 = vadd.f32 %v5540, %v5777
    %v5879 = vadd.f32 %v5541, %v5780
    %v5880 = vadd.f32 %v5542, %v5784
    %v5881 = vadd.f32 %v5543, %v5786
    %v5882 = vadd.f32 %v5544, %v5790
    %v5883 = vadd.f32 %v5545, %v5793
    %v5884 = vadd.f32 %v5546, %v5797
    %v5885 = vadd.f32 %v5547, %v5799
    %v5886 = vadd.f32 %v5548, %v5803
    %v5887 = vadd.f32 %v5549, %v5806
    %v5888 = vadd.f32 %v5550, %v5810
    %v5889 = vadd.f32 %v5551, %v5812
    %v5890 = vadd.f32 %v5552, %v5816
    %v5891 = vadd.f32 %v5553, %v5819
    %v5892 = vadd.f32 %v5554, %v5823
    %v5893 = vadd.f32 %v5555, %v5825
    %s5894 = scalar_lea.vmem %s1, 32
    %v5895 = vld [vmem:[%s5894] sm:$0xf]
    %v5896 = vrot.slane %v5243, 1
    %v5897 = vsel %vm2757, %v2861, %v5896
    %v5898 = vrot.slane %v5244, 1
    %v5899 = vsel %vm2757, %v5896, %v5898
    %v5900 = vrot.slane %v5560, 1
    %v5901 = vsel %vm2757, %v5898, %v5900
    %v5903 = vsel %vm2016, %v5897, 0
    %v5906 = vsel %vm2016, %v5899, 0
    %v5909 = vsel %vm2016, %v5901, 0
    %v5912 = vsel %vm2016, %v5900, 0
    %v5915 = vsel %vm2176, %v5895, 0
    %5917 = vmatpush.bf16.msra.mxu0 0
    %5918 = vmatpush.bf16.msra.mxu0 0
    %5919 = vmatpush.bf16.msra.mxu0 0
    %5920 = vmatpush.bf16.msra.mxu0 0
    %5921 = vmatpush.bf16.msra.mxu0 0
    %5922 = vmatpush.bf16.msra.mxu0 0
    %5923 = vmatpush.bf16.msra.mxu0 0
    %5924 = vmatpush.bf16.msra.mxu0 %v5915
    %5925 = vmatmul.bf16.gmra.mxu0 %v2873
    %v5926 = vpop.f32.mrf.mxu0
    %v5927 = vadd.f32 0.0, %v5926
    %v5928 = vpop.f32.mrf.mxu0
    %v5929 = vadd.f32 0.0, %v5928
    %5930 = vmatmul.bf16.gmra.mxu0 %v2876
    %v5931 = vpop.f32.mrf.mxu0
    %v5932 = vpop.f32.mrf.mxu0
    %v5933 = vadd.f32 0.0, %v5932
    %5934 = vmatmul.bf16.gmra.mxu0 %v2879
    %v5935 = vpop.f32.mrf.mxu0
    %v5936 = vadd.f32 0.0, %v5935
    %v5937 = vpop.f32.mrf.mxu0
    %5938 = vmatmul.bf16.gmra.mxu0 %v2882
    %v5939 = vpop.f32.mrf.mxu0
    %v5940 = vadd.f32 0.0, %v5939
    %v5941 = vpop.f32.mrf.mxu0
    %v5942 = vadd.f32 0.0, %v5941
    %5943 = vmatmul.bf16.gmra.mxu0 %v2885
    %v5944 = vpop.f32.mrf.mxu0
    %v5945 = vpop.f32.mrf.mxu0
    %v5946 = vadd.f32 0.0, %v5945
    %5947 = vmatmul.bf16.gmra.mxu0 %v2888
    %v5948 = vpop.f32.mrf.mxu0
    %v5949 = vadd.f32 0.0, %v5948
    %v5950 = vpop.f32.mrf.mxu0
    %5951 = vmatmul.bf16.gmra.mxu0 %v2891
    %v5952 = vpop.f32.mrf.mxu0
    %v5953 = vadd.f32 0.0, %v5952
    %v5954 = vpop.f32.mrf.mxu0
    %v5955 = vadd.f32 0.0, %v5954
    %5956 = vmatmul.bf16.gmra.mxu0 %v2894
    %v5957 = vpop.f32.mrf.mxu0
    %v5958 = vpop.f32.mrf.mxu0
    %v5959 = vadd.f32 0.0, %v5958
    %5960 = vmatmul.bf16.gmra.mxu0 %v2897
    %v5961 = vpop.f32.mrf.mxu0
    %v5962 = vadd.f32 0.0, %v5961
    %v5963 = vpop.f32.mrf.mxu0
    %5964 = vmatmul.bf16.gmra.mxu0 %v2900
    %v5965 = vpop.f32.mrf.mxu0
    %v5966 = vadd.f32 0.0, %v5965
    %v5967 = vpop.f32.mrf.mxu0
    %v5968 = vadd.f32 0.0, %v5967
    %5969 = vmatmul.bf16.gmra.mxu0 %v2903
    %v5970 = vpop.f32.mrf.mxu0
    %v5971 = vpop.f32.mrf.mxu0
    %v5972 = vadd.f32 0.0, %v5971
    %5973 = vmatmul.bf16.gmra.mxu0 %v2906
    %v5974 = vpop.f32.mrf.mxu0
    %v5975 = vadd.f32 0.0, %v5974
    %v5976 = vpop.f32.mrf.mxu0
    %5977 = vmatmul.bf16.gmra.mxu0 %v2909
    %v5978 = vpop.f32.mrf.mxu0
    %v5979 = vadd.f32 0.0, %v5978
    %v5980 = vpop.f32.mrf.mxu0
    %v5981 = vadd.f32 0.0, %v5980
    %5982 = vmatmul.bf16.gmra.mxu0 %v2912
    %v5983 = vpop.f32.mrf.mxu0
    %v5984 = vpop.f32.mrf.mxu0
    %v5985 = vadd.f32 0.0, %v5984
    %5986 = vmatmul.bf16.gmra.mxu0 %v2915
    %v5987 = vpop.f32.mrf.mxu0
    %v5988 = vadd.f32 0.0, %v5987
    %v5989 = vpop.f32.mrf.mxu0
    %5990 = vmatmul.bf16.gmra.mxu0 %v2918
    %v5991 = vpop.f32.mrf.mxu0
    %v5992 = vadd.f32 0.0, %v5991
    %v5993 = vpop.f32.mrf.mxu0
    %v5994 = vadd.f32 0.0, %v5993
    %5995 = vmatmul.bf16.gmra.mxu0 %v2921
    %v5996 = vpop.f32.mrf.mxu0
    %v5997 = vpop.f32.mrf.mxu0
    %v5998 = vadd.f32 0.0, %v5997
    %5999 = vmatmul.bf16.gmra.mxu0 %v2924
    %v6000 = vpop.f32.mrf.mxu0
    %v6001 = vadd.f32 0.0, %v6000
    %v6002 = vpop.f32.mrf.mxu0
    %6003 = vmatmul.bf16.gmra.mxu0 %v2927
    %v6004 = vpop.f32.mrf.mxu0
    %v6005 = vadd.f32 0.0, %v6004
    %v6006 = vpop.f32.mrf.mxu0
    %v6007 = vadd.f32 0.0, %v6006
    %6008 = vmatmul.bf16.gmra.mxu0 %v2930
    %v6009 = vpop.f32.mrf.mxu0
    %v6010 = vpop.f32.mrf.mxu0
    %v6011 = vadd.f32 0.0, %v6010
    %6012 = vmatmul.bf16.gmra.mxu0 %v2933
    %v6013 = vpop.f32.mrf.mxu0
    %v6014 = vadd.f32 0.0, %v6013
    %v6015 = vpop.f32.mrf.mxu0
    %6016 = vmatmul.bf16.gmra.mxu0 %v2936
    %v6017 = vpop.f32.mrf.mxu0
    %v6018 = vadd.f32 0.0, %v6017
    %v6019 = vpop.f32.mrf.mxu0
    %v6020 = vadd.f32 0.0, %v6019
    %6021 = vmatmul.bf16.gmra.mxu0 %v2939
    %v6022 = vpop.f32.mrf.mxu0
    %v6023 = vpop.f32.mrf.mxu0
    %v6024 = vadd.f32 0.0, %v6023
    %6025 = vmatmul.bf16.gmra.mxu0 %v2942
    %v6026 = vpop.f32.mrf.mxu0
    %v6027 = vadd.f32 0.0, %v6026
    %v6028 = vpop.f32.mrf.mxu0
    %6029 = vmatmul.bf16.gmra.mxu0 %v2945
    %v6030 = vpop.f32.mrf.mxu0
    %v6031 = vpop.f32.mrf.mxu0
    %6032 = vmatmul.bf16.gmra.mxu0 %v2948
    %v6033 = vpop.f32.mrf.mxu0
    %v6034 = vpop.f32.mrf.mxu0
    %6035 = vmatmul.bf16.gmra.mxu0 %v2951
    %v6036 = vpop.f32.mrf.mxu0
    %v6037 = vpop.f32.mrf.mxu0
    %6038 = vmatmul.bf16.gmra.mxu0 %v2954
    %v6039 = vpop.f32.mrf.mxu0
    %v6040 = vpop.f32.mrf.mxu0
    %6041 = vmatmul.bf16.gmra.mxu0 %v2957
    %v6042 = vpop.f32.mrf.mxu0
    %v6043 = vpop.f32.mrf.mxu0
    %v6044 = vadd.f32 0.0, %v6043
    %6045 = vmatmul.bf16.gmra.mxu0 %v2960
    %v6046 = vpop.f32.mrf.mxu0
    %v6047 = vadd.f32 0.0, %v6046
    %v6048 = vpop.f32.mrf.mxu0
    %6049 = vmatmul.bf16.gmra.mxu0 %v2963
    %v6050 = vpop.f32.mrf.mxu0
    %v6051 = vadd.f32 0.0, %v6050
    %v6052 = vpop.f32.mrf.mxu0
    %v6053 = vadd.f32 0.0, %v6052
    %6054 = vmatmul.bf16.gmra.mxu0 %v2966
    %v6055 = vpop.f32.mrf.mxu0
    %v6056 = vpop.f32.mrf.mxu0
    %v6057 = vadd.f32 0.0, %v6056
    %6058 = vmatmul.bf16.gmra.mxu0 %v2969
    %v6059 = vpop.f32.mrf.mxu0
    %v6060 = vadd.f32 0.0, %v6059
    %v6061 = vpop.f32.mrf.mxu0
    %6062 = vmatmul.bf16.gmra.mxu0 %v2972
    %v6063 = vpop.f32.mrf.mxu0
    %v6064 = vadd.f32 0.0, %v6063
    %v6065 = vpop.f32.mrf.mxu0
    %v6066 = vadd.f32 0.0, %v6065
    %6067 = vmatmul.bf16.gmra.mxu0 %v2975
    %v6068 = vpop.f32.mrf.mxu0
    %v6069 = vpop.f32.mrf.mxu0
    %v6070 = vadd.f32 0.0, %v6069
    %6071 = vmatmul.bf16.gmra.mxu0 %v2978
    %v6072 = vpop.f32.mrf.mxu0
    %v6073 = vadd.f32 0.0, %v6072
    %v6074 = vpop.f32.mrf.mxu0
    %6075 = vmatmul.bf16.gmra.mxu0 %v2981
    %v6076 = vpop.f32.mrf.mxu0
    %v6077 = vadd.f32 0.0, %v6076
    %v6078 = vpop.f32.mrf.mxu0
    %v6079 = vadd.f32 0.0, %v6078
    %6080 = vmatmul.bf16.gmra.mxu0 %v2984
    %v6081 = vpop.f32.mrf.mxu0
    %v6082 = vpop.f32.mrf.mxu0
    %v6083 = vadd.f32 0.0, %v6082
    %6084 = vmatmul.bf16.gmra.mxu0 %v2987
    %v6085 = vpop.f32.mrf.mxu0
    %v6086 = vadd.f32 0.0, %v6085
    %v6087 = vpop.f32.mrf.mxu0
    %6088 = vmatmul.bf16.gmra.mxu0 %v2990
    %v6089 = vpop.f32.mrf.mxu0
    %v6090 = vadd.f32 0.0, %v6089
    %v6091 = vpop.f32.mrf.mxu0
    %v6092 = vadd.f32 0.0, %v6091
    %6093 = vmatmul.bf16.gmra.mxu0 %v2993
    %v6094 = vpop.f32.mrf.mxu0
    %v6095 = vpop.f32.mrf.mxu0
    %v6096 = vadd.f32 0.0, %v6095
    %6097 = vmatmul.bf16.gmra.mxu0 %v2996
    %v6098 = vpop.f32.mrf.mxu0
    %v6099 = vadd.f32 0.0, %v6098
    %v6100 = vpop.f32.mrf.mxu0
    %6101 = vmatmul.bf16.gmra.mxu0 %v2999
    %v6102 = vpop.f32.mrf.mxu0
    %v6103 = vadd.f32 0.0, %v6102
    %v6104 = vpop.f32.mrf.mxu0
    %v6105 = vadd.f32 0.0, %v6104
    %6106 = vmatmul.bf16.gmra.mxu0 %v3002
    %v6107 = vpop.f32.mrf.mxu0
    %v6108 = vpop.f32.mrf.mxu0
    %v6109 = vadd.f32 0.0, %v6108
    %6110 = vmatmul.bf16.gmra.mxu0 %v3005
    %v6111 = vpop.f32.mrf.mxu0
    %v6112 = vadd.f32 0.0, %v6111
    %v6113 = vpop.f32.mrf.mxu0
    %6114 = vmatmul.bf16.gmra.mxu0 %v3008
    %v6115 = vpop.f32.mrf.mxu0
    %v6116 = vadd.f32 0.0, %v6115
    %v6117 = vpop.f32.mrf.mxu0
    %v6118 = vadd.f32 0.0, %v6117
    %6119 = vmatmul.bf16.gmra.mxu0 %v3011
    %v6120 = vpop.f32.mrf.mxu0
    %v6121 = vpop.f32.mrf.mxu0
    %v6122 = vadd.f32 0.0, %v6121
    %6123 = vmatmul.bf16.gmra.mxu0 %v3014
    %v6124 = vpop.f32.mrf.mxu0
    %v6125 = vadd.f32 0.0, %v6124
    %v6126 = vpop.f32.mrf.mxu0
    %6127 = vmatmul.bf16.gmra.mxu0 %v3017
    %v6128 = vpop.f32.mrf.mxu0
    %v6129 = vadd.f32 0.0, %v6128
    %v6130 = vpop.f32.mrf.mxu0
    %v6131 = vadd.f32 0.0, %v6130
    %6132 = vmatmul.bf16.gmra.mxu0 %v5903
    %v6133 = vpop.f32.mrf.mxu0
    %v6134 = vpop.f32.mrf.mxu0
    %v6135 = vadd.f32 0.0, %v6134
    %6136 = vmatmul.bf16.gmra.mxu0 %v5906
    %v6137 = vpop.f32.mrf.mxu0
    %v6138 = vadd.f32 0.0, %v6137
    %v6139 = vpop.f32.mrf.mxu0
    %6140 = vmatmul.bf16.gmra.mxu0 %v5909
    %v6141 = vpop.f32.mrf.mxu0
    %v6142 = vadd.f32 0.0, %v6141
    %v6143 = vpop.f32.mrf.mxu0
    %v6144 = vadd.f32 0.0, %v6143
    %6145 = vmatmul.bf16.gmra.mxu0 %v5912
    %v6146 = vpop.f32.mrf.mxu0
    %v6147 = vpop.f32.mrf.mxu0
    %6148 = vdwg.mxu0
    %v6149 = vadd.f32 %v5830, %v5927
    %v6150 = vadd.f32 %v5831, %v5929
    %v6151 = vadd.f32 %v5832, %v5933
    %v6152 = vadd.f32 %v5833, %v5936
    %v6153 = vadd.f32 %v5834, %v5940
    %v6154 = vadd.f32 %v5835, %v5942
    %v6155 = vadd.f32 %v5836, %v5946
    %v6156 = vadd.f32 %v5837, %v5949
    %v6157 = vadd.f32 %v5838, %v5953
    %v6158 = vadd.f32 %v5839, %v5955
    %v6159 = vadd.f32 %v5840, %v5959
    %v6160 = vadd.f32 %v5841, %v5962
    %v6161 = vadd.f32 %v5842, %v5966
    %v6162 = vadd.f32 %v5843, %v5968
    %v6163 = vadd.f32 %v5844, %v5972
    %v6164 = vadd.f32 %v5845, %v5975
    %v6165 = vadd.f32 %v5846, %v5979
    %v6166 = vadd.f32 %v5847, %v5981
    %v6167 = vadd.f32 %v5848, %v5985
    %v6168 = vadd.f32 %v5849, %v5988
    %v6169 = vadd.f32 %v5850, %v5992
    %v6170 = vadd.f32 %v5851, %v5994
    %v6171 = vadd.f32 %v5852, %v5998
    %v6172 = vadd.f32 %v5853, %v6001
    %v6173 = vadd.f32 %v5854, %v6005
    %v6174 = vadd.f32 %v5855, %v6007
    %v6175 = vadd.f32 %v5856, %v6011
    %v6176 = vadd.f32 %v5857, %v6014
    %v6177 = vadd.f32 %v5858, %v6018
    %v6178 = vadd.f32 %v5859, %v6020
    %v6179 = vadd.f32 %v5860, %v6024
    %v6180 = vadd.f32 %v5861, %v6027
    %v6181 = vadd.f32 %v5862, %v6044
    %v6182 = vadd.f32 %v5863, %v6047
    %v6183 = vadd.f32 %v5864, %v6051
    %v6184 = vadd.f32 %v5865, %v6053
    %v6185 = vadd.f32 %v5866, %v6057
    %v6186 = vadd.f32 %v5867, %v6060
    %v6187 = vadd.f32 %v5868, %v6064
    %v6188 = vadd.f32 %v5869, %v6066
    %v6189 = vadd.f32 %v5870, %v6070
    %v6190 = vadd.f32 %v5871, %v6073
    %v6191 = vadd.f32 %v5872, %v6077
    %v6192 = vadd.f32 %v5873, %v6079
    %v6193 = vadd.f32 %v5874, %v6083
    %v6194 = vadd.f32 %v5875, %v6086
    %v6195 = vadd.f32 %v5876, %v6090
    %v6196 = vadd.f32 %v5877, %v6092
    %v6197 = vadd.f32 %v5878, %v6096
    %v6198 = vadd.f32 %v5879, %v6099
    %v6199 = vadd.f32 %v5880, %v6103
    %v6200 = vadd.f32 %v5881, %v6105
    %v6201 = vadd.f32 %v5882, %v6109
    %v6202 = vadd.f32 %v5883, %v6112
    %v6203 = vadd.f32 %v5884, %v6116
    %v6204 = vadd.f32 %v5885, %v6118
    %v6205 = vadd.f32 %v5886, %v6122
    %v6206 = vadd.f32 %v5887, %v6125
    %v6207 = vadd.f32 %v5888, %v6129
    %v6208 = vadd.f32 %v5889, %v6131
    %v6209 = vadd.f32 %v5890, %v6135
    %v6210 = vadd.f32 %v5891, %v6138
    %v6211 = vadd.f32 %v5892, %v6142
    %v6212 = vadd.f32 %v5893, %v6144
    %v6213 = vld [vmem:[%s3] sm:$0x1]
    %v6215 = vperm.slane %v6213, 0
    %v6217 = vmul.f32 %v6149, %v6215
    %v6218 = vmul.f32 %v6150, %v6215
    %v6219 = vmul.f32 %v6151, %v6215
    %v6220 = vmul.f32 %v6152, %v6215
    %v6221 = vmul.f32 %v6153, %v6215
    %v6222 = vmul.f32 %v6154, %v6215
    %v6223 = vmul.f32 %v6155, %v6215
    %v6224 = vmul.f32 %v6156, %v6215
    %v6225 = vmul.f32 %v6157, %v6215
    %v6226 = vmul.f32 %v6158, %v6215
    %v6227 = vmul.f32 %v6159, %v6215
    %v6228 = vmul.f32 %v6160, %v6215
    %v6229 = vmul.f32 %v6161, %v6215
    %v6230 = vmul.f32 %v6162, %v6215
    %v6231 = vmul.f32 %v6163, %v6215
    %v6232 = vmul.f32 %v6164, %v6215
    %v6233 = vmul.f32 %v6165, %v6215
    %v6234 = vmul.f32 %v6166, %v6215
    %v6235 = vmul.f32 %v6167, %v6215
    %v6236 = vmul.f32 %v6168, %v6215
    %v6237 = vmul.f32 %v6169, %v6215
    %v6238 = vmul.f32 %v6170, %v6215
    %v6239 = vmul.f32 %v6171, %v6215
    %v6240 = vmul.f32 %v6172, %v6215
    %v6241 = vmul.f32 %v6173, %v6215
    %v6242 = vmul.f32 %v6174, %v6215
    %v6243 = vmul.f32 %v6175, %v6215
    %v6244 = vmul.f32 %v6176, %v6215
    %v6245 = vmul.f32 %v6177, %v6215
    %v6246 = vmul.f32 %v6178, %v6215
    %v6247 = vmul.f32 %v6179, %v6215
    %v6248 = vmul.f32 %v6180, %v6215
    %v6249 = vmul.f32 %v6181, %v6215
    %v6250 = vmul.f32 %v6182, %v6215
    %v6251 = vmul.f32 %v6183, %v6215
    %v6252 = vmul.f32 %v6184, %v6215
    %v6253 = vmul.f32 %v6185, %v6215
    %v6254 = vmul.f32 %v6186, %v6215
    %v6255 = vmul.f32 %v6187, %v6215
    %v6256 = vmul.f32 %v6188, %v6215
    %v6257 = vmul.f32 %v6189, %v6215
    %v6258 = vmul.f32 %v6190, %v6215
    %v6259 = vmul.f32 %v6191, %v6215
    %v6260 = vmul.f32 %v6192, %v6215
    %v6261 = vmul.f32 %v6193, %v6215
    %v6262 = vmul.f32 %v6194, %v6215
    %v6263 = vmul.f32 %v6195, %v6215
    %v6264 = vmul.f32 %v6196, %v6215
    %v6265 = vmul.f32 %v6197, %v6215
    %v6266 = vmul.f32 %v6198, %v6215
    %v6267 = vmul.f32 %v6199, %v6215
    %v6268 = vmul.f32 %v6200, %v6215
    %v6269 = vmul.f32 %v6201, %v6215
    %v6270 = vmul.f32 %v6202, %v6215
    %v6271 = vmul.f32 %v6203, %v6215
    %v6272 = vmul.f32 %v6204, %v6215
    %v6273 = vmul.f32 %v6205, %v6215
    %v6274 = vmul.f32 %v6206, %v6215
    %v6275 = vmul.f32 %v6207, %v6215
    %v6276 = vmul.f32 %v6208, %v6215
    %v6277 = vmul.f32 %v6209, %v6215
    %v6278 = vmul.f32 %v6210, %v6215
    %v6279 = vmul.f32 %v6211, %v6215
    %v6280 = vmul.f32 %v6212, %v6215
    %v6281 = vld [vmem:[%s4] sm:$0x1]
    %v6283 = vperm.slane %v6281, 0
    %v6285 = vadd.f32 %v6217, %v6283
    %v6286 = vadd.f32 %v6218, %v6283
    %v6287 = vadd.f32 %v6219, %v6283
    %v6288 = vadd.f32 %v6220, %v6283
    %v6289 = vadd.f32 %v6221, %v6283
    %v6290 = vadd.f32 %v6222, %v6283
    %v6291 = vadd.f32 %v6223, %v6283
    %v6292 = vadd.f32 %v6224, %v6283
    %v6293 = vadd.f32 %v6225, %v6283
    %v6294 = vadd.f32 %v6226, %v6283
    %v6295 = vadd.f32 %v6227, %v6283
    %v6296 = vadd.f32 %v6228, %v6283
    %v6297 = vadd.f32 %v6229, %v6283
    %v6298 = vadd.f32 %v6230, %v6283
    %v6299 = vadd.f32 %v6231, %v6283
    %v6300 = vadd.f32 %v6232, %v6283
    %v6301 = vadd.f32 %v6233, %v6283
    %v6302 = vadd.f32 %v6234, %v6283
    %v6303 = vadd.f32 %v6235, %v6283
    %v6304 = vadd.f32 %v6236, %v6283
    %v6305 = vadd.f32 %v6237, %v6283
    %v6306 = vadd.f32 %v6238, %v6283
    %v6307 = vadd.f32 %v6239, %v6283
    %v6308 = vadd.f32 %v6240, %v6283
    %v6309 = vadd.f32 %v6241, %v6283
    %v6310 = vadd.f32 %v6242, %v6283
    %v6311 = vadd.f32 %v6243, %v6283
    %v6312 = vadd.f32 %v6244, %v6283
    %v6313 = vadd.f32 %v6245, %v6283
    %v6314 = vadd.f32 %v6246, %v6283
    %v6315 = vadd.f32 %v6247, %v6283
    %v6316 = vadd.f32 %v6248, %v6283
    %v6317 = vadd.f32 %v6249, %v6283
    %v6318 = vadd.f32 %v6250, %v6283
    %v6319 = vadd.f32 %v6251, %v6283
    %v6320 = vadd.f32 %v6252, %v6283
    %v6321 = vadd.f32 %v6253, %v6283
    %v6322 = vadd.f32 %v6254, %v6283
    %v6323 = vadd.f32 %v6255, %v6283
    %v6324 = vadd.f32 %v6256, %v6283
    %v6325 = vadd.f32 %v6257, %v6283
    %v6326 = vadd.f32 %v6258, %v6283
    %v6327 = vadd.f32 %v6259, %v6283
    %v6328 = vadd.f32 %v6260, %v6283
    %v6329 = vadd.f32 %v6261, %v6283
    %v6330 = vadd.f32 %v6262, %v6283
    %v6331 = vadd.f32 %v6263, %v6283
    %v6332 = vadd.f32 %v6264, %v6283
    %v6333 = vadd.f32 %v6265, %v6283
    %v6334 = vadd.f32 %v6266, %v6283
    %v6335 = vadd.f32 %v6267, %v6283
    %v6336 = vadd.f32 %v6268, %v6283
    %v6337 = vadd.f32 %v6269, %v6283
    %v6338 = vadd.f32 %v6270, %v6283
    %v6339 = vadd.f32 %v6271, %v6283
    %v6340 = vadd.f32 %v6272, %v6283
    %v6341 = vadd.f32 %v6273, %v6283
    %v6342 = vadd.f32 %v6274, %v6283
    %v6343 = vadd.f32 %v6275, %v6283
    %v6344 = vadd.f32 %v6276, %v6283
    %v6345 = vadd.f32 %v6277, %v6283
    %v6346 = vadd.f32 %v6278, %v6283
    %v6347 = vadd.f32 %v6279, %v6283
    %v6348 = vadd.f32 %v6280, %v6283
    %v6349 = vmax.f32 %v6285, 0.0
    %v6350 = vmax.f32 %v6286, 0.0
    %v6351 = vmax.f32 %v6287, 0.0
    %v6352 = vmax.f32 %v6288, 0.0
    %v6353 = vmax.f32 %v6289, 0.0
    %v6354 = vmax.f32 %v6290, 0.0
    %v6355 = vmax.f32 %v6291, 0.0
    %v6356 = vmax.f32 %v6292, 0.0
    %v6357 = vmax.f32 %v6293, 0.0
    %v6358 = vmax.f32 %v6294, 0.0
    %v6359 = vmax.f32 %v6295, 0.0
    %v6360 = vmax.f32 %v6296, 0.0
    %v6361 = vmax.f32 %v6297, 0.0
    %v6362 = vmax.f32 %v6298, 0.0
    %v6363 = vmax.f32 %v6299, 0.0
    %v6364 = vmax.f32 %v6300, 0.0
    %v6365 = vmax.f32 %v6301, 0.0
    %v6366 = vmax.f32 %v6302, 0.0
    %v6367 = vmax.f32 %v6303, 0.0
    %v6368 = vmax.f32 %v6304, 0.0
    %v6369 = vmax.f32 %v6305, 0.0
    %v6370 = vmax.f32 %v6306, 0.0
    %v6371 = vmax.f32 %v6307, 0.0
    %v6372 = vmax.f32 %v6308, 0.0
    %v6373 = vmax.f32 %v6309, 0.0
    %v6374 = vmax.f32 %v6310, 0.0
    %v6375 = vmax.f32 %v6311, 0.0
    %v6376 = vmax.f32 %v6312, 0.0
    %v6377 = vmax.f32 %v6313, 0.0
    %v6378 = vmax.f32 %v6314, 0.0
    %v6379 = vmax.f32 %v6315, 0.0
    %v6380 = vmax.f32 %v6316, 0.0
    %v6381 = vmax.f32 %v6317, 0.0
    %v6382 = vmax.f32 %v6318, 0.0
    %v6383 = vmax.f32 %v6319, 0.0
    %v6384 = vmax.f32 %v6320, 0.0
    %v6385 = vmax.f32 %v6321, 0.0
    %v6386 = vmax.f32 %v6322, 0.0
    %v6387 = vmax.f32 %v6323, 0.0
    %v6388 = vmax.f32 %v6324, 0.0
    %v6389 = vmax.f32 %v6325, 0.0
    %v6390 = vmax.f32 %v6326, 0.0
    %v6391 = vmax.f32 %v6327, 0.0
    %v6392 = vmax.f32 %v6328, 0.0
    %v6393 = vmax.f32 %v6329, 0.0
    %v6394 = vmax.f32 %v6330, 0.0
    %v6395 = vmax.f32 %v6331, 0.0
    %v6396 = vmax.f32 %v6332, 0.0
    %v6397 = vmax.f32 %v6333, 0.0
    %v6398 = vmax.f32 %v6334, 0.0
    %v6399 = vmax.f32 %v6335, 0.0
    %v6400 = vmax.f32 %v6336, 0.0
    %v6401 = vmax.f32 %v6337, 0.0
    %v6402 = vmax.f32 %v6338, 0.0
    %v6403 = vmax.f32 %v6339, 0.0
    %v6404 = vmax.f32 %v6340, 0.0
    %v6405 = vmax.f32 %v6341, 0.0
    %v6406 = vmax.f32 %v6342, 0.0
    %v6407 = vmax.f32 %v6343, 0.0
    %v6408 = vmax.f32 %v6344, 0.0
    %v6409 = vmax.f32 %v6345, 0.0
    %v6410 = vmax.f32 %v6346, 0.0
    %v6411 = vmax.f32 %v6347, 0.0
    %v6412 = vmax.f32 %v6348, 0.0
    %v6413 = vld [vmem:[#allocation3] sm:$0x1]
    %v6414 = vsel %vm95, 0, %v6413
    %6415 = vst [vmem:[#allocation3] sm:$0x1] %v6414
    %v6416 = vld [vmem:[#allocation3 + $0xc] sm:$0x1]
    %v6417 = vsel %vm95, 0, %v6416
    %6418 = vst [vmem:[#allocation3 + $0xc] sm:$0x1] %v6417
    %v6419 = vld [vmem:[#allocation3 + $0x18] sm:$0x1]
    %v6420 = vsel %vm95, 0, %v6419
    %6421 = vst [vmem:[#allocation3 + $0x18] sm:$0x1] %v6420
    %v6422 = vld [vmem:[#allocation3 + $0x24] sm:$0x1]
    %v6423 = vsel %vm95, 0, %v6422
    %6424 = vst [vmem:[#allocation3 + $0x24] sm:$0x1] %v6423
    %v6425 = vld [vmem:[#allocation3 + $0x30] sm:$0x1]
    %v6426 = vsel %vm95, 0, %v6425
    %6427 = vst [vmem:[#allocation3 + $0x30] sm:$0x1] %v6426
    %v6428 = vld [vmem:[#allocation3 + $0x3c] sm:$0x1]
    %v6429 = vsel %vm95, 0, %v6428
    %6430 = vst [vmem:[#allocation3 + $0x3c] sm:$0x1] %v6429
    %v6431 = vld [vmem:[#allocation3 + $0x48] sm:$0x1]
    %v6432 = vsel %vm95, 0, %v6431
    %6433 = vst [vmem:[#allocation3 + $0x48] sm:$0x1] %v6432
    %v6434 = vld [vmem:[#allocation3 + $0x54] sm:$0x1]
    %v6435 = vsel %vm95, 0, %v6434
    %6436 = vst [vmem:[#allocation3 + $0x54] sm:$0x1] %v6435
    %v6437 = vld [vmem:[#allocation3 + $0x60] sm:$0x1]
    %v6438 = vsel %vm95, 0, %v6437
    %6439 = vst [vmem:[#allocation3 + $0x60] sm:$0x1] %v6438
    %v6440 = vld [vmem:[#allocation3 + $0x6c] sm:$0x1]
    %v6441 = vsel %vm95, 0, %v6440
    %6442 = vst [vmem:[#allocation3 + $0x6c] sm:$0x1] %v6441
    %v6443 = vld [vmem:[#allocation3 + $0x78] sm:$0x1]
    %v6444 = vsel %vm95, 0, %v6443
    %6445 = vst [vmem:[#allocation3 + $0x78] sm:$0x1] %v6444
    %v6446 = vld [vmem:[#allocation3 + $0x84] sm:$0x1]
    %v6447 = vsel %vm95, 0, %v6446
    %6448 = vst [vmem:[#allocation3 + $0x84] sm:$0x1] %v6447
    %v6449 = vld [vmem:[#allocation3 + $0x90] sm:$0x1]
    %v6450 = vsel %vm95, 0, %v6449
    %6451 = vst [vmem:[#allocation3 + $0x90] sm:$0x1] %v6450
    %v6452 = vld [vmem:[#allocation3 + $0x9c] sm:$0x1]
    %v6453 = vsel %vm95, 0, %v6452
    %6454 = vst [vmem:[#allocation3 + $0x9c] sm:$0x1] %v6453
    %v6455 = vld [vmem:[#allocation3 + $0xa8] sm:$0x1]
    %v6456 = vsel %vm95, 0, %v6455
    %6457 = vst [vmem:[#allocation3 + $0xa8] sm:$0x1] %v6456
    %v6458 = vld [vmem:[#allocation3 + $0xb4] sm:$0x1]
    %v6459 = vsel %vm95, 0, %v6458
    %6460 = vst [vmem:[#allocation3 + $0xb4] sm:$0x1] %v6459
    %v6461 = vld [vmem:[#allocation3 + $0xc0] sm:$0x1]
    %v6462 = vsel %vm95, 0, %v6461
    %6463 = vst [vmem:[#allocation3 + $0xc0] sm:$0x1] %v6462
    %v6464 = vld [vmem:[#allocation3 + $0xcc] sm:$0x1]
    %v6465 = vsel %vm95, 0, %v6464
    %6466 = vst [vmem:[#allocation3 + $0xcc] sm:$0x1] %v6465
    %v6467 = vld [vmem:[#allocation3 + $0xd8] sm:$0x1]
    %v6468 = vsel %vm95, 0, %v6467
    %6469 = vst [vmem:[#allocation3 + $0xd8] sm:$0x1] %v6468
    %v6470 = vld [vmem:[#allocation3 + $0xe4] sm:$0x1]
    %v6471 = vsel %vm95, 0, %v6470
    %6472 = vst [vmem:[#allocation3 + $0xe4] sm:$0x1] %v6471
    %v6473 = vld [vmem:[#allocation3 + $0xf0] sm:$0x1]
    %v6474 = vsel %vm95, 0, %v6473
    %6475 = vst [vmem:[#allocation3 + $0xf0] sm:$0x1] %v6474
    %v6476 = vld [vmem:[#allocation3 + $0xfc] sm:$0x1]
    %v6477 = vsel %vm95, 0, %v6476
    %6478 = vst [vmem:[#allocation3 + $0xfc] sm:$0x1] %v6477
    %v6479 = vld [vmem:[#allocation3 + $0x108] sm:$0x1]
    %v6480 = vsel %vm95, 0, %v6479
    %6481 = vst [vmem:[#allocation3 + $0x108] sm:$0x1] %v6480
    %v6482 = vld [vmem:[#allocation3 + $0x114] sm:$0x1]
    %v6483 = vsel %vm95, 0, %v6482
    %6484 = vst [vmem:[#allocation3 + $0x114] sm:$0x1] %v6483
    %v6485 = vld [vmem:[#allocation3 + $0x120] sm:$0x1]
    %v6486 = vsel %vm95, 0, %v6485
    %6487 = vst [vmem:[#allocation3 + $0x120] sm:$0x1] %v6486
    %v6488 = vld [vmem:[#allocation3 + $0x12c] sm:$0x1]
    %v6489 = vsel %vm95, 0, %v6488
    %6490 = vst [vmem:[#allocation3 + $0x12c] sm:$0x1] %v6489
    %v6491 = vld [vmem:[#allocation3 + $0x138] sm:$0x1]
    %v6492 = vsel %vm95, 0, %v6491
    %6493 = vst [vmem:[#allocation3 + $0x138] sm:$0x1] %v6492
    %v6494 = vld [vmem:[#allocation3 + $0x144] sm:$0x1]
    %v6495 = vsel %vm95, 0, %v6494
    %6496 = vst [vmem:[#allocation3 + $0x144] sm:$0x1] %v6495
    %v6497 = vld [vmem:[#allocation3 + $0x150] sm:$0x1]
    %v6498 = vsel %vm95, 0, %v6497
    %6499 = vst [vmem:[#allocation3 + $0x150] sm:$0x1] %v6498
    %v6500 = vld [vmem:[#allocation3 + $0x15c] sm:$0x1]
    %v6501 = vsel %vm95, 0, %v6500
    %6502 = vst [vmem:[#allocation3 + $0x15c] sm:$0x1] %v6501
    %v6503 = vld [vmem:[#allocation3 + $0x168] sm:$0x1]
    %v6504 = vsel %vm95, 0, %v6503
    %6505 = vst [vmem:[#allocation3 + $0x168] sm:$0x1] %v6504
    %v6506 = vld [vmem:[#allocation3 + $0x174] sm:$0x1]
    %v6507 = vsel %vm95, 0, %v6506
    %6508 = vst [vmem:[#allocation3 + $0x174] sm:$0x1] %v6507
    %v6509 = vld [vmem:[#allocation3 + $0x180] sm:$0x1]
    %v6510 = vsel %vm95, 0, %v6509
    %6511 = vst [vmem:[#allocation3 + $0x180] sm:$0x1] %v6510
    %v6512 = vld [vmem:[#allocation3 + $0x18c] sm:$0x1]
    %v6513 = vsel %vm95, 0, %v6512
    %6514 = vst [vmem:[#allocation3 + $0x18c] sm:$0x1] %v6513
    %v6515 = vld [vmem:[#allocation3 + $0x198] sm:$0x1]
    %v6516 = vsel %vm95, 0, %v6515
    %6517 = vst [vmem:[#allocation3 + $0x198] sm:$0x1] %v6516
    %v6518 = vld [vmem:[#allocation3 + $0x1a4] sm:$0x1]
    %v6519 = vsel %vm95, 0, %v6518
    %6520 = vst [vmem:[#allocation3 + $0x1a4] sm:$0x1] %v6519
    %v6521 = vld [vmem:[#allocation3 + $0x1b0] sm:$0x1]
    %v6522 = vsel %vm95, 0, %v6521
    %6523 = vst [vmem:[#allocation3 + $0x1b0] sm:$0x1] %v6522
    %v6524 = vld [vmem:[#allocation3 + $0x1bc] sm:$0x1]
    %v6525 = vsel %vm95, 0, %v6524
    %6526 = vst [vmem:[#allocation3 + $0x1bc] sm:$0x1] %v6525
    %v6527 = vld [vmem:[#allocation3 + $0x8] sm:$0x1]
    %v6528 = vsel %vm211, 0, %v6527
    %6529 = vst [vmem:[#allocation3 + $0x8] sm:$0x1] %v6528
    %v6530 = vld [vmem:[#allocation3 + $0x14] sm:$0x1]
    %v6531 = vsel %vm211, 0, %v6530
    %6532 = vst [vmem:[#allocation3 + $0x14] sm:$0x1] %v6531
    %v6533 = vld [vmem:[#allocation3 + $0x20] sm:$0x1]
    %v6534 = vsel %vm211, 0, %v6533
    %6535 = vst [vmem:[#allocation3 + $0x20] sm:$0x1] %v6534
    %v6536 = vld [vmem:[#allocation3 + $0x2c] sm:$0x1]
    %v6537 = vsel %vm211, 0, %v6536
    %6538 = vst [vmem:[#allocation3 + $0x2c] sm:$0x1] %v6537
    %v6539 = vld [vmem:[#allocation3 + $0x38] sm:$0x1]
    %v6540 = vsel %vm211, 0, %v6539
    %6541 = vst [vmem:[#allocation3 + $0x38] sm:$0x1] %v6540
    %v6542 = vld [vmem:[#allocation3 + $0x44] sm:$0x1]
    %v6543 = vsel %vm211, 0, %v6542
    %6544 = vst [vmem:[#allocation3 + $0x44] sm:$0x1] %v6543
    %v6545 = vld [vmem:[#allocation3 + $0x50] sm:$0x1]
    %v6546 = vsel %vm211, 0, %v6545
    %6547 = vst [vmem:[#allocation3 + $0x50] sm:$0x1] %v6546
    %v6548 = vld [vmem:[#allocation3 + $0x5c] sm:$0x1]
    %v6549 = vsel %vm211, 0, %v6548
    %6550 = vst [vmem:[#allocation3 + $0x5c] sm:$0x1] %v6549
    %v6551 = vld [vmem:[#allocation3 + $0x68] sm:$0x1]
    %v6552 = vsel %vm211, 0, %v6551
    %6553 = vst [vmem:[#allocation3 + $0x68] sm:$0x1] %v6552
    %v6554 = vld [vmem:[#allocation3 + $0x74] sm:$0x1]
    %v6555 = vsel %vm211, 0, %v6554
    %6556 = vst [vmem:[#allocation3 + $0x74] sm:$0x1] %v6555
    %v6557 = vld [vmem:[#allocation3 + $0x80] sm:$0x1]
    %v6558 = vsel %vm211, 0, %v6557
    %6559 = vst [vmem:[#allocation3 + $0x80] sm:$0x1] %v6558
    %v6560 = vld [vmem:[#allocation3 + $0x8c] sm:$0x1]
    %v6561 = vsel %vm211, 0, %v6560
    %6562 = vst [vmem:[#allocation3 + $0x8c] sm:$0x1] %v6561
    %v6563 = vld [vmem:[#allocation3 + $0x98] sm:$0x1]
    %v6564 = vsel %vm211, 0, %v6563
    %6565 = vst [vmem:[#allocation3 + $0x98] sm:$0x1] %v6564
    %v6566 = vld [vmem:[#allocation3 + $0xa4] sm:$0x1]
    %v6567 = vsel %vm211, 0, %v6566
    %6568 = vst [vmem:[#allocation3 + $0xa4] sm:$0x1] %v6567
    %v6569 = vld [vmem:[#allocation3 + $0xb0] sm:$0x1]
    %v6570 = vsel %vm211, 0, %v6569
    %6571 = vst [vmem:[#allocation3 + $0xb0] sm:$0x1] %v6570
    %v6572 = vld [vmem:[#allocation3 + $0xbc] sm:$0x1]
    %v6573 = vsel %vm211, 0, %v6572
    %6574 = vst [vmem:[#allocation3 + $0xbc] sm:$0x1] %v6573
    %v6575 = vld [vmem:[#allocation3 + $0xc8] sm:$0x1]
    %v6576 = vsel %vm211, 0, %v6575
    %6577 = vst [vmem:[#allocation3 + $0xc8] sm:$0x1] %v6576
    %v6578 = vld [vmem:[#allocation3 + $0xd4] sm:$0x1]
    %v6579 = vsel %vm211, 0, %v6578
    %6580 = vst [vmem:[#allocation3 + $0xd4] sm:$0x1] %v6579
    %v6581 = vld [vmem:[#allocation3 + $0xe0] sm:$0x1]
    %v6582 = vsel %vm211, 0, %v6581
    %6583 = vst [vmem:[#allocation3 + $0xe0] sm:$0x1] %v6582
    %v6584 = vld [vmem:[#allocation3 + $0xec] sm:$0x1]
    %v6585 = vsel %vm211, 0, %v6584
    %6586 = vst [vmem:[#allocation3 + $0xec] sm:$0x1] %v6585
    %v6587 = vld [vmem:[#allocation3 + $0xf8] sm:$0x1]
    %v6588 = vsel %vm211, 0, %v6587
    %6589 = vst [vmem:[#allocation3 + $0xf8] sm:$0x1] %v6588
    %v6590 = vld [vmem:[#allocation3 + $0x104] sm:$0x1]
    %v6591 = vsel %vm211, 0, %v6590
    %6592 = vst [vmem:[#allocation3 + $0x104] sm:$0x1] %v6591
    %v6593 = vld [vmem:[#allocation3 + $0x110] sm:$0x1]
    %v6594 = vsel %vm211, 0, %v6593
    %6595 = vst [vmem:[#allocation3 + $0x110] sm:$0x1] %v6594
    %v6596 = vld [vmem:[#allocation3 + $0x11c] sm:$0x1]
    %v6597 = vsel %vm211, 0, %v6596
    %6598 = vst [vmem:[#allocation3 + $0x11c] sm:$0x1] %v6597
    %v6599 = vld [vmem:[#allocation3 + $0x128] sm:$0x1]
    %v6600 = vsel %vm211, 0, %v6599
    %6601 = vst [vmem:[#allocation3 + $0x128] sm:$0x1] %v6600
    %v6602 = vld [vmem:[#allocation3 + $0x134] sm:$0x1]
    %v6603 = vsel %vm211, 0, %v6602
    %6604 = vst [vmem:[#allocation3 + $0x134] sm:$0x1] %v6603
    %v6605 = vld [vmem:[#allocation3 + $0x140] sm:$0x1]
    %v6606 = vsel %vm211, 0, %v6605
    %6607 = vst [vmem:[#allocation3 + $0x140] sm:$0x1] %v6606
    %v6608 = vld [vmem:[#allocation3 + $0x14c] sm:$0x1]
    %v6609 = vsel %vm211, 0, %v6608
    %6610 = vst [vmem:[#allocation3 + $0x14c] sm:$0x1] %v6609
    %v6611 = vld [vmem:[#allocation3 + $0x158] sm:$0x1]
    %v6612 = vsel %vm211, 0, %v6611
    %6613 = vst [vmem:[#allocation3 + $0x158] sm:$0x1] %v6612
    %v6614 = vld [vmem:[#allocation3 + $0x164] sm:$0x1]
    %v6615 = vsel %vm211, 0, %v6614
    %6616 = vst [vmem:[#allocation3 + $0x164] sm:$0x1] %v6615
    %v6617 = vld [vmem:[#allocation3 + $0x170] sm:$0x1]
    %v6618 = vsel %vm211, 0, %v6617
    %6619 = vst [vmem:[#allocation3 + $0x170] sm:$0x1] %v6618
    %v6620 = vld [vmem:[#allocation3 + $0x17c] sm:$0x1]
    %v6621 = vsel %vm211, 0, %v6620
    %6622 = vst [vmem:[#allocation3 + $0x17c] sm:$0x1] %v6621
    %v6623 = vld [vmem:[#allocation3 + $0x188] sm:$0x1]
    %v6624 = vsel %vm211, 0, %v6623
    %6625 = vst [vmem:[#allocation3 + $0x188] sm:$0x1] %v6624
    %v6626 = vld [vmem:[#allocation3 + $0x194] sm:$0x1]
    %v6627 = vsel %vm211, 0, %v6626
    %6628 = vst [vmem:[#allocation3 + $0x194] sm:$0x1] %v6627
    %v6629 = vld [vmem:[#allocation3 + $0x1a0] sm:$0x1]
    %v6630 = vsel %vm211, 0, %v6629
    %6631 = vst [vmem:[#allocation3 + $0x1a0] sm:$0x1] %v6630
    %v6632 = vld [vmem:[#allocation3 + $0x1ac] sm:$0x1]
    %v6633 = vsel %vm211, 0, %v6632
    %6634 = vst [vmem:[#allocation3 + $0x1ac] sm:$0x1] %v6633
    %v6635 = vld [vmem:[#allocation3 + $0x1b8] sm:$0x1]
    %v6636 = vsel %vm211, 0, %v6635
    %6637 = vst [vmem:[#allocation3 + $0x1b8] sm:$0x1] %v6636
    %v6638 = vld [vmem:[#allocation3 + $0x1c4] sm:$0x1]
    %v6639 = vsel %vm211, 0, %v6638
    %6640 = vst [vmem:[#allocation3 + $0x1c4] sm:$0x1] %v6639
    %6641 = vst.msk [vmem:[#allocation3] sm:$0xf] %vm326, 0
    %6642 = vst.msk [vmem:[#allocation3 + $0x4] sm:$0xf] %vm326, 0
    %6643 = vst.msk [vmem:[#allocation3 + $0x8] sm:$0xf] %vm326, 0
    %s6644 = scalar_lea.vmem [#allocation3], 204
    %6645 = vst.msk [vmem:[%s6644] sm:$0xf] %vm326, 0
    %6646 = vst.msk [vmem:[%s6644 + $0x4] sm:$0xf] %vm326, 0
    %6647 = vst.msk [vmem:[%s6644 + $0x8] sm:$0xf] %vm326, 0
    %v6648 = vpack.c.bf16 %v6349, %v6349
    %v6649 = vpack.c.bf16 %v6350, %v6350
    %v6650 = vpack.c.bf16 %v6351, %v6351
    %v6651 = vpack.c.bf16 %v6352, %v6352
    %v6652 = vpack.c.bf16 %v6353, %v6353
    %v6653 = vpack.c.bf16 %v6354, %v6354
    %v6654 = vpack.c.bf16 %v6355, %v6355
    %v6655 = vpack.c.bf16 %v6356, %v6356
    %v6656 = vpack.c.bf16 %v6357, %v6357
    %v6657 = vpack.c.bf16 %v6358, %v6358
    %v6658 = vpack.c.bf16 %v6359, %v6359
    %v6659 = vpack.c.bf16 %v6360, %v6360
    %v6660 = vpack.c.bf16 %v6361, %v6361
    %v6661 = vpack.c.bf16 %v6362, %v6362
    %v6662 = vpack.c.bf16 %v6363, %v6363
    %v6663 = vpack.c.bf16 %v6364, %v6364
    %v6664 = vpack.c.bf16 %v6365, %v6365
    %v6665 = vpack.c.bf16 %v6366, %v6366
    %v6666 = vpack.c.bf16 %v6367, %v6367
    %v6667 = vpack.c.bf16 %v6368, %v6368
    %v6668 = vpack.c.bf16 %v6369, %v6369
    %v6669 = vpack.c.bf16 %v6370, %v6370
    %v6670 = vpack.c.bf16 %v6371, %v6371
    %v6671 = vpack.c.bf16 %v6372, %v6372
    %v6672 = vpack.c.bf16 %v6373, %v6373
    %v6673 = vpack.c.bf16 %v6374, %v6374
    %v6674 = vpack.c.bf16 %v6375, %v6375
    %v6675 = vpack.c.bf16 %v6376, %v6376
    %v6676 = vpack.c.bf16 %v6377, %v6377
    %v6677 = vpack.c.bf16 %v6378, %v6378
    %v6678 = vpack.c.bf16 %v6379, %v6379
    %v6679 = vpack.c.bf16 %v6380, %v6380
    %v6681 = vshrl.u32 %v6648, 16
    %v6683 = vrot.slane %v6681, 7
    %v6684 = vshll.u32 %v6648, 16
    %v6686 = vor.u32 %v6683, %v6684
    %v6687 = vrot.slane %v6683, 4
    %v6689 = vshrl.u32 %v6649, 16
    %v6691 = vrot.slane %v6689, 7
    %v6692 = vshll.u32 %v6649, 16
    %v6694 = vor.u32 %v6691, %v6692
    %v6695 = vsel %vm335, %v6687, %v6694
    %v6696 = vrot.slane %v6691, 4
    %v6698 = vshrl.u32 %v6650, 16
    %v6700 = vrot.slane %v6698, 7
    %v6701 = vshll.u32 %v6650, 16
    %v6703 = vor.u32 %v6700, %v6701
    %v6704 = vrot.slane %v6700, 4
    %v6706 = vshrl.u32 %v6651, 16
    %v6708 = vrot.slane %v6706, 7
    %v6709 = vshll.u32 %v6651, 16
    %v6711 = vor.u32 %v6708, %v6709
    %v6712 = vsel %vm335, %v6704, %v6711
    %v6713 = vrot.slane %v6708, 4
    %v6715 = vshrl.u32 %v6652, 16
    %v6717 = vrot.slane %v6715, 7
    %v6718 = vshll.u32 %v6652, 16
    %v6720 = vor.u32 %v6717, %v6718
    %v6721 = vrot.slane %v6717, 4
    %v6723 = vshrl.u32 %v6653, 16
    %v6725 = vrot.slane %v6723, 7
    %v6726 = vshll.u32 %v6653, 16
    %v6728 = vor.u32 %v6725, %v6726
    %v6729 = vsel %vm335, %v6721, %v6728
    %v6730 = vrot.slane %v6725, 4
    %v6732 = vshrl.u32 %v6654, 16
    %v6734 = vrot.slane %v6732, 7
    %v6735 = vshll.u32 %v6654, 16
    %v6737 = vor.u32 %v6734, %v6735
    %v6738 = vrot.slane %v6734, 4
    %v6740 = vshrl.u32 %v6655, 16
    %v6742 = vrot.slane %v6740, 7
    %v6743 = vshll.u32 %v6655, 16
    %v6745 = vor.u32 %v6742, %v6743
    %v6746 = vsel %vm335, %v6738, %v6745
    %v6747 = vrot.slane %v6742, 4
    %v6749 = vshrl.u32 %v6656, 16
    %v6751 = vrot.slane %v6749, 7
    %v6752 = vshll.u32 %v6656, 16
    %v6754 = vor.u32 %v6751, %v6752
    %v6755 = vrot.slane %v6751, 4
    %v6757 = vshrl.u32 %v6657, 16
    %v6759 = vrot.slane %v6757, 7
    %v6760 = vshll.u32 %v6657, 16
    %v6762 = vor.u32 %v6759, %v6760
    %v6763 = vsel %vm335, %v6755, %v6762
    %v6764 = vrot.slane %v6759, 4
    %v6766 = vshrl.u32 %v6658, 16
    %v6768 = vrot.slane %v6766, 7
    %v6769 = vshll.u32 %v6658, 16
    %v6771 = vor.u32 %v6768, %v6769
    %v6772 = vrot.slane %v6768, 4
    %v6774 = vshrl.u32 %v6659, 16
    %v6776 = vrot.slane %v6774, 7
    %v6777 = vshll.u32 %v6659, 16
    %v6779 = vor.u32 %v6776, %v6777
    %v6780 = vsel %vm335, %v6772, %v6779
    %v6781 = vrot.slane %v6776, 4
    %v6783 = vshrl.u32 %v6660, 16
    %v6785 = vrot.slane %v6783, 7
    %v6786 = vshll.u32 %v6660, 16
    %v6788 = vor.u32 %v6785, %v6786
    %v6789 = vrot.slane %v6785, 4
    %v6791 = vshrl.u32 %v6661, 16
    %v6793 = vrot.slane %v6791, 7
    %v6794 = vshll.u32 %v6661, 16
    %v6796 = vor.u32 %v6793, %v6794
    %v6797 = vsel %vm335, %v6789, %v6796
    %v6798 = vrot.slane %v6793, 4
    %v6800 = vshrl.u32 %v6662, 16
    %v6802 = vrot.slane %v6800, 7
    %v6803 = vshll.u32 %v6662, 16
    %v6805 = vor.u32 %v6802, %v6803
    %v6806 = vrot.slane %v6802, 4
    %v6808 = vshrl.u32 %v6663, 16
    %v6810 = vrot.slane %v6808, 7
    %v6811 = vshll.u32 %v6663, 16
    %v6813 = vor.u32 %v6810, %v6811
    %v6814 = vsel %vm335, %v6806, %v6813
    %v6815 = vrot.slane %v6810, 4
    %v6817 = vshrl.u32 %v6664, 16
    %v6819 = vrot.slane %v6817, 7
    %v6820 = vshll.u32 %v6664, 16
    %v6822 = vor.u32 %v6819, %v6820
    %v6823 = vrot.slane %v6819, 4
    %v6825 = vshrl.u32 %v6665, 16
    %v6827 = vrot.slane %v6825, 7
    %v6828 = vshll.u32 %v6665, 16
    %v6830 = vor.u32 %v6827, %v6828
    %v6831 = vsel %vm335, %v6823, %v6830
    %v6832 = vrot.slane %v6827, 4
    %v6834 = vshrl.u32 %v6666, 16
    %v6836 = vrot.slane %v6834, 7
    %v6837 = vshll.u32 %v6666, 16
    %v6839 = vor.u32 %v6836, %v6837
    %v6840 = vrot.slane %v6836, 4
    %v6842 = vshrl.u32 %v6667, 16
    %v6844 = vrot.slane %v6842, 7
    %v6845 = vshll.u32 %v6667, 16
    %v6847 = vor.u32 %v6844, %v6845
    %v6848 = vsel %vm335, %v6840, %v6847
    %v6849 = vrot.slane %v6844, 4
    %v6851 = vshrl.u32 %v6668, 16
    %v6853 = vrot.slane %v6851, 7
    %v6854 = vshll.u32 %v6668, 16
    %v6856 = vor.u32 %v6853, %v6854
    %v6857 = vrot.slane %v6853, 4
    %v6859 = vshrl.u32 %v6669, 16
    %v6861 = vrot.slane %v6859, 7
    %v6862 = vshll.u32 %v6669, 16
    %v6864 = vor.u32 %v6861, %v6862
    %v6865 = vsel %vm335, %v6857, %v6864
    %v6866 = vrot.slane %v6861, 4
    %v6868 = vshrl.u32 %v6670, 16
    %v6870 = vrot.slane %v6868, 7
    %v6871 = vshll.u32 %v6670, 16
    %v6873 = vor.u32 %v6870, %v6871
    %v6874 = vrot.slane %v6870, 4
    %v6876 = vshrl.u32 %v6671, 16
    %v6878 = vrot.slane %v6876, 7
    %v6879 = vshll.u32 %v6671, 16
    %v6881 = vor.u32 %v6878, %v6879
    %v6882 = vsel %vm335, %v6874, %v6881
    %v6883 = vrot.slane %v6878, 4
    %v6885 = vshrl.u32 %v6672, 16
    %v6887 = vrot.slane %v6885, 7
    %v6888 = vshll.u32 %v6672, 16
    %v6890 = vor.u32 %v6887, %v6888
    %v6891 = vrot.slane %v6887, 4
    %v6893 = vshrl.u32 %v6673, 16
    %v6895 = vrot.slane %v6893, 7
    %v6896 = vshll.u32 %v6673, 16
    %v6898 = vor.u32 %v6895, %v6896
    %v6899 = vsel %vm335, %v6891, %v6898
    %v6900 = vrot.slane %v6895, 4
    %v6902 = vshrl.u32 %v6674, 16
    %v6904 = vrot.slane %v6902, 7
    %v6905 = vshll.u32 %v6674, 16
    %v6907 = vor.u32 %v6904, %v6905
    %v6908 = vrot.slane %v6904, 4
    %v6910 = vshrl.u32 %v6675, 16
    %v6912 = vrot.slane %v6910, 7
    %v6913 = vshll.u32 %v6675, 16
    %v6915 = vor.u32 %v6912, %v6913
    %v6916 = vsel %vm335, %v6908, %v6915
    %v6917 = vrot.slane %v6912, 4
    %v6919 = vshrl.u32 %v6676, 16
    %v6921 = vrot.slane %v6919, 7
    %v6922 = vshll.u32 %v6676, 16
    %v6924 = vor.u32 %v6921, %v6922
    %v6925 = vrot.slane %v6921, 4
    %v6927 = vshrl.u32 %v6677, 16
    %v6929 = vrot.slane %v6927, 7
    %v6930 = vshll.u32 %v6677, 16
    %v6932 = vor.u32 %v6929, %v6930
    %v6933 = vsel %vm335, %v6925, %v6932
    %v6934 = vrot.slane %v6929, 4
    %v6936 = vshrl.u32 %v6678, 16
    %v6938 = vrot.slane %v6936, 7
    %v6939 = vshll.u32 %v6678, 16
    %v6941 = vor.u32 %v6938, %v6939
    %v6942 = vrot.slane %v6938, 4
    %v6944 = vshrl.u32 %v6679, 16
    %v6946 = vrot.slane %v6944, 7
    %v6947 = vshll.u32 %v6679, 16
    %v6949 = vor.u32 %v6946, %v6947
    %v6950 = vsel %vm335, %v6942, %v6949
    %v6951 = vrot.slane %v6946, 4
    %s7000 = scalar_lea.vmem [#allocation3], 12
    %v7001 = vld [vmem:[%s7000] sm:$0xf]
    %v7002 = vsel %vm658, %v6686, %v7001
    %7003 = vst [vmem:[%s7000] sm:$0xf] %v7002
    %7004 = vst.msk [vmem:[%s7000 + $0x4] sm:$0xf] %vm326, %v6695
    %v7005 = vld [vmem:[%s7000 + $0x8] sm:$0x1]
    %v7006 = vsel %vm95, %v6696, %v7005
    %7007 = vst [vmem:[%s7000 + $0x8] sm:$0x1] %v7006
    %v7008 = vld [vmem:[%s7000 + $0xc] sm:$0xf]
    %v7009 = vsel %vm658, %v6703, %v7008
    %7010 = vst [vmem:[%s7000 + $0xc] sm:$0xf] %v7009
    %7011 = vst.msk [vmem:[%s7000 + $0x10] sm:$0xf] %vm326, %v6712
    %v7012 = vld [vmem:[%s7000 + $0x14] sm:$0x1]
    %v7013 = vsel %vm95, %v6713, %v7012
    %7014 = vst [vmem:[%s7000 + $0x14] sm:$0x1] %v7013
    %v7015 = vld [vmem:[%s7000 + $0x18] sm:$0xf]
    %v7016 = vsel %vm658, %v6720, %v7015
    %7017 = vst [vmem:[%s7000 + $0x18] sm:$0xf] %v7016
    %7018 = vst.msk [vmem:[%s7000 + $0x1c] sm:$0xf] %vm326, %v6729
    %v7019 = vld [vmem:[%s7000 + $0x20] sm:$0x1]
    %v7020 = vsel %vm95, %v6730, %v7019
    %7021 = vst [vmem:[%s7000 + $0x20] sm:$0x1] %v7020
    %v7022 = vld [vmem:[%s7000 + $0x24] sm:$0xf]
    %v7023 = vsel %vm658, %v6737, %v7022
    %7024 = vst [vmem:[%s7000 + $0x24] sm:$0xf] %v7023
    %7025 = vst.msk [vmem:[%s7000 + $0x28] sm:$0xf] %vm326, %v6746
    %v7026 = vld [vmem:[%s7000 + $0x2c] sm:$0x1]
    %v7027 = vsel %vm95, %v6747, %v7026
    %7028 = vst [vmem:[%s7000 + $0x2c] sm:$0x1] %v7027
    %v7029 = vld [vmem:[%s7000 + $0x30] sm:$0xf]
    %v7030 = vsel %vm658, %v6754, %v7029
    %7031 = vst [vmem:[%s7000 + $0x30] sm:$0xf] %v7030
    %7032 = vst.msk [vmem:[%s7000 + $0x34] sm:$0xf] %vm326, %v6763
    %v7033 = vld [vmem:[%s7000 + $0x38] sm:$0x1]
    %v7034 = vsel %vm95, %v6764, %v7033
    %7035 = vst [vmem:[%s7000 + $0x38] sm:$0x1] %v7034
    %v7036 = vld [vmem:[%s7000 + $0x3c] sm:$0xf]
    %v7037 = vsel %vm658, %v6771, %v7036
    %7038 = vst [vmem:[%s7000 + $0x3c] sm:$0xf] %v7037
    %7039 = vst.msk [vmem:[%s7000 + $0x40] sm:$0xf] %vm326, %v6780
    %v7040 = vld [vmem:[%s7000 + $0x44] sm:$0x1]
    %v7041 = vsel %vm95, %v6781, %v7040
    %7042 = vst [vmem:[%s7000 + $0x44] sm:$0x1] %v7041
    %v7043 = vld [vmem:[%s7000 + $0x48] sm:$0xf]
    %v7044 = vsel %vm658, %v6788, %v7043
    %7045 = vst [vmem:[%s7000 + $0x48] sm:$0xf] %v7044
    %7046 = vst.msk [vmem:[%s7000 + $0x4c] sm:$0xf] %vm326, %v6797
    %v7047 = vld [vmem:[%s7000 + $0x50] sm:$0x1]
    %v7048 = vsel %vm95, %v6798, %v7047
    %7049 = vst [vmem:[%s7000 + $0x50] sm:$0x1] %v7048
    %v7050 = vld [vmem:[%s7000 + $0x54] sm:$0xf]
    %v7051 = vsel %vm658, %v6805, %v7050
    %7052 = vst [vmem:[%s7000 + $0x54] sm:$0xf] %v7051
    %7053 = vst.msk [vmem:[%s7000 + $0x58] sm:$0xf] %vm326, %v6814
    %v7054 = vld [vmem:[%s7000 + $0x5c] sm:$0x1]
    %v7055 = vsel %vm95, %v6815, %v7054
    %7056 = vst [vmem:[%s7000 + $0x5c] sm:$0x1] %v7055
    %v7057 = vld [vmem:[%s7000 + $0x60] sm:$0xf]
    %v7058 = vsel %vm658, %v6822, %v7057
    %7059 = vst [vmem:[%s7000 + $0x60] sm:$0xf] %v7058
    %7060 = vst.msk [vmem:[%s7000 + $0x64] sm:$0xf] %vm326, %v6831
    %v7061 = vld [vmem:[%s7000 + $0x68] sm:$0x1]
    %v7062 = vsel %vm95, %v6832, %v7061
    %7063 = vst [vmem:[%s7000 + $0x68] sm:$0x1] %v7062
    %v7064 = vld [vmem:[%s7000 + $0x6c] sm:$0xf]
    %v7065 = vsel %vm658, %v6839, %v7064
    %7066 = vst [vmem:[%s7000 + $0x6c] sm:$0xf] %v7065
    %7067 = vst.msk [vmem:[%s7000 + $0x70] sm:$0xf] %vm326, %v6848
    %v7068 = vld [vmem:[%s7000 + $0x74] sm:$0x1]
    %v7069 = vsel %vm95, %v6849, %v7068
    %7070 = vst [vmem:[%s7000 + $0x74] sm:$0x1] %v7069
    %v7071 = vld [vmem:[%s7000 + $0x78] sm:$0xf]
    %v7072 = vsel %vm658, %v6856, %v7071
    %7073 = vst [vmem:[%s7000 + $0x78] sm:$0xf] %v7072
    %7074 = vst.msk [vmem:[%s7000 + $0x7c] sm:$0xf] %vm326, %v6865
    %v7075 = vld [vmem:[%s7000 + $0x80] sm:$0x1]
    %v7076 = vsel %vm95, %v6866, %v7075
    %7077 = vst [vmem:[%s7000 + $0x80] sm:$0x1] %v7076
    %v7078 = vld [vmem:[%s7000 + $0x84] sm:$0xf]
    %v7079 = vsel %vm658, %v6873, %v7078
    %7080 = vst [vmem:[%s7000 + $0x84] sm:$0xf] %v7079
    %7081 = vst.msk [vmem:[%s7000 + $0x88] sm:$0xf] %vm326, %v6882
    %v7082 = vld [vmem:[%s7000 + $0x8c] sm:$0x1]
    %v7083 = vsel %vm95, %v6883, %v7082
    %7084 = vst [vmem:[%s7000 + $0x8c] sm:$0x1] %v7083
    %v7085 = vld [vmem:[%s7000 + $0x90] sm:$0xf]
    %v7086 = vsel %vm658, %v6890, %v7085
    %7087 = vst [vmem:[%s7000 + $0x90] sm:$0xf] %v7086
    %7088 = vst.msk [vmem:[%s7000 + $0x94] sm:$0xf] %vm326, %v6899
    %v7089 = vld [vmem:[%s7000 + $0x98] sm:$0x1]
    %v7090 = vsel %vm95, %v6900, %v7089
    %7091 = vst [vmem:[%s7000 + $0x98] sm:$0x1] %v7090
    %v7092 = vld [vmem:[%s7000 + $0x9c] sm:$0xf]
    %v7093 = vsel %vm658, %v6907, %v7092
    %7094 = vst [vmem:[%s7000 + $0x9c] sm:$0xf] %v7093
    %7095 = vst.msk [vmem:[%s7000 + $0xa0] sm:$0xf] %vm326, %v6916
    %v7096 = vld [vmem:[%s7000 + $0xa4] sm:$0x1]
    %v7097 = vsel %vm95, %v6917, %v7096
    %7098 = vst [vmem:[%s7000 + $0xa4] sm:$0x1] %v7097
    %v7099 = vld [vmem:[%s7000 + $0xa8] sm:$0xf]
    %v7100 = vsel %vm658, %v6924, %v7099
    %7101 = vst [vmem:[%s7000 + $0xa8] sm:$0xf] %v7100
    %7102 = vst.msk [vmem:[%s7000 + $0xac] sm:$0xf] %vm326, %v6933
    %v7103 = vld [vmem:[%s7000 + $0xb0] sm:$0x1]
    %v7104 = vsel %vm95, %v6934, %v7103
    %7105 = vst [vmem:[%s7000 + $0xb0] sm:$0x1] %v7104
    %v7106 = vld [vmem:[%s7000 + $0xb4] sm:$0xf]
    %v7107 = vsel %vm658, %v6941, %v7106
    %7108 = vst [vmem:[%s7000 + $0xb4] sm:$0xf] %v7107
    %7109 = vst.msk [vmem:[%s7000 + $0xb8] sm:$0xf] %vm326, %v6950
    %v7110 = vld [vmem:[%s7000 + $0xbc] sm:$0x1]
    %v7111 = vsel %vm95, %v6951, %v7110
    %7112 = vst [vmem:[%s7000 + $0xbc] sm:$0x1] %v7111
    %s7113 = scalar_lea.vmem [#allocation3], 228
    %7114 = vst.msk [vmem:[%s7113] sm:$0xf] %vm326, 0
    %7115 = vst.msk [vmem:[%s7113 + $0x4] sm:$0xf] %vm326, 0
    %7116 = vst.msk [vmem:[%s7113 + $0x8] sm:$0xf] %vm326, 0
    %s7117 = scalar_lea.vmem [#allocation3], 432
    %7118 = vst.msk [vmem:[%s7117] sm:$0xf] %vm326, 0
    %7119 = vst.msk [vmem:[%s7117 + $0x4] sm:$0xf] %vm326, 0
    %7120 = vst.msk [vmem:[%s7117 + $0x8] sm:$0xf] %vm326, 0
    %v7121 = vpack.c.bf16 %v6381, %v6381
    %v7122 = vpack.c.bf16 %v6382, %v6382
    %v7123 = vpack.c.bf16 %v6383, %v6383
    %v7124 = vpack.c.bf16 %v6384, %v6384
    %v7125 = vpack.c.bf16 %v6385, %v6385
    %v7126 = vpack.c.bf16 %v6386, %v6386
    %v7127 = vpack.c.bf16 %v6387, %v6387
    %v7128 = vpack.c.bf16 %v6388, %v6388
    %v7129 = vpack.c.bf16 %v6389, %v6389
    %v7130 = vpack.c.bf16 %v6390, %v6390
    %v7131 = vpack.c.bf16 %v6391, %v6391
    %v7132 = vpack.c.bf16 %v6392, %v6392
    %v7133 = vpack.c.bf16 %v6393, %v6393
    %v7134 = vpack.c.bf16 %v6394, %v6394
    %v7135 = vpack.c.bf16 %v6395, %v6395
    %v7136 = vpack.c.bf16 %v6396, %v6396
    %v7137 = vpack.c.bf16 %v6397, %v6397
    %v7138 = vpack.c.bf16 %v6398, %v6398
    %v7139 = vpack.c.bf16 %v6399, %v6399
    %v7140 = vpack.c.bf16 %v6400, %v6400
    %v7141 = vpack.c.bf16 %v6401, %v6401
    %v7142 = vpack.c.bf16 %v6402, %v6402
    %v7143 = vpack.c.bf16 %v6403, %v6403
    %v7144 = vpack.c.bf16 %v6404, %v6404
    %v7145 = vpack.c.bf16 %v6405, %v6405
    %v7146 = vpack.c.bf16 %v6406, %v6406
    %v7147 = vpack.c.bf16 %v6407, %v6407
    %v7148 = vpack.c.bf16 %v6408, %v6408
    %v7149 = vpack.c.bf16 %v6409, %v6409
    %v7150 = vpack.c.bf16 %v6410, %v6410
    %v7151 = vpack.c.bf16 %v6411, %v6411
    %v7152 = vpack.c.bf16 %v6412, %v6412
    %v7154 = vshrl.u32 %v7121, 16
    %v7156 = vrot.slane %v7154, 7
    %v7157 = vshll.u32 %v7121, 16
    %v7159 = vor.u32 %v7156, %v7157
    %v7160 = vrot.slane %v7156, 4
    %v7162 = vshrl.u32 %v7122, 16
    %v7164 = vrot.slane %v7162, 7
    %v7165 = vshll.u32 %v7122, 16
    %v7167 = vor.u32 %v7164, %v7165
    %v7168 = vsel %vm335, %v7160, %v7167
    %v7169 = vrot.slane %v7164, 4
    %v7171 = vshrl.u32 %v7123, 16
    %v7173 = vrot.slane %v7171, 7
    %v7174 = vshll.u32 %v7123, 16
    %v7176 = vor.u32 %v7173, %v7174
    %v7177 = vrot.slane %v7173, 4
    %v7179 = vshrl.u32 %v7124, 16
    %v7181 = vrot.slane %v7179, 7
    %v7182 = vshll.u32 %v7124, 16
    %v7184 = vor.u32 %v7181, %v7182
    %v7185 = vsel %vm335, %v7177, %v7184
    %v7186 = vrot.slane %v7181, 4
    %v7188 = vshrl.u32 %v7125, 16
    %v7190 = vrot.slane %v7188, 7
    %v7191 = vshll.u32 %v7125, 16
    %v7193 = vor.u32 %v7190, %v7191
    %v7194 = vrot.slane %v7190, 4
    %v7196 = vshrl.u32 %v7126, 16
    %v7198 = vrot.slane %v7196, 7
    %v7199 = vshll.u32 %v7126, 16
    %v7201 = vor.u32 %v7198, %v7199
    %v7202 = vsel %vm335, %v7194, %v7201
    %v7203 = vrot.slane %v7198, 4
    %v7205 = vshrl.u32 %v7127, 16
    %v7207 = vrot.slane %v7205, 7
    %v7208 = vshll.u32 %v7127, 16
    %v7210 = vor.u32 %v7207, %v7208
    %v7211 = vrot.slane %v7207, 4
    %v7213 = vshrl.u32 %v7128, 16
    %v7215 = vrot.slane %v7213, 7
    %v7216 = vshll.u32 %v7128, 16
    %v7218 = vor.u32 %v7215, %v7216
    %v7219 = vsel %vm335, %v7211, %v7218
    %v7220 = vrot.slane %v7215, 4
    %v7222 = vshrl.u32 %v7129, 16
    %v7224 = vrot.slane %v7222, 7
    %v7225 = vshll.u32 %v7129, 16
    %v7227 = vor.u32 %v7224, %v7225
    %v7228 = vrot.slane %v7224, 4
    %v7230 = vshrl.u32 %v7130, 16
    %v7232 = vrot.slane %v7230, 7
    %v7233 = vshll.u32 %v7130, 16
    %v7235 = vor.u32 %v7232, %v7233
    %v7236 = vsel %vm335, %v7228, %v7235
    %v7237 = vrot.slane %v7232, 4
    %v7239 = vshrl.u32 %v7131, 16
    %v7241 = vrot.slane %v7239, 7
    %v7242 = vshll.u32 %v7131, 16
    %v7244 = vor.u32 %v7241, %v7242
    %v7245 = vrot.slane %v7241, 4
    %v7247 = vshrl.u32 %v7132, 16
    %v7249 = vrot.slane %v7247, 7
    %v7250 = vshll.u32 %v7132, 16
    %v7252 = vor.u32 %v7249, %v7250
    %v7253 = vsel %vm335, %v7245, %v7252
    %v7254 = vrot.slane %v7249, 4
    %v7256 = vshrl.u32 %v7133, 16
    %v7258 = vrot.slane %v7256, 7
    %v7259 = vshll.u32 %v7133, 16
    %v7261 = vor.u32 %v7258, %v7259
    %v7262 = vrot.slane %v7258, 4
    %v7264 = vshrl.u32 %v7134, 16
    %v7266 = vrot.slane %v7264, 7
    %v7267 = vshll.u32 %v7134, 16
    %v7269 = vor.u32 %v7266, %v7267
    %v7270 = vsel %vm335, %v7262, %v7269
    %v7271 = vrot.slane %v7266, 4
    %v7273 = vshrl.u32 %v7135, 16
    %v7275 = vrot.slane %v7273, 7
    %v7276 = vshll.u32 %v7135, 16
    %v7278 = vor.u32 %v7275, %v7276
    %v7279 = vrot.slane %v7275, 4
    %v7281 = vshrl.u32 %v7136, 16
    %v7283 = vrot.slane %v7281, 7
    %v7284 = vshll.u32 %v7136, 16
    %v7286 = vor.u32 %v7283, %v7284
    %v7287 = vsel %vm335, %v7279, %v7286
    %v7288 = vrot.slane %v7283, 4
    %v7290 = vshrl.u32 %v7137, 16
    %v7292 = vrot.slane %v7290, 7
    %v7293 = vshll.u32 %v7137, 16
    %v7295 = vor.u32 %v7292, %v7293
    %v7296 = vrot.slane %v7292, 4
    %v7298 = vshrl.u32 %v7138, 16
    %v7300 = vrot.slane %v7298, 7
    %v7301 = vshll.u32 %v7138, 16
    %v7303 = vor.u32 %v7300, %v7301
    %v7304 = vsel %vm335, %v7296, %v7303
    %v7305 = vrot.slane %v7300, 4
    %v7307 = vshrl.u32 %v7139, 16
    %v7309 = vrot.slane %v7307, 7
    %v7310 = vshll.u32 %v7139, 16
    %v7312 = vor.u32 %v7309, %v7310
    %v7313 = vrot.slane %v7309, 4
    %v7315 = vshrl.u32 %v7140, 16
    %v7317 = vrot.slane %v7315, 7
    %v7318 = vshll.u32 %v7140, 16
    %v7320 = vor.u32 %v7317, %v7318
    %v7321 = vsel %vm335, %v7313, %v7320
    %v7322 = vrot.slane %v7317, 4
    %v7324 = vshrl.u32 %v7141, 16
    %v7326 = vrot.slane %v7324, 7
    %v7327 = vshll.u32 %v7141, 16
    %v7329 = vor.u32 %v7326, %v7327
    %v7330 = vrot.slane %v7326, 4
    %v7332 = vshrl.u32 %v7142, 16
    %v7334 = vrot.slane %v7332, 7
    %v7335 = vshll.u32 %v7142, 16
    %v7337 = vor.u32 %v7334, %v7335
    %v7338 = vsel %vm335, %v7330, %v7337
    %v7339 = vrot.slane %v7334, 4
    %v7341 = vshrl.u32 %v7143, 16
    %v7343 = vrot.slane %v7341, 7
    %v7344 = vshll.u32 %v7143, 16
    %v7346 = vor.u32 %v7343, %v7344
    %v7347 = vrot.slane %v7343, 4
    %v7349 = vshrl.u32 %v7144, 16
    %v7351 = vrot.slane %v7349, 7
    %v7352 = vshll.u32 %v7144, 16
    %v7354 = vor.u32 %v7351, %v7352
    %v7355 = vsel %vm335, %v7347, %v7354
    %v7356 = vrot.slane %v7351, 4
    %v7358 = vshrl.u32 %v7145, 16
    %v7360 = vrot.slane %v7358, 7
    %v7361 = vshll.u32 %v7145, 16
    %v7363 = vor.u32 %v7360, %v7361
    %v7364 = vrot.slane %v7360, 4
    %v7366 = vshrl.u32 %v7146, 16
    %v7368 = vrot.slane %v7366, 7
    %v7369 = vshll.u32 %v7146, 16
    %v7371 = vor.u32 %v7368, %v7369
    %v7372 = vsel %vm335, %v7364, %v7371
    %v7373 = vrot.slane %v7368, 4
    %v7375 = vshrl.u32 %v7147, 16
    %v7377 = vrot.slane %v7375, 7
    %v7378 = vshll.u32 %v7147, 16
    %v7380 = vor.u32 %v7377, %v7378
    %v7381 = vrot.slane %v7377, 4
    %v7383 = vshrl.u32 %v7148, 16
    %v7385 = vrot.slane %v7383, 7
    %v7386 = vshll.u32 %v7148, 16
    %v7388 = vor.u32 %v7385, %v7386
    %v7389 = vsel %vm335, %v7381, %v7388
    %v7390 = vrot.slane %v7385, 4
    %v7392 = vshrl.u32 %v7149, 16
    %v7394 = vrot.slane %v7392, 7
    %v7395 = vshll.u32 %v7149, 16
    %v7397 = vor.u32 %v7394, %v7395
    %v7398 = vrot.slane %v7394, 4
    %v7400 = vshrl.u32 %v7150, 16
    %v7402 = vrot.slane %v7400, 7
    %v7403 = vshll.u32 %v7150, 16
    %v7405 = vor.u32 %v7402, %v7403
    %v7406 = vsel %vm335, %v7398, %v7405
    %v7407 = vrot.slane %v7402, 4
    %v7409 = vshrl.u32 %v7151, 16
    %v7411 = vrot.slane %v7409, 7
    %v7412 = vshll.u32 %v7151, 16
    %v7414 = vor.u32 %v7411, %v7412
    %v7415 = vrot.slane %v7411, 4
    %v7417 = vshrl.u32 %v7152, 16
    %v7419 = vrot.slane %v7417, 7
    %v7420 = vshll.u32 %v7152, 16
    %v7422 = vor.u32 %v7419, %v7420
    %v7423 = vsel %vm335, %v7415, %v7422
    %v7424 = vrot.slane %v7419, 4
    %s7473 = scalar_lea.vmem [#allocation3], 240
    %v7474 = vld [vmem:[%s7473] sm:$0xf]
    %v7475 = vsel %vm658, %v7159, %v7474
    %7476 = vst [vmem:[%s7473] sm:$0xf] %v7475
    %7477 = vst.msk [vmem:[%s7473 + $0x4] sm:$0xf] %vm326, %v7168
    %v7478 = vld [vmem:[%s7473 + $0x8] sm:$0x1]
    %v7479 = vsel %vm95, %v7169, %v7478
    %7480 = vst [vmem:[%s7473 + $0x8] sm:$0x1] %v7479
    %v7481 = vld [vmem:[%s7473 + $0xc] sm:$0xf]
    %v7482 = vsel %vm658, %v7176, %v7481
    %7483 = vst [vmem:[%s7473 + $0xc] sm:$0xf] %v7482
    %7484 = vst.msk [vmem:[%s7473 + $0x10] sm:$0xf] %vm326, %v7185
    %v7485 = vld [vmem:[%s7473 + $0x14] sm:$0x1]
    %v7486 = vsel %vm95, %v7186, %v7485
    %7487 = vst [vmem:[%s7473 + $0x14] sm:$0x1] %v7486
    %v7488 = vld [vmem:[%s7473 + $0x18] sm:$0xf]
    %v7489 = vsel %vm658, %v7193, %v7488
    %7490 = vst [vmem:[%s7473 + $0x18] sm:$0xf] %v7489
    %7491 = vst.msk [vmem:[%s7473 + $0x1c] sm:$0xf] %vm326, %v7202
    %v7492 = vld [vmem:[%s7473 + $0x20] sm:$0x1]
    %v7493 = vsel %vm95, %v7203, %v7492
    %7494 = vst [vmem:[%s7473 + $0x20] sm:$0x1] %v7493
    %v7495 = vld [vmem:[%s7473 + $0x24] sm:$0xf]
    %v7496 = vsel %vm658, %v7210, %v7495
    %7497 = vst [vmem:[%s7473 + $0x24] sm:$0xf] %v7496
    %7498 = vst.msk [vmem:[%s7473 + $0x28] sm:$0xf] %vm326, %v7219
    %v7499 = vld [vmem:[%s7473 + $0x2c] sm:$0x1]
    %v7500 = vsel %vm95, %v7220, %v7499
    %7501 = vst [vmem:[%s7473 + $0x2c] sm:$0x1] %v7500
    %v7502 = vld [vmem:[%s7473 + $0x30] sm:$0xf]
    %v7503 = vsel %vm658, %v7227, %v7502
    %7504 = vst [vmem:[%s7473 + $0x30] sm:$0xf] %v7503
    %7505 = vst.msk [vmem:[%s7473 + $0x34] sm:$0xf] %vm326, %v7236
    %v7506 = vld [vmem:[%s7473 + $0x38] sm:$0x1]
    %v7507 = vsel %vm95, %v7237, %v7506
    %7508 = vst [vmem:[%s7473 + $0x38] sm:$0x1] %v7507
    %v7509 = vld [vmem:[%s7473 + $0x3c] sm:$0xf]
    %v7510 = vsel %vm658, %v7244, %v7509
    %7511 = vst [vmem:[%s7473 + $0x3c] sm:$0xf] %v7510
    %7512 = vst.msk [vmem:[%s7473 + $0x40] sm:$0xf] %vm326, %v7253
    %v7513 = vld [vmem:[%s7473 + $0x44] sm:$0x1]
    %v7514 = vsel %vm95, %v7254, %v7513
    %7515 = vst [vmem:[%s7473 + $0x44] sm:$0x1] %v7514
    %v7516 = vld [vmem:[%s7473 + $0x48] sm:$0xf]
    %v7517 = vsel %vm658, %v7261, %v7516
    %7518 = vst [vmem:[%s7473 + $0x48] sm:$0xf] %v7517
    %7519 = vst.msk [vmem:[%s7473 + $0x4c] sm:$0xf] %vm326, %v7270
    %v7520 = vld [vmem:[%s7473 + $0x50] sm:$0x1]
    %v7521 = vsel %vm95, %v7271, %v7520
    %7522 = vst [vmem:[%s7473 + $0x50] sm:$0x1] %v7521
    %v7523 = vld [vmem:[%s7473 + $0x54] sm:$0xf]
    %v7524 = vsel %vm658, %v7278, %v7523
    %7525 = vst [vmem:[%s7473 + $0x54] sm:$0xf] %v7524
    %7526 = vst.msk [vmem:[%s7473 + $0x58] sm:$0xf] %vm326, %v7287
    %v7527 = vld [vmem:[%s7473 + $0x5c] sm:$0x1]
    %v7528 = vsel %vm95, %v7288, %v7527
    %7529 = vst [vmem:[%s7473 + $0x5c] sm:$0x1] %v7528
    %v7530 = vld [vmem:[%s7473 + $0x60] sm:$0xf]
    %v7531 = vsel %vm658, %v7295, %v7530
    %7532 = vst [vmem:[%s7473 + $0x60] sm:$0xf] %v7531
    %7533 = vst.msk [vmem:[%s7473 + $0x64] sm:$0xf] %vm326, %v7304
    %v7534 = vld [vmem:[%s7473 + $0x68] sm:$0x1]
    %v7535 = vsel %vm95, %v7305, %v7534
    %7536 = vst [vmem:[%s7473 + $0x68] sm:$0x1] %v7535
    %v7537 = vld [vmem:[%s7473 + $0x6c] sm:$0xf]
    %v7538 = vsel %vm658, %v7312, %v7537
    %7539 = vst [vmem:[%s7473 + $0x6c] sm:$0xf] %v7538
    %7540 = vst.msk [vmem:[%s7473 + $0x70] sm:$0xf] %vm326, %v7321
    %v7541 = vld [vmem:[%s7473 + $0x74] sm:$0x1]
    %v7542 = vsel %vm95, %v7322, %v7541
    %7543 = vst [vmem:[%s7473 + $0x74] sm:$0x1] %v7542
    %v7544 = vld [vmem:[%s7473 + $0x78] sm:$0xf]
    %v7545 = vsel %vm658, %v7329, %v7544
    %7546 = vst [vmem:[%s7473 + $0x78] sm:$0xf] %v7545
    %7547 = vst.msk [vmem:[%s7473 + $0x7c] sm:$0xf] %vm326, %v7338
    %v7548 = vld [vmem:[%s7473 + $0x80] sm:$0x1]
    %v7549 = vsel %vm95, %v7339, %v7548
    %7550 = vst [vmem:[%s7473 + $0x80] sm:$0x1] %v7549
    %v7551 = vld [vmem:[%s7473 + $0x84] sm:$0xf]
    %v7552 = vsel %vm658, %v7346, %v7551
    %7553 = vst [vmem:[%s7473 + $0x84] sm:$0xf] %v7552
    %7554 = vst.msk [vmem:[%s7473 + $0x88] sm:$0xf] %vm326, %v7355
    %v7555 = vld [vmem:[%s7473 + $0x8c] sm:$0x1]
    %v7556 = vsel %vm95, %v7356, %v7555
    %7557 = vst [vmem:[%s7473 + $0x8c] sm:$0x1] %v7556
    %v7558 = vld [vmem:[%s7473 + $0x90] sm:$0xf]
    %v7559 = vsel %vm658, %v7363, %v7558
    %7560 = vst [vmem:[%s7473 + $0x90] sm:$0xf] %v7559
    %7561 = vst.msk [vmem:[%s7473 + $0x94] sm:$0xf] %vm326, %v7372
    %v7562 = vld [vmem:[%s7473 + $0x98] sm:$0x1]
    %v7563 = vsel %vm95, %v7373, %v7562
    %7564 = vst [vmem:[%s7473 + $0x98] sm:$0x1] %v7563
    %v7565 = vld [vmem:[%s7473 + $0x9c] sm:$0xf]
    %v7566 = vsel %vm658, %v7380, %v7565
    %7567 = vst [vmem:[%s7473 + $0x9c] sm:$0xf] %v7566
    %7568 = vst.msk [vmem:[%s7473 + $0xa0] sm:$0xf] %vm326, %v7389
    %v7569 = vld [vmem:[%s7473 + $0xa4] sm:$0x1]
    %v7570 = vsel %vm95, %v7390, %v7569
    %7571 = vst [vmem:[%s7473 + $0xa4] sm:$0x1] %v7570
    %v7572 = vld [vmem:[%s7473 + $0xa8] sm:$0xf]
    %v7573 = vsel %vm658, %v7397, %v7572
    %7574 = vst [vmem:[%s7473 + $0xa8] sm:$0xf] %v7573
    %7575 = vst.msk [vmem:[%s7473 + $0xac] sm:$0xf] %vm326, %v7406
    %v7576 = vld [vmem:[%s7473 + $0xb0] sm:$0x1]
    %v7577 = vsel %vm95, %v7407, %v7576
    %7578 = vst [vmem:[%s7473 + $0xb0] sm:$0x1] %v7577
    %v7579 = vld [vmem:[%s7473 + $0xb4] sm:$0xf]
    %v7580 = vsel %vm658, %v7414, %v7579
    %7581 = vst [vmem:[%s7473 + $0xb4] sm:$0xf] %v7580
    %7582 = vst.msk [vmem:[%s7473 + $0xb8] sm:$0xf] %vm326, %v7423
    %v7583 = vld [vmem:[%s7473 + $0xbc] sm:$0x1]
    %v7584 = vsel %vm95, %v7424, %v7583
    %7585 = vst [vmem:[%s7473 + $0xbc] sm:$0x1] %v7584
    %v7586 = vld [vmem:[#allocation3] sm:$0xf]
    %v7587 = vld [vmem:[#allocation3 + $0x4] sm:$0xf]
    %v7588 = vld [vmem:[#allocation3 + $0x8] sm:$0xf]
    %v7589 = vld [vmem:[#allocation3 + $0xc] sm:$0xf]
    %v7590 = vld [vmem:[#allocation3 + $0x10] sm:$0xf]
    %v7591 = vld [vmem:[#allocation3 + $0x14] sm:$0xf]
    %v7592 = vld [vmem:[#allocation3 + $0x18] sm:$0xf]
    %v7593 = vld [vmem:[#allocation3 + $0x1c] sm:$0xf]
    %v7594 = vld [vmem:[#allocation3 + $0x20] sm:$0xf]
    %v7595 = vld [vmem:[#allocation3 + $0x24] sm:$0xf]
    %v7596 = vld [vmem:[#allocation3 + $0x28] sm:$0xf]
    %v7597 = vld [vmem:[#allocation3 + $0x2c] sm:$0xf]
    %v7598 = vld [vmem:[#allocation3 + $0x30] sm:$0xf]
    %v7599 = vld [vmem:[#allocation3 + $0x34] sm:$0xf]
    %v7600 = vld [vmem:[#allocation3 + $0x38] sm:$0xf]
    %v7601 = vld [vmem:[#allocation3 + $0x3c] sm:$0xf]
    %v7602 = vld [vmem:[#allocation3 + $0x40] sm:$0xf]
    %v7603 = vld [vmem:[#allocation3 + $0x44] sm:$0xf]
    %v7604 = vld [vmem:[#allocation3 + $0x48] sm:$0xf]
    %v7605 = vld [vmem:[#allocation3 + $0x4c] sm:$0xf]
    %v7606 = vld [vmem:[#allocation3 + $0x50] sm:$0xf]
    %v7607 = vld [vmem:[#allocation3 + $0x54] sm:$0xf]
    %v7608 = vld [vmem:[#allocation3 + $0x58] sm:$0xf]
    %v7609 = vld [vmem:[#allocation3 + $0x5c] sm:$0xf]
    %v7610 = vld [vmem:[#allocation3 + $0x60] sm:$0xf]
    %v7611 = vld [vmem:[#allocation3 + $0x64] sm:$0xf]
    %v7612 = vld [vmem:[#allocation3 + $0x68] sm:$0xf]
    %v7613 = vld [vmem:[#allocation3 + $0x6c] sm:$0xf]
    %v7614 = vld [vmem:[#allocation3 + $0x70] sm:$0xf]
    %v7615 = vld [vmem:[#allocation3 + $0x74] sm:$0xf]
    %v7616 = vld [vmem:[#allocation3 + $0x78] sm:$0xf]
    %v7617 = vld [vmem:[#allocation3 + $0x7c] sm:$0xf]
    %v7618 = vld [vmem:[#allocation3 + $0x80] sm:$0xf]
    %v7619 = vld [vmem:[#allocation3 + $0x84] sm:$0xf]
    %v7620 = vld [vmem:[#allocation3 + $0x88] sm:$0xf]
    %v7621 = vld [vmem:[#allocation3 + $0x8c] sm:$0xf]
    %v7622 = vld [vmem:[#allocation3 + $0x90] sm:$0xf]
    %v7623 = vld [vmem:[#allocation3 + $0x94] sm:$0xf]
    %v7624 = vld [vmem:[#allocation3 + $0x98] sm:$0xf]
    %v7625 = vld [vmem:[#allocation3 + $0x9c] sm:$0xf]
    %v7626 = vld [vmem:[#allocation3 + $0xa0] sm:$0xf]
    %v7627 = vld [vmem:[#allocation3 + $0xa4] sm:$0xf]
    %v7628 = vld [vmem:[#allocation3 + $0xa8] sm:$0xf]
    %v7629 = vld [vmem:[#allocation3 + $0xac] sm:$0xf]
    %v7630 = vld [vmem:[#allocation3 + $0xb0] sm:$0xf]
    %v7631 = vld [vmem:[#allocation3 + $0xb4] sm:$0xf]
    %v7632 = vld [vmem:[#allocation3 + $0xb8] sm:$0xf]
    %v7633 = vld [vmem:[#allocation3 + $0xbc] sm:$0xf]
    %v7634 = vld [vmem:[#allocation3 + $0xc0] sm:$0xf]
    %v7635 = vld [vmem:[#allocation3 + $0xc4] sm:$0xf]
    %v7636 = vld [vmem:[#allocation3 + $0xc8] sm:$0xf]
    %v7637 = vld [vmem:[#allocation3 + $0xcc] sm:$0xf]
    %v7638 = vld [vmem:[#allocation3 + $0xd0] sm:$0xf]
    %v7639 = vld [vmem:[#allocation3 + $0xd4] sm:$0xf]
    %v7640 = vld [vmem:[#allocation3 + $0xd8] sm:$0xf]
    %v7641 = vld [vmem:[#allocation3 + $0xdc] sm:$0xf]
    %v7642 = vld [vmem:[#allocation3 + $0xe0] sm:$0xf]
    %v7643 = vld [vmem:[#allocation3 + $0xe4] sm:$0xf]
    %v7644 = vld [vmem:[#allocation3 + $0xe8] sm:$0xf]
    %v7645 = vld [vmem:[#allocation3 + $0xec] sm:$0xf]
    %v7646 = vld [vmem:[#allocation3 + $0xf0] sm:$0xf]
    %v7647 = vld [vmem:[#allocation3 + $0xf4] sm:$0xf]
    %v7648 = vld [vmem:[#allocation3 + $0xf8] sm:$0xf]
    %v7649 = vld [vmem:[#allocation3 + $0xfc] sm:$0xf]
    %v7650 = vld [vmem:[#allocation3 + $0x100] sm:$0xf]
    %v7651 = vld [vmem:[#allocation3 + $0x104] sm:$0xf]
    %v7652 = vld [vmem:[#allocation3 + $0x108] sm:$0xf]
    %v7653 = vld [vmem:[#allocation3 + $0x10c] sm:$0xf]
    %v7654 = vld [vmem:[#allocation3 + $0x110] sm:$0xf]
    %v7655 = vld [vmem:[#allocation3 + $0x114] sm:$0xf]
    %v7656 = vld [vmem:[#allocation3 + $0x118] sm:$0xf]
    %v7657 = vld [vmem:[#allocation3 + $0x11c] sm:$0xf]
    %v7658 = vld [vmem:[#allocation3 + $0x120] sm:$0xf]
    %v7659 = vld [vmem:[#allocation3 + $0x124] sm:$0xf]
    %v7660 = vld [vmem:[#allocation3 + $0x128] sm:$0xf]
    %v7661 = vld [vmem:[#allocation3 + $0x12c] sm:$0xf]
    %v7662 = vld [vmem:[#allocation3 + $0x130] sm:$0xf]
    %v7663 = vld [vmem:[#allocation3 + $0x134] sm:$0xf]
    %v7664 = vld [vmem:[#allocation3 + $0x138] sm:$0xf]
    %v7665 = vld [vmem:[#allocation3 + $0x13c] sm:$0xf]
    %v7666 = vld [vmem:[#allocation3 + $0x140] sm:$0xf]
    %v7667 = vld [vmem:[#allocation3 + $0x144] sm:$0xf]
    %v7668 = vld [vmem:[#allocation3 + $0x148] sm:$0xf]
    %v7669 = vld [vmem:[#allocation3 + $0x14c] sm:$0xf]
    %v7670 = vld [vmem:[#allocation3 + $0x150] sm:$0xf]
    %v7671 = vld [vmem:[#allocation3 + $0x154] sm:$0xf]
    %v7672 = vld [vmem:[#allocation3 + $0x158] sm:$0xf]
    %v7673 = vld [vmem:[#allocation3 + $0x15c] sm:$0xf]
    %v7674 = vld [vmem:[#allocation3 + $0x160] sm:$0xf]
    %v7675 = vld [vmem:[#allocation3 + $0x164] sm:$0xf]
    %v7676 = vld [vmem:[#allocation3 + $0x168] sm:$0xf]
    %v7677 = vld [vmem:[#allocation3 + $0x16c] sm:$0xf]
    %v7678 = vld [vmem:[#allocation3 + $0x170] sm:$0xf]
    %v7679 = vld [vmem:[#allocation3 + $0x174] sm:$0xf]
    %v7680 = vld [vmem:[#allocation3 + $0x178] sm:$0xf]
    %v7681 = vld [vmem:[#allocation3 + $0x17c] sm:$0xf]
    %v7682 = vld [vmem:[#allocation3 + $0x180] sm:$0xf]
    %v7683 = vld [vmem:[#allocation3 + $0x184] sm:$0xf]
    %v7684 = vld [vmem:[#allocation3 + $0x188] sm:$0xf]
    %v7685 = vld [vmem:[#allocation3 + $0x18c] sm:$0xf]
    %v7686 = vld [vmem:[#allocation3 + $0x190] sm:$0xf]
    %v7687 = vld [vmem:[#allocation3 + $0x194] sm:$0xf]
    %v7688 = vld [vmem:[#allocation3 + $0x198] sm:$0xf]
    %v7689 = vld [vmem:[#allocation3 + $0x19c] sm:$0xf]
    %v7690 = vld [vmem:[#allocation3 + $0x1a0] sm:$0xf]
    %v7691 = vld [vmem:[#allocation3 + $0x1a4] sm:$0xf]
    %v7692 = vld [vmem:[#allocation3 + $0x1a8] sm:$0xf]
    %v7693 = vld [vmem:[#allocation3 + $0x1ac] sm:$0xf]
    %v7694 = vld [vmem:[#allocation3 + $0x1b0] sm:$0xf]
    %v7695 = vld [vmem:[#allocation3 + $0x1b4] sm:$0xf]
    %v7696 = vld [vmem:[#allocation3 + $0x1b8] sm:$0xf]
    %v7697 = vld [vmem:[#allocation3 + $0x1bc] sm:$0xf]
    %v7698 = vld [vmem:[%s2] sm:$0xf]
    %s7699 = scalar_lea.vmem %s2, 4
    %v7700 = vld [vmem:[%s7699] sm:$0xf]
    %v7807 = vunpack.c.l.b16 %v7586
    %v7808 = vunpack.c.l.b16 %v7587
    %v7809 = vunpack.c.l.b16 %v7588
    %v7810 = vunpack.c.l.b16 %v7589
    %v7811 = vunpack.c.l.b16 %v7590
    %v7812 = vunpack.c.l.b16 %v7591
    %v7813 = vunpack.c.l.b16 %v7592
    %v7814 = vunpack.c.l.b16 %v7593
    %v7815 = vunpack.c.l.b16 %v7594
    %v7816 = vunpack.c.l.b16 %v7595
    %v7817 = vunpack.c.l.b16 %v7596
    %v7818 = vunpack.c.l.b16 %v7597
    %v7819 = vunpack.c.l.b16 %v7598
    %v7820 = vunpack.c.l.b16 %v7599
    %v7821 = vunpack.c.l.b16 %v7600
    %v7822 = vunpack.c.l.b16 %v7601
    %v7823 = vunpack.c.l.b16 %v7602
    %v7824 = vunpack.c.l.b16 %v7603
    %v7825 = vunpack.c.l.b16 %v7604
    %v7826 = vunpack.c.l.b16 %v7605
    %v7827 = vunpack.c.l.b16 %v7606
    %v7828 = vunpack.c.l.b16 %v7607
    %v7829 = vunpack.c.l.b16 %v7608
    %v7830 = vunpack.c.l.b16 %v7609
    %v7831 = vunpack.c.l.b16 %v7610
    %v7832 = vunpack.c.l.b16 %v7611
    %v7833 = vunpack.c.l.b16 %v7612
    %v7834 = vunpack.c.l.b16 %v7613
    %v7835 = vunpack.c.l.b16 %v7614
    %v7836 = vunpack.c.l.b16 %v7615
    %v7837 = vunpack.c.l.b16 %v7616
    %v7838 = vunpack.c.l.b16 %v7617
    %v7839 = vunpack.c.l.b16 %v7618
    %v7840 = vunpack.c.l.b16 %v7619
    %v7841 = vunpack.c.l.b16 %v7620
    %v7842 = vunpack.c.l.b16 %v7621
    %v7843 = vunpack.c.l.b16 %v7622
    %v7844 = vunpack.c.l.b16 %v7623
    %v7845 = vunpack.c.l.b16 %v7624
    %v7846 = vunpack.c.l.b16 %v7625
    %v7847 = vunpack.c.l.b16 %v7626
    %v7848 = vunpack.c.l.b16 %v7627
    %v7849 = vunpack.c.l.b16 %v7628
    %v7850 = vunpack.c.l.b16 %v7629
    %v7851 = vunpack.c.l.b16 %v7630
    %v7852 = vunpack.c.l.b16 %v7631
    %v7853 = vunpack.c.l.b16 %v7632
    %v7854 = vunpack.c.l.b16 %v7633
    %v7855 = vunpack.c.l.b16 %v7634
    %v7856 = vunpack.c.l.b16 %v7635
    %v7857 = vunpack.c.l.b16 %v7636
    %v7858 = vunpack.c.l.b16 %v7637
    %v7859 = vunpack.c.l.b16 %v7638
    %v7860 = vunpack.c.l.b16 %v7639
    %v7861 = vunpack.c.l.b16 %v7640
    %v7862 = vunpack.c.l.b16 %v7641
    %v7863 = vunpack.c.l.b16 %v7642
    %v7864 = vunpack.c.l.b16 %v7643
    %v7865 = vunpack.c.l.b16 %v7644
    %v7866 = vunpack.c.l.b16 %v7645
    %v7867 = vunpack.c.l.b16 %v7646
    %v7868 = vunpack.c.l.b16 %v7647
    %v7869 = vunpack.c.l.b16 %v7648
    %v7870 = vunpack.c.l.b16 %v7649
    %v7871 = vunpack.c.l.b16 %v7650
    %v7872 = vunpack.c.l.b16 %v7651
    %v7873 = vunpack.c.l.b16 %v7652
    %v7874 = vunpack.c.l.b16 %v7653
    %v7875 = vunpack.c.l.b16 %v7654
    %v7876 = vunpack.c.l.b16 %v7655
    %v7877 = vunpack.c.l.b16 %v7656
    %v7878 = vunpack.c.l.b16 %v7657
    %v7879 = vunpack.c.l.b16 %v7658
    %v7880 = vunpack.c.l.b16 %v7659
    %v7881 = vunpack.c.l.b16 %v7660
    %v7882 = vunpack.c.l.b16 %v7661
    %v7883 = vunpack.c.l.b16 %v7662
    %v7884 = vunpack.c.l.b16 %v7663
    %v7885 = vunpack.c.l.b16 %v7664
    %v7886 = vunpack.c.l.b16 %v7665
    %v7887 = vunpack.c.l.b16 %v7666
    %v7888 = vunpack.c.l.b16 %v7667
    %v7889 = vunpack.c.l.b16 %v7668
    %v7890 = vunpack.c.l.b16 %v7669
    %v7891 = vunpack.c.l.b16 %v7670
    %v7892 = vunpack.c.l.b16 %v7671
    %v7893 = vunpack.c.l.b16 %v7672
    %v7894 = vunpack.c.l.b16 %v7673
    %v7895 = vunpack.c.l.b16 %v7674
    %v7896 = vunpack.c.l.b16 %v7675
    %v7897 = vunpack.c.l.b16 %v7676
    %v7898 = vunpack.c.l.b16 %v7677
    %v7899 = vunpack.c.l.b16 %v7678
    %v7900 = vunpack.c.l.b16 %v7679
    %v7901 = vunpack.c.l.b16 %v7680
    %v7902 = vunpack.c.l.b16 %v7681
    %v7903 = vunpack.c.l.b16 %v7682
    %v7904 = vunpack.c.l.b16 %v7683
    %v7905 = vunpack.c.l.b16 %v7684
    %v7906 = vunpack.c.l.b16 %v7685
    %v7907 = vunpack.c.l.b16 %v7686
    %v7908 = vunpack.c.l.b16 %v7687
    %v7909 = vunpack.c.l.b16 %v7688
    %v7910 = vunpack.c.l.b16 %v7689
    %v7911 = vunpack.c.l.b16 %v7690
    %v7912 = vunpack.c.l.b16 %v7691
    %v7913 = vpack.c.b16 %v7808, %v7807
    %v7914 = vpack.c.b16 %v7810, %v7809
    %v7915 = vpack.c.b16 %v7812, %v7811
    %v7916 = vpack.c.b16 %v7814, %v7813
    %v7917 = vpack.c.b16 %v7816, %v7815
    %v7918 = vpack.c.b16 %v7818, %v7817
    %v7919 = vpack.c.b16 %v7820, %v7819
    %v7920 = vpack.c.b16 %v7822, %v7821
    %v7921 = vpack.c.b16 %v7824, %v7823
    %v7922 = vpack.c.b16 %v7826, %v7825
    %v7923 = vpack.c.b16 %v7828, %v7827
    %v7924 = vpack.c.b16 %v7830, %v7829
    %v7925 = vpack.c.b16 %v7832, %v7831
    %v7926 = vpack.c.b16 %v7834, %v7833
    %v7927 = vpack.c.b16 %v7836, %v7835
    %v7928 = vpack.c.b16 %v7838, %v7837
    %v7929 = vpack.c.b16 %v7840, %v7839
    %v7930 = vpack.c.b16 %v7842, %v7841
    %v7931 = vpack.c.b16 %v7844, %v7843
    %v7932 = vpack.c.b16 %v7846, %v7845
    %v7933 = vpack.c.b16 %v7848, %v7847
    %v7934 = vpack.c.b16 %v7850, %v7849
    %v7935 = vpack.c.b16 %v7852, %v7851
    %v7936 = vpack.c.b16 %v7854, %v7853
    %v7937 = vpack.c.b16 %v7856, %v7855
    %v7938 = vpack.c.b16 %v7858, %v7857
    %v7939 = vpack.c.b16 %v7860, %v7859
    %v7940 = vpack.c.b16 %v7862, %v7861
    %v7941 = vpack.c.b16 %v7864, %v7863
    %v7942 = vpack.c.b16 %v7866, %v7865
    %v7943 = vpack.c.b16 %v7868, %v7867
    %v7944 = vpack.c.b16 %v7870, %v7869
    %v7945 = vpack.c.b16 %v7872, %v7871
    %v7946 = vpack.c.b16 %v7874, %v7873
    %v7947 = vpack.c.b16 %v7876, %v7875
    %v7948 = vpack.c.b16 %v7878, %v7877
    %v7949 = vpack.c.b16 %v7880, %v7879
    %v7950 = vpack.c.b16 %v7882, %v7881
    %v7951 = vpack.c.b16 %v7884, %v7883
    %v7952 = vpack.c.b16 %v7886, %v7885
    %v7953 = vpack.c.b16 %v7888, %v7887
    %v7954 = vpack.c.b16 %v7890, %v7889
    %v7955 = vpack.c.b16 %v7892, %v7891
    %v7956 = vpack.c.b16 %v7894, %v7893
    %v7957 = vpack.c.b16 %v7896, %v7895
    %v7958 = vpack.c.b16 %v7898, %v7897
    %v7959 = vpack.c.b16 %v7900, %v7899
    %v7960 = vpack.c.b16 %v7902, %v7901
    %v7961 = vpack.c.b16 %v7904, %v7903
    %v7962 = vpack.c.b16 %v7906, %v7905
    %v7963 = vpack.c.b16 %v7908, %v7907
    %v7964 = vpack.c.b16 %v7910, %v7909
    %v7965 = vpack.c.b16 %v7912, %v7911
    %v7967 = vshrl.u32 %v7913, 16
    %v7969 = vshll.u32 %v7913, 16
    %v7971 = vrot.slane %v7969, 1
    %v7972 = vor.u32 %v7967, %v7971
    %v7974 = vshll.u32 %v7914, 16
    %v7976 = vrot.slane %v7974, 1
    %v7977 = vsel %vm1592, %v7972, %v7976
    %v7978 = vshrl.u32 %v7914, 16
    %v7980 = vor.u32 %v7978, %v7976
    %v7982 = vshll.u32 %v7915, 16
    %v7984 = vrot.slane %v7982, 1
    %v7985 = vsel %vm1592, %v7980, %v7984
    %v7986 = vshrl.u32 %v7915, 16
    %v7988 = vor.u32 %v7986, %v7984
    %v7990 = vshll.u32 %v7916, 16
    %v7992 = vrot.slane %v7990, 1
    %v7993 = vsel %vm1592, %v7988, %v7992
    %v7994 = vshrl.u32 %v7916, 16
    %v7996 = vor.u32 %v7994, %v7992
    %v7998 = vshll.u32 %v7917, 16
    %v8000 = vrot.slane %v7998, 1
    %v8001 = vsel %vm1592, %v7996, %v8000
    %v8002 = vshrl.u32 %v7917, 16
    %v8004 = vor.u32 %v8002, %v8000
    %v8006 = vshll.u32 %v7918, 16
    %v8008 = vrot.slane %v8006, 1
    %v8009 = vsel %vm1592, %v8004, %v8008
    %v8010 = vshrl.u32 %v7918, 16
    %v8012 = vor.u32 %v8010, %v8008
    %v8014 = vshll.u32 %v7919, 16
    %v8016 = vrot.slane %v8014, 1
    %v8017 = vsel %vm1592, %v8012, %v8016
    %v8018 = vshrl.u32 %v7919, 16
    %v8020 = vor.u32 %v8018, %v8016
    %v8022 = vshll.u32 %v7920, 16
    %v8024 = vrot.slane %v8022, 1
    %v8025 = vsel %vm1592, %v8020, %v8024
    %v8026 = vshrl.u32 %v7920, 16
    %v8028 = vor.u32 %v8026, %v8024
    %v8030 = vshll.u32 %v7921, 16
    %v8032 = vrot.slane %v8030, 1
    %v8033 = vsel %vm1592, %v8028, %v8032
    %v8034 = vshrl.u32 %v7921, 16
    %v8036 = vor.u32 %v8034, %v8032
    %v8038 = vshll.u32 %v7922, 16
    %v8040 = vrot.slane %v8038, 1
    %v8041 = vsel %vm1592, %v8036, %v8040
    %v8042 = vshrl.u32 %v7922, 16
    %v8044 = vor.u32 %v8042, %v8040
    %v8046 = vshll.u32 %v7923, 16
    %v8048 = vrot.slane %v8046, 1
    %v8049 = vsel %vm1592, %v8044, %v8048
    %v8050 = vshrl.u32 %v7923, 16
    %v8052 = vor.u32 %v8050, %v8048
    %v8054 = vshll.u32 %v7924, 16
    %v8056 = vrot.slane %v8054, 1
    %v8057 = vsel %vm1592, %v8052, %v8056
    %v8058 = vshrl.u32 %v7924, 16
    %v8060 = vor.u32 %v8058, %v8056
    %v8062 = vshll.u32 %v7925, 16
    %v8064 = vrot.slane %v8062, 1
    %v8065 = vsel %vm1592, %v8060, %v8064
    %v8066 = vshrl.u32 %v7925, 16
    %v8068 = vor.u32 %v8066, %v8064
    %v8070 = vshll.u32 %v7926, 16
    %v8072 = vrot.slane %v8070, 1
    %v8073 = vsel %vm1592, %v8068, %v8072
    %v8074 = vshrl.u32 %v7926, 16
    %v8076 = vor.u32 %v8074, %v8072
    %v8078 = vshll.u32 %v7927, 16
    %v8080 = vrot.slane %v8078, 1
    %v8081 = vsel %vm1592, %v8076, %v8080
    %v8082 = vshrl.u32 %v7927, 16
    %v8084 = vor.u32 %v8082, %v8080
    %v8086 = vshll.u32 %v7928, 16
    %v8088 = vrot.slane %v8086, 1
    %v8089 = vsel %vm1592, %v8084, %v8088
    %v8090 = vshrl.u32 %v7928, 16
    %v8092 = vor.u32 %v8090, %v8088
    %v8094 = vshll.u32 %v7929, 16
    %v8096 = vrot.slane %v8094, 1
    %v8097 = vsel %vm1592, %v8092, %v8096
    %v8098 = vshrl.u32 %v7929, 16
    %v8100 = vor.u32 %v8098, %v8096
    %v8102 = vshll.u32 %v7930, 16
    %v8104 = vrot.slane %v8102, 1
    %v8105 = vsel %vm1592, %v8100, %v8104
    %v8106 = vshrl.u32 %v7930, 16
    %v8108 = vor.u32 %v8106, %v8104
    %v8110 = vshll.u32 %v7931, 16
    %v8112 = vrot.slane %v8110, 1
    %v8113 = vsel %vm1592, %v8108, %v8112
    %v8114 = vshrl.u32 %v7931, 16
    %v8116 = vor.u32 %v8114, %v8112
    %v8118 = vshll.u32 %v7932, 16
    %v8120 = vrot.slane %v8118, 1
    %v8121 = vsel %vm1592, %v8116, %v8120
    %v8122 = vshrl.u32 %v7932, 16
    %v8124 = vor.u32 %v8122, %v8120
    %v8126 = vshll.u32 %v7933, 16
    %v8128 = vrot.slane %v8126, 1
    %v8129 = vsel %vm1592, %v8124, %v8128
    %v8130 = vshrl.u32 %v7933, 16
    %v8132 = vor.u32 %v8130, %v8128
    %v8134 = vshll.u32 %v7934, 16
    %v8136 = vrot.slane %v8134, 1
    %v8137 = vsel %vm1592, %v8132, %v8136
    %v8138 = vshrl.u32 %v7934, 16
    %v8140 = vor.u32 %v8138, %v8136
    %v8142 = vshll.u32 %v7935, 16
    %v8144 = vrot.slane %v8142, 1
    %v8145 = vsel %vm1592, %v8140, %v8144
    %v8146 = vshrl.u32 %v7935, 16
    %v8148 = vor.u32 %v8146, %v8144
    %v8150 = vshll.u32 %v7936, 16
    %v8152 = vrot.slane %v8150, 1
    %v8153 = vsel %vm1592, %v8148, %v8152
    %v8154 = vshrl.u32 %v7936, 16
    %v8156 = vor.u32 %v8154, %v8152
    %v8158 = vshll.u32 %v7937, 16
    %v8160 = vrot.slane %v8158, 1
    %v8161 = vsel %vm1592, %v8156, %v8160
    %v8162 = vshrl.u32 %v7937, 16
    %v8164 = vor.u32 %v8162, %v8160
    %v8166 = vshll.u32 %v7938, 16
    %v8168 = vrot.slane %v8166, 1
    %v8169 = vsel %vm1592, %v8164, %v8168
    %v8170 = vshrl.u32 %v7938, 16
    %v8172 = vor.u32 %v8170, %v8168
    %v8174 = vshll.u32 %v7939, 16
    %v8176 = vrot.slane %v8174, 1
    %v8177 = vsel %vm1592, %v8172, %v8176
    %v8178 = vshrl.u32 %v7939, 16
    %v8180 = vor.u32 %v8178, %v8176
    %v8182 = vshll.u32 %v7940, 16
    %v8184 = vrot.slane %v8182, 1
    %v8185 = vsel %vm1592, %v8180, %v8184
    %v8186 = vshrl.u32 %v7940, 16
    %v8188 = vor.u32 %v8186, %v8184
    %v8190 = vshll.u32 %v7941, 16
    %v8192 = vrot.slane %v8190, 1
    %v8193 = vsel %vm1592, %v8188, %v8192
    %v8194 = vshrl.u32 %v7941, 16
    %v8196 = vor.u32 %v8194, %v8192
    %v8198 = vshll.u32 %v7942, 16
    %v8200 = vrot.slane %v8198, 1
    %v8201 = vsel %vm1592, %v8196, %v8200
    %v8202 = vshrl.u32 %v7942, 16
    %v8204 = vor.u32 %v8202, %v8200
    %v8206 = vshll.u32 %v7943, 16
    %v8208 = vrot.slane %v8206, 1
    %v8209 = vsel %vm1592, %v8204, %v8208
    %v8210 = vshrl.u32 %v7943, 16
    %v8212 = vor.u32 %v8210, %v8208
    %v8214 = vshll.u32 %v7944, 16
    %v8216 = vrot.slane %v8214, 1
    %v8217 = vsel %vm1592, %v8212, %v8216
    %v8218 = vshrl.u32 %v7944, 16
    %v8220 = vor.u32 %v8218, %v8216
    %v8222 = vshll.u32 %v7945, 16
    %v8224 = vrot.slane %v8222, 1
    %v8225 = vsel %vm1592, %v8220, %v8224
    %v8226 = vshrl.u32 %v7945, 16
    %v8228 = vor.u32 %v8226, %v8224
    %v8230 = vshll.u32 %v7946, 16
    %v8232 = vrot.slane %v8230, 1
    %v8233 = vsel %vm1592, %v8228, %v8232
    %v8234 = vshrl.u32 %v7946, 16
    %v8236 = vor.u32 %v8234, %v8232
    %v8238 = vshll.u32 %v7947, 16
    %v8240 = vrot.slane %v8238, 1
    %v8241 = vsel %vm1592, %v8236, %v8240
    %v8242 = vshrl.u32 %v7947, 16
    %v8244 = vor.u32 %v8242, %v8240
    %v8246 = vshll.u32 %v7948, 16
    %v8248 = vrot.slane %v8246, 1
    %v8249 = vsel %vm1592, %v8244, %v8248
    %v8250 = vshrl.u32 %v7948, 16
    %v8252 = vor.u32 %v8250, %v8248
    %v8254 = vshll.u32 %v7949, 16
    %v8256 = vrot.slane %v8254, 1
    %v8257 = vsel %vm1592, %v8252, %v8256
    %v8258 = vshrl.u32 %v7949, 16
    %v8260 = vor.u32 %v8258, %v8256
    %v8262 = vshll.u32 %v7950, 16
    %v8264 = vrot.slane %v8262, 1
    %v8265 = vsel %vm1592, %v8260, %v8264
    %v8266 = vshrl.u32 %v7950, 16
    %v8268 = vor.u32 %v8266, %v8264
    %v8270 = vshll.u32 %v7951, 16
    %v8272 = vrot.slane %v8270, 1
    %v8273 = vsel %vm1592, %v8268, %v8272
    %v8274 = vshrl.u32 %v7951, 16
    %v8276 = vor.u32 %v8274, %v8272
    %v8278 = vshll.u32 %v7952, 16
    %v8280 = vrot.slane %v8278, 1
    %v8281 = vsel %vm1592, %v8276, %v8280
    %v8282 = vshrl.u32 %v7952, 16
    %v8284 = vor.u32 %v8282, %v8280
    %v8286 = vshll.u32 %v7953, 16
    %v8288 = vrot.slane %v8286, 1
    %v8289 = vsel %vm1592, %v8284, %v8288
    %v8290 = vshrl.u32 %v7953, 16
    %v8292 = vor.u32 %v8290, %v8288
    %v8294 = vshll.u32 %v7954, 16
    %v8296 = vrot.slane %v8294, 1
    %v8297 = vsel %vm1592, %v8292, %v8296
    %v8298 = vshrl.u32 %v7954, 16
    %v8300 = vor.u32 %v8298, %v8296
    %v8302 = vshll.u32 %v7955, 16
    %v8304 = vrot.slane %v8302, 1
    %v8305 = vsel %vm1592, %v8300, %v8304
    %v8306 = vshrl.u32 %v7955, 16
    %v8308 = vor.u32 %v8306, %v8304
    %v8310 = vshll.u32 %v7956, 16
    %v8312 = vrot.slane %v8310, 1
    %v8313 = vsel %vm1592, %v8308, %v8312
    %v8314 = vshrl.u32 %v7956, 16
    %v8316 = vor.u32 %v8314, %v8312
    %v8318 = vshll.u32 %v7957, 16
    %v8320 = vrot.slane %v8318, 1
    %v8321 = vsel %vm1592, %v8316, %v8320
    %v8322 = vshrl.u32 %v7957, 16
    %v8324 = vor.u32 %v8322, %v8320
    %v8326 = vshll.u32 %v7958, 16
    %v8328 = vrot.slane %v8326, 1
    %v8329 = vsel %vm1592, %v8324, %v8328
    %v8330 = vshrl.u32 %v7958, 16
    %v8332 = vor.u32 %v8330, %v8328
    %v8334 = vshll.u32 %v7959, 16
    %v8336 = vrot.slane %v8334, 1
    %v8337 = vsel %vm1592, %v8332, %v8336
    %v8338 = vshrl.u32 %v7959, 16
    %v8340 = vor.u32 %v8338, %v8336
    %v8342 = vshll.u32 %v7960, 16
    %v8344 = vrot.slane %v8342, 1
    %v8345 = vsel %vm1592, %v8340, %v8344
    %v8346 = vshrl.u32 %v7960, 16
    %v8348 = vor.u32 %v8346, %v8344
    %v8350 = vshll.u32 %v7961, 16
    %v8352 = vrot.slane %v8350, 1
    %v8353 = vsel %vm1592, %v8348, %v8352
    %v8354 = vshrl.u32 %v7961, 16
    %v8356 = vor.u32 %v8354, %v8352
    %v8358 = vshll.u32 %v7962, 16
    %v8360 = vrot.slane %v8358, 1
    %v8361 = vsel %vm1592, %v8356, %v8360
    %v8362 = vshrl.u32 %v7962, 16
    %v8364 = vor.u32 %v8362, %v8360
    %v8366 = vshll.u32 %v7963, 16
    %v8368 = vrot.slane %v8366, 1
    %v8369 = vsel %vm1592, %v8364, %v8368
    %v8370 = vshrl.u32 %v7963, 16
    %v8372 = vor.u32 %v8370, %v8368
    %v8374 = vshll.u32 %v7964, 16
    %v8376 = vrot.slane %v8374, 1
    %v8377 = vsel %vm1592, %v8372, %v8376
    %v8378 = vshrl.u32 %v7964, 16
    %v8380 = vor.u32 %v8378, %v8376
    %v8382 = vshll.u32 %v7965, 16
    %v8384 = vrot.slane %v8382, 1
    %v8385 = vsel %vm1592, %v8380, %v8384
    %v8386 = vshrl.u32 %v7965, 16
    %v8388 = vor.u32 %v8386, %v8384
    %v8390 = vsel %vm2016, %v7977, 0
    %v8393 = vsel %vm2016, %v7985, 0
    %v8396 = vsel %vm2016, %v7993, 0
    %v8399 = vsel %vm2016, %v8001, 0
    %v8402 = vsel %vm2016, %v8009, 0
    %v8405 = vsel %vm2016, %v8017, 0
    %v8408 = vsel %vm2016, %v8025, 0
    %v8411 = vsel %vm2016, %v8033, 0
    %v8414 = vsel %vm2016, %v8041, 0
    %v8417 = vsel %vm2016, %v8049, 0
    %v8420 = vsel %vm2016, %v8057, 0
    %v8423 = vsel %vm2016, %v8065, 0
    %v8426 = vsel %vm2016, %v8073, 0
    %v8429 = vsel %vm2016, %v8081, 0
    %v8432 = vsel %vm2016, %v8089, 0
    %v8435 = vsel %vm2016, %v8097, 0
    %v8438 = vsel %vm2016, %v8105, 0
    %v8441 = vsel %vm2016, %v8113, 0
    %v8444 = vsel %vm2016, %v8121, 0
    %v8447 = vsel %vm2016, %v8129, 0
    %v8450 = vsel %vm2016, %v8137, 0
    %v8453 = vsel %vm2016, %v8145, 0
    %v8456 = vsel %vm2016, %v8153, 0
    %v8459 = vsel %vm2016, %v8161, 0
    %v8462 = vsel %vm2016, %v8169, 0
    %v8465 = vsel %vm2016, %v8177, 0
    %v8468 = vsel %vm2016, %v8185, 0
    %v8471 = vsel %vm2016, %v8193, 0
    %v8474 = vsel %vm2016, %v8201, 0
    %v8477 = vsel %vm2016, %v8209, 0
    %v8480 = vsel %vm2016, %v8217, 0
    %v8483 = vsel %vm2016, %v8225, 0
    %v8486 = vsel %vm2016, %v8233, 0
    %v8489 = vsel %vm2016, %v8241, 0
    %v8492 = vsel %vm2016, %v8249, 0
    %v8495 = vsel %vm2016, %v8257, 0
    %v8498 = vsel %vm2016, %v8265, 0
    %v8501 = vsel %vm2016, %v8273, 0
    %v8504 = vsel %vm2016, %v8281, 0
    %v8507 = vsel %vm2016, %v8289, 0
    %v8510 = vsel %vm2016, %v8297, 0
    %v8513 = vsel %vm2016, %v8305, 0
    %v8516 = vsel %vm2016, %v8313, 0
    %v8519 = vsel %vm2016, %v8321, 0
    %v8522 = vsel %vm2016, %v8329, 0
    %v8525 = vsel %vm2016, %v8337, 0
    %v8528 = vsel %vm2016, %v8345, 0
    %v8531 = vsel %vm2016, %v8353, 0
    %v8534 = vsel %vm2016, %v8361, 0
    %v8537 = vsel %vm2016, %v8369, 0
    %v8540 = vsel %vm2016, %v8377, 0
    %v8543 = vsel %vm2016, %v8385, 0
    %v8546 = vsel %vm2016, %v8388, 0
    %v8549 = vsel %vm2176, %v7700, 0
    %8551 = vmatpush.bf16.msra.mxu0 0
    %8552 = vmatpush.bf16.msra.mxu0 0
    %8553 = vmatpush.bf16.msra.mxu0 0
    %8554 = vmatpush.bf16.msra.mxu0 0
    %8555 = vmatpush.bf16.msra.mxu0 0
    %8556 = vmatpush.bf16.msra.mxu0 0
    %8557 = vmatpush.bf16.msra.mxu0 0
    %8558 = vmatpush.bf16.msra.mxu0 %v8549
    %8559 = vmatmul.bf16.gmra.mxu0 %v8390
    %v8560 = vpop.f32.mrf.mxu0
    %v8561 = vadd.f32 0.0, %v8560
    %v8562 = vpop.f32.mrf.mxu0
    %v8563 = vadd.f32 0.0, %v8562
    %8564 = vmatmul.bf16.gmra.mxu0 %v8393
    %v8565 = vpop.f32.mrf.mxu0
    %v8566 = vpop.f32.mrf.mxu0
    %v8567 = vadd.f32 0.0, %v8566
    %8568 = vmatmul.bf16.gmra.mxu0 %v8396
    %v8569 = vpop.f32.mrf.mxu0
    %v8570 = vadd.f32 0.0, %v8569
    %v8571 = vpop.f32.mrf.mxu0
    %8572 = vmatmul.bf16.gmra.mxu0 %v8399
    %v8573 = vpop.f32.mrf.mxu0
    %v8574 = vadd.f32 0.0, %v8573
    %v8575 = vpop.f32.mrf.mxu0
    %v8576 = vadd.f32 0.0, %v8575
    %8577 = vmatmul.bf16.gmra.mxu0 %v8402
    %v8578 = vpop.f32.mrf.mxu0
    %v8579 = vpop.f32.mrf.mxu0
    %v8580 = vadd.f32 0.0, %v8579
    %8581 = vmatmul.bf16.gmra.mxu0 %v8405
    %v8582 = vpop.f32.mrf.mxu0
    %v8583 = vadd.f32 0.0, %v8582
    %v8584 = vpop.f32.mrf.mxu0
    %8585 = vmatmul.bf16.gmra.mxu0 %v8408
    %v8586 = vpop.f32.mrf.mxu0
    %v8587 = vadd.f32 0.0, %v8586
    %v8588 = vpop.f32.mrf.mxu0
    %v8589 = vadd.f32 0.0, %v8588
    %8590 = vmatmul.bf16.gmra.mxu0 %v8411
    %v8591 = vpop.f32.mrf.mxu0
    %v8592 = vpop.f32.mrf.mxu0
    %v8593 = vadd.f32 0.0, %v8592
    %8594 = vmatmul.bf16.gmra.mxu0 %v8414
    %v8595 = vpop.f32.mrf.mxu0
    %v8596 = vadd.f32 0.0, %v8595
    %v8597 = vpop.f32.mrf.mxu0
    %8598 = vmatmul.bf16.gmra.mxu0 %v8417
    %v8599 = vpop.f32.mrf.mxu0
    %v8600 = vadd.f32 0.0, %v8599
    %v8601 = vpop.f32.mrf.mxu0
    %v8602 = vadd.f32 0.0, %v8601
    %8603 = vmatmul.bf16.gmra.mxu0 %v8420
    %v8604 = vpop.f32.mrf.mxu0
    %v8605 = vpop.f32.mrf.mxu0
    %v8606 = vadd.f32 0.0, %v8605
    %8607 = vmatmul.bf16.gmra.mxu0 %v8423
    %v8608 = vpop.f32.mrf.mxu0
    %v8609 = vadd.f32 0.0, %v8608
    %v8610 = vpop.f32.mrf.mxu0
    %8611 = vmatmul.bf16.gmra.mxu0 %v8426
    %v8612 = vpop.f32.mrf.mxu0
    %v8613 = vadd.f32 0.0, %v8612
    %v8614 = vpop.f32.mrf.mxu0
    %v8615 = vadd.f32 0.0, %v8614
    %8616 = vmatmul.bf16.gmra.mxu0 %v8429
    %v8617 = vpop.f32.mrf.mxu0
    %v8618 = vpop.f32.mrf.mxu0
    %v8619 = vadd.f32 0.0, %v8618
    %8620 = vmatmul.bf16.gmra.mxu0 %v8432
    %v8621 = vpop.f32.mrf.mxu0
    %v8622 = vadd.f32 0.0, %v8621
    %v8623 = vpop.f32.mrf.mxu0
    %8624 = vmatmul.bf16.gmra.mxu0 %v8435
    %v8625 = vpop.f32.mrf.mxu0
    %v8626 = vadd.f32 0.0, %v8625
    %v8627 = vpop.f32.mrf.mxu0
    %v8628 = vadd.f32 0.0, %v8627
    %8629 = vmatmul.bf16.gmra.mxu0 %v8438
    %v8630 = vpop.f32.mrf.mxu0
    %v8631 = vpop.f32.mrf.mxu0
    %v8632 = vadd.f32 0.0, %v8631
    %8633 = vmatmul.bf16.gmra.mxu0 %v8441
    %v8634 = vpop.f32.mrf.mxu0
    %v8635 = vadd.f32 0.0, %v8634
    %v8636 = vpop.f32.mrf.mxu0
    %8637 = vmatmul.bf16.gmra.mxu0 %v8444
    %v8638 = vpop.f32.mrf.mxu0
    %v8639 = vadd.f32 0.0, %v8638
    %v8640 = vpop.f32.mrf.mxu0
    %v8641 = vadd.f32 0.0, %v8640
    %8642 = vmatmul.bf16.gmra.mxu0 %v8447
    %v8643 = vpop.f32.mrf.mxu0
    %v8644 = vpop.f32.mrf.mxu0
    %v8645 = vadd.f32 0.0, %v8644
    %8646 = vmatmul.bf16.gmra.mxu0 %v8450
    %v8647 = vpop.f32.mrf.mxu0
    %v8648 = vadd.f32 0.0, %v8647
    %v8649 = vpop.f32.mrf.mxu0
    %8650 = vmatmul.bf16.gmra.mxu0 %v8453
    %v8651 = vpop.f32.mrf.mxu0
    %v8652 = vadd.f32 0.0, %v8651
    %v8653 = vpop.f32.mrf.mxu0
    %v8654 = vadd.f32 0.0, %v8653
    %8655 = vmatmul.bf16.gmra.mxu0 %v8456
    %v8656 = vpop.f32.mrf.mxu0
    %v8657 = vpop.f32.mrf.mxu0
    %v8658 = vadd.f32 0.0, %v8657
    %8659 = vmatmul.bf16.gmra.mxu0 %v8459
    %v8660 = vpop.f32.mrf.mxu0
    %v8661 = vadd.f32 0.0, %v8660
    %v8662 = vpop.f32.mrf.mxu0
    %8663 = vmatmul.bf16.gmra.mxu0 %v8462
    %v8664 = vpop.f32.mrf.mxu0
    %v8665 = vpop.f32.mrf.mxu0
    %8666 = vmatmul.bf16.gmra.mxu0 %v8465
    %v8667 = vpop.f32.mrf.mxu0
    %v8668 = vpop.f32.mrf.mxu0
    %8669 = vmatmul.bf16.gmra.mxu0 %v8468
    %v8670 = vpop.f32.mrf.mxu0
    %v8671 = vpop.f32.mrf.mxu0
    %8672 = vmatmul.bf16.gmra.mxu0 %v8471
    %v8673 = vpop.f32.mrf.mxu0
    %v8674 = vpop.f32.mrf.mxu0
    %8675 = vmatmul.bf16.gmra.mxu0 %v8474
    %v8676 = vpop.f32.mrf.mxu0
    %v8677 = vpop.f32.mrf.mxu0
    %v8678 = vadd.f32 0.0, %v8677
    %8679 = vmatmul.bf16.gmra.mxu0 %v8477
    %v8680 = vpop.f32.mrf.mxu0
    %v8681 = vadd.f32 0.0, %v8680
    %v8682 = vpop.f32.mrf.mxu0
    %8683 = vmatmul.bf16.gmra.mxu0 %v8480
    %v8684 = vpop.f32.mrf.mxu0
    %v8685 = vadd.f32 0.0, %v8684
    %v8686 = vpop.f32.mrf.mxu0
    %v8687 = vadd.f32 0.0, %v8686
    %8688 = vmatmul.bf16.gmra.mxu0 %v8483
    %v8689 = vpop.f32.mrf.mxu0
    %v8690 = vpop.f32.mrf.mxu0
    %v8691 = vadd.f32 0.0, %v8690
    %8692 = vmatmul.bf16.gmra.mxu0 %v8486
    %v8693 = vpop.f32.mrf.mxu0
    %v8694 = vadd.f32 0.0, %v8693
    %v8695 = vpop.f32.mrf.mxu0
    %8696 = vmatmul.bf16.gmra.mxu0 %v8489
    %v8697 = vpop.f32.mrf.mxu0
    %v8698 = vadd.f32 0.0, %v8697
    %v8699 = vpop.f32.mrf.mxu0
    %v8700 = vadd.f32 0.0, %v8699
    %8701 = vmatmul.bf16.gmra.mxu0 %v8492
    %v8702 = vpop.f32.mrf.mxu0
    %v8703 = vpop.f32.mrf.mxu0
    %v8704 = vadd.f32 0.0, %v8703
    %8705 = vmatmul.bf16.gmra.mxu0 %v8495
    %v8706 = vpop.f32.mrf.mxu0
    %v8707 = vadd.f32 0.0, %v8706
    %v8708 = vpop.f32.mrf.mxu0
    %8709 = vmatmul.bf16.gmra.mxu0 %v8498
    %v8710 = vpop.f32.mrf.mxu0
    %v8711 = vadd.f32 0.0, %v8710
    %v8712 = vpop.f32.mrf.mxu0
    %v8713 = vadd.f32 0.0, %v8712
    %8714 = vmatmul.bf16.gmra.mxu0 %v8501
    %v8715 = vpop.f32.mrf.mxu0
    %v8716 = vpop.f32.mrf.mxu0
    %v8717 = vadd.f32 0.0, %v8716
    %8718 = vmatmul.bf16.gmra.mxu0 %v8504
    %v8719 = vpop.f32.mrf.mxu0
    %v8720 = vadd.f32 0.0, %v8719
    %v8721 = vpop.f32.mrf.mxu0
    %8722 = vmatmul.bf16.gmra.mxu0 %v8507
    %v8723 = vpop.f32.mrf.mxu0
    %v8724 = vadd.f32 0.0, %v8723
    %v8725 = vpop.f32.mrf.mxu0
    %v8726 = vadd.f32 0.0, %v8725
    %8727 = vmatmul.bf16.gmra.mxu0 %v8510
    %v8728 = vpop.f32.mrf.mxu0
    %v8729 = vpop.f32.mrf.mxu0
    %v8730 = vadd.f32 0.0, %v8729
    %8731 = vmatmul.bf16.gmra.mxu0 %v8513
    %v8732 = vpop.f32.mrf.mxu0
    %v8733 = vadd.f32 0.0, %v8732
    %v8734 = vpop.f32.mrf.mxu0
    %8735 = vmatmul.bf16.gmra.mxu0 %v8516
    %v8736 = vpop.f32.mrf.mxu0
    %v8737 = vadd.f32 0.0, %v8736
    %v8738 = vpop.f32.mrf.mxu0
    %v8739 = vadd.f32 0.0, %v8738
    %8740 = vmatmul.bf16.gmra.mxu0 %v8519
    %v8741 = vpop.f32.mrf.mxu0
    %v8742 = vpop.f32.mrf.mxu0
    %v8743 = vadd.f32 0.0, %v8742
    %8744 = vmatmul.bf16.gmra.mxu0 %v8522
    %v8745 = vpop.f32.mrf.mxu0
    %v8746 = vadd.f32 0.0, %v8745
    %v8747 = vpop.f32.mrf.mxu0
    %8748 = vmatmul.bf16.gmra.mxu0 %v8525
    %v8749 = vpop.f32.mrf.mxu0
    %v8750 = vadd.f32 0.0, %v8749
    %v8751 = vpop.f32.mrf.mxu0
    %v8752 = vadd.f32 0.0, %v8751
    %8753 = vmatmul.bf16.gmra.mxu0 %v8528
    %v8754 = vpop.f32.mrf.mxu0
    %v8755 = vpop.f32.mrf.mxu0
    %v8756 = vadd.f32 0.0, %v8755
    %8757 = vmatmul.bf16.gmra.mxu0 %v8531
    %v8758 = vpop.f32.mrf.mxu0
    %v8759 = vadd.f32 0.0, %v8758
    %v8760 = vpop.f32.mrf.mxu0
    %8761 = vmatmul.bf16.gmra.mxu0 %v8534
    %v8762 = vpop.f32.mrf.mxu0
    %v8763 = vadd.f32 0.0, %v8762
    %v8764 = vpop.f32.mrf.mxu0
    %v8765 = vadd.f32 0.0, %v8764
    %8766 = vmatmul.bf16.gmra.mxu0 %v8537
    %v8767 = vpop.f32.mrf.mxu0
    %v8768 = vpop.f32.mrf.mxu0
    %v8769 = vadd.f32 0.0, %v8768
    %8770 = vmatmul.bf16.gmra.mxu0 %v8540
    %v8771 = vpop.f32.mrf.mxu0
    %v8772 = vadd.f32 0.0, %v8771
    %v8773 = vpop.f32.mrf.mxu0
    %8774 = vmatmul.bf16.gmra.mxu0 %v8543
    %v8775 = vpop.f32.mrf.mxu0
    %v8776 = vadd.f32 0.0, %v8775
    %v8777 = vpop.f32.mrf.mxu0
    %v8778 = vadd.f32 0.0, %v8777
    %8779 = vmatmul.bf16.gmra.mxu0 %v8546
    %v8780 = vpop.f32.mrf.mxu0
    %v8781 = vpop.f32.mrf.mxu0
    %8782 = vdwg.mxu0
    %v8783 = vpack.c.b16 %v7911, %v7911
    %v8784 = vsel %vm2016, %v7913, 0
    %v8786 = vsel %vm2016, %v7914, 0
    %v8788 = vsel %vm2016, %v7915, 0
    %v8790 = vsel %vm2016, %v7916, 0
    %v8792 = vsel %vm2016, %v7917, 0
    %v8794 = vsel %vm2016, %v7918, 0
    %v8796 = vsel %vm2016, %v7919, 0
    %v8798 = vsel %vm2016, %v7920, 0
    %v8800 = vsel %vm2016, %v7921, 0
    %v8802 = vsel %vm2016, %v7922, 0
    %v8804 = vsel %vm2016, %v7923, 0
    %v8806 = vsel %vm2016, %v7924, 0
    %v8808 = vsel %vm2016, %v7925, 0
    %v8810 = vsel %vm2016, %v7926, 0
    %v8812 = vsel %vm2016, %v7927, 0
    %v8814 = vsel %vm2016, %v7928, 0
    %v8816 = vsel %vm2016, %v7929, 0
    %v8818 = vsel %vm2016, %v7930, 0
    %v8820 = vsel %vm2016, %v7931, 0
    %v8822 = vsel %vm2016, %v7932, 0
    %v8824 = vsel %vm2016, %v7933, 0
    %v8826 = vsel %vm2016, %v7934, 0
    %v8828 = vsel %vm2016, %v7935, 0
    %v8830 = vsel %vm2016, %v7936, 0
    %v8832 = vsel %vm2016, %v7937, 0
    %v8834 = vsel %vm2016, %v7938, 0
    %v8836 = vsel %vm2016, %v7939, 0
    %v8838 = vsel %vm2016, %v7940, 0
    %v8840 = vsel %vm2016, %v7941, 0
    %v8842 = vsel %vm2016, %v7942, 0
    %v8844 = vsel %vm2016, %v7943, 0
    %v8846 = vsel %vm2016, %v7944, 0
    %v8848 = vsel %vm2016, %v7945, 0
    %v8850 = vsel %vm2016, %v7946, 0
    %v8852 = vsel %vm2016, %v7947, 0
    %v8854 = vsel %vm2016, %v7948, 0
    %v8856 = vsel %vm2016, %v7949, 0
    %v8858 = vsel %vm2016, %v7950, 0
    %v8860 = vsel %vm2016, %v7951, 0
    %v8862 = vsel %vm2016, %v7952, 0
    %v8864 = vsel %vm2016, %v7953, 0
    %v8866 = vsel %vm2016, %v7954, 0
    %v8868 = vsel %vm2016, %v7955, 0
    %v8870 = vsel %vm2016, %v7956, 0
    %v8872 = vsel %vm2016, %v7957, 0
    %v8874 = vsel %vm2016, %v7958, 0
    %v8876 = vsel %vm2016, %v7959, 0
    %v8878 = vsel %vm2016, %v7960, 0
    %v8880 = vsel %vm2016, %v7961, 0
    %v8882 = vsel %vm2016, %v7962, 0
    %v8884 = vsel %vm2016, %v7963, 0
    %v8886 = vsel %vm2016, %v7964, 0
    %v8889 = vsel %vm2016, %v8783, 0
    %v8892 = vsel %vm2176, %v7698, 0
    %8894 = vmatpush.bf16.msra.mxu0 0
    %8895 = vmatpush.bf16.msra.mxu0 0
    %8896 = vmatpush.bf16.msra.mxu0 0
    %8897 = vmatpush.bf16.msra.mxu0 0
    %8898 = vmatpush.bf16.msra.mxu0 0
    %8899 = vmatpush.bf16.msra.mxu0 0
    %8900 = vmatpush.bf16.msra.mxu0 0
    %8901 = vmatpush.bf16.msra.mxu0 %v8892
    %8902 = vmatmul.bf16.gmra.mxu0 %v8784
    %v8903 = vpop.f32.mrf.mxu0
    %v8904 = vadd.f32 %v8561, %v8903
    %v8905 = vpop.f32.mrf.mxu0
    %v8906 = vadd.f32 %v8563, %v8905
    %8907 = vmatmul.bf16.gmra.mxu0 %v8786
    %v8908 = vpop.f32.mrf.mxu0
    %v8909 = vpop.f32.mrf.mxu0
    %v8910 = vadd.f32 %v8567, %v8909
    %8911 = vmatmul.bf16.gmra.mxu0 %v8788
    %v8912 = vpop.f32.mrf.mxu0
    %v8913 = vadd.f32 %v8570, %v8912
    %v8914 = vpop.f32.mrf.mxu0
    %8915 = vmatmul.bf16.gmra.mxu0 %v8790
    %v8916 = vpop.f32.mrf.mxu0
    %v8917 = vadd.f32 %v8574, %v8916
    %v8918 = vpop.f32.mrf.mxu0
    %v8919 = vadd.f32 %v8576, %v8918
    %8920 = vmatmul.bf16.gmra.mxu0 %v8792
    %v8921 = vpop.f32.mrf.mxu0
    %v8922 = vpop.f32.mrf.mxu0
    %v8923 = vadd.f32 %v8580, %v8922
    %8924 = vmatmul.bf16.gmra.mxu0 %v8794
    %v8925 = vpop.f32.mrf.mxu0
    %v8926 = vadd.f32 %v8583, %v8925
    %v8927 = vpop.f32.mrf.mxu0
    %8928 = vmatmul.bf16.gmra.mxu0 %v8796
    %v8929 = vpop.f32.mrf.mxu0
    %v8930 = vadd.f32 %v8587, %v8929
    %v8931 = vpop.f32.mrf.mxu0
    %v8932 = vadd.f32 %v8589, %v8931
    %8933 = vmatmul.bf16.gmra.mxu0 %v8798
    %v8934 = vpop.f32.mrf.mxu0
    %v8935 = vpop.f32.mrf.mxu0
    %v8936 = vadd.f32 %v8593, %v8935
    %8937 = vmatmul.bf16.gmra.mxu0 %v8800
    %v8938 = vpop.f32.mrf.mxu0
    %v8939 = vadd.f32 %v8596, %v8938
    %v8940 = vpop.f32.mrf.mxu0
    %8941 = vmatmul.bf16.gmra.mxu0 %v8802
    %v8942 = vpop.f32.mrf.mxu0
    %v8943 = vadd.f32 %v8600, %v8942
    %v8944 = vpop.f32.mrf.mxu0
    %v8945 = vadd.f32 %v8602, %v8944
    %8946 = vmatmul.bf16.gmra.mxu0 %v8804
    %v8947 = vpop.f32.mrf.mxu0
    %v8948 = vpop.f32.mrf.mxu0
    %v8949 = vadd.f32 %v8606, %v8948
    %8950 = vmatmul.bf16.gmra.mxu0 %v8806
    %v8951 = vpop.f32.mrf.mxu0
    %v8952 = vadd.f32 %v8609, %v8951
    %v8953 = vpop.f32.mrf.mxu0
    %8954 = vmatmul.bf16.gmra.mxu0 %v8808
    %v8955 = vpop.f32.mrf.mxu0
    %v8956 = vadd.f32 %v8613, %v8955
    %v8957 = vpop.f32.mrf.mxu0
    %v8958 = vadd.f32 %v8615, %v8957
    %8959 = vmatmul.bf16.gmra.mxu0 %v8810
    %v8960 = vpop.f32.mrf.mxu0
    %v8961 = vpop.f32.mrf.mxu0
    %v8962 = vadd.f32 %v8619, %v8961
    %8963 = vmatmul.bf16.gmra.mxu0 %v8812
    %v8964 = vpop.f32.mrf.mxu0
    %v8965 = vadd.f32 %v8622, %v8964
    %v8966 = vpop.f32.mrf.mxu0
    %8967 = vmatmul.bf16.gmra.mxu0 %v8814
    %v8968 = vpop.f32.mrf.mxu0
    %v8969 = vadd.f32 %v8626, %v8968
    %v8970 = vpop.f32.mrf.mxu0
    %v8971 = vadd.f32 %v8628, %v8970
    %8972 = vmatmul.bf16.gmra.mxu0 %v8816
    %v8973 = vpop.f32.mrf.mxu0
    %v8974 = vpop.f32.mrf.mxu0
    %v8975 = vadd.f32 %v8632, %v8974
    %8976 = vmatmul.bf16.gmra.mxu0 %v8818
    %v8977 = vpop.f32.mrf.mxu0
    %v8978 = vadd.f32 %v8635, %v8977
    %v8979 = vpop.f32.mrf.mxu0
    %8980 = vmatmul.bf16.gmra.mxu0 %v8820
    %v8981 = vpop.f32.mrf.mxu0
    %v8982 = vadd.f32 %v8639, %v8981
    %v8983 = vpop.f32.mrf.mxu0
    %v8984 = vadd.f32 %v8641, %v8983
    %8985 = vmatmul.bf16.gmra.mxu0 %v8822
    %v8986 = vpop.f32.mrf.mxu0
    %v8987 = vpop.f32.mrf.mxu0
    %v8988 = vadd.f32 %v8645, %v8987
    %8989 = vmatmul.bf16.gmra.mxu0 %v8824
    %v8990 = vpop.f32.mrf.mxu0
    %v8991 = vadd.f32 %v8648, %v8990
    %v8992 = vpop.f32.mrf.mxu0
    %8993 = vmatmul.bf16.gmra.mxu0 %v8826
    %v8994 = vpop.f32.mrf.mxu0
    %v8995 = vadd.f32 %v8652, %v8994
    %v8996 = vpop.f32.mrf.mxu0
    %v8997 = vadd.f32 %v8654, %v8996
    %8998 = vmatmul.bf16.gmra.mxu0 %v8828
    %v8999 = vpop.f32.mrf.mxu0
    %v9000 = vpop.f32.mrf.mxu0
    %v9001 = vadd.f32 %v8658, %v9000
    %9002 = vmatmul.bf16.gmra.mxu0 %v8830
    %v9003 = vpop.f32.mrf.mxu0
    %v9004 = vadd.f32 %v8661, %v9003
    %v9005 = vpop.f32.mrf.mxu0
    %9006 = vmatmul.bf16.gmra.mxu0 %v8832
    %v9007 = vpop.f32.mrf.mxu0
    %v9008 = vpop.f32.mrf.mxu0
    %9009 = vmatmul.bf16.gmra.mxu0 %v8834
    %v9010 = vpop.f32.mrf.mxu0
    %v9011 = vpop.f32.mrf.mxu0
    %9012 = vmatmul.bf16.gmra.mxu0 %v8836
    %v9013 = vpop.f32.mrf.mxu0
    %v9014 = vpop.f32.mrf.mxu0
    %9015 = vmatmul.bf16.gmra.mxu0 %v8838
    %v9016 = vpop.f32.mrf.mxu0
    %v9017 = vpop.f32.mrf.mxu0
    %9018 = vmatmul.bf16.gmra.mxu0 %v8840
    %v9019 = vpop.f32.mrf.mxu0
    %v9020 = vpop.f32.mrf.mxu0
    %v9021 = vadd.f32 %v8678, %v9020
    %9022 = vmatmul.bf16.gmra.mxu0 %v8842
    %v9023 = vpop.f32.mrf.mxu0
    %v9024 = vadd.f32 %v8681, %v9023
    %v9025 = vpop.f32.mrf.mxu0
    %9026 = vmatmul.bf16.gmra.mxu0 %v8844
    %v9027 = vpop.f32.mrf.mxu0
    %v9028 = vadd.f32 %v8685, %v9027
    %v9029 = vpop.f32.mrf.mxu0
    %v9030 = vadd.f32 %v8687, %v9029
    %9031 = vmatmul.bf16.gmra.mxu0 %v8846
    %v9032 = vpop.f32.mrf.mxu0
    %v9033 = vpop.f32.mrf.mxu0
    %v9034 = vadd.f32 %v8691, %v9033
    %9035 = vmatmul.bf16.gmra.mxu0 %v8848
    %v9036 = vpop.f32.mrf.mxu0
    %v9037 = vadd.f32 %v8694, %v9036
    %v9038 = vpop.f32.mrf.mxu0
    %9039 = vmatmul.bf16.gmra.mxu0 %v8850
    %v9040 = vpop.f32.mrf.mxu0
    %v9041 = vadd.f32 %v8698, %v9040
    %v9042 = vpop.f32.mrf.mxu0
    %v9043 = vadd.f32 %v8700, %v9042
    %9044 = vmatmul.bf16.gmra.mxu0 %v8852
    %v9045 = vpop.f32.mrf.mxu0
    %v9046 = vpop.f32.mrf.mxu0
    %v9047 = vadd.f32 %v8704, %v9046
    %9048 = vmatmul.bf16.gmra.mxu0 %v8854
    %v9049 = vpop.f32.mrf.mxu0
    %v9050 = vadd.f32 %v8707, %v9049
    %v9051 = vpop.f32.mrf.mxu0
    %9052 = vmatmul.bf16.gmra.mxu0 %v8856
    %v9053 = vpop.f32.mrf.mxu0
    %v9054 = vadd.f32 %v8711, %v9053
    %v9055 = vpop.f32.mrf.mxu0
    %v9056 = vadd.f32 %v8713, %v9055
    %9057 = vmatmul.bf16.gmra.mxu0 %v8858
    %v9058 = vpop.f32.mrf.mxu0
    %v9059 = vpop.f32.mrf.mxu0
    %v9060 = vadd.f32 %v8717, %v9059
    %9061 = vmatmul.bf16.gmra.mxu0 %v8860
    %v9062 = vpop.f32.mrf.mxu0
    %v9063 = vadd.f32 %v8720, %v9062
    %v9064 = vpop.f32.mrf.mxu0
    %9065 = vmatmul.bf16.gmra.mxu0 %v8862
    %v9066 = vpop.f32.mrf.mxu0
    %v9067 = vadd.f32 %v8724, %v9066
    %v9068 = vpop.f32.mrf.mxu0
    %v9069 = vadd.f32 %v8726, %v9068
    %9070 = vmatmul.bf16.gmra.mxu0 %v8864
    %v9071 = vpop.f32.mrf.mxu0
    %v9072 = vpop.f32.mrf.mxu0
    %v9073 = vadd.f32 %v8730, %v9072
    %9074 = vmatmul.bf16.gmra.mxu0 %v8866
    %v9075 = vpop.f32.mrf.mxu0
    %v9076 = vadd.f32 %v8733, %v9075
    %v9077 = vpop.f32.mrf.mxu0
    %9078 = vmatmul.bf16.gmra.mxu0 %v8868
    %v9079 = vpop.f32.mrf.mxu0
    %v9080 = vadd.f32 %v8737, %v9079
    %v9081 = vpop.f32.mrf.mxu0
    %v9082 = vadd.f32 %v8739, %v9081
    %9083 = vmatmul.bf16.gmra.mxu0 %v8870
    %v9084 = vpop.f32.mrf.mxu0
    %v9085 = vpop.f32.mrf.mxu0
    %v9086 = vadd.f32 %v8743, %v9085
    %9087 = vmatmul.bf16.gmra.mxu0 %v8872
    %v9088 = vpop.f32.mrf.mxu0
    %v9089 = vadd.f32 %v8746, %v9088
    %v9090 = vpop.f32.mrf.mxu0
    %9091 = vmatmul.bf16.gmra.mxu0 %v8874
    %v9092 = vpop.f32.mrf.mxu0
    %v9093 = vadd.f32 %v8750, %v9092
    %v9094 = vpop.f32.mrf.mxu0
    %v9095 = vadd.f32 %v8752, %v9094
    %9096 = vmatmul.bf16.gmra.mxu0 %v8876
    %v9097 = vpop.f32.mrf.mxu0
    %v9098 = vpop.f32.mrf.mxu0
    %v9099 = vadd.f32 %v8756, %v9098
    %9100 = vmatmul.bf16.gmra.mxu0 %v8878
    %v9101 = vpop.f32.mrf.mxu0
    %v9102 = vadd.f32 %v8759, %v9101
    %v9103 = vpop.f32.mrf.mxu0
    %9104 = vmatmul.bf16.gmra.mxu0 %v8880
    %v9105 = vpop.f32.mrf.mxu0
    %v9106 = vadd.f32 %v8763, %v9105
    %v9107 = vpop.f32.mrf.mxu0
    %v9108 = vadd.f32 %v8765, %v9107
    %9109 = vmatmul.bf16.gmra.mxu0 %v8882
    %v9110 = vpop.f32.mrf.mxu0
    %v9111 = vpop.f32.mrf.mxu0
    %v9112 = vadd.f32 %v8769, %v9111
    %9113 = vmatmul.bf16.gmra.mxu0 %v8884
    %v9114 = vpop.f32.mrf.mxu0
    %v9115 = vadd.f32 %v8772, %v9114
    %v9116 = vpop.f32.mrf.mxu0
    %9117 = vmatmul.bf16.gmra.mxu0 %v8886
    %v9118 = vpop.f32.mrf.mxu0
    %v9119 = vadd.f32 %v8776, %v9118
    %v9120 = vpop.f32.mrf.mxu0
    %v9121 = vadd.f32 %v8778, %v9120
    %9122 = vmatmul.bf16.gmra.mxu0 %v8889
    %v9123 = vpop.f32.mrf.mxu0
    %v9124 = vpop.f32.mrf.mxu0
    %9125 = vdwg.mxu0
    %s9126 = scalar_lea.vmem %s2, 8
    %v9127 = vld [vmem:[%s9126] sm:$0xf]
    %v9128 = vrot.slane %v7913, 1
    %v9129 = vrot.slane %v7914, 1
    %v9130 = vsel %vm2757, %v9128, %v9129
    %v9131 = vrot.slane %v7915, 1
    %v9132 = vsel %vm2757, %v9129, %v9131
    %v9133 = vrot.slane %v7916, 1
    %v9134 = vsel %vm2757, %v9131, %v9133
    %v9135 = vrot.slane %v7917, 1
    %v9136 = vsel %vm2757, %v9133, %v9135
    %v9137 = vrot.slane %v7918, 1
    %v9138 = vsel %vm2757, %v9135, %v9137
    %v9139 = vrot.slane %v7919, 1
    %v9140 = vsel %vm2757, %v9137, %v9139
    %v9141 = vrot.slane %v7920, 1
    %v9142 = vsel %vm2757, %v9139, %v9141
    %v9143 = vrot.slane %v7921, 1
    %v9144 = vsel %vm2757, %v9141, %v9143
    %v9145 = vrot.slane %v7922, 1
    %v9146 = vsel %vm2757, %v9143, %v9145
    %v9147 = vrot.slane %v7923, 1
    %v9148 = vsel %vm2757, %v9145, %v9147
    %v9149 = vrot.slane %v7924, 1
    %v9150 = vsel %vm2757, %v9147, %v9149
    %v9151 = vrot.slane %v7925, 1
    %v9152 = vsel %vm2757, %v9149, %v9151
    %v9153 = vrot.slane %v7926, 1
    %v9154 = vsel %vm2757, %v9151, %v9153
    %v9155 = vrot.slane %v7927, 1
    %v9156 = vsel %vm2757, %v9153, %v9155
    %v9157 = vrot.slane %v7928, 1
    %v9158 = vsel %vm2757, %v9155, %v9157
    %v9159 = vrot.slane %v7929, 1
    %v9160 = vsel %vm2757, %v9157, %v9159
    %v9161 = vrot.slane %v7930, 1
    %v9162 = vsel %vm2757, %v9159, %v9161
    %v9163 = vrot.slane %v7931, 1
    %v9164 = vsel %vm2757, %v9161, %v9163
    %v9165 = vrot.slane %v7932, 1
    %v9166 = vsel %vm2757, %v9163, %v9165
    %v9167 = vrot.slane %v7933, 1
    %v9168 = vsel %vm2757, %v9165, %v9167
    %v9169 = vrot.slane %v7934, 1
    %v9170 = vsel %vm2757, %v9167, %v9169
    %v9171 = vrot.slane %v7935, 1
    %v9172 = vsel %vm2757, %v9169, %v9171
    %v9173 = vrot.slane %v7936, 1
    %v9174 = vsel %vm2757, %v9171, %v9173
    %v9175 = vrot.slane %v7937, 1
    %v9176 = vsel %vm2757, %v9173, %v9175
    %v9177 = vrot.slane %v7938, 1
    %v9178 = vsel %vm2757, %v9175, %v9177
    %v9179 = vrot.slane %v7939, 1
    %v9180 = vsel %vm2757, %v9177, %v9179
    %v9181 = vrot.slane %v7940, 1
    %v9182 = vsel %vm2757, %v9179, %v9181
    %v9183 = vrot.slane %v7941, 1
    %v9184 = vsel %vm2757, %v9181, %v9183
    %v9185 = vrot.slane %v7942, 1
    %v9186 = vsel %vm2757, %v9183, %v9185
    %v9187 = vrot.slane %v7943, 1
    %v9188 = vsel %vm2757, %v9185, %v9187
    %v9189 = vrot.slane %v7944, 1
    %v9190 = vsel %vm2757, %v9187, %v9189
    %v9191 = vrot.slane %v7945, 1
    %v9192 = vsel %vm2757, %v9189, %v9191
    %v9193 = vrot.slane %v7946, 1
    %v9194 = vsel %vm2757, %v9191, %v9193
    %v9195 = vrot.slane %v7947, 1
    %v9196 = vsel %vm2757, %v9193, %v9195
    %v9197 = vrot.slane %v7948, 1
    %v9198 = vsel %vm2757, %v9195, %v9197
    %v9199 = vrot.slane %v7949, 1
    %v9200 = vsel %vm2757, %v9197, %v9199
    %v9201 = vrot.slane %v7950, 1
    %v9202 = vsel %vm2757, %v9199, %v9201
    %v9203 = vrot.slane %v7951, 1
    %v9204 = vsel %vm2757, %v9201, %v9203
    %v9205 = vrot.slane %v7952, 1
    %v9206 = vsel %vm2757, %v9203, %v9205
    %v9207 = vrot.slane %v7953, 1
    %v9208 = vsel %vm2757, %v9205, %v9207
    %v9209 = vrot.slane %v7954, 1
    %v9210 = vsel %vm2757, %v9207, %v9209
    %v9211 = vrot.slane %v7955, 1
    %v9212 = vsel %vm2757, %v9209, %v9211
    %v9213 = vrot.slane %v7956, 1
    %v9214 = vsel %vm2757, %v9211, %v9213
    %v9215 = vrot.slane %v7957, 1
    %v9216 = vsel %vm2757, %v9213, %v9215
    %v9217 = vrot.slane %v7958, 1
    %v9218 = vsel %vm2757, %v9215, %v9217
    %v9219 = vrot.slane %v7959, 1
    %v9220 = vsel %vm2757, %v9217, %v9219
    %v9221 = vrot.slane %v7960, 1
    %v9222 = vsel %vm2757, %v9219, %v9221
    %v9223 = vrot.slane %v7961, 1
    %v9224 = vsel %vm2757, %v9221, %v9223
    %v9225 = vrot.slane %v7962, 1
    %v9226 = vsel %vm2757, %v9223, %v9225
    %v9227 = vrot.slane %v7963, 1
    %v9228 = vsel %vm2757, %v9225, %v9227
    %v9229 = vrot.slane %v7964, 1
    %v9230 = vsel %vm2757, %v9227, %v9229
    %v9231 = vrot.slane %v7965, 1
    %v9232 = vsel %vm2757, %v9229, %v9231
    %v9234 = vsel %vm2016, %v9130, 0
    %v9237 = vsel %vm2016, %v9132, 0
    %v9240 = vsel %vm2016, %v9134, 0
    %v9243 = vsel %vm2016, %v9136, 0
    %v9246 = vsel %vm2016, %v9138, 0
    %v9249 = vsel %vm2016, %v9140, 0
    %v9252 = vsel %vm2016, %v9142, 0
    %v9255 = vsel %vm2016, %v9144, 0
    %v9258 = vsel %vm2016, %v9146, 0
    %v9261 = vsel %vm2016, %v9148, 0
    %v9264 = vsel %vm2016, %v9150, 0
    %v9267 = vsel %vm2016, %v9152, 0
    %v9270 = vsel %vm2016, %v9154, 0
    %v9273 = vsel %vm2016, %v9156, 0
    %v9276 = vsel %vm2016, %v9158, 0
    %v9279 = vsel %vm2016, %v9160, 0
    %v9282 = vsel %vm2016, %v9162, 0
    %v9285 = vsel %vm2016, %v9164, 0
    %v9288 = vsel %vm2016, %v9166, 0
    %v9291 = vsel %vm2016, %v9168, 0
    %v9294 = vsel %vm2016, %v9170, 0
    %v9297 = vsel %vm2016, %v9172, 0
    %v9300 = vsel %vm2016, %v9174, 0
    %v9303 = vsel %vm2016, %v9176, 0
    %v9306 = vsel %vm2016, %v9178, 0
    %v9309 = vsel %vm2016, %v9180, 0
    %v9312 = vsel %vm2016, %v9182, 0
    %v9315 = vsel %vm2016, %v9184, 0
    %v9318 = vsel %vm2016, %v9186, 0
    %v9321 = vsel %vm2016, %v9188, 0
    %v9324 = vsel %vm2016, %v9190, 0
    %v9327 = vsel %vm2016, %v9192, 0
    %v9330 = vsel %vm2016, %v9194, 0
    %v9333 = vsel %vm2016, %v9196, 0
    %v9336 = vsel %vm2016, %v9198, 0
    %v9339 = vsel %vm2016, %v9200, 0
    %v9342 = vsel %vm2016, %v9202, 0
    %v9345 = vsel %vm2016, %v9204, 0
    %v9348 = vsel %vm2016, %v9206, 0
    %v9351 = vsel %vm2016, %v9208, 0
    %v9354 = vsel %vm2016, %v9210, 0
    %v9357 = vsel %vm2016, %v9212, 0
    %v9360 = vsel %vm2016, %v9214, 0
    %v9363 = vsel %vm2016, %v9216, 0
    %v9366 = vsel %vm2016, %v9218, 0
    %v9369 = vsel %vm2016, %v9220, 0
    %v9372 = vsel %vm2016, %v9222, 0
    %v9375 = vsel %vm2016, %v9224, 0
    %v9378 = vsel %vm2016, %v9226, 0
    %v9381 = vsel %vm2016, %v9228, 0
    %v9384 = vsel %vm2016, %v9230, 0
    %v9387 = vsel %vm2016, %v9232, 0
    %v9390 = vsel %vm2016, %v9231, 0
    %v9393 = vsel %vm2176, %v9127, 0
    %9395 = vmatpush.bf16.msra.mxu0 0
    %9396 = vmatpush.bf16.msra.mxu0 0
    %9397 = vmatpush.bf16.msra.mxu0 0
    %9398 = vmatpush.bf16.msra.mxu0 0
    %9399 = vmatpush.bf16.msra.mxu0 0
    %9400 = vmatpush.bf16.msra.mxu0 0
    %9401 = vmatpush.bf16.msra.mxu0 0
    %9402 = vmatpush.bf16.msra.mxu0 %v9393
    %9403 = vmatmul.bf16.gmra.mxu0 %v9234
    %v9404 = vpop.f32.mrf.mxu0
    %v9405 = vadd.f32 0.0, %v9404
    %v9406 = vpop.f32.mrf.mxu0
    %v9407 = vadd.f32 0.0, %v9406
    %9408 = vmatmul.bf16.gmra.mxu0 %v9237
    %v9409 = vpop.f32.mrf.mxu0
    %v9410 = vpop.f32.mrf.mxu0
    %v9411 = vadd.f32 0.0, %v9410
    %9412 = vmatmul.bf16.gmra.mxu0 %v9240
    %v9413 = vpop.f32.mrf.mxu0
    %v9414 = vadd.f32 0.0, %v9413
    %v9415 = vpop.f32.mrf.mxu0
    %9416 = vmatmul.bf16.gmra.mxu0 %v9243
    %v9417 = vpop.f32.mrf.mxu0
    %v9418 = vadd.f32 0.0, %v9417
    %v9419 = vpop.f32.mrf.mxu0
    %v9420 = vadd.f32 0.0, %v9419
    %9421 = vmatmul.bf16.gmra.mxu0 %v9246
    %v9422 = vpop.f32.mrf.mxu0
    %v9423 = vpop.f32.mrf.mxu0
    %v9424 = vadd.f32 0.0, %v9423
    %9425 = vmatmul.bf16.gmra.mxu0 %v9249
    %v9426 = vpop.f32.mrf.mxu0
    %v9427 = vadd.f32 0.0, %v9426
    %v9428 = vpop.f32.mrf.mxu0
    %9429 = vmatmul.bf16.gmra.mxu0 %v9252
    %v9430 = vpop.f32.mrf.mxu0
    %v9431 = vadd.f32 0.0, %v9430
    %v9432 = vpop.f32.mrf.mxu0
    %v9433 = vadd.f32 0.0, %v9432
    %9434 = vmatmul.bf16.gmra.mxu0 %v9255
    %v9435 = vpop.f32.mrf.mxu0
    %v9436 = vpop.f32.mrf.mxu0
    %v9437 = vadd.f32 0.0, %v9436
    %9438 = vmatmul.bf16.gmra.mxu0 %v9258
    %v9439 = vpop.f32.mrf.mxu0
    %v9440 = vadd.f32 0.0, %v9439
    %v9441 = vpop.f32.mrf.mxu0
    %9442 = vmatmul.bf16.gmra.mxu0 %v9261
    %v9443 = vpop.f32.mrf.mxu0
    %v9444 = vadd.f32 0.0, %v9443
    %v9445 = vpop.f32.mrf.mxu0
    %v9446 = vadd.f32 0.0, %v9445
    %9447 = vmatmul.bf16.gmra.mxu0 %v9264
    %v9448 = vpop.f32.mrf.mxu0
    %v9449 = vpop.f32.mrf.mxu0
    %v9450 = vadd.f32 0.0, %v9449
    %9451 = vmatmul.bf16.gmra.mxu0 %v9267
    %v9452 = vpop.f32.mrf.mxu0
    %v9453 = vadd.f32 0.0, %v9452
    %v9454 = vpop.f32.mrf.mxu0
    %9455 = vmatmul.bf16.gmra.mxu0 %v9270
    %v9456 = vpop.f32.mrf.mxu0
    %v9457 = vadd.f32 0.0, %v9456
    %v9458 = vpop.f32.mrf.mxu0
    %v9459 = vadd.f32 0.0, %v9458
    %9460 = vmatmul.bf16.gmra.mxu0 %v9273
    %v9461 = vpop.f32.mrf.mxu0
    %v9462 = vpop.f32.mrf.mxu0
    %v9463 = vadd.f32 0.0, %v9462
    %9464 = vmatmul.bf16.gmra.mxu0 %v9276
    %v9465 = vpop.f32.mrf.mxu0
    %v9466 = vadd.f32 0.0, %v9465
    %v9467 = vpop.f32.mrf.mxu0
    %9468 = vmatmul.bf16.gmra.mxu0 %v9279
    %v9469 = vpop.f32.mrf.mxu0
    %v9470 = vadd.f32 0.0, %v9469
    %v9471 = vpop.f32.mrf.mxu0
    %v9472 = vadd.f32 0.0, %v9471
    %9473 = vmatmul.bf16.gmra.mxu0 %v9282
    %v9474 = vpop.f32.mrf.mxu0
    %v9475 = vpop.f32.mrf.mxu0
    %v9476 = vadd.f32 0.0, %v9475
    %9477 = vmatmul.bf16.gmra.mxu0 %v9285
    %v9478 = vpop.f32.mrf.mxu0
    %v9479 = vadd.f32 0.0, %v9478
    %v9480 = vpop.f32.mrf.mxu0
    %9481 = vmatmul.bf16.gmra.mxu0 %v9288
    %v9482 = vpop.f32.mrf.mxu0
    %v9483 = vadd.f32 0.0, %v9482
    %v9484 = vpop.f32.mrf.mxu0
    %v9485 = vadd.f32 0.0, %v9484
    %9486 = vmatmul.bf16.gmra.mxu0 %v9291
    %v9487 = vpop.f32.mrf.mxu0
    %v9488 = vpop.f32.mrf.mxu0
    %v9489 = vadd.f32 0.0, %v9488
    %9490 = vmatmul.bf16.gmra.mxu0 %v9294
    %v9491 = vpop.f32.mrf.mxu0
    %v9492 = vadd.f32 0.0, %v9491
    %v9493 = vpop.f32.mrf.mxu0
    %9494 = vmatmul.bf16.gmra.mxu0 %v9297
    %v9495 = vpop.f32.mrf.mxu0
    %v9496 = vadd.f32 0.0, %v9495
    %v9497 = vpop.f32.mrf.mxu0
    %v9498 = vadd.f32 0.0, %v9497
    %9499 = vmatmul.bf16.gmra.mxu0 %v9300
    %v9500 = vpop.f32.mrf.mxu0
    %v9501 = vpop.f32.mrf.mxu0
    %v9502 = vadd.f32 0.0, %v9501
    %9503 = vmatmul.bf16.gmra.mxu0 %v9303
    %v9504 = vpop.f32.mrf.mxu0
    %v9505 = vadd.f32 0.0, %v9504
    %v9506 = vpop.f32.mrf.mxu0
    %9507 = vmatmul.bf16.gmra.mxu0 %v9306
    %v9508 = vpop.f32.mrf.mxu0
    %v9509 = vpop.f32.mrf.mxu0
    %9510 = vmatmul.bf16.gmra.mxu0 %v9309
    %v9511 = vpop.f32.mrf.mxu0
    %v9512 = vpop.f32.mrf.mxu0
    %9513 = vmatmul.bf16.gmra.mxu0 %v9312
    %v9514 = vpop.f32.mrf.mxu0
    %v9515 = vpop.f32.mrf.mxu0
    %9516 = vmatmul.bf16.gmra.mxu0 %v9315
    %v9517 = vpop.f32.mrf.mxu0
    %v9518 = vpop.f32.mrf.mxu0
    %9519 = vmatmul.bf16.gmra.mxu0 %v9318
    %v9520 = vpop.f32.mrf.mxu0
    %v9521 = vpop.f32.mrf.mxu0
    %v9522 = vadd.f32 0.0, %v9521
    %9523 = vmatmul.bf16.gmra.mxu0 %v9321
    %v9524 = vpop.f32.mrf.mxu0
    %v9525 = vadd.f32 0.0, %v9524
    %v9526 = vpop.f32.mrf.mxu0
    %9527 = vmatmul.bf16.gmra.mxu0 %v9324
    %v9528 = vpop.f32.mrf.mxu0
    %v9529 = vadd.f32 0.0, %v9528
    %v9530 = vpop.f32.mrf.mxu0
    %v9531 = vadd.f32 0.0, %v9530
    %9532 = vmatmul.bf16.gmra.mxu0 %v9327
    %v9533 = vpop.f32.mrf.mxu0
    %v9534 = vpop.f32.mrf.mxu0
    %v9535 = vadd.f32 0.0, %v9534
    %9536 = vmatmul.bf16.gmra.mxu0 %v9330
    %v9537 = vpop.f32.mrf.mxu0
    %v9538 = vadd.f32 0.0, %v9537
    %v9539 = vpop.f32.mrf.mxu0
    %9540 = vmatmul.bf16.gmra.mxu0 %v9333
    %v9541 = vpop.f32.mrf.mxu0
    %v9542 = vadd.f32 0.0, %v9541
    %v9543 = vpop.f32.mrf.mxu0
    %v9544 = vadd.f32 0.0, %v9543
    %9545 = vmatmul.bf16.gmra.mxu0 %v9336
    %v9546 = vpop.f32.mrf.mxu0
    %v9547 = vpop.f32.mrf.mxu0
    %v9548 = vadd.f32 0.0, %v9547
    %9549 = vmatmul.bf16.gmra.mxu0 %v9339
    %v9550 = vpop.f32.mrf.mxu0
    %v9551 = vadd.f32 0.0, %v9550
    %v9552 = vpop.f32.mrf.mxu0
    %9553 = vmatmul.bf16.gmra.mxu0 %v9342
    %v9554 = vpop.f32.mrf.mxu0
    %v9555 = vadd.f32 0.0, %v9554
    %v9556 = vpop.f32.mrf.mxu0
    %v9557 = vadd.f32 0.0, %v9556
    %9558 = vmatmul.bf16.gmra.mxu0 %v9345
    %v9559 = vpop.f32.mrf.mxu0
    %v9560 = vpop.f32.mrf.mxu0
    %v9561 = vadd.f32 0.0, %v9560
    %9562 = vmatmul.bf16.gmra.mxu0 %v9348
    %v9563 = vpop.f32.mrf.mxu0
    %v9564 = vadd.f32 0.0, %v9563
    %v9565 = vpop.f32.mrf.mxu0
    %9566 = vmatmul.bf16.gmra.mxu0 %v9351
    %v9567 = vpop.f32.mrf.mxu0
    %v9568 = vadd.f32 0.0, %v9567
    %v9569 = vpop.f32.mrf.mxu0
    %v9570 = vadd.f32 0.0, %v9569
    %9571 = vmatmul.bf16.gmra.mxu0 %v9354
    %v9572 = vpop.f32.mrf.mxu0
    %v9573 = vpop.f32.mrf.mxu0
    %v9574 = vadd.f32 0.0, %v9573
    %9575 = vmatmul.bf16.gmra.mxu0 %v9357
    %v9576 = vpop.f32.mrf.mxu0
    %v9577 = vadd.f32 0.0, %v9576
    %v9578 = vpop.f32.mrf.mxu0
    %9579 = vmatmul.bf16.gmra.mxu0 %v9360
    %v9580 = vpop.f32.mrf.mxu0
    %v9581 = vadd.f32 0.0, %v9580
    %v9582 = vpop.f32.mrf.mxu0
    %v9583 = vadd.f32 0.0, %v9582
    %9584 = vmatmul.bf16.gmra.mxu0 %v9363
    %v9585 = vpop.f32.mrf.mxu0
    %v9586 = vpop.f32.mrf.mxu0
    %v9587 = vadd.f32 0.0, %v9586
    %9588 = vmatmul.bf16.gmra.mxu0 %v9366
    %v9589 = vpop.f32.mrf.mxu0
    %v9590 = vadd.f32 0.0, %v9589
    %v9591 = vpop.f32.mrf.mxu0
    %9592 = vmatmul.bf16.gmra.mxu0 %v9369
    %v9593 = vpop.f32.mrf.mxu0
    %v9594 = vadd.f32 0.0, %v9593
    %v9595 = vpop.f32.mrf.mxu0
    %v9596 = vadd.f32 0.0, %v9595
    %9597 = vmatmul.bf16.gmra.mxu0 %v9372
    %v9598 = vpop.f32.mrf.mxu0
    %v9599 = vpop.f32.mrf.mxu0
    %v9600 = vadd.f32 0.0, %v9599
    %9601 = vmatmul.bf16.gmra.mxu0 %v9375
    %v9602 = vpop.f32.mrf.mxu0
    %v9603 = vadd.f32 0.0, %v9602
    %v9604 = vpop.f32.mrf.mxu0
    %9605 = vmatmul.bf16.gmra.mxu0 %v9378
    %v9606 = vpop.f32.mrf.mxu0
    %v9607 = vadd.f32 0.0, %v9606
    %v9608 = vpop.f32.mrf.mxu0
    %v9609 = vadd.f32 0.0, %v9608
    %9610 = vmatmul.bf16.gmra.mxu0 %v9381
    %v9611 = vpop.f32.mrf.mxu0
    %v9612 = vpop.f32.mrf.mxu0
    %v9613 = vadd.f32 0.0, %v9612
    %9614 = vmatmul.bf16.gmra.mxu0 %v9384
    %v9615 = vpop.f32.mrf.mxu0
    %v9616 = vadd.f32 0.0, %v9615
    %v9617 = vpop.f32.mrf.mxu0
    %9618 = vmatmul.bf16.gmra.mxu0 %v9387
    %v9619 = vpop.f32.mrf.mxu0
    %v9620 = vadd.f32 0.0, %v9619
    %v9621 = vpop.f32.mrf.mxu0
    %v9622 = vadd.f32 0.0, %v9621
    %9623 = vmatmul.bf16.gmra.mxu0 %v9390
    %v9624 = vpop.f32.mrf.mxu0
    %v9625 = vpop.f32.mrf.mxu0
    %9626 = vdwg.mxu0
    %v9627 = vadd.f32 %v8904, %v9405
    %v9628 = vadd.f32 %v8906, %v9407
    %v9629 = vadd.f32 %v8910, %v9411
    %v9630 = vadd.f32 %v8913, %v9414
    %v9631 = vadd.f32 %v8917, %v9418
    %v9632 = vadd.f32 %v8919, %v9420
    %v9633 = vadd.f32 %v8923, %v9424
    %v9634 = vadd.f32 %v8926, %v9427
    %v9635 = vadd.f32 %v8930, %v9431
    %v9636 = vadd.f32 %v8932, %v9433
    %v9637 = vadd.f32 %v8936, %v9437
    %v9638 = vadd.f32 %v8939, %v9440
    %v9639 = vadd.f32 %v8943, %v9444
    %v9640 = vadd.f32 %v8945, %v9446
    %v9641 = vadd.f32 %v8949, %v9450
    %v9642 = vadd.f32 %v8952, %v9453
    %v9643 = vadd.f32 %v8956, %v9457
    %v9644 = vadd.f32 %v8958, %v9459
    %v9645 = vadd.f32 %v8962, %v9463
    %v9646 = vadd.f32 %v8965, %v9466
    %v9647 = vadd.f32 %v8969, %v9470
    %v9648 = vadd.f32 %v8971, %v9472
    %v9649 = vadd.f32 %v8975, %v9476
    %v9650 = vadd.f32 %v8978, %v9479
    %v9651 = vadd.f32 %v8982, %v9483
    %v9652 = vadd.f32 %v8984, %v9485
    %v9653 = vadd.f32 %v8988, %v9489
    %v9654 = vadd.f32 %v8991, %v9492
    %v9655 = vadd.f32 %v8995, %v9496
    %v9656 = vadd.f32 %v8997, %v9498
    %v9657 = vadd.f32 %v9001, %v9502
    %v9658 = vadd.f32 %v9004, %v9505
    %v9659 = vadd.f32 %v9021, %v9522
    %v9660 = vadd.f32 %v9024, %v9525
    %v9661 = vadd.f32 %v9028, %v9529
    %v9662 = vadd.f32 %v9030, %v9531
    %v9663 = vadd.f32 %v9034, %v9535
    %v9664 = vadd.f32 %v9037, %v9538
    %v9665 = vadd.f32 %v9041, %v9542
    %v9666 = vadd.f32 %v9043, %v9544
    %v9667 = vadd.f32 %v9047, %v9548
    %v9668 = vadd.f32 %v9050, %v9551
    %v9669 = vadd.f32 %v9054, %v9555
    %v9670 = vadd.f32 %v9056, %v9557
    %v9671 = vadd.f32 %v9060, %v9561
    %v9672 = vadd.f32 %v9063, %v9564
    %v9673 = vadd.f32 %v9067, %v9568
    %v9674 = vadd.f32 %v9069, %v9570
    %v9675 = vadd.f32 %v9073, %v9574
    %v9676 = vadd.f32 %v9076, %v9577
    %v9677 = vadd.f32 %v9080, %v9581
    %v9678 = vadd.f32 %v9082, %v9583
    %v9679 = vadd.f32 %v9086, %v9587
    %v9680 = vadd.f32 %v9089, %v9590
    %v9681 = vadd.f32 %v9093, %v9594
    %v9682 = vadd.f32 %v9095, %v9596
    %v9683 = vadd.f32 %v9099, %v9600
    %v9684 = vadd.f32 %v9102, %v9603
    %v9685 = vadd.f32 %v9106, %v9607
    %v9686 = vadd.f32 %v9108, %v9609
    %v9687 = vadd.f32 %v9112, %v9613
    %v9688 = vadd.f32 %v9115, %v9616
    %v9689 = vadd.f32 %v9119, %v9620
    %v9690 = vadd.f32 %v9121, %v9622
    %s9691 = scalar_lea.vmem %s2, 12
    %v9692 = vld [vmem:[%s9691] sm:$0xf]
    %v9695 = vunpack.c.l.b16 %v7692
    %v9696 = vunpack.c.l.b16 %v7693
    %v9697 = vpack.c.b16 %v7811, %v7810
    %v9698 = vpack.c.b16 %v7813, %v7812
    %v9699 = vpack.c.b16 %v7815, %v7814
    %v9700 = vpack.c.b16 %v7817, %v7816
    %v9701 = vpack.c.b16 %v7819, %v7818
    %v9702 = vpack.c.b16 %v7821, %v7820
    %v9703 = vpack.c.b16 %v7823, %v7822
    %v9704 = vpack.c.b16 %v7825, %v7824
    %v9705 = vpack.c.b16 %v7827, %v7826
    %v9706 = vpack.c.b16 %v7829, %v7828
    %v9707 = vpack.c.b16 %v7831, %v7830
    %v9708 = vpack.c.b16 %v7833, %v7832
    %v9709 = vpack.c.b16 %v7835, %v7834
    %v9710 = vpack.c.b16 %v7837, %v7836
    %v9711 = vpack.c.b16 %v7839, %v7838
    %v9712 = vpack.c.b16 %v7841, %v7840
    %v9713 = vpack.c.b16 %v7843, %v7842
    %v9714 = vpack.c.b16 %v7845, %v7844
    %v9715 = vpack.c.b16 %v7847, %v7846
    %v9716 = vpack.c.b16 %v7849, %v7848
    %v9717 = vpack.c.b16 %v7851, %v7850
    %v9718 = vpack.c.b16 %v7853, %v7852
    %v9719 = vpack.c.b16 %v7855, %v7854
    %v9720 = vpack.c.b16 %v7857, %v7856
    %v9721 = vpack.c.b16 %v7859, %v7858
    %v9722 = vpack.c.b16 %v7861, %v7860
    %v9723 = vpack.c.b16 %v7863, %v7862
    %v9724 = vpack.c.b16 %v7865, %v7864
    %v9725 = vpack.c.b16 %v7867, %v7866
    %v9726 = vpack.c.b16 %v7869, %v7868
    %v9727 = vpack.c.b16 %v7871, %v7870
    %v9728 = vpack.c.b16 %v7873, %v7872
    %v9729 = vpack.c.b16 %v7875, %v7874
    %v9730 = vpack.c.b16 %v7877, %v7876
    %v9731 = vpack.c.b16 %v7879, %v7878
    %v9732 = vpack.c.b16 %v7881, %v7880
    %v9733 = vpack.c.b16 %v7883, %v7882
    %v9734 = vpack.c.b16 %v7885, %v7884
    %v9735 = vpack.c.b16 %v7887, %v7886
    %v9736 = vpack.c.b16 %v7889, %v7888
    %v9737 = vpack.c.b16 %v7891, %v7890
    %v9738 = vpack.c.b16 %v7893, %v7892
    %v9739 = vpack.c.b16 %v7895, %v7894
    %v9740 = vpack.c.b16 %v7897, %v7896
    %v9741 = vpack.c.b16 %v7899, %v7898
    %v9742 = vpack.c.b16 %v7901, %v7900
    %v9743 = vpack.c.b16 %v7903, %v7902
    %v9744 = vpack.c.b16 %v7905, %v7904
    %v9745 = vpack.c.b16 %v7907, %v7906
    %v9746 = vpack.c.b16 %v7909, %v7908
    %v9747 = vpack.c.b16 %v7911, %v7910
    %v9748 = vpack.c.b16 %v9695, %v7912
    %v9749 = vpack.c.b16 %v9696, %v9696
    %v9751 = vsel %vm2016, %v9697, 0
    %v9754 = vsel %vm2016, %v9698, 0
    %v9757 = vsel %vm2016, %v9699, 0
    %v9760 = vsel %vm2016, %v9700, 0
    %v9763 = vsel %vm2016, %v9701, 0
    %v9766 = vsel %vm2016, %v9702, 0
    %v9769 = vsel %vm2016, %v9703, 0
    %v9772 = vsel %vm2016, %v9704, 0
    %v9775 = vsel %vm2016, %v9705, 0
    %v9778 = vsel %vm2016, %v9706, 0
    %v9781 = vsel %vm2016, %v9707, 0
    %v9784 = vsel %vm2016, %v9708, 0
    %v9787 = vsel %vm2016, %v9709, 0
    %v9790 = vsel %vm2016, %v9710, 0
    %v9793 = vsel %vm2016, %v9711, 0
    %v9796 = vsel %vm2016, %v9712, 0
    %v9799 = vsel %vm2016, %v9713, 0
    %v9802 = vsel %vm2016, %v9714, 0
    %v9805 = vsel %vm2016, %v9715, 0
    %v9808 = vsel %vm2016, %v9716, 0
    %v9811 = vsel %vm2016, %v9717, 0
    %v9814 = vsel %vm2016, %v9718, 0
    %v9817 = vsel %vm2016, %v9719, 0
    %v9820 = vsel %vm2016, %v9720, 0
    %v9823 = vsel %vm2016, %v9721, 0
    %v9826 = vsel %vm2016, %v9722, 0
    %v9829 = vsel %vm2016, %v9723, 0
    %v9832 = vsel %vm2016, %v9724, 0
    %v9835 = vsel %vm2016, %v9725, 0
    %v9838 = vsel %vm2016, %v9726, 0
    %v9841 = vsel %vm2016, %v9727, 0
    %v9844 = vsel %vm2016, %v9728, 0
    %v9847 = vsel %vm2016, %v9729, 0
    %v9850 = vsel %vm2016, %v9730, 0
    %v9853 = vsel %vm2016, %v9731, 0
    %v9856 = vsel %vm2016, %v9732, 0
    %v9859 = vsel %vm2016, %v9733, 0
    %v9862 = vsel %vm2016, %v9734, 0
    %v9865 = vsel %vm2016, %v9735, 0
    %v9868 = vsel %vm2016, %v9736, 0
    %v9871 = vsel %vm2016, %v9737, 0
    %v9874 = vsel %vm2016, %v9738, 0
    %v9877 = vsel %vm2016, %v9739, 0
    %v9880 = vsel %vm2016, %v9740, 0
    %v9883 = vsel %vm2016, %v9741, 0
    %v9886 = vsel %vm2016, %v9742, 0
    %v9889 = vsel %vm2016, %v9743, 0
    %v9892 = vsel %vm2016, %v9744, 0
    %v9895 = vsel %vm2016, %v9745, 0
    %v9898 = vsel %vm2016, %v9746, 0
    %v9901 = vsel %vm2016, %v9747, 0
    %v9904 = vsel %vm2016, %v9748, 0
    %v9907 = vsel %vm2016, %v9749, 0
    %v9910 = vsel %vm2176, %v9692, 0
    %9912 = vmatpush.bf16.msra.mxu0 0
    %9913 = vmatpush.bf16.msra.mxu0 0
    %9914 = vmatpush.bf16.msra.mxu0 0
    %9915 = vmatpush.bf16.msra.mxu0 0
    %9916 = vmatpush.bf16.msra.mxu0 0
    %9917 = vmatpush.bf16.msra.mxu0 0
    %9918 = vmatpush.bf16.msra.mxu0 0
    %9919 = vmatpush.bf16.msra.mxu0 %v9910
    %9920 = vmatmul.bf16.gmra.mxu0 %v9751
    %v9921 = vpop.f32.mrf.mxu0
    %v9922 = vadd.f32 0.0, %v9921
    %v9923 = vpop.f32.mrf.mxu0
    %v9924 = vadd.f32 0.0, %v9923
    %9925 = vmatmul.bf16.gmra.mxu0 %v9754
    %v9926 = vpop.f32.mrf.mxu0
    %v9927 = vpop.f32.mrf.mxu0
    %v9928 = vadd.f32 0.0, %v9927
    %9929 = vmatmul.bf16.gmra.mxu0 %v9757
    %v9930 = vpop.f32.mrf.mxu0
    %v9931 = vadd.f32 0.0, %v9930
    %v9932 = vpop.f32.mrf.mxu0
    %9933 = vmatmul.bf16.gmra.mxu0 %v9760
    %v9934 = vpop.f32.mrf.mxu0
    %v9935 = vadd.f32 0.0, %v9934
    %v9936 = vpop.f32.mrf.mxu0
    %v9937 = vadd.f32 0.0, %v9936
    %9938 = vmatmul.bf16.gmra.mxu0 %v9763
    %v9939 = vpop.f32.mrf.mxu0
    %v9940 = vpop.f32.mrf.mxu0
    %v9941 = vadd.f32 0.0, %v9940
    %9942 = vmatmul.bf16.gmra.mxu0 %v9766
    %v9943 = vpop.f32.mrf.mxu0
    %v9944 = vadd.f32 0.0, %v9943
    %v9945 = vpop.f32.mrf.mxu0
    %9946 = vmatmul.bf16.gmra.mxu0 %v9769
    %v9947 = vpop.f32.mrf.mxu0
    %v9948 = vadd.f32 0.0, %v9947
    %v9949 = vpop.f32.mrf.mxu0
    %v9950 = vadd.f32 0.0, %v9949
    %9951 = vmatmul.bf16.gmra.mxu0 %v9772
    %v9952 = vpop.f32.mrf.mxu0
    %v9953 = vpop.f32.mrf.mxu0
    %v9954 = vadd.f32 0.0, %v9953
    %9955 = vmatmul.bf16.gmra.mxu0 %v9775
    %v9956 = vpop.f32.mrf.mxu0
    %v9957 = vadd.f32 0.0, %v9956
    %v9958 = vpop.f32.mrf.mxu0
    %9959 = vmatmul.bf16.gmra.mxu0 %v9778
    %v9960 = vpop.f32.mrf.mxu0
    %v9961 = vadd.f32 0.0, %v9960
    %v9962 = vpop.f32.mrf.mxu0
    %v9963 = vadd.f32 0.0, %v9962
    %9964 = vmatmul.bf16.gmra.mxu0 %v9781
    %v9965 = vpop.f32.mrf.mxu0
    %v9966 = vpop.f32.mrf.mxu0
    %v9967 = vadd.f32 0.0, %v9966
    %9968 = vmatmul.bf16.gmra.mxu0 %v9784
    %v9969 = vpop.f32.mrf.mxu0
    %v9970 = vadd.f32 0.0, %v9969
    %v9971 = vpop.f32.mrf.mxu0
    %9972 = vmatmul.bf16.gmra.mxu0 %v9787
    %v9973 = vpop.f32.mrf.mxu0
    %v9974 = vadd.f32 0.0, %v9973
    %v9975 = vpop.f32.mrf.mxu0
    %v9976 = vadd.f32 0.0, %v9975
    %9977 = vmatmul.bf16.gmra.mxu0 %v9790
    %v9978 = vpop.f32.mrf.mxu0
    %v9979 = vpop.f32.mrf.mxu0
    %v9980 = vadd.f32 0.0, %v9979
    %9981 = vmatmul.bf16.gmra.mxu0 %v9793
    %v9982 = vpop.f32.mrf.mxu0
    %v9983 = vadd.f32 0.0, %v9982
    %v9984 = vpop.f32.mrf.mxu0
    %9985 = vmatmul.bf16.gmra.mxu0 %v9796
    %v9986 = vpop.f32.mrf.mxu0
    %v9987 = vadd.f32 0.0, %v9986
    %v9988 = vpop.f32.mrf.mxu0
    %v9989 = vadd.f32 0.0, %v9988
    %9990 = vmatmul.bf16.gmra.mxu0 %v9799
    %v9991 = vpop.f32.mrf.mxu0
    %v9992 = vpop.f32.mrf.mxu0
    %v9993 = vadd.f32 0.0, %v9992
    %9994 = vmatmul.bf16.gmra.mxu0 %v9802
    %v9995 = vpop.f32.mrf.mxu0
    %v9996 = vadd.f32 0.0, %v9995
    %v9997 = vpop.f32.mrf.mxu0
    %9998 = vmatmul.bf16.gmra.mxu0 %v9805
    %v9999 = vpop.f32.mrf.mxu0
    %v10000 = vadd.f32 0.0, %v9999
    %v10001 = vpop.f32.mrf.mxu0
    %v10002 = vadd.f32 0.0, %v10001
    %10003 = vmatmul.bf16.gmra.mxu0 %v9808
    %v10004 = vpop.f32.mrf.mxu0
    %v10005 = vpop.f32.mrf.mxu0
    %v10006 = vadd.f32 0.0, %v10005
    %10007 = vmatmul.bf16.gmra.mxu0 %v9811
    %v10008 = vpop.f32.mrf.mxu0
    %v10009 = vadd.f32 0.0, %v10008
    %v10010 = vpop.f32.mrf.mxu0
    %10011 = vmatmul.bf16.gmra.mxu0 %v9814
    %v10012 = vpop.f32.mrf.mxu0
    %v10013 = vadd.f32 0.0, %v10012
    %v10014 = vpop.f32.mrf.mxu0
    %v10015 = vadd.f32 0.0, %v10014
    %10016 = vmatmul.bf16.gmra.mxu0 %v9817
    %v10017 = vpop.f32.mrf.mxu0
    %v10018 = vpop.f32.mrf.mxu0
    %v10019 = vadd.f32 0.0, %v10018
    %10020 = vmatmul.bf16.gmra.mxu0 %v9820
    %v10021 = vpop.f32.mrf.mxu0
    %v10022 = vadd.f32 0.0, %v10021
    %v10023 = vpop.f32.mrf.mxu0
    %10024 = vmatmul.bf16.gmra.mxu0 %v9823
    %v10025 = vpop.f32.mrf.mxu0
    %v10026 = vpop.f32.mrf.mxu0
    %10027 = vmatmul.bf16.gmra.mxu0 %v9826
    %v10028 = vpop.f32.mrf.mxu0
    %v10029 = vpop.f32.mrf.mxu0
    %10030 = vmatmul.bf16.gmra.mxu0 %v9829
    %v10031 = vpop.f32.mrf.mxu0
    %v10032 = vpop.f32.mrf.mxu0
    %10033 = vmatmul.bf16.gmra.mxu0 %v9832
    %v10034 = vpop.f32.mrf.mxu0
    %v10035 = vpop.f32.mrf.mxu0
    %10036 = vmatmul.bf16.gmra.mxu0 %v9835
    %v10037 = vpop.f32.mrf.mxu0
    %v10038 = vpop.f32.mrf.mxu0
    %v10039 = vadd.f32 0.0, %v10038
    %10040 = vmatmul.bf16.gmra.mxu0 %v9838
    %v10041 = vpop.f32.mrf.mxu0
    %v10042 = vadd.f32 0.0, %v10041
    %v10043 = vpop.f32.mrf.mxu0
    %10044 = vmatmul.bf16.gmra.mxu0 %v9841
    %v10045 = vpop.f32.mrf.mxu0
    %v10046 = vadd.f32 0.0, %v10045
    %v10047 = vpop.f32.mrf.mxu0
    %v10048 = vadd.f32 0.0, %v10047
    %10049 = vmatmul.bf16.gmra.mxu0 %v9844
    %v10050 = vpop.f32.mrf.mxu0
    %v10051 = vpop.f32.mrf.mxu0
    %v10052 = vadd.f32 0.0, %v10051
    %10053 = vmatmul.bf16.gmra.mxu0 %v9847
    %v10054 = vpop.f32.mrf.mxu0
    %v10055 = vadd.f32 0.0, %v10054
    %v10056 = vpop.f32.mrf.mxu0
    %10057 = vmatmul.bf16.gmra.mxu0 %v9850
    %v10058 = vpop.f32.mrf.mxu0
    %v10059 = vadd.f32 0.0, %v10058
    %v10060 = vpop.f32.mrf.mxu0
    %v10061 = vadd.f32 0.0, %v10060
    %10062 = vmatmul.bf16.gmra.mxu0 %v9853
    %v10063 = vpop.f32.mrf.mxu0
    %v10064 = vpop.f32.mrf.mxu0
    %v10065 = vadd.f32 0.0, %v10064
    %10066 = vmatmul.bf16.gmra.mxu0 %v9856
    %v10067 = vpop.f32.mrf.mxu0
    %v10068 = vadd.f32 0.0, %v10067
    %v10069 = vpop.f32.mrf.mxu0
    %10070 = vmatmul.bf16.gmra.mxu0 %v9859
    %v10071 = vpop.f32.mrf.mxu0
    %v10072 = vadd.f32 0.0, %v10071
    %v10073 = vpop.f32.mrf.mxu0
    %v10074 = vadd.f32 0.0, %v10073
    %10075 = vmatmul.bf16.gmra.mxu0 %v9862
    %v10076 = vpop.f32.mrf.mxu0
    %v10077 = vpop.f32.mrf.mxu0
    %v10078 = vadd.f32 0.0, %v10077
    %10079 = vmatmul.bf16.gmra.mxu0 %v9865
    %v10080 = vpop.f32.mrf.mxu0
    %v10081 = vadd.f32 0.0, %v10080
    %v10082 = vpop.f32.mrf.mxu0
    %10083 = vmatmul.bf16.gmra.mxu0 %v9868
    %v10084 = vpop.f32.mrf.mxu0
    %v10085 = vadd.f32 0.0, %v10084
    %v10086 = vpop.f32.mrf.mxu0
    %v10087 = vadd.f32 0.0, %v10086
    %10088 = vmatmul.bf16.gmra.mxu0 %v9871
    %v10089 = vpop.f32.mrf.mxu0
    %v10090 = vpop.f32.mrf.mxu0
    %v10091 = vadd.f32 0.0, %v10090
    %10092 = vmatmul.bf16.gmra.mxu0 %v9874
    %v10093 = vpop.f32.mrf.mxu0
    %v10094 = vadd.f32 0.0, %v10093
    %v10095 = vpop.f32.mrf.mxu0
    %10096 = vmatmul.bf16.gmra.mxu0 %v9877
    %v10097 = vpop.f32.mrf.mxu0
    %v10098 = vadd.f32 0.0, %v10097
    %v10099 = vpop.f32.mrf.mxu0
    %v10100 = vadd.f32 0.0, %v10099
    %10101 = vmatmul.bf16.gmra.mxu0 %v9880
    %v10102 = vpop.f32.mrf.mxu0
    %v10103 = vpop.f32.mrf.mxu0
    %v10104 = vadd.f32 0.0, %v10103
    %10105 = vmatmul.bf16.gmra.mxu0 %v9883
    %v10106 = vpop.f32.mrf.mxu0
    %v10107 = vadd.f32 0.0, %v10106
    %v10108 = vpop.f32.mrf.mxu0
    %10109 = vmatmul.bf16.gmra.mxu0 %v9886
    %v10110 = vpop.f32.mrf.mxu0
    %v10111 = vadd.f32 0.0, %v10110
    %v10112 = vpop.f32.mrf.mxu0
    %v10113 = vadd.f32 0.0, %v10112
    %10114 = vmatmul.bf16.gmra.mxu0 %v9889
    %v10115 = vpop.f32.mrf.mxu0
    %v10116 = vpop.f32.mrf.mxu0
    %v10117 = vadd.f32 0.0, %v10116
    %10118 = vmatmul.bf16.gmra.mxu0 %v9892
    %v10119 = vpop.f32.mrf.mxu0
    %v10120 = vadd.f32 0.0, %v10119
    %v10121 = vpop.f32.mrf.mxu0
    %10122 = vmatmul.bf16.gmra.mxu0 %v9895
    %v10123 = vpop.f32.mrf.mxu0
    %v10124 = vadd.f32 0.0, %v10123
    %v10125 = vpop.f32.mrf.mxu0
    %v10126 = vadd.f32 0.0, %v10125
    %10127 = vmatmul.bf16.gmra.mxu0 %v9898
    %v10128 = vpop.f32.mrf.mxu0
    %v10129 = vpop.f32.mrf.mxu0
    %v10130 = vadd.f32 0.0, %v10129
    %10131 = vmatmul.bf16.gmra.mxu0 %v9901
    %v10132 = vpop.f32.mrf.mxu0
    %v10133 = vadd.f32 0.0, %v10132
    %v10134 = vpop.f32.mrf.mxu0
    %10135 = vmatmul.bf16.gmra.mxu0 %v9904
    %v10136 = vpop.f32.mrf.mxu0
    %v10137 = vadd.f32 0.0, %v10136
    %v10138 = vpop.f32.mrf.mxu0
    %v10139 = vadd.f32 0.0, %v10138
    %10140 = vmatmul.bf16.gmra.mxu0 %v9907
    %v10141 = vpop.f32.mrf.mxu0
    %v10142 = vpop.f32.mrf.mxu0
    %10143 = vdwg.mxu0
    %v10144 = vadd.f32 %v9627, %v9922
    %v10145 = vadd.f32 %v9628, %v9924
    %v10146 = vadd.f32 %v9629, %v9928
    %v10147 = vadd.f32 %v9630, %v9931
    %v10148 = vadd.f32 %v9631, %v9935
    %v10149 = vadd.f32 %v9632, %v9937
    %v10150 = vadd.f32 %v9633, %v9941
    %v10151 = vadd.f32 %v9634, %v9944
    %v10152 = vadd.f32 %v9635, %v9948
    %v10153 = vadd.f32 %v9636, %v9950
    %v10154 = vadd.f32 %v9637, %v9954
    %v10155 = vadd.f32 %v9638, %v9957
    %v10156 = vadd.f32 %v9639, %v9961
    %v10157 = vadd.f32 %v9640, %v9963
    %v10158 = vadd.f32 %v9641, %v9967
    %v10159 = vadd.f32 %v9642, %v9970
    %v10160 = vadd.f32 %v9643, %v9974
    %v10161 = vadd.f32 %v9644, %v9976
    %v10162 = vadd.f32 %v9645, %v9980
    %v10163 = vadd.f32 %v9646, %v9983
    %v10164 = vadd.f32 %v9647, %v9987
    %v10165 = vadd.f32 %v9648, %v9989
    %v10166 = vadd.f32 %v9649, %v9993
    %v10167 = vadd.f32 %v9650, %v9996
    %v10168 = vadd.f32 %v9651, %v10000
    %v10169 = vadd.f32 %v9652, %v10002
    %v10170 = vadd.f32 %v9653, %v10006
    %v10171 = vadd.f32 %v9654, %v10009
    %v10172 = vadd.f32 %v9655, %v10013
    %v10173 = vadd.f32 %v9656, %v10015
    %v10174 = vadd.f32 %v9657, %v10019
    %v10175 = vadd.f32 %v9658, %v10022
    %v10176 = vadd.f32 %v9659, %v10039
    %v10177 = vadd.f32 %v9660, %v10042
    %v10178 = vadd.f32 %v9661, %v10046
    %v10179 = vadd.f32 %v9662, %v10048
    %v10180 = vadd.f32 %v9663, %v10052
    %v10181 = vadd.f32 %v9664, %v10055
    %v10182 = vadd.f32 %v9665, %v10059
    %v10183 = vadd.f32 %v9666, %v10061
    %v10184 = vadd.f32 %v9667, %v10065
    %v10185 = vadd.f32 %v9668, %v10068
    %v10186 = vadd.f32 %v9669, %v10072
    %v10187 = vadd.f32 %v9670, %v10074
    %v10188 = vadd.f32 %v9671, %v10078
    %v10189 = vadd.f32 %v9672, %v10081
    %v10190 = vadd.f32 %v9673, %v10085
    %v10191 = vadd.f32 %v9674, %v10087
    %v10192 = vadd.f32 %v9675, %v10091
    %v10193 = vadd.f32 %v9676, %v10094
    %v10194 = vadd.f32 %v9677, %v10098
    %v10195 = vadd.f32 %v9678, %v10100
    %v10196 = vadd.f32 %v9679, %v10104
    %v10197 = vadd.f32 %v9680, %v10107
    %v10198 = vadd.f32 %v9681, %v10111
    %v10199 = vadd.f32 %v9682, %v10113
    %v10200 = vadd.f32 %v9683, %v10117
    %v10201 = vadd.f32 %v9684, %v10120
    %v10202 = vadd.f32 %v9685, %v10124
    %v10203 = vadd.f32 %v9686, %v10126
    %v10204 = vadd.f32 %v9687, %v10130
    %v10205 = vadd.f32 %v9688, %v10133
    %v10206 = vadd.f32 %v9689, %v10137
    %v10207 = vadd.f32 %v9690, %v10139
    %s10208 = scalar_lea.vmem %s2, 16
    %v10209 = vld [vmem:[%s10208] sm:$0xf]
    %v10211 = vunpack.c.l.b16 %v7694
    %v10212 = vpack.c.b16 %v10211, %v9696
    %v10213 = vshrl.u32 %v9697, 16
    %v10215 = vshll.u32 %v9697, 16
    %v10217 = vrot.slane %v10215, 1
    %v10218 = vor.u32 %v10213, %v10217
    %v10219 = vshll.u32 %v9698, 16
    %v10221 = vrot.slane %v10219, 1
    %v10222 = vsel %vm1592, %v10218, %v10221
    %v10223 = vshrl.u32 %v9698, 16
    %v10225 = vor.u32 %v10223, %v10221
    %v10226 = vshll.u32 %v9699, 16
    %v10228 = vrot.slane %v10226, 1
    %v10229 = vsel %vm1592, %v10225, %v10228
    %v10230 = vshrl.u32 %v9699, 16
    %v10232 = vor.u32 %v10230, %v10228
    %v10233 = vshll.u32 %v9700, 16
    %v10235 = vrot.slane %v10233, 1
    %v10236 = vsel %vm1592, %v10232, %v10235
    %v10237 = vshrl.u32 %v9700, 16
    %v10239 = vor.u32 %v10237, %v10235
    %v10240 = vshll.u32 %v9701, 16
    %v10242 = vrot.slane %v10240, 1
    %v10243 = vsel %vm1592, %v10239, %v10242
    %v10244 = vshrl.u32 %v9701, 16
    %v10246 = vor.u32 %v10244, %v10242
    %v10247 = vshll.u32 %v9702, 16
    %v10249 = vrot.slane %v10247, 1
    %v10250 = vsel %vm1592, %v10246, %v10249
    %v10251 = vshrl.u32 %v9702, 16
    %v10253 = vor.u32 %v10251, %v10249
    %v10254 = vshll.u32 %v9703, 16
    %v10256 = vrot.slane %v10254, 1
    %v10257 = vsel %vm1592, %v10253, %v10256
    %v10258 = vshrl.u32 %v9703, 16
    %v10260 = vor.u32 %v10258, %v10256
    %v10261 = vshll.u32 %v9704, 16
    %v10263 = vrot.slane %v10261, 1
    %v10264 = vsel %vm1592, %v10260, %v10263
    %v10265 = vshrl.u32 %v9704, 16
    %v10267 = vor.u32 %v10265, %v10263
    %v10268 = vshll.u32 %v9705, 16
    %v10270 = vrot.slane %v10268, 1
    %v10271 = vsel %vm1592, %v10267, %v10270
    %v10272 = vshrl.u32 %v9705, 16
    %v10274 = vor.u32 %v10272, %v10270
    %v10275 = vshll.u32 %v9706, 16
    %v10277 = vrot.slane %v10275, 1
    %v10278 = vsel %vm1592, %v10274, %v10277
    %v10279 = vshrl.u32 %v9706, 16
    %v10281 = vor.u32 %v10279, %v10277
    %v10282 = vshll.u32 %v9707, 16
    %v10284 = vrot.slane %v10282, 1
    %v10285 = vsel %vm1592, %v10281, %v10284
    %v10286 = vshrl.u32 %v9707, 16
    %v10288 = vor.u32 %v10286, %v10284
    %v10289 = vshll.u32 %v9708, 16
    %v10291 = vrot.slane %v10289, 1
    %v10292 = vsel %vm1592, %v10288, %v10291
    %v10293 = vshrl.u32 %v9708, 16
    %v10295 = vor.u32 %v10293, %v10291
    %v10296 = vshll.u32 %v9709, 16
    %v10298 = vrot.slane %v10296, 1
    %v10299 = vsel %vm1592, %v10295, %v10298
    %v10300 = vshrl.u32 %v9709, 16
    %v10302 = vor.u32 %v10300, %v10298
    %v10303 = vshll.u32 %v9710, 16
    %v10305 = vrot.slane %v10303, 1
    %v10306 = vsel %vm1592, %v10302, %v10305
    %v10307 = vshrl.u32 %v9710, 16
    %v10309 = vor.u32 %v10307, %v10305
    %v10310 = vshll.u32 %v9711, 16
    %v10312 = vrot.slane %v10310, 1
    %v10313 = vsel %vm1592, %v10309, %v10312
    %v10314 = vshrl.u32 %v9711, 16
    %v10316 = vor.u32 %v10314, %v10312
    %v10317 = vshll.u32 %v9712, 16
    %v10319 = vrot.slane %v10317, 1
    %v10320 = vsel %vm1592, %v10316, %v10319
    %v10321 = vshrl.u32 %v9712, 16
    %v10323 = vor.u32 %v10321, %v10319
    %v10324 = vshll.u32 %v9713, 16
    %v10326 = vrot.slane %v10324, 1
    %v10327 = vsel %vm1592, %v10323, %v10326
    %v10328 = vshrl.u32 %v9713, 16
    %v10330 = vor.u32 %v10328, %v10326
    %v10331 = vshll.u32 %v9714, 16
    %v10333 = vrot.slane %v10331, 1
    %v10334 = vsel %vm1592, %v10330, %v10333
    %v10335 = vshrl.u32 %v9714, 16
    %v10337 = vor.u32 %v10335, %v10333
    %v10338 = vshll.u32 %v9715, 16
    %v10340 = vrot.slane %v10338, 1
    %v10341 = vsel %vm1592, %v10337, %v10340
    %v10342 = vshrl.u32 %v9715, 16
    %v10344 = vor.u32 %v10342, %v10340
    %v10345 = vshll.u32 %v9716, 16
    %v10347 = vrot.slane %v10345, 1
    %v10348 = vsel %vm1592, %v10344, %v10347
    %v10349 = vshrl.u32 %v9716, 16
    %v10351 = vor.u32 %v10349, %v10347
    %v10352 = vshll.u32 %v9717, 16
    %v10354 = vrot.slane %v10352, 1
    %v10355 = vsel %vm1592, %v10351, %v10354
    %v10356 = vshrl.u32 %v9717, 16
    %v10358 = vor.u32 %v10356, %v10354
    %v10359 = vshll.u32 %v9718, 16
    %v10361 = vrot.slane %v10359, 1
    %v10362 = vsel %vm1592, %v10358, %v10361
    %v10363 = vshrl.u32 %v9718, 16
    %v10365 = vor.u32 %v10363, %v10361
    %v10366 = vshll.u32 %v9719, 16
    %v10368 = vrot.slane %v10366, 1
    %v10369 = vsel %vm1592, %v10365, %v10368
    %v10370 = vshrl.u32 %v9719, 16
    %v10372 = vor.u32 %v10370, %v10368
    %v10373 = vshll.u32 %v9720, 16
    %v10375 = vrot.slane %v10373, 1
    %v10376 = vsel %vm1592, %v10372, %v10375
    %v10377 = vshrl.u32 %v9720, 16
    %v10379 = vor.u32 %v10377, %v10375
    %v10380 = vshll.u32 %v9721, 16
    %v10382 = vrot.slane %v10380, 1
    %v10383 = vsel %vm1592, %v10379, %v10382
    %v10384 = vshrl.u32 %v9721, 16
    %v10386 = vor.u32 %v10384, %v10382
    %v10387 = vshll.u32 %v9722, 16
    %v10389 = vrot.slane %v10387, 1
    %v10390 = vsel %vm1592, %v10386, %v10389
    %v10391 = vshrl.u32 %v9722, 16
    %v10393 = vor.u32 %v10391, %v10389
    %v10394 = vshll.u32 %v9723, 16
    %v10396 = vrot.slane %v10394, 1
    %v10397 = vsel %vm1592, %v10393, %v10396
    %v10398 = vshrl.u32 %v9723, 16
    %v10400 = vor.u32 %v10398, %v10396
    %v10401 = vshll.u32 %v9724, 16
    %v10403 = vrot.slane %v10401, 1
    %v10404 = vsel %vm1592, %v10400, %v10403
    %v10405 = vshrl.u32 %v9724, 16
    %v10407 = vor.u32 %v10405, %v10403
    %v10408 = vshll.u32 %v9725, 16
    %v10410 = vrot.slane %v10408, 1
    %v10411 = vsel %vm1592, %v10407, %v10410
    %v10412 = vshrl.u32 %v9725, 16
    %v10414 = vor.u32 %v10412, %v10410
    %v10415 = vshll.u32 %v9726, 16
    %v10417 = vrot.slane %v10415, 1
    %v10418 = vsel %vm1592, %v10414, %v10417
    %v10419 = vshrl.u32 %v9726, 16
    %v10421 = vor.u32 %v10419, %v10417
    %v10422 = vshll.u32 %v9727, 16
    %v10424 = vrot.slane %v10422, 1
    %v10425 = vsel %vm1592, %v10421, %v10424
    %v10426 = vshrl.u32 %v9727, 16
    %v10428 = vor.u32 %v10426, %v10424
    %v10429 = vshll.u32 %v9728, 16
    %v10431 = vrot.slane %v10429, 1
    %v10432 = vsel %vm1592, %v10428, %v10431
    %v10433 = vshrl.u32 %v9728, 16
    %v10435 = vor.u32 %v10433, %v10431
    %v10436 = vshll.u32 %v9729, 16
    %v10438 = vrot.slane %v10436, 1
    %v10439 = vsel %vm1592, %v10435, %v10438
    %v10440 = vshrl.u32 %v9729, 16
    %v10442 = vor.u32 %v10440, %v10438
    %v10443 = vshll.u32 %v9730, 16
    %v10445 = vrot.slane %v10443, 1
    %v10446 = vsel %vm1592, %v10442, %v10445
    %v10447 = vshrl.u32 %v9730, 16
    %v10449 = vor.u32 %v10447, %v10445
    %v10450 = vshll.u32 %v9731, 16
    %v10452 = vrot.slane %v10450, 1
    %v10453 = vsel %vm1592, %v10449, %v10452
    %v10454 = vshrl.u32 %v9731, 16
    %v10456 = vor.u32 %v10454, %v10452
    %v10457 = vshll.u32 %v9732, 16
    %v10459 = vrot.slane %v10457, 1
    %v10460 = vsel %vm1592, %v10456, %v10459
    %v10461 = vshrl.u32 %v9732, 16
    %v10463 = vor.u32 %v10461, %v10459
    %v10464 = vshll.u32 %v9733, 16
    %v10466 = vrot.slane %v10464, 1
    %v10467 = vsel %vm1592, %v10463, %v10466
    %v10468 = vshrl.u32 %v9733, 16
    %v10470 = vor.u32 %v10468, %v10466
    %v10471 = vshll.u32 %v9734, 16
    %v10473 = vrot.slane %v10471, 1
    %v10474 = vsel %vm1592, %v10470, %v10473
    %v10475 = vshrl.u32 %v9734, 16
    %v10477 = vor.u32 %v10475, %v10473
    %v10478 = vshll.u32 %v9735, 16
    %v10480 = vrot.slane %v10478, 1
    %v10481 = vsel %vm1592, %v10477, %v10480
    %v10482 = vshrl.u32 %v9735, 16
    %v10484 = vor.u32 %v10482, %v10480
    %v10485 = vshll.u32 %v9736, 16
    %v10487 = vrot.slane %v10485, 1
    %v10488 = vsel %vm1592, %v10484, %v10487
    %v10489 = vshrl.u32 %v9736, 16
    %v10491 = vor.u32 %v10489, %v10487
    %v10492 = vshll.u32 %v9737, 16
    %v10494 = vrot.slane %v10492, 1
    %v10495 = vsel %vm1592, %v10491, %v10494
    %v10496 = vshrl.u32 %v9737, 16
    %v10498 = vor.u32 %v10496, %v10494
    %v10499 = vshll.u32 %v9738, 16
    %v10501 = vrot.slane %v10499, 1
    %v10502 = vsel %vm1592, %v10498, %v10501
    %v10503 = vshrl.u32 %v9738, 16
    %v10505 = vor.u32 %v10503, %v10501
    %v10506 = vshll.u32 %v9739, 16
    %v10508 = vrot.slane %v10506, 1
    %v10509 = vsel %vm1592, %v10505, %v10508
    %v10510 = vshrl.u32 %v9739, 16
    %v10512 = vor.u32 %v10510, %v10508
    %v10513 = vshll.u32 %v9740, 16
    %v10515 = vrot.slane %v10513, 1
    %v10516 = vsel %vm1592, %v10512, %v10515
    %v10517 = vshrl.u32 %v9740, 16
    %v10519 = vor.u32 %v10517, %v10515
    %v10520 = vshll.u32 %v9741, 16
    %v10522 = vrot.slane %v10520, 1
    %v10523 = vsel %vm1592, %v10519, %v10522
    %v10524 = vshrl.u32 %v9741, 16
    %v10526 = vor.u32 %v10524, %v10522
    %v10527 = vshll.u32 %v9742, 16
    %v10529 = vrot.slane %v10527, 1
    %v10530 = vsel %vm1592, %v10526, %v10529
    %v10531 = vshrl.u32 %v9742, 16
    %v10533 = vor.u32 %v10531, %v10529
    %v10534 = vshll.u32 %v9743, 16
    %v10536 = vrot.slane %v10534, 1
    %v10537 = vsel %vm1592, %v10533, %v10536
    %v10538 = vshrl.u32 %v9743, 16
    %v10540 = vor.u32 %v10538, %v10536
    %v10541 = vshll.u32 %v9744, 16
    %v10543 = vrot.slane %v10541, 1
    %v10544 = vsel %vm1592, %v10540, %v10543
    %v10545 = vshrl.u32 %v9744, 16
    %v10547 = vor.u32 %v10545, %v10543
    %v10548 = vshll.u32 %v9745, 16
    %v10550 = vrot.slane %v10548, 1
    %v10551 = vsel %vm1592, %v10547, %v10550
    %v10552 = vshrl.u32 %v9745, 16
    %v10554 = vor.u32 %v10552, %v10550
    %v10555 = vshll.u32 %v9746, 16
    %v10557 = vrot.slane %v10555, 1
    %v10558 = vsel %vm1592, %v10554, %v10557
    %v10559 = vshrl.u32 %v9746, 16
    %v10561 = vor.u32 %v10559, %v10557
    %v10562 = vshll.u32 %v9747, 16
    %v10564 = vrot.slane %v10562, 1
    %v10565 = vsel %vm1592, %v10561, %v10564
    %v10566 = vshrl.u32 %v9747, 16
    %v10568 = vor.u32 %v10566, %v10564
    %v10569 = vshll.u32 %v9748, 16
    %v10571 = vrot.slane %v10569, 1
    %v10572 = vsel %vm1592, %v10568, %v10571
    %v10573 = vshrl.u32 %v9748, 16
    %v10575 = vor.u32 %v10573, %v10571
    %v10577 = vshll.u32 %v10212, 16
    %v10579 = vrot.slane %v10577, 1
    %v10580 = vsel %vm1592, %v10575, %v10579
    %v10581 = vshrl.u32 %v10212, 16
    %v10583 = vor.u32 %v10581, %v10579
    %v10585 = vsel %vm2016, %v10222, 0
    %v10588 = vsel %vm2016, %v10229, 0
    %v10591 = vsel %vm2016, %v10236, 0
    %v10594 = vsel %vm2016, %v10243, 0
    %v10597 = vsel %vm2016, %v10250, 0
    %v10600 = vsel %vm2016, %v10257, 0
    %v10603 = vsel %vm2016, %v10264, 0
    %v10606 = vsel %vm2016, %v10271, 0
    %v10609 = vsel %vm2016, %v10278, 0
    %v10612 = vsel %vm2016, %v10285, 0
    %v10615 = vsel %vm2016, %v10292, 0
    %v10618 = vsel %vm2016, %v10299, 0
    %v10621 = vsel %vm2016, %v10306, 0
    %v10624 = vsel %vm2016, %v10313, 0
    %v10627 = vsel %vm2016, %v10320, 0
    %v10630 = vsel %vm2016, %v10327, 0
    %v10633 = vsel %vm2016, %v10334, 0
    %v10636 = vsel %vm2016, %v10341, 0
    %v10639 = vsel %vm2016, %v10348, 0
    %v10642 = vsel %vm2016, %v10355, 0
    %v10645 = vsel %vm2016, %v10362, 0
    %v10648 = vsel %vm2016, %v10369, 0
    %v10651 = vsel %vm2016, %v10376, 0
    %v10654 = vsel %vm2016, %v10383, 0
    %v10657 = vsel %vm2016, %v10390, 0
    %v10660 = vsel %vm2016, %v10397, 0
    %v10663 = vsel %vm2016, %v10404, 0
    %v10666 = vsel %vm2016, %v10411, 0
    %v10669 = vsel %vm2016, %v10418, 0
    %v10672 = vsel %vm2016, %v10425, 0
    %v10675 = vsel %vm2016, %v10432, 0
    %v10678 = vsel %vm2016, %v10439, 0
    %v10681 = vsel %vm2016, %v10446, 0
    %v10684 = vsel %vm2016, %v10453, 0
    %v10687 = vsel %vm2016, %v10460, 0
    %v10690 = vsel %vm2016, %v10467, 0
    %v10693 = vsel %vm2016, %v10474, 0
    %v10696 = vsel %vm2016, %v10481, 0
    %v10699 = vsel %vm2016, %v10488, 0
    %v10702 = vsel %vm2016, %v10495, 0
    %v10705 = vsel %vm2016, %v10502, 0
    %v10708 = vsel %vm2016, %v10509, 0
    %v10711 = vsel %vm2016, %v10516, 0
    %v10714 = vsel %vm2016, %v10523, 0
    %v10717 = vsel %vm2016, %v10530, 0
    %v10720 = vsel %vm2016, %v10537, 0
    %v10723 = vsel %vm2016, %v10544, 0
    %v10726 = vsel %vm2016, %v10551, 0
    %v10729 = vsel %vm2016, %v10558, 0
    %v10732 = vsel %vm2016, %v10565, 0
    %v10735 = vsel %vm2016, %v10572, 0
    %v10738 = vsel %vm2016, %v10580, 0
    %v10741 = vsel %vm2016, %v10583, 0
    %v10744 = vsel %vm2176, %v10209, 0
    %10746 = vmatpush.bf16.msra.mxu0 0
    %10747 = vmatpush.bf16.msra.mxu0 0
    %10748 = vmatpush.bf16.msra.mxu0 0
    %10749 = vmatpush.bf16.msra.mxu0 0
    %10750 = vmatpush.bf16.msra.mxu0 0
    %10751 = vmatpush.bf16.msra.mxu0 0
    %10752 = vmatpush.bf16.msra.mxu0 0
    %10753 = vmatpush.bf16.msra.mxu0 %v10744
    %10754 = vmatmul.bf16.gmra.mxu0 %v10585
    %v10755 = vpop.f32.mrf.mxu0
    %v10756 = vadd.f32 0.0, %v10755
    %v10757 = vpop.f32.mrf.mxu0
    %v10758 = vadd.f32 0.0, %v10757
    %10759 = vmatmul.bf16.gmra.mxu0 %v10588
    %v10760 = vpop.f32.mrf.mxu0
    %v10761 = vpop.f32.mrf.mxu0
    %v10762 = vadd.f32 0.0, %v10761
    %10763 = vmatmul.bf16.gmra.mxu0 %v10591
    %v10764 = vpop.f32.mrf.mxu0
    %v10765 = vadd.f32 0.0, %v10764
    %v10766 = vpop.f32.mrf.mxu0
    %10767 = vmatmul.bf16.gmra.mxu0 %v10594
    %v10768 = vpop.f32.mrf.mxu0
    %v10769 = vadd.f32 0.0, %v10768
    %v10770 = vpop.f32.mrf.mxu0
    %v10771 = vadd.f32 0.0, %v10770
    %10772 = vmatmul.bf16.gmra.mxu0 %v10597
    %v10773 = vpop.f32.mrf.mxu0
    %v10774 = vpop.f32.mrf.mxu0
    %v10775 = vadd.f32 0.0, %v10774
    %10776 = vmatmul.bf16.gmra.mxu0 %v10600
    %v10777 = vpop.f32.mrf.mxu0
    %v10778 = vadd.f32 0.0, %v10777
    %v10779 = vpop.f32.mrf.mxu0
    %10780 = vmatmul.bf16.gmra.mxu0 %v10603
    %v10781 = vpop.f32.mrf.mxu0
    %v10782 = vadd.f32 0.0, %v10781
    %v10783 = vpop.f32.mrf.mxu0
    %v10784 = vadd.f32 0.0, %v10783
    %10785 = vmatmul.bf16.gmra.mxu0 %v10606
    %v10786 = vpop.f32.mrf.mxu0
    %v10787 = vpop.f32.mrf.mxu0
    %v10788 = vadd.f32 0.0, %v10787
    %10789 = vmatmul.bf16.gmra.mxu0 %v10609
    %v10790 = vpop.f32.mrf.mxu0
    %v10791 = vadd.f32 0.0, %v10790
    %v10792 = vpop.f32.mrf.mxu0
    %10793 = vmatmul.bf16.gmra.mxu0 %v10612
    %v10794 = vpop.f32.mrf.mxu0
    %v10795 = vadd.f32 0.0, %v10794
    %v10796 = vpop.f32.mrf.mxu0
    %v10797 = vadd.f32 0.0, %v10796
    %10798 = vmatmul.bf16.gmra.mxu0 %v10615
    %v10799 = vpop.f32.mrf.mxu0
    %v10800 = vpop.f32.mrf.mxu0
    %v10801 = vadd.f32 0.0, %v10800
    %10802 = vmatmul.bf16.gmra.mxu0 %v10618
    %v10803 = vpop.f32.mrf.mxu0
    %v10804 = vadd.f32 0.0, %v10803
    %v10805 = vpop.f32.mrf.mxu0
    %10806 = vmatmul.bf16.gmra.mxu0 %v10621
    %v10807 = vpop.f32.mrf.mxu0
    %v10808 = vadd.f32 0.0, %v10807
    %v10809 = vpop.f32.mrf.mxu0
    %v10810 = vadd.f32 0.0, %v10809
    %10811 = vmatmul.bf16.gmra.mxu0 %v10624
    %v10812 = vpop.f32.mrf.mxu0
    %v10813 = vpop.f32.mrf.mxu0
    %v10814 = vadd.f32 0.0, %v10813
    %10815 = vmatmul.bf16.gmra.mxu0 %v10627
    %v10816 = vpop.f32.mrf.mxu0
    %v10817 = vadd.f32 0.0, %v10816
    %v10818 = vpop.f32.mrf.mxu0
    %10819 = vmatmul.bf16.gmra.mxu0 %v10630
    %v10820 = vpop.f32.mrf.mxu0
    %v10821 = vadd.f32 0.0, %v10820
    %v10822 = vpop.f32.mrf.mxu0
    %v10823 = vadd.f32 0.0, %v10822
    %10824 = vmatmul.bf16.gmra.mxu0 %v10633
    %v10825 = vpop.f32.mrf.mxu0
    %v10826 = vpop.f32.mrf.mxu0
    %v10827 = vadd.f32 0.0, %v10826
    %10828 = vmatmul.bf16.gmra.mxu0 %v10636
    %v10829 = vpop.f32.mrf.mxu0
    %v10830 = vadd.f32 0.0, %v10829
    %v10831 = vpop.f32.mrf.mxu0
    %10832 = vmatmul.bf16.gmra.mxu0 %v10639
    %v10833 = vpop.f32.mrf.mxu0
    %v10834 = vadd.f32 0.0, %v10833
    %v10835 = vpop.f32.mrf.mxu0
    %v10836 = vadd.f32 0.0, %v10835
    %10837 = vmatmul.bf16.gmra.mxu0 %v10642
    %v10838 = vpop.f32.mrf.mxu0
    %v10839 = vpop.f32.mrf.mxu0
    %v10840 = vadd.f32 0.0, %v10839
    %10841 = vmatmul.bf16.gmra.mxu0 %v10645
    %v10842 = vpop.f32.mrf.mxu0
    %v10843 = vadd.f32 0.0, %v10842
    %v10844 = vpop.f32.mrf.mxu0
    %10845 = vmatmul.bf16.gmra.mxu0 %v10648
    %v10846 = vpop.f32.mrf.mxu0
    %v10847 = vadd.f32 0.0, %v10846
    %v10848 = vpop.f32.mrf.mxu0
    %v10849 = vadd.f32 0.0, %v10848
    %10850 = vmatmul.bf16.gmra.mxu0 %v10651
    %v10851 = vpop.f32.mrf.mxu0
    %v10852 = vpop.f32.mrf.mxu0
    %v10853 = vadd.f32 0.0, %v10852
    %10854 = vmatmul.bf16.gmra.mxu0 %v10654
    %v10855 = vpop.f32.mrf.mxu0
    %v10856 = vadd.f32 0.0, %v10855
    %v10857 = vpop.f32.mrf.mxu0
    %10858 = vmatmul.bf16.gmra.mxu0 %v10657
    %v10859 = vpop.f32.mrf.mxu0
    %v10860 = vpop.f32.mrf.mxu0
    %10861 = vmatmul.bf16.gmra.mxu0 %v10660
    %v10862 = vpop.f32.mrf.mxu0
    %v10863 = vpop.f32.mrf.mxu0
    %10864 = vmatmul.bf16.gmra.mxu0 %v10663
    %v10865 = vpop.f32.mrf.mxu0
    %v10866 = vpop.f32.mrf.mxu0
    %10867 = vmatmul.bf16.gmra.mxu0 %v10666
    %v10868 = vpop.f32.mrf.mxu0
    %v10869 = vpop.f32.mrf.mxu0
    %10870 = vmatmul.bf16.gmra.mxu0 %v10669
    %v10871 = vpop.f32.mrf.mxu0
    %v10872 = vpop.f32.mrf.mxu0
    %v10873 = vadd.f32 0.0, %v10872
    %10874 = vmatmul.bf16.gmra.mxu0 %v10672
    %v10875 = vpop.f32.mrf.mxu0
    %v10876 = vadd.f32 0.0, %v10875
    %v10877 = vpop.f32.mrf.mxu0
    %10878 = vmatmul.bf16.gmra.mxu0 %v10675
    %v10879 = vpop.f32.mrf.mxu0
    %v10880 = vadd.f32 0.0, %v10879
    %v10881 = vpop.f32.mrf.mxu0
    %v10882 = vadd.f32 0.0, %v10881
    %10883 = vmatmul.bf16.gmra.mxu0 %v10678
    %v10884 = vpop.f32.mrf.mxu0
    %v10885 = vpop.f32.mrf.mxu0
    %v10886 = vadd.f32 0.0, %v10885
    %10887 = vmatmul.bf16.gmra.mxu0 %v10681
    %v10888 = vpop.f32.mrf.mxu0
    %v10889 = vadd.f32 0.0, %v10888
    %v10890 = vpop.f32.mrf.mxu0
    %10891 = vmatmul.bf16.gmra.mxu0 %v10684
    %v10892 = vpop.f32.mrf.mxu0
    %v10893 = vadd.f32 0.0, %v10892
    %v10894 = vpop.f32.mrf.mxu0
    %v10895 = vadd.f32 0.0, %v10894
    %10896 = vmatmul.bf16.gmra.mxu0 %v10687
    %v10897 = vpop.f32.mrf.mxu0
    %v10898 = vpop.f32.mrf.mxu0
    %v10899 = vadd.f32 0.0, %v10898
    %10900 = vmatmul.bf16.gmra.mxu0 %v10690
    %v10901 = vpop.f32.mrf.mxu0
    %v10902 = vadd.f32 0.0, %v10901
    %v10903 = vpop.f32.mrf.mxu0
    %10904 = vmatmul.bf16.gmra.mxu0 %v10693
    %v10905 = vpop.f32.mrf.mxu0
    %v10906 = vadd.f32 0.0, %v10905
    %v10907 = vpop.f32.mrf.mxu0
    %v10908 = vadd.f32 0.0, %v10907
    %10909 = vmatmul.bf16.gmra.mxu0 %v10696
    %v10910 = vpop.f32.mrf.mxu0
    %v10911 = vpop.f32.mrf.mxu0
    %v10912 = vadd.f32 0.0, %v10911
    %10913 = vmatmul.bf16.gmra.mxu0 %v10699
    %v10914 = vpop.f32.mrf.mxu0
    %v10915 = vadd.f32 0.0, %v10914
    %v10916 = vpop.f32.mrf.mxu0
    %10917 = vmatmul.bf16.gmra.mxu0 %v10702
    %v10918 = vpop.f32.mrf.mxu0
    %v10919 = vadd.f32 0.0, %v10918
    %v10920 = vpop.f32.mrf.mxu0
    %v10921 = vadd.f32 0.0, %v10920
    %10922 = vmatmul.bf16.gmra.mxu0 %v10705
    %v10923 = vpop.f32.mrf.mxu0
    %v10924 = vpop.f32.mrf.mxu0
    %v10925 = vadd.f32 0.0, %v10924
    %10926 = vmatmul.bf16.gmra.mxu0 %v10708
    %v10927 = vpop.f32.mrf.mxu0
    %v10928 = vadd.f32 0.0, %v10927
    %v10929 = vpop.f32.mrf.mxu0
    %10930 = vmatmul.bf16.gmra.mxu0 %v10711
    %v10931 = vpop.f32.mrf.mxu0
    %v10932 = vadd.f32 0.0, %v10931
    %v10933 = vpop.f32.mrf.mxu0
    %v10934 = vadd.f32 0.0, %v10933
    %10935 = vmatmul.bf16.gmra.mxu0 %v10714
    %v10936 = vpop.f32.mrf.mxu0
    %v10937 = vpop.f32.mrf.mxu0
    %v10938 = vadd.f32 0.0, %v10937
    %10939 = vmatmul.bf16.gmra.mxu0 %v10717
    %v10940 = vpop.f32.mrf.mxu0
    %v10941 = vadd.f32 0.0, %v10940
    %v10942 = vpop.f32.mrf.mxu0
    %10943 = vmatmul.bf16.gmra.mxu0 %v10720
    %v10944 = vpop.f32.mrf.mxu0
    %v10945 = vadd.f32 0.0, %v10944
    %v10946 = vpop.f32.mrf.mxu0
    %v10947 = vadd.f32 0.0, %v10946
    %10948 = vmatmul.bf16.gmra.mxu0 %v10723
    %v10949 = vpop.f32.mrf.mxu0
    %v10950 = vpop.f32.mrf.mxu0
    %v10951 = vadd.f32 0.0, %v10950
    %10952 = vmatmul.bf16.gmra.mxu0 %v10726
    %v10953 = vpop.f32.mrf.mxu0
    %v10954 = vadd.f32 0.0, %v10953
    %v10955 = vpop.f32.mrf.mxu0
    %10956 = vmatmul.bf16.gmra.mxu0 %v10729
    %v10957 = vpop.f32.mrf.mxu0
    %v10958 = vadd.f32 0.0, %v10957
    %v10959 = vpop.f32.mrf.mxu0
    %v10960 = vadd.f32 0.0, %v10959
    %10961 = vmatmul.bf16.gmra.mxu0 %v10732
    %v10962 = vpop.f32.mrf.mxu0
    %v10963 = vpop.f32.mrf.mxu0
    %v10964 = vadd.f32 0.0, %v10963
    %10965 = vmatmul.bf16.gmra.mxu0 %v10735
    %v10966 = vpop.f32.mrf.mxu0
    %v10967 = vadd.f32 0.0, %v10966
    %v10968 = vpop.f32.mrf.mxu0
    %10969 = vmatmul.bf16.gmra.mxu0 %v10738
    %v10970 = vpop.f32.mrf.mxu0
    %v10971 = vadd.f32 0.0, %v10970
    %v10972 = vpop.f32.mrf.mxu0
    %v10973 = vadd.f32 0.0, %v10972
    %10974 = vmatmul.bf16.gmra.mxu0 %v10741
    %v10975 = vpop.f32.mrf.mxu0
    %v10976 = vpop.f32.mrf.mxu0
    %10977 = vdwg.mxu0
    %v10978 = vadd.f32 %v10144, %v10756
    %v10979 = vadd.f32 %v10145, %v10758
    %v10980 = vadd.f32 %v10146, %v10762
    %v10981 = vadd.f32 %v10147, %v10765
    %v10982 = vadd.f32 %v10148, %v10769
    %v10983 = vadd.f32 %v10149, %v10771
    %v10984 = vadd.f32 %v10150, %v10775
    %v10985 = vadd.f32 %v10151, %v10778
    %v10986 = vadd.f32 %v10152, %v10782
    %v10987 = vadd.f32 %v10153, %v10784
    %v10988 = vadd.f32 %v10154, %v10788
    %v10989 = vadd.f32 %v10155, %v10791
    %v10990 = vadd.f32 %v10156, %v10795
    %v10991 = vadd.f32 %v10157, %v10797
    %v10992 = vadd.f32 %v10158, %v10801
    %v10993 = vadd.f32 %v10159, %v10804
    %v10994 = vadd.f32 %v10160, %v10808
    %v10995 = vadd.f32 %v10161, %v10810
    %v10996 = vadd.f32 %v10162, %v10814
    %v10997 = vadd.f32 %v10163, %v10817
    %v10998 = vadd.f32 %v10164, %v10821
    %v10999 = vadd.f32 %v10165, %v10823
    %v11000 = vadd.f32 %v10166, %v10827
    %v11001 = vadd.f32 %v10167, %v10830
    %v11002 = vadd.f32 %v10168, %v10834
    %v11003 = vadd.f32 %v10169, %v10836
    %v11004 = vadd.f32 %v10170, %v10840
    %v11005 = vadd.f32 %v10171, %v10843
    %v11006 = vadd.f32 %v10172, %v10847
    %v11007 = vadd.f32 %v10173, %v10849
    %v11008 = vadd.f32 %v10174, %v10853
    %v11009 = vadd.f32 %v10175, %v10856
    %v11010 = vadd.f32 %v10176, %v10873
    %v11011 = vadd.f32 %v10177, %v10876
    %v11012 = vadd.f32 %v10178, %v10880
    %v11013 = vadd.f32 %v10179, %v10882
    %v11014 = vadd.f32 %v10180, %v10886
    %v11015 = vadd.f32 %v10181, %v10889
    %v11016 = vadd.f32 %v10182, %v10893
    %v11017 = vadd.f32 %v10183, %v10895
    %v11018 = vadd.f32 %v10184, %v10899
    %v11019 = vadd.f32 %v10185, %v10902
    %v11020 = vadd.f32 %v10186, %v10906
    %v11021 = vadd.f32 %v10187, %v10908
    %v11022 = vadd.f32 %v10188, %v10912
    %v11023 = vadd.f32 %v10189, %v10915
    %v11024 = vadd.f32 %v10190, %v10919
    %v11025 = vadd.f32 %v10191, %v10921
    %v11026 = vadd.f32 %v10192, %v10925
    %v11027 = vadd.f32 %v10193, %v10928
    %v11028 = vadd.f32 %v10194, %v10932
    %v11029 = vadd.f32 %v10195, %v10934
    %v11030 = vadd.f32 %v10196, %v10938
    %v11031 = vadd.f32 %v10197, %v10941
    %v11032 = vadd.f32 %v10198, %v10945
    %v11033 = vadd.f32 %v10199, %v10947
    %v11034 = vadd.f32 %v10200, %v10951
    %v11035 = vadd.f32 %v10201, %v10954
    %v11036 = vadd.f32 %v10202, %v10958
    %v11037 = vadd.f32 %v10203, %v10960
    %v11038 = vadd.f32 %v10204, %v10964
    %v11039 = vadd.f32 %v10205, %v10967
    %v11040 = vadd.f32 %v10206, %v10971
    %v11041 = vadd.f32 %v10207, %v10973
    %s11042 = scalar_lea.vmem %s2, 20
    %v11043 = vld [vmem:[%s11042] sm:$0xf]
    %v11044 = vrot.slane %v9697, 1
    %v11045 = vrot.slane %v9698, 1
    %v11046 = vsel %vm2757, %v11044, %v11045
    %v11047 = vrot.slane %v9699, 1
    %v11048 = vsel %vm2757, %v11045, %v11047
    %v11049 = vrot.slane %v9700, 1
    %v11050 = vsel %vm2757, %v11047, %v11049
    %v11051 = vrot.slane %v9701, 1
    %v11052 = vsel %vm2757, %v11049, %v11051
    %v11053 = vrot.slane %v9702, 1
    %v11054 = vsel %vm2757, %v11051, %v11053
    %v11055 = vrot.slane %v9703, 1
    %v11056 = vsel %vm2757, %v11053, %v11055
    %v11057 = vrot.slane %v9704, 1
    %v11058 = vsel %vm2757, %v11055, %v11057
    %v11059 = vrot.slane %v9705, 1
    %v11060 = vsel %vm2757, %v11057, %v11059
    %v11061 = vrot.slane %v9706, 1
    %v11062 = vsel %vm2757, %v11059, %v11061
    %v11063 = vrot.slane %v9707, 1
    %v11064 = vsel %vm2757, %v11061, %v11063
    %v11065 = vrot.slane %v9708, 1
    %v11066 = vsel %vm2757, %v11063, %v11065
    %v11067 = vrot.slane %v9709, 1
    %v11068 = vsel %vm2757, %v11065, %v11067
    %v11069 = vrot.slane %v9710, 1
    %v11070 = vsel %vm2757, %v11067, %v11069
    %v11071 = vrot.slane %v9711, 1
    %v11072 = vsel %vm2757, %v11069, %v11071
    %v11073 = vrot.slane %v9712, 1
    %v11074 = vsel %vm2757, %v11071, %v11073
    %v11075 = vrot.slane %v9713, 1
    %v11076 = vsel %vm2757, %v11073, %v11075
    %v11077 = vrot.slane %v9714, 1
    %v11078 = vsel %vm2757, %v11075, %v11077
    %v11079 = vrot.slane %v9715, 1
    %v11080 = vsel %vm2757, %v11077, %v11079
    %v11081 = vrot.slane %v9716, 1
    %v11082 = vsel %vm2757, %v11079, %v11081
    %v11083 = vrot.slane %v9717, 1
    %v11084 = vsel %vm2757, %v11081, %v11083
    %v11085 = vrot.slane %v9718, 1
    %v11086 = vsel %vm2757, %v11083, %v11085
    %v11087 = vrot.slane %v9719, 1
    %v11088 = vsel %vm2757, %v11085, %v11087
    %v11089 = vrot.slane %v9720, 1
    %v11090 = vsel %vm2757, %v11087, %v11089
    %v11091 = vrot.slane %v9721, 1
    %v11092 = vsel %vm2757, %v11089, %v11091
    %v11093 = vrot.slane %v9722, 1
    %v11094 = vsel %vm2757, %v11091, %v11093
    %v11095 = vrot.slane %v9723, 1
    %v11096 = vsel %vm2757, %v11093, %v11095
    %v11097 = vrot.slane %v9724, 1
    %v11098 = vsel %vm2757, %v11095, %v11097
    %v11099 = vrot.slane %v9725, 1
    %v11100 = vsel %vm2757, %v11097, %v11099
    %v11101 = vrot.slane %v9726, 1
    %v11102 = vsel %vm2757, %v11099, %v11101
    %v11103 = vrot.slane %v9727, 1
    %v11104 = vsel %vm2757, %v11101, %v11103
    %v11105 = vrot.slane %v9728, 1
    %v11106 = vsel %vm2757, %v11103, %v11105
    %v11107 = vrot.slane %v9729, 1
    %v11108 = vsel %vm2757, %v11105, %v11107
    %v11109 = vrot.slane %v9730, 1
    %v11110 = vsel %vm2757, %v11107, %v11109
    %v11111 = vrot.slane %v9731, 1
    %v11112 = vsel %vm2757, %v11109, %v11111
    %v11113 = vrot.slane %v9732, 1
    %v11114 = vsel %vm2757, %v11111, %v11113
    %v11115 = vrot.slane %v9733, 1
    %v11116 = vsel %vm2757, %v11113, %v11115
    %v11117 = vrot.slane %v9734, 1
    %v11118 = vsel %vm2757, %v11115, %v11117
    %v11119 = vrot.slane %v9735, 1
    %v11120 = vsel %vm2757, %v11117, %v11119
    %v11121 = vrot.slane %v9736, 1
    %v11122 = vsel %vm2757, %v11119, %v11121
    %v11123 = vrot.slane %v9737, 1
    %v11124 = vsel %vm2757, %v11121, %v11123
    %v11125 = vrot.slane %v9738, 1
    %v11126 = vsel %vm2757, %v11123, %v11125
    %v11127 = vrot.slane %v9739, 1
    %v11128 = vsel %vm2757, %v11125, %v11127
    %v11129 = vrot.slane %v9740, 1
    %v11130 = vsel %vm2757, %v11127, %v11129
    %v11131 = vrot.slane %v9741, 1
    %v11132 = vsel %vm2757, %v11129, %v11131
    %v11133 = vrot.slane %v9742, 1
    %v11134 = vsel %vm2757, %v11131, %v11133
    %v11135 = vrot.slane %v9743, 1
    %v11136 = vsel %vm2757, %v11133, %v11135
    %v11137 = vrot.slane %v9744, 1
    %v11138 = vsel %vm2757, %v11135, %v11137
    %v11139 = vrot.slane %v9745, 1
    %v11140 = vsel %vm2757, %v11137, %v11139
    %v11141 = vrot.slane %v9746, 1
    %v11142 = vsel %vm2757, %v11139, %v11141
    %v11143 = vrot.slane %v9747, 1
    %v11144 = vsel %vm2757, %v11141, %v11143
    %v11145 = vrot.slane %v9748, 1
    %v11146 = vsel %vm2757, %v11143, %v11145
    %v11147 = vrot.slane %v10212, 1
    %v11148 = vsel %vm2757, %v11145, %v11147
    %v11150 = vsel %vm2016, %v11046, 0
    %v11153 = vsel %vm2016, %v11048, 0
    %v11156 = vsel %vm2016, %v11050, 0
    %v11159 = vsel %vm2016, %v11052, 0
    %v11162 = vsel %vm2016, %v11054, 0
    %v11165 = vsel %vm2016, %v11056, 0
    %v11168 = vsel %vm2016, %v11058, 0
    %v11171 = vsel %vm2016, %v11060, 0
    %v11174 = vsel %vm2016, %v11062, 0
    %v11177 = vsel %vm2016, %v11064, 0
    %v11180 = vsel %vm2016, %v11066, 0
    %v11183 = vsel %vm2016, %v11068, 0
    %v11186 = vsel %vm2016, %v11070, 0
    %v11189 = vsel %vm2016, %v11072, 0
    %v11192 = vsel %vm2016, %v11074, 0
    %v11195 = vsel %vm2016, %v11076, 0
    %v11198 = vsel %vm2016, %v11078, 0
    %v11201 = vsel %vm2016, %v11080, 0
    %v11204 = vsel %vm2016, %v11082, 0
    %v11207 = vsel %vm2016, %v11084, 0
    %v11210 = vsel %vm2016, %v11086, 0
    %v11213 = vsel %vm2016, %v11088, 0
    %v11216 = vsel %vm2016, %v11090, 0
    %v11219 = vsel %vm2016, %v11092, 0
    %v11222 = vsel %vm2016, %v11094, 0
    %v11225 = vsel %vm2016, %v11096, 0
    %v11228 = vsel %vm2016, %v11098, 0
    %v11231 = vsel %vm2016, %v11100, 0
    %v11234 = vsel %vm2016, %v11102, 0
    %v11237 = vsel %vm2016, %v11104, 0
    %v11240 = vsel %vm2016, %v11106, 0
    %v11243 = vsel %vm2016, %v11108, 0
    %v11246 = vsel %vm2016, %v11110, 0
    %v11249 = vsel %vm2016, %v11112, 0
    %v11252 = vsel %vm2016, %v11114, 0
    %v11255 = vsel %vm2016, %v11116, 0
    %v11258 = vsel %vm2016, %v11118, 0
    %v11261 = vsel %vm2016, %v11120, 0
    %v11264 = vsel %vm2016, %v11122, 0
    %v11267 = vsel %vm2016, %v11124, 0
    %v11270 = vsel %vm2016, %v11126, 0
    %v11273 = vsel %vm2016, %v11128, 0
    %v11276 = vsel %vm2016, %v11130, 0
    %v11279 = vsel %vm2016, %v11132, 0
    %v11282 = vsel %vm2016, %v11134, 0
    %v11285 = vsel %vm2016, %v11136, 0
    %v11288 = vsel %vm2016, %v11138, 0
    %v11291 = vsel %vm2016, %v11140, 0
    %v11294 = vsel %vm2016, %v11142, 0
    %v11297 = vsel %vm2016, %v11144, 0
    %v11300 = vsel %vm2016, %v11146, 0
    %v11303 = vsel %vm2016, %v11148, 0
    %v11306 = vsel %vm2016, %v11147, 0
    %v11309 = vsel %vm2176, %v11043, 0
    %11311 = vmatpush.bf16.msra.mxu0 0
    %11312 = vmatpush.bf16.msra.mxu0 0
    %11313 = vmatpush.bf16.msra.mxu0 0
    %11314 = vmatpush.bf16.msra.mxu0 0
    %11315 = vmatpush.bf16.msra.mxu0 0
    %11316 = vmatpush.bf16.msra.mxu0 0
    %11317 = vmatpush.bf16.msra.mxu0 0
    %11318 = vmatpush.bf16.msra.mxu0 %v11309
    %11319 = vmatmul.bf16.gmra.mxu0 %v11150
    %v11320 = vpop.f32.mrf.mxu0
    %v11321 = vadd.f32 0.0, %v11320
    %v11322 = vpop.f32.mrf.mxu0
    %v11323 = vadd.f32 0.0, %v11322
    %11324 = vmatmul.bf16.gmra.mxu0 %v11153
    %v11325 = vpop.f32.mrf.mxu0
    %v11326 = vpop.f32.mrf.mxu0
    %v11327 = vadd.f32 0.0, %v11326
    %11328 = vmatmul.bf16.gmra.mxu0 %v11156
    %v11329 = vpop.f32.mrf.mxu0
    %v11330 = vadd.f32 0.0, %v11329
    %v11331 = vpop.f32.mrf.mxu0
    %11332 = vmatmul.bf16.gmra.mxu0 %v11159
    %v11333 = vpop.f32.mrf.mxu0
    %v11334 = vadd.f32 0.0, %v11333
    %v11335 = vpop.f32.mrf.mxu0
    %v11336 = vadd.f32 0.0, %v11335
    %11337 = vmatmul.bf16.gmra.mxu0 %v11162
    %v11338 = vpop.f32.mrf.mxu0
    %v11339 = vpop.f32.mrf.mxu0
    %v11340 = vadd.f32 0.0, %v11339
    %11341 = vmatmul.bf16.gmra.mxu0 %v11165
    %v11342 = vpop.f32.mrf.mxu0
    %v11343 = vadd.f32 0.0, %v11342
    %v11344 = vpop.f32.mrf.mxu0
    %11345 = vmatmul.bf16.gmra.mxu0 %v11168
    %v11346 = vpop.f32.mrf.mxu0
    %v11347 = vadd.f32 0.0, %v11346
    %v11348 = vpop.f32.mrf.mxu0
    %v11349 = vadd.f32 0.0, %v11348
    %11350 = vmatmul.bf16.gmra.mxu0 %v11171
    %v11351 = vpop.f32.mrf.mxu0
    %v11352 = vpop.f32.mrf.mxu0
    %v11353 = vadd.f32 0.0, %v11352
    %11354 = vmatmul.bf16.gmra.mxu0 %v11174
    %v11355 = vpop.f32.mrf.mxu0
    %v11356 = vadd.f32 0.0, %v11355
    %v11357 = vpop.f32.mrf.mxu0
    %11358 = vmatmul.bf16.gmra.mxu0 %v11177
    %v11359 = vpop.f32.mrf.mxu0
    %v11360 = vadd.f32 0.0, %v11359
    %v11361 = vpop.f32.mrf.mxu0
    %v11362 = vadd.f32 0.0, %v11361
    %11363 = vmatmul.bf16.gmra.mxu0 %v11180
    %v11364 = vpop.f32.mrf.mxu0
    %v11365 = vpop.f32.mrf.mxu0
    %v11366 = vadd.f32 0.0, %v11365
    %11367 = vmatmul.bf16.gmra.mxu0 %v11183
    %v11368 = vpop.f32.mrf.mxu0
    %v11369 = vadd.f32 0.0, %v11368
    %v11370 = vpop.f32.mrf.mxu0
    %11371 = vmatmul.bf16.gmra.mxu0 %v11186
    %v11372 = vpop.f32.mrf.mxu0
    %v11373 = vadd.f32 0.0, %v11372
    %v11374 = vpop.f32.mrf.mxu0
    %v11375 = vadd.f32 0.0, %v11374
    %11376 = vmatmul.bf16.gmra.mxu0 %v11189
    %v11377 = vpop.f32.mrf.mxu0
    %v11378 = vpop.f32.mrf.mxu0
    %v11379 = vadd.f32 0.0, %v11378
    %11380 = vmatmul.bf16.gmra.mxu0 %v11192
    %v11381 = vpop.f32.mrf.mxu0
    %v11382 = vadd.f32 0.0, %v11381
    %v11383 = vpop.f32.mrf.mxu0
    %11384 = vmatmul.bf16.gmra.mxu0 %v11195
    %v11385 = vpop.f32.mrf.mxu0
    %v11386 = vadd.f32 0.0, %v11385
    %v11387 = vpop.f32.mrf.mxu0
    %v11388 = vadd.f32 0.0, %v11387
    %11389 = vmatmul.bf16.gmra.mxu0 %v11198
    %v11390 = vpop.f32.mrf.mxu0
    %v11391 = vpop.f32.mrf.mxu0
    %v11392 = vadd.f32 0.0, %v11391
    %11393 = vmatmul.bf16.gmra.mxu0 %v11201
    %v11394 = vpop.f32.mrf.mxu0
    %v11395 = vadd.f32 0.0, %v11394
    %v11396 = vpop.f32.mrf.mxu0
    %11397 = vmatmul.bf16.gmra.mxu0 %v11204
    %v11398 = vpop.f32.mrf.mxu0
    %v11399 = vadd.f32 0.0, %v11398
    %v11400 = vpop.f32.mrf.mxu0
    %v11401 = vadd.f32 0.0, %v11400
    %11402 = vmatmul.bf16.gmra.mxu0 %v11207
    %v11403 = vpop.f32.mrf.mxu0
    %v11404 = vpop.f32.mrf.mxu0
    %v11405 = vadd.f32 0.0, %v11404
    %11406 = vmatmul.bf16.gmra.mxu0 %v11210
    %v11407 = vpop.f32.mrf.mxu0
    %v11408 = vadd.f32 0.0, %v11407
    %v11409 = vpop.f32.mrf.mxu0
    %11410 = vmatmul.bf16.gmra.mxu0 %v11213
    %v11411 = vpop.f32.mrf.mxu0
    %v11412 = vadd.f32 0.0, %v11411
    %v11413 = vpop.f32.mrf.mxu0
    %v11414 = vadd.f32 0.0, %v11413
    %11415 = vmatmul.bf16.gmra.mxu0 %v11216
    %v11416 = vpop.f32.mrf.mxu0
    %v11417 = vpop.f32.mrf.mxu0
    %v11418 = vadd.f32 0.0, %v11417
    %11419 = vmatmul.bf16.gmra.mxu0 %v11219
    %v11420 = vpop.f32.mrf.mxu0
    %v11421 = vadd.f32 0.0, %v11420
    %v11422 = vpop.f32.mrf.mxu0
    %11423 = vmatmul.bf16.gmra.mxu0 %v11222
    %v11424 = vpop.f32.mrf.mxu0
    %v11425 = vpop.f32.mrf.mxu0
    %11426 = vmatmul.bf16.gmra.mxu0 %v11225
    %v11427 = vpop.f32.mrf.mxu0
    %v11428 = vpop.f32.mrf.mxu0
    %11429 = vmatmul.bf16.gmra.mxu0 %v11228
    %v11430 = vpop.f32.mrf.mxu0
    %v11431 = vpop.f32.mrf.mxu0
    %11432 = vmatmul.bf16.gmra.mxu0 %v11231
    %v11433 = vpop.f32.mrf.mxu0
    %v11434 = vpop.f32.mrf.mxu0
    %11435 = vmatmul.bf16.gmra.mxu0 %v11234
    %v11436 = vpop.f32.mrf.mxu0
    %v11437 = vpop.f32.mrf.mxu0
    %v11438 = vadd.f32 0.0, %v11437
    %11439 = vmatmul.bf16.gmra.mxu0 %v11237
    %v11440 = vpop.f32.mrf.mxu0
    %v11441 = vadd.f32 0.0, %v11440
    %v11442 = vpop.f32.mrf.mxu0
    %11443 = vmatmul.bf16.gmra.mxu0 %v11240
    %v11444 = vpop.f32.mrf.mxu0
    %v11445 = vadd.f32 0.0, %v11444
    %v11446 = vpop.f32.mrf.mxu0
    %v11447 = vadd.f32 0.0, %v11446
    %11448 = vmatmul.bf16.gmra.mxu0 %v11243
    %v11449 = vpop.f32.mrf.mxu0
    %v11450 = vpop.f32.mrf.mxu0
    %v11451 = vadd.f32 0.0, %v11450
    %11452 = vmatmul.bf16.gmra.mxu0 %v11246
    %v11453 = vpop.f32.mrf.mxu0
    %v11454 = vadd.f32 0.0, %v11453
    %v11455 = vpop.f32.mrf.mxu0
    %11456 = vmatmul.bf16.gmra.mxu0 %v11249
    %v11457 = vpop.f32.mrf.mxu0
    %v11458 = vadd.f32 0.0, %v11457
    %v11459 = vpop.f32.mrf.mxu0
    %v11460 = vadd.f32 0.0, %v11459
    %11461 = vmatmul.bf16.gmra.mxu0 %v11252
    %v11462 = vpop.f32.mrf.mxu0
    %v11463 = vpop.f32.mrf.mxu0
    %v11464 = vadd.f32 0.0, %v11463
    %11465 = vmatmul.bf16.gmra.mxu0 %v11255
    %v11466 = vpop.f32.mrf.mxu0
    %v11467 = vadd.f32 0.0, %v11466
    %v11468 = vpop.f32.mrf.mxu0
    %11469 = vmatmul.bf16.gmra.mxu0 %v11258
    %v11470 = vpop.f32.mrf.mxu0
    %v11471 = vadd.f32 0.0, %v11470
    %v11472 = vpop.f32.mrf.mxu0
    %v11473 = vadd.f32 0.0, %v11472
    %11474 = vmatmul.bf16.gmra.mxu0 %v11261
    %v11475 = vpop.f32.mrf.mxu0
    %v11476 = vpop.f32.mrf.mxu0
    %v11477 = vadd.f32 0.0, %v11476
    %11478 = vmatmul.bf16.gmra.mxu0 %v11264
    %v11479 = vpop.f32.mrf.mxu0
    %v11480 = vadd.f32 0.0, %v11479
    %v11481 = vpop.f32.mrf.mxu0
    %11482 = vmatmul.bf16.gmra.mxu0 %v11267
    %v11483 = vpop.f32.mrf.mxu0
    %v11484 = vadd.f32 0.0, %v11483
    %v11485 = vpop.f32.mrf.mxu0
    %v11486 = vadd.f32 0.0, %v11485
    %11487 = vmatmul.bf16.gmra.mxu0 %v11270
    %v11488 = vpop.f32.mrf.mxu0
    %v11489 = vpop.f32.mrf.mxu0
    %v11490 = vadd.f32 0.0, %v11489
    %11491 = vmatmul.bf16.gmra.mxu0 %v11273
    %v11492 = vpop.f32.mrf.mxu0
    %v11493 = vadd.f32 0.0, %v11492
    %v11494 = vpop.f32.mrf.mxu0
    %11495 = vmatmul.bf16.gmra.mxu0 %v11276
    %v11496 = vpop.f32.mrf.mxu0
    %v11497 = vadd.f32 0.0, %v11496
    %v11498 = vpop.f32.mrf.mxu0
    %v11499 = vadd.f32 0.0, %v11498
    %11500 = vmatmul.bf16.gmra.mxu0 %v11279
    %v11501 = vpop.f32.mrf.mxu0
    %v11502 = vpop.f32.mrf.mxu0
    %v11503 = vadd.f32 0.0, %v11502
    %11504 = vmatmul.bf16.gmra.mxu0 %v11282
    %v11505 = vpop.f32.mrf.mxu0
    %v11506 = vadd.f32 0.0, %v11505
    %v11507 = vpop.f32.mrf.mxu0
    %11508 = vmatmul.bf16.gmra.mxu0 %v11285
    %v11509 = vpop.f32.mrf.mxu0
    %v11510 = vadd.f32 0.0, %v11509
    %v11511 = vpop.f32.mrf.mxu0
    %v11512 = vadd.f32 0.0, %v11511
    %11513 = vmatmul.bf16.gmra.mxu0 %v11288
    %v11514 = vpop.f32.mrf.mxu0
    %v11515 = vpop.f32.mrf.mxu0
    %v11516 = vadd.f32 0.0, %v11515
    %11517 = vmatmul.bf16.gmra.mxu0 %v11291
    %v11518 = vpop.f32.mrf.mxu0
    %v11519 = vadd.f32 0.0, %v11518
    %v11520 = vpop.f32.mrf.mxu0
    %11521 = vmatmul.bf16.gmra.mxu0 %v11294
    %v11522 = vpop.f32.mrf.mxu0
    %v11523 = vadd.f32 0.0, %v11522
    %v11524 = vpop.f32.mrf.mxu0
    %v11525 = vadd.f32 0.0, %v11524
    %11526 = vmatmul.bf16.gmra.mxu0 %v11297
    %v11527 = vpop.f32.mrf.mxu0
    %v11528 = vpop.f32.mrf.mxu0
    %v11529 = vadd.f32 0.0, %v11528
    %11530 = vmatmul.bf16.gmra.mxu0 %v11300
    %v11531 = vpop.f32.mrf.mxu0
    %v11532 = vadd.f32 0.0, %v11531
    %v11533 = vpop.f32.mrf.mxu0
    %11534 = vmatmul.bf16.gmra.mxu0 %v11303
    %v11535 = vpop.f32.mrf.mxu0
    %v11536 = vadd.f32 0.0, %v11535
    %v11537 = vpop.f32.mrf.mxu0
    %v11538 = vadd.f32 0.0, %v11537
    %11539 = vmatmul.bf16.gmra.mxu0 %v11306
    %v11540 = vpop.f32.mrf.mxu0
    %v11541 = vpop.f32.mrf.mxu0
    %11542 = vdwg.mxu0
    %v11543 = vadd.f32 %v10978, %v11321
    %v11544 = vadd.f32 %v10979, %v11323
    %v11545 = vadd.f32 %v10980, %v11327
    %v11546 = vadd.f32 %v10981, %v11330
    %v11547 = vadd.f32 %v10982, %v11334
    %v11548 = vadd.f32 %v10983, %v11336
    %v11549 = vadd.f32 %v10984, %v11340
    %v11550 = vadd.f32 %v10985, %v11343
    %v11551 = vadd.f32 %v10986, %v11347
    %v11552 = vadd.f32 %v10987, %v11349
    %v11553 = vadd.f32 %v10988, %v11353
    %v11554 = vadd.f32 %v10989, %v11356
    %v11555 = vadd.f32 %v10990, %v11360
    %v11556 = vadd.f32 %v10991, %v11362
    %v11557 = vadd.f32 %v10992, %v11366
    %v11558 = vadd.f32 %v10993, %v11369
    %v11559 = vadd.f32 %v10994, %v11373
    %v11560 = vadd.f32 %v10995, %v11375
    %v11561 = vadd.f32 %v10996, %v11379
    %v11562 = vadd.f32 %v10997, %v11382
    %v11563 = vadd.f32 %v10998, %v11386
    %v11564 = vadd.f32 %v10999, %v11388
    %v11565 = vadd.f32 %v11000, %v11392
    %v11566 = vadd.f32 %v11001, %v11395
    %v11567 = vadd.f32 %v11002, %v11399
    %v11568 = vadd.f32 %v11003, %v11401
    %v11569 = vadd.f32 %v11004, %v11405
    %v11570 = vadd.f32 %v11005, %v11408
    %v11571 = vadd.f32 %v11006, %v11412
    %v11572 = vadd.f32 %v11007, %v11414
    %v11573 = vadd.f32 %v11008, %v11418
    %v11574 = vadd.f32 %v11009, %v11421
    %v11575 = vadd.f32 %v11010, %v11438
    %v11576 = vadd.f32 %v11011, %v11441
    %v11577 = vadd.f32 %v11012, %v11445
    %v11578 = vadd.f32 %v11013, %v11447
    %v11579 = vadd.f32 %v11014, %v11451
    %v11580 = vadd.f32 %v11015, %v11454
    %v11581 = vadd.f32 %v11016, %v11458
    %v11582 = vadd.f32 %v11017, %v11460
    %v11583 = vadd.f32 %v11018, %v11464
    %v11584 = vadd.f32 %v11019, %v11467
    %v11585 = vadd.f32 %v11020, %v11471
    %v11586 = vadd.f32 %v11021, %v11473
    %v11587 = vadd.f32 %v11022, %v11477
    %v11588 = vadd.f32 %v11023, %v11480
    %v11589 = vadd.f32 %v11024, %v11484
    %v11590 = vadd.f32 %v11025, %v11486
    %v11591 = vadd.f32 %v11026, %v11490
    %v11592 = vadd.f32 %v11027, %v11493
    %v11593 = vadd.f32 %v11028, %v11497
    %v11594 = vadd.f32 %v11029, %v11499
    %v11595 = vadd.f32 %v11030, %v11503
    %v11596 = vadd.f32 %v11031, %v11506
    %v11597 = vadd.f32 %v11032, %v11510
    %v11598 = vadd.f32 %v11033, %v11512
    %v11599 = vadd.f32 %v11034, %v11516
    %v11600 = vadd.f32 %v11035, %v11519
    %v11601 = vadd.f32 %v11036, %v11523
    %v11602 = vadd.f32 %v11037, %v11525
    %v11603 = vadd.f32 %v11038, %v11529
    %v11604 = vadd.f32 %v11039, %v11532
    %v11605 = vadd.f32 %v11040, %v11536
    %v11606 = vadd.f32 %v11041, %v11538
    %s11607 = scalar_lea.vmem %s2, 24
    %v11608 = vld [vmem:[%s11607] sm:$0xf]
    %v11611 = vunpack.c.l.b16 %v7695
    %v11612 = vunpack.c.l.b16 %v7696
    %v11613 = vpack.c.b16 %v9696, %v9695
    %v11614 = vpack.c.b16 %v11611, %v10211
    %v11615 = vpack.c.b16 %v11612, %v11612
    %v11616 = vsel %vm2016, %v7965, 0
    %v11619 = vsel %vm2016, %v11613, 0
    %v11622 = vsel %vm2016, %v11614, 0
    %v11625 = vsel %vm2016, %v11615, 0
    %v11628 = vsel %vm2176, %v11608, 0
    %11630 = vmatpush.bf16.msra.mxu0 0
    %11631 = vmatpush.bf16.msra.mxu0 0
    %11632 = vmatpush.bf16.msra.mxu0 0
    %11633 = vmatpush.bf16.msra.mxu0 0
    %11634 = vmatpush.bf16.msra.mxu0 0
    %11635 = vmatpush.bf16.msra.mxu0 0
    %11636 = vmatpush.bf16.msra.mxu0 0
    %11637 = vmatpush.bf16.msra.mxu0 %v11628
    %11638 = vmatmul.bf16.gmra.mxu0 %v8790
    %v11639 = vpop.f32.mrf.mxu0
    %v11640 = vadd.f32 0.0, %v11639
    %v11641 = vpop.f32.mrf.mxu0
    %v11642 = vadd.f32 0.0, %v11641
    %11643 = vmatmul.bf16.gmra.mxu0 %v8792
    %v11644 = vpop.f32.mrf.mxu0
    %v11645 = vpop.f32.mrf.mxu0
    %v11646 = vadd.f32 0.0, %v11645
    %11647 = vmatmul.bf16.gmra.mxu0 %v8794
    %v11648 = vpop.f32.mrf.mxu0
    %v11649 = vadd.f32 0.0, %v11648
    %v11650 = vpop.f32.mrf.mxu0
    %11651 = vmatmul.bf16.gmra.mxu0 %v8796
    %v11652 = vpop.f32.mrf.mxu0
    %v11653 = vadd.f32 0.0, %v11652
    %v11654 = vpop.f32.mrf.mxu0
    %v11655 = vadd.f32 0.0, %v11654
    %11656 = vmatmul.bf16.gmra.mxu0 %v8798
    %v11657 = vpop.f32.mrf.mxu0
    %v11658 = vpop.f32.mrf.mxu0
    %v11659 = vadd.f32 0.0, %v11658
    %11660 = vmatmul.bf16.gmra.mxu0 %v8800
    %v11661 = vpop.f32.mrf.mxu0
    %v11662 = vadd.f32 0.0, %v11661
    %v11663 = vpop.f32.mrf.mxu0
    %11664 = vmatmul.bf16.gmra.mxu0 %v8802
    %v11665 = vpop.f32.mrf.mxu0
    %v11666 = vadd.f32 0.0, %v11665
    %v11667 = vpop.f32.mrf.mxu0
    %v11668 = vadd.f32 0.0, %v11667
    %11669 = vmatmul.bf16.gmra.mxu0 %v8804
    %v11670 = vpop.f32.mrf.mxu0
    %v11671 = vpop.f32.mrf.mxu0
    %v11672 = vadd.f32 0.0, %v11671
    %11673 = vmatmul.bf16.gmra.mxu0 %v8806
    %v11674 = vpop.f32.mrf.mxu0
    %v11675 = vadd.f32 0.0, %v11674
    %v11676 = vpop.f32.mrf.mxu0
    %11677 = vmatmul.bf16.gmra.mxu0 %v8808
    %v11678 = vpop.f32.mrf.mxu0
    %v11679 = vadd.f32 0.0, %v11678
    %v11680 = vpop.f32.mrf.mxu0
    %v11681 = vadd.f32 0.0, %v11680
    %11682 = vmatmul.bf16.gmra.mxu0 %v8810
    %v11683 = vpop.f32.mrf.mxu0
    %v11684 = vpop.f32.mrf.mxu0
    %v11685 = vadd.f32 0.0, %v11684
    %11686 = vmatmul.bf16.gmra.mxu0 %v8812
    %v11687 = vpop.f32.mrf.mxu0
    %v11688 = vadd.f32 0.0, %v11687
    %v11689 = vpop.f32.mrf.mxu0
    %11690 = vmatmul.bf16.gmra.mxu0 %v8814
    %v11691 = vpop.f32.mrf.mxu0
    %v11692 = vadd.f32 0.0, %v11691
    %v11693 = vpop.f32.mrf.mxu0
    %v11694 = vadd.f32 0.0, %v11693
    %11695 = vmatmul.bf16.gmra.mxu0 %v8816
    %v11696 = vpop.f32.mrf.mxu0
    %v11697 = vpop.f32.mrf.mxu0
    %v11698 = vadd.f32 0.0, %v11697
    %11699 = vmatmul.bf16.gmra.mxu0 %v8818
    %v11700 = vpop.f32.mrf.mxu0
    %v11701 = vadd.f32 0.0, %v11700
    %v11702 = vpop.f32.mrf.mxu0
    %11703 = vmatmul.bf16.gmra.mxu0 %v8820
    %v11704 = vpop.f32.mrf.mxu0
    %v11705 = vadd.f32 0.0, %v11704
    %v11706 = vpop.f32.mrf.mxu0
    %v11707 = vadd.f32 0.0, %v11706
    %11708 = vmatmul.bf16.gmra.mxu0 %v8822
    %v11709 = vpop.f32.mrf.mxu0
    %v11710 = vpop.f32.mrf.mxu0
    %v11711 = vadd.f32 0.0, %v11710
    %11712 = vmatmul.bf16.gmra.mxu0 %v8824
    %v11713 = vpop.f32.mrf.mxu0
    %v11714 = vadd.f32 0.0, %v11713
    %v11715 = vpop.f32.mrf.mxu0
    %11716 = vmatmul.bf16.gmra.mxu0 %v8826
    %v11717 = vpop.f32.mrf.mxu0
    %v11718 = vadd.f32 0.0, %v11717
    %v11719 = vpop.f32.mrf.mxu0
    %v11720 = vadd.f32 0.0, %v11719
    %11721 = vmatmul.bf16.gmra.mxu0 %v8828
    %v11722 = vpop.f32.mrf.mxu0
    %v11723 = vpop.f32.mrf.mxu0
    %v11724 = vadd.f32 0.0, %v11723
    %11725 = vmatmul.bf16.gmra.mxu0 %v8830
    %v11726 = vpop.f32.mrf.mxu0
    %v11727 = vadd.f32 0.0, %v11726
    %v11728 = vpop.f32.mrf.mxu0
    %11729 = vmatmul.bf16.gmra.mxu0 %v8832
    %v11730 = vpop.f32.mrf.mxu0
    %v11731 = vadd.f32 0.0, %v11730
    %v11732 = vpop.f32.mrf.mxu0
    %v11733 = vadd.f32 0.0, %v11732
    %11734 = vmatmul.bf16.gmra.mxu0 %v8834
    %v11735 = vpop.f32.mrf.mxu0
    %v11736 = vpop.f32.mrf.mxu0
    %v11737 = vadd.f32 0.0, %v11736
    %11738 = vmatmul.bf16.gmra.mxu0 %v8836
    %v11739 = vpop.f32.mrf.mxu0
    %v11740 = vadd.f32 0.0, %v11739
    %v11741 = vpop.f32.mrf.mxu0
    %11742 = vmatmul.bf16.gmra.mxu0 %v8838
    %v11743 = vpop.f32.mrf.mxu0
    %v11744 = vpop.f32.mrf.mxu0
    %11745 = vmatmul.bf16.gmra.mxu0 %v8840
    %v11746 = vpop.f32.mrf.mxu0
    %v11747 = vpop.f32.mrf.mxu0
    %11748 = vmatmul.bf16.gmra.mxu0 %v8842
    %v11749 = vpop.f32.mrf.mxu0
    %v11750 = vpop.f32.mrf.mxu0
    %11751 = vmatmul.bf16.gmra.mxu0 %v8844
    %v11752 = vpop.f32.mrf.mxu0
    %v11753 = vpop.f32.mrf.mxu0
    %11754 = vmatmul.bf16.gmra.mxu0 %v8846
    %v11755 = vpop.f32.mrf.mxu0
    %v11756 = vpop.f32.mrf.mxu0
    %v11757 = vadd.f32 0.0, %v11756
    %11758 = vmatmul.bf16.gmra.mxu0 %v8848
    %v11759 = vpop.f32.mrf.mxu0
    %v11760 = vadd.f32 0.0, %v11759
    %v11761 = vpop.f32.mrf.mxu0
    %11762 = vmatmul.bf16.gmra.mxu0 %v8850
    %v11763 = vpop.f32.mrf.mxu0
    %v11764 = vadd.f32 0.0, %v11763
    %v11765 = vpop.f32.mrf.mxu0
    %v11766 = vadd.f32 0.0, %v11765
    %11767 = vmatmul.bf16.gmra.mxu0 %v8852
    %v11768 = vpop.f32.mrf.mxu0
    %v11769 = vpop.f32.mrf.mxu0
    %v11770 = vadd.f32 0.0, %v11769
    %11771 = vmatmul.bf16.gmra.mxu0 %v8854
    %v11772 = vpop.f32.mrf.mxu0
    %v11773 = vadd.f32 0.0, %v11772
    %v11774 = vpop.f32.mrf.mxu0
    %11775 = vmatmul.bf16.gmra.mxu0 %v8856
    %v11776 = vpop.f32.mrf.mxu0
    %v11777 = vadd.f32 0.0, %v11776
    %v11778 = vpop.f32.mrf.mxu0
    %v11779 = vadd.f32 0.0, %v11778
    %11780 = vmatmul.bf16.gmra.mxu0 %v8858
    %v11781 = vpop.f32.mrf.mxu0
    %v11782 = vpop.f32.mrf.mxu0
    %v11783 = vadd.f32 0.0, %v11782
    %11784 = vmatmul.bf16.gmra.mxu0 %v8860
    %v11785 = vpop.f32.mrf.mxu0
    %v11786 = vadd.f32 0.0, %v11785
    %v11787 = vpop.f32.mrf.mxu0
    %11788 = vmatmul.bf16.gmra.mxu0 %v8862
    %v11789 = vpop.f32.mrf.mxu0
    %v11790 = vadd.f32 0.0, %v11789
    %v11791 = vpop.f32.mrf.mxu0
    %v11792 = vadd.f32 0.0, %v11791
    %11793 = vmatmul.bf16.gmra.mxu0 %v8864
    %v11794 = vpop.f32.mrf.mxu0
    %v11795 = vpop.f32.mrf.mxu0
    %v11796 = vadd.f32 0.0, %v11795
    %11797 = vmatmul.bf16.gmra.mxu0 %v8866
    %v11798 = vpop.f32.mrf.mxu0
    %v11799 = vadd.f32 0.0, %v11798
    %v11800 = vpop.f32.mrf.mxu0
    %11801 = vmatmul.bf16.gmra.mxu0 %v8868
    %v11802 = vpop.f32.mrf.mxu0
    %v11803 = vadd.f32 0.0, %v11802
    %v11804 = vpop.f32.mrf.mxu0
    %v11805 = vadd.f32 0.0, %v11804
    %11806 = vmatmul.bf16.gmra.mxu0 %v8870
    %v11807 = vpop.f32.mrf.mxu0
    %v11808 = vpop.f32.mrf.mxu0
    %v11809 = vadd.f32 0.0, %v11808
    %11810 = vmatmul.bf16.gmra.mxu0 %v8872
    %v11811 = vpop.f32.mrf.mxu0
    %v11812 = vadd.f32 0.0, %v11811
    %v11813 = vpop.f32.mrf.mxu0
    %11814 = vmatmul.bf16.gmra.mxu0 %v8874
    %v11815 = vpop.f32.mrf.mxu0
    %v11816 = vadd.f32 0.0, %v11815
    %v11817 = vpop.f32.mrf.mxu0
    %v11818 = vadd.f32 0.0, %v11817
    %11819 = vmatmul.bf16.gmra.mxu0 %v8876
    %v11820 = vpop.f32.mrf.mxu0
    %v11821 = vpop.f32.mrf.mxu0
    %v11822 = vadd.f32 0.0, %v11821
    %11823 = vmatmul.bf16.gmra.mxu0 %v8878
    %v11824 = vpop.f32.mrf.mxu0
    %v11825 = vadd.f32 0.0, %v11824
    %v11826 = vpop.f32.mrf.mxu0
    %11827 = vmatmul.bf16.gmra.mxu0 %v8880
    %v11828 = vpop.f32.mrf.mxu0
    %v11829 = vadd.f32 0.0, %v11828
    %v11830 = vpop.f32.mrf.mxu0
    %v11831 = vadd.f32 0.0, %v11830
    %11832 = vmatmul.bf16.gmra.mxu0 %v8882
    %v11833 = vpop.f32.mrf.mxu0
    %v11834 = vpop.f32.mrf.mxu0
    %v11835 = vadd.f32 0.0, %v11834
    %11836 = vmatmul.bf16.gmra.mxu0 %v8884
    %v11837 = vpop.f32.mrf.mxu0
    %v11838 = vadd.f32 0.0, %v11837
    %v11839 = vpop.f32.mrf.mxu0
    %11840 = vmatmul.bf16.gmra.mxu0 %v8886
    %v11841 = vpop.f32.mrf.mxu0
    %v11842 = vadd.f32 0.0, %v11841
    %v11843 = vpop.f32.mrf.mxu0
    %v11844 = vadd.f32 0.0, %v11843
    %11845 = vmatmul.bf16.gmra.mxu0 %v11616
    %v11846 = vpop.f32.mrf.mxu0
    %v11847 = vpop.f32.mrf.mxu0
    %v11848 = vadd.f32 0.0, %v11847
    %11849 = vmatmul.bf16.gmra.mxu0 %v11619
    %v11850 = vpop.f32.mrf.mxu0
    %v11851 = vadd.f32 0.0, %v11850
    %v11852 = vpop.f32.mrf.mxu0
    %11853 = vmatmul.bf16.gmra.mxu0 %v11622
    %v11854 = vpop.f32.mrf.mxu0
    %v11855 = vadd.f32 0.0, %v11854
    %v11856 = vpop.f32.mrf.mxu0
    %v11857 = vadd.f32 0.0, %v11856
    %11858 = vmatmul.bf16.gmra.mxu0 %v11625
    %v11859 = vpop.f32.mrf.mxu0
    %v11860 = vpop.f32.mrf.mxu0
    %11861 = vdwg.mxu0
    %v11862 = vadd.f32 %v11543, %v11640
    %v11863 = vadd.f32 %v11544, %v11642
    %v11864 = vadd.f32 %v11545, %v11646
    %v11865 = vadd.f32 %v11546, %v11649
    %v11866 = vadd.f32 %v11547, %v11653
    %v11867 = vadd.f32 %v11548, %v11655
    %v11868 = vadd.f32 %v11549, %v11659
    %v11869 = vadd.f32 %v11550, %v11662
    %v11870 = vadd.f32 %v11551, %v11666
    %v11871 = vadd.f32 %v11552, %v11668
    %v11872 = vadd.f32 %v11553, %v11672
    %v11873 = vadd.f32 %v11554, %v11675
    %v11874 = vadd.f32 %v11555, %v11679
    %v11875 = vadd.f32 %v11556, %v11681
    %v11876 = vadd.f32 %v11557, %v11685
    %v11877 = vadd.f32 %v11558, %v11688
    %v11878 = vadd.f32 %v11559, %v11692
    %v11879 = vadd.f32 %v11560, %v11694
    %v11880 = vadd.f32 %v11561, %v11698
    %v11881 = vadd.f32 %v11562, %v11701
    %v11882 = vadd.f32 %v11563, %v11705
    %v11883 = vadd.f32 %v11564, %v11707
    %v11884 = vadd.f32 %v11565, %v11711
    %v11885 = vadd.f32 %v11566, %v11714
    %v11886 = vadd.f32 %v11567, %v11718
    %v11887 = vadd.f32 %v11568, %v11720
    %v11888 = vadd.f32 %v11569, %v11724
    %v11889 = vadd.f32 %v11570, %v11727
    %v11890 = vadd.f32 %v11571, %v11731
    %v11891 = vadd.f32 %v11572, %v11733
    %v11892 = vadd.f32 %v11573, %v11737
    %v11893 = vadd.f32 %v11574, %v11740
    %v11894 = vadd.f32 %v11575, %v11757
    %v11895 = vadd.f32 %v11576, %v11760
    %v11896 = vadd.f32 %v11577, %v11764
    %v11897 = vadd.f32 %v11578, %v11766
    %v11898 = vadd.f32 %v11579, %v11770
    %v11899 = vadd.f32 %v11580, %v11773
    %v11900 = vadd.f32 %v11581, %v11777
    %v11901 = vadd.f32 %v11582, %v11779
    %v11902 = vadd.f32 %v11583, %v11783
    %v11903 = vadd.f32 %v11584, %v11786
    %v11904 = vadd.f32 %v11585, %v11790
    %v11905 = vadd.f32 %v11586, %v11792
    %v11906 = vadd.f32 %v11587, %v11796
    %v11907 = vadd.f32 %v11588, %v11799
    %v11908 = vadd.f32 %v11589, %v11803
    %v11909 = vadd.f32 %v11590, %v11805
    %v11910 = vadd.f32 %v11591, %v11809
    %v11911 = vadd.f32 %v11592, %v11812
    %v11912 = vadd.f32 %v11593, %v11816
    %v11913 = vadd.f32 %v11594, %v11818
    %v11914 = vadd.f32 %v11595, %v11822
    %v11915 = vadd.f32 %v11596, %v11825
    %v11916 = vadd.f32 %v11597, %v11829
    %v11917 = vadd.f32 %v11598, %v11831
    %v11918 = vadd.f32 %v11599, %v11835
    %v11919 = vadd.f32 %v11600, %v11838
    %v11920 = vadd.f32 %v11601, %v11842
    %v11921 = vadd.f32 %v11602, %v11844
    %v11922 = vadd.f32 %v11603, %v11848
    %v11923 = vadd.f32 %v11604, %v11851
    %v11924 = vadd.f32 %v11605, %v11855
    %v11925 = vadd.f32 %v11606, %v11857
    %s11926 = scalar_lea.vmem %s2, 28
    %v11927 = vld [vmem:[%s11926] sm:$0xf]
    %v11929 = vunpack.c.l.b16 %v7697
    %v11930 = vpack.c.b16 %v11929, %v11612
    %v11931 = vshll.u32 %v11613, 16
    %v11933 = vrot.slane %v11931, 1
    %v11934 = vsel %vm1592, %v8388, %v11933
    %v11935 = vshrl.u32 %v11613, 16
    %v11937 = vor.u32 %v11935, %v11933
    %v11938 = vshll.u32 %v11614, 16
    %v11940 = vrot.slane %v11938, 1
    %v11941 = vsel %vm1592, %v11937, %v11940
    %v11942 = vshrl.u32 %v11614, 16
    %v11944 = vor.u32 %v11942, %v11940
    %v11946 = vshll.u32 %v11930, 16
    %v11948 = vrot.slane %v11946, 1
    %v11949 = vsel %vm1592, %v11944, %v11948
    %v11950 = vshrl.u32 %v11930, 16
    %v11952 = vor.u32 %v11950, %v11948
    %v11954 = vsel %vm2016, %v11934, 0
    %v11957 = vsel %vm2016, %v11941, 0
    %v11960 = vsel %vm2016, %v11949, 0
    %v11963 = vsel %vm2016, %v11952, 0
    %v11966 = vsel %vm2176, %v11927, 0
    %11968 = vmatpush.bf16.msra.mxu0 0
    %11969 = vmatpush.bf16.msra.mxu0 0
    %11970 = vmatpush.bf16.msra.mxu0 0
    %11971 = vmatpush.bf16.msra.mxu0 0
    %11972 = vmatpush.bf16.msra.mxu0 0
    %11973 = vmatpush.bf16.msra.mxu0 0
    %11974 = vmatpush.bf16.msra.mxu0 0
    %11975 = vmatpush.bf16.msra.mxu0 %v11966
    %11976 = vmatmul.bf16.gmra.mxu0 %v8399
    %v11977 = vpop.f32.mrf.mxu0
    %v11978 = vadd.f32 0.0, %v11977
    %v11979 = vpop.f32.mrf.mxu0
    %v11980 = vadd.f32 0.0, %v11979
    %11981 = vmatmul.bf16.gmra.mxu0 %v8402
    %v11982 = vpop.f32.mrf.mxu0
    %v11983 = vpop.f32.mrf.mxu0
    %v11984 = vadd.f32 0.0, %v11983
    %11985 = vmatmul.bf16.gmra.mxu0 %v8405
    %v11986 = vpop.f32.mrf.mxu0
    %v11987 = vadd.f32 0.0, %v11986
    %v11988 = vpop.f32.mrf.mxu0
    %11989 = vmatmul.bf16.gmra.mxu0 %v8408
    %v11990 = vpop.f32.mrf.mxu0
    %v11991 = vadd.f32 0.0, %v11990
    %v11992 = vpop.f32.mrf.mxu0
    %v11993 = vadd.f32 0.0, %v11992
    %11994 = vmatmul.bf16.gmra.mxu0 %v8411
    %v11995 = vpop.f32.mrf.mxu0
    %v11996 = vpop.f32.mrf.mxu0
    %v11997 = vadd.f32 0.0, %v11996
    %11998 = vmatmul.bf16.gmra.mxu0 %v8414
    %v11999 = vpop.f32.mrf.mxu0
    %v12000 = vadd.f32 0.0, %v11999
    %v12001 = vpop.f32.mrf.mxu0
    %12002 = vmatmul.bf16.gmra.mxu0 %v8417
    %v12003 = vpop.f32.mrf.mxu0
    %v12004 = vadd.f32 0.0, %v12003
    %v12005 = vpop.f32.mrf.mxu0
    %v12006 = vadd.f32 0.0, %v12005
    %12007 = vmatmul.bf16.gmra.mxu0 %v8420
    %v12008 = vpop.f32.mrf.mxu0
    %v12009 = vpop.f32.mrf.mxu0
    %v12010 = vadd.f32 0.0, %v12009
    %12011 = vmatmul.bf16.gmra.mxu0 %v8423
    %v12012 = vpop.f32.mrf.mxu0
    %v12013 = vadd.f32 0.0, %v12012
    %v12014 = vpop.f32.mrf.mxu0
    %12015 = vmatmul.bf16.gmra.mxu0 %v8426
    %v12016 = vpop.f32.mrf.mxu0
    %v12017 = vadd.f32 0.0, %v12016
    %v12018 = vpop.f32.mrf.mxu0
    %v12019 = vadd.f32 0.0, %v12018
    %12020 = vmatmul.bf16.gmra.mxu0 %v8429
    %v12021 = vpop.f32.mrf.mxu0
    %v12022 = vpop.f32.mrf.mxu0
    %v12023 = vadd.f32 0.0, %v12022
    %12024 = vmatmul.bf16.gmra.mxu0 %v8432
    %v12025 = vpop.f32.mrf.mxu0
    %v12026 = vadd.f32 0.0, %v12025
    %v12027 = vpop.f32.mrf.mxu0
    %12028 = vmatmul.bf16.gmra.mxu0 %v8435
    %v12029 = vpop.f32.mrf.mxu0
    %v12030 = vadd.f32 0.0, %v12029
    %v12031 = vpop.f32.mrf.mxu0
    %v12032 = vadd.f32 0.0, %v12031
    %12033 = vmatmul.bf16.gmra.mxu0 %v8438
    %v12034 = vpop.f32.mrf.mxu0
    %v12035 = vpop.f32.mrf.mxu0
    %v12036 = vadd.f32 0.0, %v12035
    %12037 = vmatmul.bf16.gmra.mxu0 %v8441
    %v12038 = vpop.f32.mrf.mxu0
    %v12039 = vadd.f32 0.0, %v12038
    %v12040 = vpop.f32.mrf.mxu0
    %12041 = vmatmul.bf16.gmra.mxu0 %v8444
    %v12042 = vpop.f32.mrf.mxu0
    %v12043 = vadd.f32 0.0, %v12042
    %v12044 = vpop.f32.mrf.mxu0
    %v12045 = vadd.f32 0.0, %v12044
    %12046 = vmatmul.bf16.gmra.mxu0 %v8447
    %v12047 = vpop.f32.mrf.mxu0
    %v12048 = vpop.f32.mrf.mxu0
    %v12049 = vadd.f32 0.0, %v12048
    %12050 = vmatmul.bf16.gmra.mxu0 %v8450
    %v12051 = vpop.f32.mrf.mxu0
    %v12052 = vadd.f32 0.0, %v12051
    %v12053 = vpop.f32.mrf.mxu0
    %12054 = vmatmul.bf16.gmra.mxu0 %v8453
    %v12055 = vpop.f32.mrf.mxu0
    %v12056 = vadd.f32 0.0, %v12055
    %v12057 = vpop.f32.mrf.mxu0
    %v12058 = vadd.f32 0.0, %v12057
    %12059 = vmatmul.bf16.gmra.mxu0 %v8456
    %v12060 = vpop.f32.mrf.mxu0
    %v12061 = vpop.f32.mrf.mxu0
    %v12062 = vadd.f32 0.0, %v12061
    %12063 = vmatmul.bf16.gmra.mxu0 %v8459
    %v12064 = vpop.f32.mrf.mxu0
    %v12065 = vadd.f32 0.0, %v12064
    %v12066 = vpop.f32.mrf.mxu0
    %12067 = vmatmul.bf16.gmra.mxu0 %v8462
    %v12068 = vpop.f32.mrf.mxu0
    %v12069 = vadd.f32 0.0, %v12068
    %v12070 = vpop.f32.mrf.mxu0
    %v12071 = vadd.f32 0.0, %v12070
    %12072 = vmatmul.bf16.gmra.mxu0 %v8465
    %v12073 = vpop.f32.mrf.mxu0
    %v12074 = vpop.f32.mrf.mxu0
    %v12075 = vadd.f32 0.0, %v12074
    %12076 = vmatmul.bf16.gmra.mxu0 %v8468
    %v12077 = vpop.f32.mrf.mxu0
    %v12078 = vadd.f32 0.0, %v12077
    %v12079 = vpop.f32.mrf.mxu0
    %12080 = vmatmul.bf16.gmra.mxu0 %v8471
    %v12081 = vpop.f32.mrf.mxu0
    %v12082 = vpop.f32.mrf.mxu0
    %12083 = vmatmul.bf16.gmra.mxu0 %v8474
    %v12084 = vpop.f32.mrf.mxu0
    %v12085 = vpop.f32.mrf.mxu0
    %12086 = vmatmul.bf16.gmra.mxu0 %v8477
    %v12087 = vpop.f32.mrf.mxu0
    %v12088 = vpop.f32.mrf.mxu0
    %12089 = vmatmul.bf16.gmra.mxu0 %v8480
    %v12090 = vpop.f32.mrf.mxu0
    %v12091 = vpop.f32.mrf.mxu0
    %12092 = vmatmul.bf16.gmra.mxu0 %v8483
    %v12093 = vpop.f32.mrf.mxu0
    %v12094 = vpop.f32.mrf.mxu0
    %v12095 = vadd.f32 0.0, %v12094
    %12096 = vmatmul.bf16.gmra.mxu0 %v8486
    %v12097 = vpop.f32.mrf.mxu0
    %v12098 = vadd.f32 0.0, %v12097
    %v12099 = vpop.f32.mrf.mxu0
    %12100 = vmatmul.bf16.gmra.mxu0 %v8489
    %v12101 = vpop.f32.mrf.mxu0
    %v12102 = vadd.f32 0.0, %v12101
    %v12103 = vpop.f32.mrf.mxu0
    %v12104 = vadd.f32 0.0, %v12103
    %12105 = vmatmul.bf16.gmra.mxu0 %v8492
    %v12106 = vpop.f32.mrf.mxu0
    %v12107 = vpop.f32.mrf.mxu0
    %v12108 = vadd.f32 0.0, %v12107
    %12109 = vmatmul.bf16.gmra.mxu0 %v8495
    %v12110 = vpop.f32.mrf.mxu0
    %v12111 = vadd.f32 0.0, %v12110
    %v12112 = vpop.f32.mrf.mxu0
    %12113 = vmatmul.bf16.gmra.mxu0 %v8498
    %v12114 = vpop.f32.mrf.mxu0
    %v12115 = vadd.f32 0.0, %v12114
    %v12116 = vpop.f32.mrf.mxu0
    %v12117 = vadd.f32 0.0, %v12116
    %12118 = vmatmul.bf16.gmra.mxu0 %v8501
    %v12119 = vpop.f32.mrf.mxu0
    %v12120 = vpop.f32.mrf.mxu0
    %v12121 = vadd.f32 0.0, %v12120
    %12122 = vmatmul.bf16.gmra.mxu0 %v8504
    %v12123 = vpop.f32.mrf.mxu0
    %v12124 = vadd.f32 0.0, %v12123
    %v12125 = vpop.f32.mrf.mxu0
    %12126 = vmatmul.bf16.gmra.mxu0 %v8507
    %v12127 = vpop.f32.mrf.mxu0
    %v12128 = vadd.f32 0.0, %v12127
    %v12129 = vpop.f32.mrf.mxu0
    %v12130 = vadd.f32 0.0, %v12129
    %12131 = vmatmul.bf16.gmra.mxu0 %v8510
    %v12132 = vpop.f32.mrf.mxu0
    %v12133 = vpop.f32.mrf.mxu0
    %v12134 = vadd.f32 0.0, %v12133
    %12135 = vmatmul.bf16.gmra.mxu0 %v8513
    %v12136 = vpop.f32.mrf.mxu0
    %v12137 = vadd.f32 0.0, %v12136
    %v12138 = vpop.f32.mrf.mxu0
    %12139 = vmatmul.bf16.gmra.mxu0 %v8516
    %v12140 = vpop.f32.mrf.mxu0
    %v12141 = vadd.f32 0.0, %v12140
    %v12142 = vpop.f32.mrf.mxu0
    %v12143 = vadd.f32 0.0, %v12142
    %12144 = vmatmul.bf16.gmra.mxu0 %v8519
    %v12145 = vpop.f32.mrf.mxu0
    %v12146 = vpop.f32.mrf.mxu0
    %v12147 = vadd.f32 0.0, %v12146
    %12148 = vmatmul.bf16.gmra.mxu0 %v8522
    %v12149 = vpop.f32.mrf.mxu0
    %v12150 = vadd.f32 0.0, %v12149
    %v12151 = vpop.f32.mrf.mxu0
    %12152 = vmatmul.bf16.gmra.mxu0 %v8525
    %v12153 = vpop.f32.mrf.mxu0
    %v12154 = vadd.f32 0.0, %v12153
    %v12155 = vpop.f32.mrf.mxu0
    %v12156 = vadd.f32 0.0, %v12155
    %12157 = vmatmul.bf16.gmra.mxu0 %v8528
    %v12158 = vpop.f32.mrf.mxu0
    %v12159 = vpop.f32.mrf.mxu0
    %v12160 = vadd.f32 0.0, %v12159
    %12161 = vmatmul.bf16.gmra.mxu0 %v8531
    %v12162 = vpop.f32.mrf.mxu0
    %v12163 = vadd.f32 0.0, %v12162
    %v12164 = vpop.f32.mrf.mxu0
    %12165 = vmatmul.bf16.gmra.mxu0 %v8534
    %v12166 = vpop.f32.mrf.mxu0
    %v12167 = vadd.f32 0.0, %v12166
    %v12168 = vpop.f32.mrf.mxu0
    %v12169 = vadd.f32 0.0, %v12168
    %12170 = vmatmul.bf16.gmra.mxu0 %v8537
    %v12171 = vpop.f32.mrf.mxu0
    %v12172 = vpop.f32.mrf.mxu0
    %v12173 = vadd.f32 0.0, %v12172
    %12174 = vmatmul.bf16.gmra.mxu0 %v8540
    %v12175 = vpop.f32.mrf.mxu0
    %v12176 = vadd.f32 0.0, %v12175
    %v12177 = vpop.f32.mrf.mxu0
    %12178 = vmatmul.bf16.gmra.mxu0 %v8543
    %v12179 = vpop.f32.mrf.mxu0
    %v12180 = vadd.f32 0.0, %v12179
    %v12181 = vpop.f32.mrf.mxu0
    %v12182 = vadd.f32 0.0, %v12181
    %12183 = vmatmul.bf16.gmra.mxu0 %v11954
    %v12184 = vpop.f32.mrf.mxu0
    %v12185 = vpop.f32.mrf.mxu0
    %v12186 = vadd.f32 0.0, %v12185
    %12187 = vmatmul.bf16.gmra.mxu0 %v11957
    %v12188 = vpop.f32.mrf.mxu0
    %v12189 = vadd.f32 0.0, %v12188
    %v12190 = vpop.f32.mrf.mxu0
    %12191 = vmatmul.bf16.gmra.mxu0 %v11960
    %v12192 = vpop.f32.mrf.mxu0
    %v12193 = vadd.f32 0.0, %v12192
    %v12194 = vpop.f32.mrf.mxu0
    %v12195 = vadd.f32 0.0, %v12194
    %12196 = vmatmul.bf16.gmra.mxu0 %v11963
    %v12197 = vpop.f32.mrf.mxu0
    %v12198 = vpop.f32.mrf.mxu0
    %12199 = vdwg.mxu0
    %v12200 = vadd.f32 %v11862, %v11978
    %v12201 = vadd.f32 %v11863, %v11980
    %v12202 = vadd.f32 %v11864, %v11984
    %v12203 = vadd.f32 %v11865, %v11987
    %v12204 = vadd.f32 %v11866, %v11991
    %v12205 = vadd.f32 %v11867, %v11993
    %v12206 = vadd.f32 %v11868, %v11997
    %v12207 = vadd.f32 %v11869, %v12000
    %v12208 = vadd.f32 %v11870, %v12004
    %v12209 = vadd.f32 %v11871, %v12006
    %v12210 = vadd.f32 %v11872, %v12010
    %v12211 = vadd.f32 %v11873, %v12013
    %v12212 = vadd.f32 %v11874, %v12017
    %v12213 = vadd.f32 %v11875, %v12019
    %v12214 = vadd.f32 %v11876, %v12023
    %v12215 = vadd.f32 %v11877, %v12026
    %v12216 = vadd.f32 %v11878, %v12030
    %v12217 = vadd.f32 %v11879, %v12032
    %v12218 = vadd.f32 %v11880, %v12036
    %v12219 = vadd.f32 %v11881, %v12039
    %v12220 = vadd.f32 %v11882, %v12043
    %v12221 = vadd.f32 %v11883, %v12045
    %v12222 = vadd.f32 %v11884, %v12049
    %v12223 = vadd.f32 %v11885, %v12052
    %v12224 = vadd.f32 %v11886, %v12056
    %v12225 = vadd.f32 %v11887, %v12058
    %v12226 = vadd.f32 %v11888, %v12062
    %v12227 = vadd.f32 %v11889, %v12065
    %v12228 = vadd.f32 %v11890, %v12069
    %v12229 = vadd.f32 %v11891, %v12071
    %v12230 = vadd.f32 %v11892, %v12075
    %v12231 = vadd.f32 %v11893, %v12078
    %v12232 = vadd.f32 %v11894, %v12095
    %v12233 = vadd.f32 %v11895, %v12098
    %v12234 = vadd.f32 %v11896, %v12102
    %v12235 = vadd.f32 %v11897, %v12104
    %v12236 = vadd.f32 %v11898, %v12108
    %v12237 = vadd.f32 %v11899, %v12111
    %v12238 = vadd.f32 %v11900, %v12115
    %v12239 = vadd.f32 %v11901, %v12117
    %v12240 = vadd.f32 %v11902, %v12121
    %v12241 = vadd.f32 %v11903, %v12124
    %v12242 = vadd.f32 %v11904, %v12128
    %v12243 = vadd.f32 %v11905, %v12130
    %v12244 = vadd.f32 %v11906, %v12134
    %v12245 = vadd.f32 %v11907, %v12137
    %v12246 = vadd.f32 %v11908, %v12141
    %v12247 = vadd.f32 %v11909, %v12143
    %v12248 = vadd.f32 %v11910, %v12147
    %v12249 = vadd.f32 %v11911, %v12150
    %v12250 = vadd.f32 %v11912, %v12154
    %v12251 = vadd.f32 %v11913, %v12156
    %v12252 = vadd.f32 %v11914, %v12160
    %v12253 = vadd.f32 %v11915, %v12163
    %v12254 = vadd.f32 %v11916, %v12167
    %v12255 = vadd.f32 %v11917, %v12169
    %v12256 = vadd.f32 %v11918, %v12173
    %v12257 = vadd.f32 %v11919, %v12176
    %v12258 = vadd.f32 %v11920, %v12180
    %v12259 = vadd.f32 %v11921, %v12182
    %v12260 = vadd.f32 %v11922, %v12186
    %v12261 = vadd.f32 %v11923, %v12189
    %v12262 = vadd.f32 %v11924, %v12193
    %v12263 = vadd.f32 %v11925, %v12195
    %s12264 = scalar_lea.vmem %s2, 32
    %v12265 = vld [vmem:[%s12264] sm:$0xf]
    %v12266 = vrot.slane %v11613, 1
    %v12267 = vsel %vm2757, %v9231, %v12266
    %v12268 = vrot.slane %v11614, 1
    %v12269 = vsel %vm2757, %v12266, %v12268
    %v12270 = vrot.slane %v11930, 1
    %v12271 = vsel %vm2757, %v12268, %v12270
    %v12273 = vsel %vm2016, %v12267, 0
    %v12276 = vsel %vm2016, %v12269, 0
    %v12279 = vsel %vm2016, %v12271, 0
    %v12282 = vsel %vm2016, %v12270, 0
    %v12285 = vsel %vm2176, %v12265, 0
    %12287 = vmatpush.bf16.msra.mxu0 0
    %12288 = vmatpush.bf16.msra.mxu0 0
    %12289 = vmatpush.bf16.msra.mxu0 0
    %12290 = vmatpush.bf16.msra.mxu0 0
    %12291 = vmatpush.bf16.msra.mxu0 0
    %12292 = vmatpush.bf16.msra.mxu0 0
    %12293 = vmatpush.bf16.msra.mxu0 0
    %12294 = vmatpush.bf16.msra.mxu0 %v12285
    %12295 = vmatmul.bf16.gmra.mxu0 %v9243
    %v12296 = vpop.f32.mrf.mxu0
    %v12297 = vadd.f32 0.0, %v12296
    %v12298 = vpop.f32.mrf.mxu0
    %v12299 = vadd.f32 0.0, %v12298
    %12300 = vmatmul.bf16.gmra.mxu0 %v9246
    %v12301 = vpop.f32.mrf.mxu0
    %v12302 = vpop.f32.mrf.mxu0
    %v12303 = vadd.f32 0.0, %v12302
    %12304 = vmatmul.bf16.gmra.mxu0 %v9249
    %v12305 = vpop.f32.mrf.mxu0
    %v12306 = vadd.f32 0.0, %v12305
    %v12307 = vpop.f32.mrf.mxu0
    %12308 = vmatmul.bf16.gmra.mxu0 %v9252
    %v12309 = vpop.f32.mrf.mxu0
    %v12310 = vadd.f32 0.0, %v12309
    %v12311 = vpop.f32.mrf.mxu0
    %v12312 = vadd.f32 0.0, %v12311
    %12313 = vmatmul.bf16.gmra.mxu0 %v9255
    %v12314 = vpop.f32.mrf.mxu0
    %v12315 = vpop.f32.mrf.mxu0
    %v12316 = vadd.f32 0.0, %v12315
    %12317 = vmatmul.bf16.gmra.mxu0 %v9258
    %v12318 = vpop.f32.mrf.mxu0
    %v12319 = vadd.f32 0.0, %v12318
    %v12320 = vpop.f32.mrf.mxu0
    %12321 = vmatmul.bf16.gmra.mxu0 %v9261
    %v12322 = vpop.f32.mrf.mxu0
    %v12323 = vadd.f32 0.0, %v12322
    %v12324 = vpop.f32.mrf.mxu0
    %v12325 = vadd.f32 0.0, %v12324
    %12326 = vmatmul.bf16.gmra.mxu0 %v9264
    %v12327 = vpop.f32.mrf.mxu0
    %v12328 = vpop.f32.mrf.mxu0
    %v12329 = vadd.f32 0.0, %v12328
    %12330 = vmatmul.bf16.gmra.mxu0 %v9267
    %v12331 = vpop.f32.mrf.mxu0
    %v12332 = vadd.f32 0.0, %v12331
    %v12333 = vpop.f32.mrf.mxu0
    %12334 = vmatmul.bf16.gmra.mxu0 %v9270
    %v12335 = vpop.f32.mrf.mxu0
    %v12336 = vadd.f32 0.0, %v12335
    %v12337 = vpop.f32.mrf.mxu0
    %v12338 = vadd.f32 0.0, %v12337
    %12339 = vmatmul.bf16.gmra.mxu0 %v9273
    %v12340 = vpop.f32.mrf.mxu0
    %v12341 = vpop.f32.mrf.mxu0
    %v12342 = vadd.f32 0.0, %v12341
    %12343 = vmatmul.bf16.gmra.mxu0 %v9276
    %v12344 = vpop.f32.mrf.mxu0
    %v12345 = vadd.f32 0.0, %v12344
    %v12346 = vpop.f32.mrf.mxu0
    %12347 = vmatmul.bf16.gmra.mxu0 %v9279
    %v12348 = vpop.f32.mrf.mxu0
    %v12349 = vadd.f32 0.0, %v12348
    %v12350 = vpop.f32.mrf.mxu0
    %v12351 = vadd.f32 0.0, %v12350
    %12352 = vmatmul.bf16.gmra.mxu0 %v9282
    %v12353 = vpop.f32.mrf.mxu0
    %v12354 = vpop.f32.mrf.mxu0
    %v12355 = vadd.f32 0.0, %v12354
    %12356 = vmatmul.bf16.gmra.mxu0 %v9285
    %v12357 = vpop.f32.mrf.mxu0
    %v12358 = vadd.f32 0.0, %v12357
    %v12359 = vpop.f32.mrf.mxu0
    %12360 = vmatmul.bf16.gmra.mxu0 %v9288
    %v12361 = vpop.f32.mrf.mxu0
    %v12362 = vadd.f32 0.0, %v12361
    %v12363 = vpop.f32.mrf.mxu0
    %v12364 = vadd.f32 0.0, %v12363
    %12365 = vmatmul.bf16.gmra.mxu0 %v9291
    %v12366 = vpop.f32.mrf.mxu0
    %v12367 = vpop.f32.mrf.mxu0
    %v12368 = vadd.f32 0.0, %v12367
    %12369 = vmatmul.bf16.gmra.mxu0 %v9294
    %v12370 = vpop.f32.mrf.mxu0
    %v12371 = vadd.f32 0.0, %v12370
    %v12372 = vpop.f32.mrf.mxu0
    %12373 = vmatmul.bf16.gmra.mxu0 %v9297
    %v12374 = vpop.f32.mrf.mxu0
    %v12375 = vadd.f32 0.0, %v12374
    %v12376 = vpop.f32.mrf.mxu0
    %v12377 = vadd.f32 0.0, %v12376
    %12378 = vmatmul.bf16.gmra.mxu0 %v9300
    %v12379 = vpop.f32.mrf.mxu0
    %v12380 = vpop.f32.mrf.mxu0
    %v12381 = vadd.f32 0.0, %v12380
    %12382 = vmatmul.bf16.gmra.mxu0 %v9303
    %v12383 = vpop.f32.mrf.mxu0
    %v12384 = vadd.f32 0.0, %v12383
    %v12385 = vpop.f32.mrf.mxu0
    %12386 = vmatmul.bf16.gmra.mxu0 %v9306
    %v12387 = vpop.f32.mrf.mxu0
    %v12388 = vadd.f32 0.0, %v12387
    %v12389 = vpop.f32.mrf.mxu0
    %v12390 = vadd.f32 0.0, %v12389
    %12391 = vmatmul.bf16.gmra.mxu0 %v9309
    %v12392 = vpop.f32.mrf.mxu0
    %v12393 = vpop.f32.mrf.mxu0
    %v12394 = vadd.f32 0.0, %v12393
    %12395 = vmatmul.bf16.gmra.mxu0 %v9312
    %v12396 = vpop.f32.mrf.mxu0
    %v12397 = vadd.f32 0.0, %v12396
    %v12398 = vpop.f32.mrf.mxu0
    %12399 = vmatmul.bf16.gmra.mxu0 %v9315
    %v12400 = vpop.f32.mrf.mxu0
    %v12401 = vpop.f32.mrf.mxu0
    %12402 = vmatmul.bf16.gmra.mxu0 %v9318
    %v12403 = vpop.f32.mrf.mxu0
    %v12404 = vpop.f32.mrf.mxu0
    %12405 = vmatmul.bf16.gmra.mxu0 %v9321
    %v12406 = vpop.f32.mrf.mxu0
    %v12407 = vpop.f32.mrf.mxu0
    %12408 = vmatmul.bf16.gmra.mxu0 %v9324
    %v12409 = vpop.f32.mrf.mxu0
    %v12410 = vpop.f32.mrf.mxu0
    %12411 = vmatmul.bf16.gmra.mxu0 %v9327
    %v12412 = vpop.f32.mrf.mxu0
    %v12413 = vpop.f32.mrf.mxu0
    %v12414 = vadd.f32 0.0, %v12413
    %12415 = vmatmul.bf16.gmra.mxu0 %v9330
    %v12416 = vpop.f32.mrf.mxu0
    %v12417 = vadd.f32 0.0, %v12416
    %v12418 = vpop.f32.mrf.mxu0
    %12419 = vmatmul.bf16.gmra.mxu0 %v9333
    %v12420 = vpop.f32.mrf.mxu0
    %v12421 = vadd.f32 0.0, %v12420
    %v12422 = vpop.f32.mrf.mxu0
    %v12423 = vadd.f32 0.0, %v12422
    %12424 = vmatmul.bf16.gmra.mxu0 %v9336
    %v12425 = vpop.f32.mrf.mxu0
    %v12426 = vpop.f32.mrf.mxu0
    %v12427 = vadd.f32 0.0, %v12426
    %12428 = vmatmul.bf16.gmra.mxu0 %v9339
    %v12429 = vpop.f32.mrf.mxu0
    %v12430 = vadd.f32 0.0, %v12429
    %v12431 = vpop.f32.mrf.mxu0
    %12432 = vmatmul.bf16.gmra.mxu0 %v9342
    %v12433 = vpop.f32.mrf.mxu0
    %v12434 = vadd.f32 0.0, %v12433
    %v12435 = vpop.f32.mrf.mxu0
    %v12436 = vadd.f32 0.0, %v12435
    %12437 = vmatmul.bf16.gmra.mxu0 %v9345
    %v12438 = vpop.f32.mrf.mxu0
    %v12439 = vpop.f32.mrf.mxu0
    %v12440 = vadd.f32 0.0, %v12439
    %12441 = vmatmul.bf16.gmra.mxu0 %v9348
    %v12442 = vpop.f32.mrf.mxu0
    %v12443 = vadd.f32 0.0, %v12442
    %v12444 = vpop.f32.mrf.mxu0
    %12445 = vmatmul.bf16.gmra.mxu0 %v9351
    %v12446 = vpop.f32.mrf.mxu0
    %v12447 = vadd.f32 0.0, %v12446
    %v12448 = vpop.f32.mrf.mxu0
    %v12449 = vadd.f32 0.0, %v12448
    %12450 = vmatmul.bf16.gmra.mxu0 %v9354
    %v12451 = vpop.f32.mrf.mxu0
    %v12452 = vpop.f32.mrf.mxu0
    %v12453 = vadd.f32 0.0, %v12452
    %12454 = vmatmul.bf16.gmra.mxu0 %v9357
    %v12455 = vpop.f32.mrf.mxu0
    %v12456 = vadd.f32 0.0, %v12455
    %v12457 = vpop.f32.mrf.mxu0
    %12458 = vmatmul.bf16.gmra.mxu0 %v9360
    %v12459 = vpop.f32.mrf.mxu0
    %v12460 = vadd.f32 0.0, %v12459
    %v12461 = vpop.f32.mrf.mxu0
    %v12462 = vadd.f32 0.0, %v12461
    %12463 = vmatmul.bf16.gmra.mxu0 %v9363
    %v12464 = vpop.f32.mrf.mxu0
    %v12465 = vpop.f32.mrf.mxu0
    %v12466 = vadd.f32 0.0, %v12465
    %12467 = vmatmul.bf16.gmra.mxu0 %v9366
    %v12468 = vpop.f32.mrf.mxu0
    %v12469 = vadd.f32 0.0, %v12468
    %v12470 = vpop.f32.mrf.mxu0
    %12471 = vmatmul.bf16.gmra.mxu0 %v9369
    %v12472 = vpop.f32.mrf.mxu0
    %v12473 = vadd.f32 0.0, %v12472
    %v12474 = vpop.f32.mrf.mxu0
    %v12475 = vadd.f32 0.0, %v12474
    %12476 = vmatmul.bf16.gmra.mxu0 %v9372
    %v12477 = vpop.f32.mrf.mxu0
    %v12478 = vpop.f32.mrf.mxu0
    %v12479 = vadd.f32 0.0, %v12478
    %12480 = vmatmul.bf16.gmra.mxu0 %v9375
    %v12481 = vpop.f32.mrf.mxu0
    %v12482 = vadd.f32 0.0, %v12481
    %v12483 = vpop.f32.mrf.mxu0
    %12484 = vmatmul.bf16.gmra.mxu0 %v9378
    %v12485 = vpop.f32.mrf.mxu0
    %v12486 = vadd.f32 0.0, %v12485
    %v12487 = vpop.f32.mrf.mxu0
    %v12488 = vadd.f32 0.0, %v12487
    %12489 = vmatmul.bf16.gmra.mxu0 %v9381
    %v12490 = vpop.f32.mrf.mxu0
    %v12491 = vpop.f32.mrf.mxu0
    %v12492 = vadd.f32 0.0, %v12491
    %12493 = vmatmul.bf16.gmra.mxu0 %v9384
    %v12494 = vpop.f32.mrf.mxu0
    %v12495 = vadd.f32 0.0, %v12494
    %v12496 = vpop.f32.mrf.mxu0
    %12497 = vmatmul.bf16.gmra.mxu0 %v9387
    %v12498 = vpop.f32.mrf.mxu0
    %v12499 = vadd.f32 0.0, %v12498
    %v12500 = vpop.f32.mrf.mxu0
    %v12501 = vadd.f32 0.0, %v12500
    %12502 = vmatmul.bf16.gmra.mxu0 %v12273
    %v12503 = vpop.f32.mrf.mxu0
    %v12504 = vpop.f32.mrf.mxu0
    %v12505 = vadd.f32 0.0, %v12504
    %12506 = vmatmul.bf16.gmra.mxu0 %v12276
    %v12507 = vpop.f32.mrf.mxu0
    %v12508 = vadd.f32 0.0, %v12507
    %v12509 = vpop.f32.mrf.mxu0
    %12510 = vmatmul.bf16.gmra.mxu0 %v12279
    %v12511 = vpop.f32.mrf.mxu0
    %v12512 = vadd.f32 0.0, %v12511
    %v12513 = vpop.f32.mrf.mxu0
    %v12514 = vadd.f32 0.0, %v12513
    %12515 = vmatmul.bf16.gmra.mxu0 %v12282
    %v12516 = vpop.f32.mrf.mxu0
    %v12517 = vpop.f32.mrf.mxu0
    %12518 = vdwg.mxu0
    %v12519 = vadd.f32 %v12200, %v12297
    %v12520 = vadd.f32 %v12201, %v12299
    %v12521 = vadd.f32 %v12202, %v12303
    %v12522 = vadd.f32 %v12203, %v12306
    %v12523 = vadd.f32 %v12204, %v12310
    %v12524 = vadd.f32 %v12205, %v12312
    %v12525 = vadd.f32 %v12206, %v12316
    %v12526 = vadd.f32 %v12207, %v12319
    %v12527 = vadd.f32 %v12208, %v12323
    %v12528 = vadd.f32 %v12209, %v12325
    %v12529 = vadd.f32 %v12210, %v12329
    %v12530 = vadd.f32 %v12211, %v12332
    %v12531 = vadd.f32 %v12212, %v12336
    %v12532 = vadd.f32 %v12213, %v12338
    %v12533 = vadd.f32 %v12214, %v12342
    %v12534 = vadd.f32 %v12215, %v12345
    %v12535 = vadd.f32 %v12216, %v12349
    %v12536 = vadd.f32 %v12217, %v12351
    %v12537 = vadd.f32 %v12218, %v12355
    %v12538 = vadd.f32 %v12219, %v12358
    %v12539 = vadd.f32 %v12220, %v12362
    %v12540 = vadd.f32 %v12221, %v12364
    %v12541 = vadd.f32 %v12222, %v12368
    %v12542 = vadd.f32 %v12223, %v12371
    %v12543 = vadd.f32 %v12224, %v12375
    %v12544 = vadd.f32 %v12225, %v12377
    %v12545 = vadd.f32 %v12226, %v12381
    %v12546 = vadd.f32 %v12227, %v12384
    %v12547 = vadd.f32 %v12228, %v12388
    %v12548 = vadd.f32 %v12229, %v12390
    %v12549 = vadd.f32 %v12230, %v12394
    %v12550 = vadd.f32 %v12231, %v12397
    %v12551 = vadd.f32 %v12232, %v12414
    %v12552 = vadd.f32 %v12233, %v12417
    %v12553 = vadd.f32 %v12234, %v12421
    %v12554 = vadd.f32 %v12235, %v12423
    %v12555 = vadd.f32 %v12236, %v12427
    %v12556 = vadd.f32 %v12237, %v12430
    %v12557 = vadd.f32 %v12238, %v12434
    %v12558 = vadd.f32 %v12239, %v12436
    %v12559 = vadd.f32 %v12240, %v12440
    %v12560 = vadd.f32 %v12241, %v12443
    %v12561 = vadd.f32 %v12242, %v12447
    %v12562 = vadd.f32 %v12243, %v12449
    %v12563 = vadd.f32 %v12244, %v12453
    %v12564 = vadd.f32 %v12245, %v12456
    %v12565 = vadd.f32 %v12246, %v12460
    %v12566 = vadd.f32 %v12247, %v12462
    %v12567 = vadd.f32 %v12248, %v12466
    %v12568 = vadd.f32 %v12249, %v12469
    %v12569 = vadd.f32 %v12250, %v12473
    %v12570 = vadd.f32 %v12251, %v12475
    %v12571 = vadd.f32 %v12252, %v12479
    %v12572 = vadd.f32 %v12253, %v12482
    %v12573 = vadd.f32 %v12254, %v12486
    %v12574 = vadd.f32 %v12255, %v12488
    %v12575 = vadd.f32 %v12256, %v12492
    %v12576 = vadd.f32 %v12257, %v12495
    %v12577 = vadd.f32 %v12258, %v12499
    %v12578 = vadd.f32 %v12259, %v12501
    %v12579 = vadd.f32 %v12260, %v12505
    %v12580 = vadd.f32 %v12261, %v12508
    %v12581 = vadd.f32 %v12262, %v12512
    %v12582 = vadd.f32 %v12263, %v12514
    %v12583 = vld [vmem:[%s5] sm:$0x1]
    %v12585 = vperm.slane %v12583, 0
    %v12587 = vmul.f32 %v12519, %v12585
    %v12588 = vmul.f32 %v12520, %v12585
    %v12589 = vmul.f32 %v12521, %v12585
    %v12590 = vmul.f32 %v12522, %v12585
    %v12591 = vmul.f32 %v12523, %v12585
    %v12592 = vmul.f32 %v12524, %v12585
    %v12593 = vmul.f32 %v12525, %v12585
    %v12594 = vmul.f32 %v12526, %v12585
    %v12595 = vmul.f32 %v12527, %v12585
    %v12596 = vmul.f32 %v12528, %v12585
    %v12597 = vmul.f32 %v12529, %v12585
    %v12598 = vmul.f32 %v12530, %v12585
    %v12599 = vmul.f32 %v12531, %v12585
    %v12600 = vmul.f32 %v12532, %v12585
    %v12601 = vmul.f32 %v12533, %v12585
    %v12602 = vmul.f32 %v12534, %v12585
    %v12603 = vmul.f32 %v12535, %v12585
    %v12604 = vmul.f32 %v12536, %v12585
    %v12605 = vmul.f32 %v12537, %v12585
    %v12606 = vmul.f32 %v12538, %v12585
    %v12607 = vmul.f32 %v12539, %v12585
    %v12608 = vmul.f32 %v12540, %v12585
    %v12609 = vmul.f32 %v12541, %v12585
    %v12610 = vmul.f32 %v12542, %v12585
    %v12611 = vmul.f32 %v12543, %v12585
    %v12612 = vmul.f32 %v12544, %v12585
    %v12613 = vmul.f32 %v12545, %v12585
    %v12614 = vmul.f32 %v12546, %v12585
    %v12615 = vmul.f32 %v12547, %v12585
    %v12616 = vmul.f32 %v12548, %v12585
    %v12617 = vmul.f32 %v12549, %v12585
    %v12618 = vmul.f32 %v12550, %v12585
    %v12619 = vmul.f32 %v12551, %v12585
    %v12620 = vmul.f32 %v12552, %v12585
    %v12621 = vmul.f32 %v12553, %v12585
    %v12622 = vmul.f32 %v12554, %v12585
    %v12623 = vmul.f32 %v12555, %v12585
    %v12624 = vmul.f32 %v12556, %v12585
    %v12625 = vmul.f32 %v12557, %v12585
    %v12626 = vmul.f32 %v12558, %v12585
    %v12627 = vmul.f32 %v12559, %v12585
    %v12628 = vmul.f32 %v12560, %v12585
    %v12629 = vmul.f32 %v12561, %v12585
    %v12630 = vmul.f32 %v12562, %v12585
    %v12631 = vmul.f32 %v12563, %v12585
    %v12632 = vmul.f32 %v12564, %v12585
    %v12633 = vmul.f32 %v12565, %v12585
    %v12634 = vmul.f32 %v12566, %v12585
    %v12635 = vmul.f32 %v12567, %v12585
    %v12636 = vmul.f32 %v12568, %v12585
    %v12637 = vmul.f32 %v12569, %v12585
    %v12638 = vmul.f32 %v12570, %v12585
    %v12639 = vmul.f32 %v12571, %v12585
    %v12640 = vmul.f32 %v12572, %v12585
    %v12641 = vmul.f32 %v12573, %v12585
    %v12642 = vmul.f32 %v12574, %v12585
    %v12643 = vmul.f32 %v12575, %v12585
    %v12644 = vmul.f32 %v12576, %v12585
    %v12645 = vmul.f32 %v12577, %v12585
    %v12646 = vmul.f32 %v12578, %v12585
    %v12647 = vmul.f32 %v12579, %v12585
    %v12648 = vmul.f32 %v12580, %v12585
    %v12649 = vmul.f32 %v12581, %v12585
    %v12650 = vmul.f32 %v12582, %v12585
    %v12651 = vld [vmem:[%s6] sm:$0x1]
    %v12653 = vperm.slane %v12651, 0
    %v12655 = vadd.f32 %v12587, %v12653
    %v12656 = vadd.f32 %v12588, %v12653
    %v12657 = vadd.f32 %v12589, %v12653
    %v12658 = vadd.f32 %v12590, %v12653
    %v12659 = vadd.f32 %v12591, %v12653
    %v12660 = vadd.f32 %v12592, %v12653
    %v12661 = vadd.f32 %v12593, %v12653
    %v12662 = vadd.f32 %v12594, %v12653
    %v12663 = vadd.f32 %v12595, %v12653
    %v12664 = vadd.f32 %v12596, %v12653
    %v12665 = vadd.f32 %v12597, %v12653
    %v12666 = vadd.f32 %v12598, %v12653
    %v12667 = vadd.f32 %v12599, %v12653
    %v12668 = vadd.f32 %v12600, %v12653
    %v12669 = vadd.f32 %v12601, %v12653
    %v12670 = vadd.f32 %v12602, %v12653
    %v12671 = vadd.f32 %v12603, %v12653
    %v12672 = vadd.f32 %v12604, %v12653
    %v12673 = vadd.f32 %v12605, %v12653
    %v12674 = vadd.f32 %v12606, %v12653
    %v12675 = vadd.f32 %v12607, %v12653
    %v12676 = vadd.f32 %v12608, %v12653
    %v12677 = vadd.f32 %v12609, %v12653
    %v12678 = vadd.f32 %v12610, %v12653
    %v12679 = vadd.f32 %v12611, %v12653
    %v12680 = vadd.f32 %v12612, %v12653
    %v12681 = vadd.f32 %v12613, %v12653
    %v12682 = vadd.f32 %v12614, %v12653
    %v12683 = vadd.f32 %v12615, %v12653
    %v12684 = vadd.f32 %v12616, %v12653
    %v12685 = vadd.f32 %v12617, %v12653
    %v12686 = vadd.f32 %v12618, %v12653
    %v12687 = vadd.f32 %v12619, %v12653
    %v12688 = vadd.f32 %v12620, %v12653
    %v12689 = vadd.f32 %v12621, %v12653
    %v12690 = vadd.f32 %v12622, %v12653
    %v12691 = vadd.f32 %v12623, %v12653
    %v12692 = vadd.f32 %v12624, %v12653
    %v12693 = vadd.f32 %v12625, %v12653
    %v12694 = vadd.f32 %v12626, %v12653
    %v12695 = vadd.f32 %v12627, %v12653
    %v12696 = vadd.f32 %v12628, %v12653
    %v12697 = vadd.f32 %v12629, %v12653
    %v12698 = vadd.f32 %v12630, %v12653
    %v12699 = vadd.f32 %v12631, %v12653
    %v12700 = vadd.f32 %v12632, %v12653
    %v12701 = vadd.f32 %v12633, %v12653
    %v12702 = vadd.f32 %v12634, %v12653
    %v12703 = vadd.f32 %v12635, %v12653
    %v12704 = vadd.f32 %v12636, %v12653
    %v12705 = vadd.f32 %v12637, %v12653
    %v12706 = vadd.f32 %v12638, %v12653
    %v12707 = vadd.f32 %v12639, %v12653
    %v12708 = vadd.f32 %v12640, %v12653
    %v12709 = vadd.f32 %v12641, %v12653
    %v12710 = vadd.f32 %v12642, %v12653
    %v12711 = vadd.f32 %v12643, %v12653
    %v12712 = vadd.f32 %v12644, %v12653
    %v12713 = vadd.f32 %v12645, %v12653
    %v12714 = vadd.f32 %v12646, %v12653
    %v12715 = vadd.f32 %v12647, %v12653
    %v12716 = vadd.f32 %v12648, %v12653
    %v12717 = vadd.f32 %v12649, %v12653
    %v12718 = vadd.f32 %v12650, %v12653
    %v12719 = vunpack.c.l.bf16 %v28
    %v12720 = vunpack.c.l.bf16 %v29
    %v12721 = vunpack.c.l.bf16 %v30
    %v12722 = vunpack.c.l.bf16 %v31
    %v12723 = vunpack.c.l.bf16 %v32
    %v12724 = vunpack.c.l.bf16 %v33
    %v12725 = vunpack.c.l.bf16 %v34
    %v12726 = vunpack.c.l.bf16 %v35
    %v12727 = vunpack.c.l.bf16 %v36
    %v12728 = vunpack.c.l.bf16 %v37
    %v12729 = vunpack.c.l.bf16 %v38
    %v12730 = vunpack.c.l.bf16 %v39
    %v12731 = vunpack.c.l.bf16 %v40
    %v12732 = vunpack.c.l.bf16 %v41
    %v12733 = vunpack.c.l.bf16 %v42
    %v12734 = vunpack.c.l.bf16 %v43
    %v12735 = vunpack.c.l.bf16 %v44
    %v12736 = vunpack.c.l.bf16 %v45
    %v12737 = vunpack.c.l.bf16 %v46
    %v12738 = vunpack.c.l.bf16 %v47
    %v12739 = vunpack.c.l.bf16 %v48
    %v12740 = vunpack.c.l.bf16 %v49
    %v12741 = vunpack.c.l.bf16 %v50
    %v12742 = vunpack.c.l.bf16 %v51
    %v12743 = vunpack.c.l.bf16 %v52
    %v12744 = vunpack.c.l.bf16 %v53
    %v12745 = vunpack.c.l.bf16 %v54
    %v12746 = vunpack.c.l.bf16 %v55
    %v12747 = vunpack.c.l.bf16 %v56
    %v12748 = vunpack.c.l.bf16 %v57
    %v12749 = vunpack.c.l.bf16 %v58
    %v12750 = vunpack.c.l.bf16 %v59
    %v12751 = vadd.f32 %v12655, %v12719
    %v12752 = vadd.f32 %v12656, %v12720
    %v12753 = vadd.f32 %v12657, %v12721
    %v12754 = vadd.f32 %v12658, %v12722
    %v12755 = vadd.f32 %v12659, %v12723
    %v12756 = vadd.f32 %v12660, %v12724
    %v12757 = vadd.f32 %v12661, %v12725
    %v12758 = vadd.f32 %v12662, %v12726
    %v12759 = vadd.f32 %v12663, %v12727
    %v12760 = vadd.f32 %v12664, %v12728
    %v12761 = vadd.f32 %v12665, %v12729
    %v12762 = vadd.f32 %v12666, %v12730
    %v12763 = vadd.f32 %v12667, %v12731
    %v12764 = vadd.f32 %v12668, %v12732
    %v12765 = vadd.f32 %v12669, %v12733
    %v12766 = vadd.f32 %v12670, %v12734
    %v12767 = vadd.f32 %v12671, %v12735
    %v12768 = vadd.f32 %v12672, %v12736
    %v12769 = vadd.f32 %v12673, %v12737
    %v12770 = vadd.f32 %v12674, %v12738
    %v12771 = vadd.f32 %v12675, %v12739
    %v12772 = vadd.f32 %v12676, %v12740
    %v12773 = vadd.f32 %v12677, %v12741
    %v12774 = vadd.f32 %v12678, %v12742
    %v12775 = vadd.f32 %v12679, %v12743
    %v12776 = vadd.f32 %v12680, %v12744
    %v12777 = vadd.f32 %v12681, %v12745
    %v12778 = vadd.f32 %v12682, %v12746
    %v12779 = vadd.f32 %v12683, %v12747
    %v12780 = vadd.f32 %v12684, %v12748
    %v12781 = vadd.f32 %v12685, %v12749
    %v12782 = vadd.f32 %v12686, %v12750
    %v12783 = vmax.f32 %v12751, 0.0
    %v12784 = vmax.f32 %v12752, 0.0
    %v12785 = vmax.f32 %v12753, 0.0
    %v12786 = vmax.f32 %v12754, 0.0
    %v12787 = vmax.f32 %v12755, 0.0
    %v12788 = vmax.f32 %v12756, 0.0
    %v12789 = vmax.f32 %v12757, 0.0
    %v12790 = vmax.f32 %v12758, 0.0
    %v12791 = vmax.f32 %v12759, 0.0
    %v12792 = vmax.f32 %v12760, 0.0
    %v12793 = vmax.f32 %v12761, 0.0
    %v12794 = vmax.f32 %v12762, 0.0
    %v12795 = vmax.f32 %v12763, 0.0
    %v12796 = vmax.f32 %v12764, 0.0
    %v12797 = vmax.f32 %v12765, 0.0
    %v12798 = vmax.f32 %v12766, 0.0
    %v12799 = vmax.f32 %v12767, 0.0
    %v12800 = vmax.f32 %v12768, 0.0
    %v12801 = vmax.f32 %v12769, 0.0
    %v12802 = vmax.f32 %v12770, 0.0
    %v12803 = vmax.f32 %v12771, 0.0
    %v12804 = vmax.f32 %v12772, 0.0
    %v12805 = vmax.f32 %v12773, 0.0
    %v12806 = vmax.f32 %v12774, 0.0
    %v12807 = vmax.f32 %v12775, 0.0
    %v12808 = vmax.f32 %v12776, 0.0
    %v12809 = vmax.f32 %v12777, 0.0
    %v12810 = vmax.f32 %v12778, 0.0
    %v12811 = vmax.f32 %v12779, 0.0
    %v12812 = vmax.f32 %v12780, 0.0
    %v12813 = vmax.f32 %v12781, 0.0
    %v12814 = vmax.f32 %v12782, 0.0
    %v12815 = vpack.c.bf16 %v12783, %v12783
    %v12816 = vpack.c.bf16 %v12784, %v12784
    %v12817 = vpack.c.bf16 %v12785, %v12785
    %v12818 = vpack.c.bf16 %v12786, %v12786
    %v12819 = vpack.c.bf16 %v12787, %v12787
    %v12820 = vpack.c.bf16 %v12788, %v12788
    %v12821 = vpack.c.bf16 %v12789, %v12789
    %v12822 = vpack.c.bf16 %v12790, %v12790
    %v12823 = vpack.c.bf16 %v12791, %v12791
    %v12824 = vpack.c.bf16 %v12792, %v12792
    %v12825 = vpack.c.bf16 %v12793, %v12793
    %v12826 = vpack.c.bf16 %v12794, %v12794
    %v12827 = vpack.c.bf16 %v12795, %v12795
    %v12828 = vpack.c.bf16 %v12796, %v12796
    %v12829 = vpack.c.bf16 %v12797, %v12797
    %v12830 = vpack.c.bf16 %v12798, %v12798
    %v12831 = vpack.c.bf16 %v12799, %v12799
    %v12832 = vpack.c.bf16 %v12800, %v12800
    %v12833 = vpack.c.bf16 %v12801, %v12801
    %v12834 = vpack.c.bf16 %v12802, %v12802
    %v12835 = vpack.c.bf16 %v12803, %v12803
    %v12836 = vpack.c.bf16 %v12804, %v12804
    %v12837 = vpack.c.bf16 %v12805, %v12805
    %v12838 = vpack.c.bf16 %v12806, %v12806
    %v12839 = vpack.c.bf16 %v12807, %v12807
    %v12840 = vpack.c.bf16 %v12808, %v12808
    %v12841 = vpack.c.bf16 %v12809, %v12809
    %v12842 = vpack.c.bf16 %v12810, %v12810
    %v12843 = vpack.c.bf16 %v12811, %v12811
    %v12844 = vpack.c.bf16 %v12812, %v12812
    %v12845 = vpack.c.bf16 %v12813, %v12813
    %v12846 = vpack.c.bf16 %v12814, %v12814
    %v12847 = vrot.slane %v12823, 4
    %vm12848 = vcmask 1047556
    %v12849 = vsel %vm12848, %v12847, %v12815
    %v12851 = vunpack.c.l.s4 1983009808
    %v12852 = vunpack.c.0.s8 %v12851
    %v12853 = vperm.slane %v12849, %v12852
    %v12854 = vrot.slane %v12827, 4
    %v12855 = vsel %vm12848, %v12854, %v12819
    %v12857 = vunpack.c.l.s4 1983009808
    %v12858 = vunpack.c.0.s8 %v12857
    %v12859 = vperm.slane %v12855, %v12858
    %v12860 = vrot.slane %v12859, 4
    %v12861 = vsel %vm12848, %v12860, %v12853
    %v12862 = vrot.slane %v12853, 4
    %v12863 = vsel %vm12848, %v12859, %v12862
    %v12865 = vunpack.c.l.s4 1934713408
    %v12866 = vunpack.c.0.s8 %v12865
    %v12867 = vperm.slane %v12861, %v12866
    %v12869 = vunpack.c.l.s4 1934713408
    %v12870 = vunpack.c.0.s8 %v12869
    %v12871 = vperm.slane %v12863, %v12870
    %v12872 = vrot.slane %v12867, 4
    %v12873 = vsel %vm12848, 0, %v12872
    %v12874 = vrot.slane %v12871, 4
    %v12875 = vsel %vm12848, 0, %v12874
    %v12876 = vrot.slane %v12825, 4
    %v12877 = vsel %vm12848, %v12876, %v12817
    %v12879 = vunpack.c.l.s4 1983009808
    %v12880 = vunpack.c.0.s8 %v12879
    %v12881 = vperm.slane %v12877, %v12880
    %v12882 = vrot.slane %v12829, 4
    %v12883 = vsel %vm12848, %v12882, %v12821
    %v12885 = vunpack.c.l.s4 1983009808
    %v12886 = vunpack.c.0.s8 %v12885
    %v12887 = vperm.slane %v12883, %v12886
    %v12888 = vrot.slane %v12887, 4
    %v12889 = vsel %vm12848, %v12888, %v12881
    %v12890 = vrot.slane %v12881, 4
    %v12891 = vsel %vm12848, %v12887, %v12890
    %v12893 = vunpack.c.l.s4 1934713408
    %v12894 = vunpack.c.0.s8 %v12893
    %v12895 = vperm.slane %v12889, %v12894
    %v12897 = vunpack.c.l.s4 1934713408
    %v12898 = vunpack.c.0.s8 %v12897
    %v12899 = vperm.slane %v12891, %v12898
    %v12900 = vrot.slane %v12895, 4
    %v12901 = vsel %vm12848, 0, %v12900
    %v12902 = vrot.slane %v12899, 4
    %v12903 = vsel %vm12848, 0, %v12902
    %v12904 = vrot.slane %v12839, 4
    %v12905 = vsel %vm12848, %v12904, %v12831
    %v12907 = vunpack.c.l.s4 1983009808
    %v12908 = vunpack.c.0.s8 %v12907
    %v12909 = vperm.slane %v12905, %v12908
    %v12910 = vrot.slane %v12843, 4
    %v12911 = vsel %vm12848, %v12910, %v12835
    %v12913 = vunpack.c.l.s4 1983009808
    %v12914 = vunpack.c.0.s8 %v12913
    %v12915 = vperm.slane %v12911, %v12914
    %v12916 = vrot.slane %v12915, 4
    %v12917 = vsel %vm12848, %v12916, %v12909
    %v12918 = vrot.slane %v12909, 4
    %v12919 = vsel %vm12848, %v12915, %v12918
    %v12921 = vunpack.c.l.s4 1934713408
    %v12922 = vunpack.c.0.s8 %v12921
    %v12923 = vperm.slane %v12917, %v12922
    %v12925 = vunpack.c.l.s4 1934713408
    %v12926 = vunpack.c.0.s8 %v12925
    %v12927 = vperm.slane %v12919, %v12926
    %v12928 = vrot.slane %v12923, 4
    %v12929 = vsel %vm12848, 0, %v12928
    %v12930 = vrot.slane %v12927, 4
    %v12931 = vsel %vm12848, 0, %v12930
    %v12932 = vrot.slane %v12841, 4
    %v12933 = vsel %vm12848, %v12932, %v12833
    %v12935 = vunpack.c.l.s4 1983009808
    %v12936 = vunpack.c.0.s8 %v12935
    %v12937 = vperm.slane %v12933, %v12936
    %v12938 = vrot.slane %v12845, 4
    %v12939 = vsel %vm12848, %v12938, %v12837
    %v12941 = vunpack.c.l.s4 1983009808
    %v12942 = vunpack.c.0.s8 %v12941
    %v12943 = vperm.slane %v12939, %v12942
    %v12944 = vrot.slane %v12943, 4
    %v12945 = vsel %vm12848, %v12944, %v12937
    %v12946 = vrot.slane %v12937, 4
    %v12947 = vsel %vm12848, %v12943, %v12946
    %v12949 = vunpack.c.l.s4 1934713408
    %v12950 = vunpack.c.0.s8 %v12949
    %v12951 = vperm.slane %v12945, %v12950
    %v12953 = vunpack.c.l.s4 1934713408
    %v12954 = vunpack.c.0.s8 %v12953
    %v12955 = vperm.slane %v12947, %v12954
    %v12956 = vrot.slane %v12951, 4
    %v12957 = vsel %vm12848, 0, %v12956
    %v12958 = vrot.slane %v12955, 4
    %v12959 = vsel %vm12848, 0, %v12958
    %v12960 = vrot.slane %v12824, 4
    %v12961 = vsel %vm12848, %v12960, %v12816
    %v12963 = vunpack.c.l.s4 1983009808
    %v12964 = vunpack.c.0.s8 %v12963
    %v12965 = vperm.slane %v12961, %v12964
    %v12966 = vrot.slane %v12828, 4
    %v12967 = vsel %vm12848, %v12966, %v12820
    %v12969 = vunpack.c.l.s4 1983009808
    %v12970 = vunpack.c.0.s8 %v12969
    %v12971 = vperm.slane %v12967, %v12970
    %v12972 = vrot.slane %v12971, 4
    %v12973 = vsel %vm12848, %v12972, %v12965
    %v12974 = vrot.slane %v12965, 4
    %v12975 = vsel %vm12848, %v12971, %v12974
    %v12977 = vunpack.c.l.s4 1934713408
    %v12978 = vunpack.c.0.s8 %v12977
    %v12979 = vperm.slane %v12973, %v12978
    %v12981 = vunpack.c.l.s4 1934713408
    %v12982 = vunpack.c.0.s8 %v12981
    %v12983 = vperm.slane %v12975, %v12982
    %v12984 = vrot.slane %v12979, 4
    %v12985 = vsel %vm12848, 0, %v12984
    %v12986 = vrot.slane %v12983, 4
    %v12987 = vsel %vm12848, 0, %v12986
    %v12988 = vrot.slane %v12826, 4
    %v12989 = vsel %vm12848, %v12988, %v12818
    %v12991 = vunpack.c.l.s4 1983009808
    %v12992 = vunpack.c.0.s8 %v12991
    %v12993 = vperm.slane %v12989, %v12992
    %v12994 = vrot.slane %v12830, 4
    %v12995 = vsel %vm12848, %v12994, %v12822
    %v12997 = vunpack.c.l.s4 1983009808
    %v12998 = vunpack.c.0.s8 %v12997
    %v12999 = vperm.slane %v12995, %v12998
    %v13000 = vrot.slane %v12999, 4
    %v13001 = vsel %vm12848, %v13000, %v12993
    %v13002 = vrot.slane %v12993, 4
    %v13003 = vsel %vm12848, %v12999, %v13002
    %v13005 = vunpack.c.l.s4 1934713408
    %v13006 = vunpack.c.0.s8 %v13005
    %v13007 = vperm.slane %v13001, %v13006
    %v13009 = vunpack.c.l.s4 1934713408
    %v13010 = vunpack.c.0.s8 %v13009
    %v13011 = vperm.slane %v13003, %v13010
    %v13012 = vrot.slane %v13007, 4
    %v13013 = vsel %vm12848, 0, %v13012
    %v13014 = vrot.slane %v13011, 4
    %v13015 = vsel %vm12848, 0, %v13014
    %v13016 = vrot.slane %v12840, 4
    %v13017 = vsel %vm12848, %v13016, %v12832
    %v13019 = vunpack.c.l.s4 1983009808
    %v13020 = vunpack.c.0.s8 %v13019
    %v13021 = vperm.slane %v13017, %v13020
    %v13022 = vrot.slane %v12844, 4
    %v13023 = vsel %vm12848, %v13022, %v12836
    %v13025 = vunpack.c.l.s4 1983009808
    %v13026 = vunpack.c.0.s8 %v13025
    %v13027 = vperm.slane %v13023, %v13026
    %v13028 = vrot.slane %v13027, 4
    %v13029 = vsel %vm12848, %v13028, %v13021
    %v13030 = vrot.slane %v13021, 4
    %v13031 = vsel %vm12848, %v13027, %v13030
    %v13033 = vunpack.c.l.s4 1934713408
    %v13034 = vunpack.c.0.s8 %v13033
    %v13035 = vperm.slane %v13029, %v13034
    %v13037 = vunpack.c.l.s4 1934713408
    %v13038 = vunpack.c.0.s8 %v13037
    %v13039 = vperm.slane %v13031, %v13038
    %v13040 = vrot.slane %v13035, 4
    %v13041 = vsel %vm12848, 0, %v13040
    %v13042 = vrot.slane %v13039, 4
    %v13043 = vsel %vm12848, 0, %v13042
    %v13044 = vrot.slane %v12842, 4
    %v13045 = vsel %vm12848, %v13044, %v12834
    %v13047 = vunpack.c.l.s4 1983009808
    %v13048 = vunpack.c.0.s8 %v13047
    %v13049 = vperm.slane %v13045, %v13048
    %v13050 = vrot.slane %v12846, 4
    %v13051 = vsel %vm12848, %v13050, %v12838
    %v13053 = vunpack.c.l.s4 1983009808
    %v13054 = vunpack.c.0.s8 %v13053
    %v13055 = vperm.slane %v13051, %v13054
    %v13056 = vrot.slane %v13055, 4
    %v13057 = vsel %vm12848, %v13056, %v13049
    %v13058 = vrot.slane %v13049, 4
    %v13059 = vsel %vm12848, %v13055, %v13058
    %v13061 = vunpack.c.l.s4 1934713408
    %v13062 = vunpack.c.0.s8 %v13061
    %v13063 = vperm.slane %v13057, %v13062
    %v13065 = vunpack.c.l.s4 1934713408
    %v13066 = vunpack.c.0.s8 %v13065
    %v13067 = vperm.slane %v13059, %v13066
    %v13068 = vrot.slane %v13063, 4
    %v13069 = vsel %vm12848, 0, %v13068
    %v13070 = vrot.slane %v13067, 4
    %v13071 = vsel %vm12848, 0, %v13070
    %v13074 = vpack.i.b16 %v12895, %v12867
    %v13075 = vshrl.u32 %v12867, 16
    %v13076 = vshrl.u32 %v12895, 16
    %v13077 = vpack.i.b16 %v13076, %v13075
    %v13080 = vpack.i.b16 %v12901, %v12873
    %v13081 = vshrl.u32 %v12873, 16
    %v13082 = vshrl.u32 %v12901, 16
    %v13083 = vpack.i.b16 %v13082, %v13081
    %v13086 = vpack.i.b16 %v12899, %v12871
    %v13087 = vshrl.u32 %v12871, 16
    %v13088 = vshrl.u32 %v12899, 16
    %v13089 = vpack.i.b16 %v13088, %v13087
    %v13092 = vpack.i.b16 %v12903, %v12875
    %v13093 = vshrl.u32 %v12875, 16
    %v13094 = vshrl.u32 %v12903, 16
    %v13095 = vpack.i.b16 %v13094, %v13093
    %v13098 = vpack.i.b16 %v13007, %v12979
    %v13099 = vshrl.u32 %v12979, 16
    %v13100 = vshrl.u32 %v13007, 16
    %v13101 = vpack.i.b16 %v13100, %v13099
    %v13104 = vpack.i.b16 %v13013, %v12985
    %v13105 = vshrl.u32 %v12985, 16
    %v13106 = vshrl.u32 %v13013, 16
    %v13107 = vpack.i.b16 %v13106, %v13105
    %v13110 = vpack.i.b16 %v13011, %v12983
    %v13111 = vshrl.u32 %v12983, 16
    %v13112 = vshrl.u32 %v13011, 16
    %v13113 = vpack.i.b16 %v13112, %v13111
    %v13116 = vpack.i.b16 %v13015, %v12987
    %v13117 = vshrl.u32 %v12987, 16
    %v13118 = vshrl.u32 %v13015, 16
    %v13119 = vpack.i.b16 %v13118, %v13117
    %v13122 = vpack.i.b16 %v12951, %v12923
    %v13123 = vshrl.u32 %v12923, 16
    %v13124 = vshrl.u32 %v12951, 16
    %v13125 = vpack.i.b16 %v13124, %v13123
    %v13128 = vpack.i.b16 %v12957, %v12929
    %v13129 = vshrl.u32 %v12929, 16
    %v13130 = vshrl.u32 %v12957, 16
    %v13131 = vpack.i.b16 %v13130, %v13129
    %v13134 = vpack.i.b16 %v12955, %v12927
    %v13135 = vshrl.u32 %v12927, 16
    %v13136 = vshrl.u32 %v12955, 16
    %v13137 = vpack.i.b16 %v13136, %v13135
    %v13140 = vpack.i.b16 %v12959, %v12931
    %v13141 = vshrl.u32 %v12931, 16
    %v13142 = vshrl.u32 %v12959, 16
    %v13143 = vpack.i.b16 %v13142, %v13141
    %v13146 = vpack.i.b16 %v13063, %v13035
    %v13147 = vshrl.u32 %v13035, 16
    %v13148 = vshrl.u32 %v13063, 16
    %v13149 = vpack.i.b16 %v13148, %v13147
    %v13152 = vpack.i.b16 %v13069, %v13041
    %v13153 = vshrl.u32 %v13041, 16
    %v13154 = vshrl.u32 %v13069, 16
    %v13155 = vpack.i.b16 %v13154, %v13153
    %v13158 = vpack.i.b16 %v13067, %v13039
    %v13159 = vshrl.u32 %v13039, 16
    %v13160 = vshrl.u32 %v13067, 16
    %v13161 = vpack.i.b16 %v13160, %v13159
    %v13164 = vpack.i.b16 %v13071, %v13043
    %v13165 = vshrl.u32 %v13043, 16
    %v13166 = vshrl.u32 %v13071, 16
    %v13167 = vpack.i.b16 %v13166, %v13165
    %v13168 = vunpack.c.l.b16 %v13074
    %v13169 = vunpack.c.l.b16 %v13122
    %v13170 = vpack.c.b16 %v13169, %v13168
    %v13171 = vunpack.c.l.b16 %v13077
    %v13172 = vunpack.c.l.b16 %v13125
    %v13173 = vpack.c.b16 %v13172, %v13171
    %13174 = vrot.lane.b32.xlu0 %v13173, 8
    %v13175 = vpop.permute.xlu0 %13174
    %v13176 = vunpack.c.l.b16 %v13080
    %v13177 = vunpack.c.l.b16 %v13128
    %v13178 = vpack.c.b16 %v13177, %v13176
    %13179 = vrot.lane.b32.xlu0 %v13178, 16
    %v13180 = vpop.permute.xlu0 %13179
    %v13181 = vunpack.c.l.b16 %v13083
    %v13182 = vunpack.c.l.b16 %v13131
    %v13183 = vpack.c.b16 %v13182, %v13181
    %13184 = vrot.lane.b32.xlu0 %v13183, 24
    %v13185 = vpop.permute.xlu0 %13184
    %v13186 = vunpack.c.l.b16 %v13086
    %v13187 = vunpack.c.l.b16 %v13134
    %v13188 = vpack.c.b16 %v13187, %v13186
    %13189 = vrot.lane.b32.xlu0 %v13188, 32
    %v13190 = vpop.permute.xlu0 %13189
    %v13191 = vunpack.c.l.b16 %v13089
    %v13192 = vunpack.c.l.b16 %v13137
    %v13193 = vpack.c.b16 %v13192, %v13191
    %13194 = vrot.lane.b32.xlu0 %v13193, 40
    %v13195 = vpop.permute.xlu0 %13194
    %v13196 = vunpack.c.l.b16 %v13092
    %v13197 = vunpack.c.l.b16 %v13140
    %v13198 = vpack.c.b16 %v13197, %v13196
    %13199 = vrot.lane.b32.xlu0 %v13198, 48
    %v13200 = vpop.permute.xlu0 %13199
    %v13201 = vunpack.c.l.b16 %v13095
    %v13202 = vunpack.c.l.b16 %v13143
    %v13203 = vpack.c.b16 %v13202, %v13201
    %13204 = vrot.lane.b32.xlu0 %v13203, 56
    %v13205 = vpop.permute.xlu0 %13204
    %v13206 = vunpack.c.l.b16 %v13098
    %v13207 = vunpack.c.l.b16 %v13146
    %v13208 = vpack.c.b16 %v13207, %v13206
    %13209 = vrot.lane.b32.xlu0 %v13208, 64
    %v13210 = vpop.permute.xlu0 %13209
    %v13211 = vunpack.c.l.b16 %v13101
    %v13212 = vunpack.c.l.b16 %v13149
    %v13213 = vpack.c.b16 %v13212, %v13211
    %13214 = vrot.lane.b32.xlu0 %v13213, 72
    %v13215 = vpop.permute.xlu0 %13214
    %v13216 = vunpack.c.l.b16 %v13104
    %v13217 = vunpack.c.l.b16 %v13152
    %v13218 = vpack.c.b16 %v13217, %v13216
    %13219 = vrot.lane.b32.xlu0 %v13218, 80
    %v13220 = vpop.permute.xlu0 %13219
    %v13221 = vunpack.c.l.b16 %v13107
    %v13222 = vunpack.c.l.b16 %v13155
    %v13223 = vpack.c.b16 %v13222, %v13221
    %13224 = vrot.lane.b32.xlu0 %v13223, 88
    %v13225 = vpop.permute.xlu0 %13224
    %v13226 = vunpack.c.l.b16 %v13110
    %v13227 = vunpack.c.l.b16 %v13158
    %v13228 = vpack.c.b16 %v13227, %v13226
    %13229 = vrot.lane.b32.xlu0 %v13228, 96
    %v13230 = vpop.permute.xlu0 %13229
    %v13231 = vunpack.c.l.b16 %v13113
    %v13232 = vunpack.c.l.b16 %v13161
    %v13233 = vpack.c.b16 %v13232, %v13231
    %13234 = vrot.lane.b32.xlu0 %v13233, 104
    %v13235 = vpop.permute.xlu0 %13234
    %v13236 = vunpack.c.l.b16 %v13116
    %v13237 = vunpack.c.l.b16 %v13164
    %v13238 = vpack.c.b16 %v13237, %v13236
    %13239 = vrot.lane.b32.xlu0 %v13238, 112
    %v13240 = vpop.permute.xlu0 %13239
    %v13241 = vunpack.c.l.b16 %v13119
    %v13242 = vunpack.c.l.b16 %v13167
    %v13243 = vpack.c.b16 %v13242, %v13241
    %13244 = vrot.lane.b32.xlu0 %v13243, 120
    %v13245 = vpop.permute.xlu0 %13244
    %v13248 = vsel %vm2016, %v13170, %v13175
    %vm13249 = vcmask 130048
    %v13251 = vsel %vm13249, %v13248, %v13180
    %vm13252 = vcmask 195584
    %v13254 = vsel %vm13252, %v13251, %v13185
    %vm13255 = vcmask 261120
    %v13257 = vsel %vm13255, %v13254, %v13190
    %vm13258 = vcmask 326656
    %v13260 = vsel %vm13258, %v13257, %v13195
    %vm13261 = vcmask 392192
    %v13263 = vsel %vm13261, %v13260, %v13200
    %vm13264 = vcmask 457728
    %v13266 = vsel %vm13264, %v13263, %v13205
    %vm13267 = vcmask 523264
    %v13269 = vsel %vm13267, %v13266, %v13210
    %vm13270 = vcmask 588800
    %v13272 = vsel %vm13270, %v13269, %v13215
    %vm13273 = vcmask 654336
    %v13275 = vsel %vm13273, %v13272, %v13220
    %vm13276 = vcmask 719872
    %v13278 = vsel %vm13276, %v13275, %v13225
    %vm13279 = vcmask 785408
    %v13281 = vsel %vm13279, %v13278, %v13230
    %vm13282 = vcmask 850944
    %v13284 = vsel %vm13282, %v13281, %v13235
    %vm13285 = vcmask 916480
    %v13287 = vsel %vm13285, %v13284, %v13240
    %vm13288 = vcmask 982016
    %v13290 = vsel %vm13288, %v13287, %v13245
    %v13292 = vunpack.c.l.b16 %v13290
    %v13293 = vunpack.c.h.b16 %v13290
    %v13294 = vpack.c.b16 %v13292, %v13292
    %v13295 = vpack.c.b16 %v13293, %v13293
    %13298 = vst [vmem:[#allocation4] sm:$0xf] %v13294
    %13299 = vst [vmem:[#allocation4 + $0x4] sm:$0xf] %v13295
    %v13300 = vunpack.c.l.bf16 %v61
    %v13301 = vunpack.c.l.bf16 %v62
    %v13302 = vunpack.c.l.bf16 %v63
    %v13303 = vunpack.c.l.bf16 %v64
    %v13304 = vunpack.c.l.bf16 %v65
    %v13305 = vunpack.c.l.bf16 %v66
    %v13306 = vunpack.c.l.bf16 %v67
    %v13307 = vunpack.c.l.bf16 %v68
    %v13308 = vunpack.c.l.bf16 %v69
    %v13309 = vunpack.c.l.bf16 %v70
    %v13310 = vunpack.c.l.bf16 %v71
    %v13311 = vunpack.c.l.bf16 %v72
    %v13312 = vunpack.c.l.bf16 %v73
    %v13313 = vunpack.c.l.bf16 %v74
    %v13314 = vunpack.c.l.bf16 %v75
    %v13315 = vunpack.c.l.bf16 %v76
    %v13316 = vunpack.c.l.bf16 %v77
    %v13317 = vunpack.c.l.bf16 %v78
    %v13318 = vunpack.c.l.bf16 %v79
    %v13319 = vunpack.c.l.bf16 %v80
    %v13320 = vunpack.c.l.bf16 %v81
    %v13321 = vunpack.c.l.bf16 %v82
    %v13322 = vunpack.c.l.bf16 %v83
    %v13323 = vunpack.c.l.bf16 %v84
    %v13324 = vunpack.c.l.bf16 %v85
    %v13325 = vunpack.c.l.bf16 %v86
    %v13326 = vunpack.c.l.bf16 %v87
    %v13327 = vunpack.c.l.bf16 %v88
    %v13328 = vunpack.c.l.bf16 %v89
    %v13329 = vunpack.c.l.bf16 %v90
    %v13330 = vunpack.c.l.bf16 %v91
    %v13331 = vunpack.c.l.bf16 %v92
    %v13332 = vadd.f32 %v12687, %v13300
    %v13333 = vadd.f32 %v12688, %v13301
    %v13334 = vadd.f32 %v12689, %v13302
    %v13335 = vadd.f32 %v12690, %v13303
    %v13336 = vadd.f32 %v12691, %v13304
    %v13337 = vadd.f32 %v12692, %v13305
    %v13338 = vadd.f32 %v12693, %v13306
    %v13339 = vadd.f32 %v12694, %v13307
    %v13340 = vadd.f32 %v12695, %v13308
    %v13341 = vadd.f32 %v12696, %v13309
    %v13342 = vadd.f32 %v12697, %v13310
    %v13343 = vadd.f32 %v12698, %v13311
    %v13344 = vadd.f32 %v12699, %v13312
    %v13345 = vadd.f32 %v12700, %v13313
    %v13346 = vadd.f32 %v12701, %v13314
    %v13347 = vadd.f32 %v12702, %v13315
    %v13348 = vadd.f32 %v12703, %v13316
    %v13349 = vadd.f32 %v12704, %v13317
    %v13350 = vadd.f32 %v12705, %v13318
    %v13351 = vadd.f32 %v12706, %v13319
    %v13352 = vadd.f32 %v12707, %v13320
    %v13353 = vadd.f32 %v12708, %v13321
    %v13354 = vadd.f32 %v12709, %v13322
    %v13355 = vadd.f32 %v12710, %v13323
    %v13356 = vadd.f32 %v12711, %v13324
    %v13357 = vadd.f32 %v12712, %v13325
    %v13358 = vadd.f32 %v12713, %v13326
    %v13359 = vadd.f32 %v12714, %v13327
    %v13360 = vadd.f32 %v12715, %v13328
    %v13361 = vadd.f32 %v12716, %v13329
    %v13362 = vadd.f32 %v12717, %v13330
    %v13363 = vadd.f32 %v12718, %v13331
    %v13364 = vmax.f32 %v13332, 0.0
    %v13365 = vmax.f32 %v13333, 0.0
    %v13366 = vmax.f32 %v13334, 0.0
    %v13367 = vmax.f32 %v13335, 0.0
    %v13368 = vmax.f32 %v13336, 0.0
    %v13369 = vmax.f32 %v13337, 0.0
    %v13370 = vmax.f32 %v13338, 0.0
    %v13371 = vmax.f32 %v13339, 0.0
    %v13372 = vmax.f32 %v13340, 0.0
    %v13373 = vmax.f32 %v13341, 0.0
    %v13374 = vmax.f32 %v13342, 0.0
    %v13375 = vmax.f32 %v13343, 0.0
    %v13376 = vmax.f32 %v13344, 0.0
    %v13377 = vmax.f32 %v13345, 0.0
    %v13378 = vmax.f32 %v13346, 0.0
    %v13379 = vmax.f32 %v13347, 0.0
    %v13380 = vmax.f32 %v13348, 0.0
    %v13381 = vmax.f32 %v13349, 0.0
    %v13382 = vmax.f32 %v13350, 0.0
    %v13383 = vmax.f32 %v13351, 0.0
    %v13384 = vmax.f32 %v13352, 0.0
    %v13385 = vmax.f32 %v13353, 0.0
    %v13386 = vmax.f32 %v13354, 0.0
    %v13387 = vmax.f32 %v13355, 0.0
    %v13388 = vmax.f32 %v13356, 0.0
    %v13389 = vmax.f32 %v13357, 0.0
    %v13390 = vmax.f32 %v13358, 0.0
    %v13391 = vmax.f32 %v13359, 0.0
    %v13392 = vmax.f32 %v13360, 0.0
    %v13393 = vmax.f32 %v13361, 0.0
    %v13394 = vmax.f32 %v13362, 0.0
    %v13395 = vmax.f32 %v13363, 0.0
    %v13396 = vpack.c.bf16 %v13364, %v13364
    %v13397 = vpack.c.bf16 %v13365, %v13365
    %v13398 = vpack.c.bf16 %v13366, %v13366
    %v13399 = vpack.c.bf16 %v13367, %v13367
    %v13400 = vpack.c.bf16 %v13368, %v13368
    %v13401 = vpack.c.bf16 %v13369, %v13369
    %v13402 = vpack.c.bf16 %v13370, %v13370
    %v13403 = vpack.c.bf16 %v13371, %v13371
    %v13404 = vpack.c.bf16 %v13372, %v13372
    %v13405 = vpack.c.bf16 %v13373, %v13373
    %v13406 = vpack.c.bf16 %v13374, %v13374
    %v13407 = vpack.c.bf16 %v13375, %v13375
    %v13408 = vpack.c.bf16 %v13376, %v13376
    %v13409 = vpack.c.bf16 %v13377, %v13377
    %v13410 = vpack.c.bf16 %v13378, %v13378
    %v13411 = vpack.c.bf16 %v13379, %v13379
    %v13412 = vpack.c.bf16 %v13380, %v13380
    %v13413 = vpack.c.bf16 %v13381, %v13381
    %v13414 = vpack.c.bf16 %v13382, %v13382
    %v13415 = vpack.c.bf16 %v13383, %v13383
    %v13416 = vpack.c.bf16 %v13384, %v13384
    %v13417 = vpack.c.bf16 %v13385, %v13385
    %v13418 = vpack.c.bf16 %v13386, %v13386
    %v13419 = vpack.c.bf16 %v13387, %v13387
    %v13420 = vpack.c.bf16 %v13388, %v13388
    %v13421 = vpack.c.bf16 %v13389, %v13389
    %v13422 = vpack.c.bf16 %v13390, %v13390
    %v13423 = vpack.c.bf16 %v13391, %v13391
    %v13424 = vpack.c.bf16 %v13392, %v13392
    %v13425 = vpack.c.bf16 %v13393, %v13393
    %v13426 = vpack.c.bf16 %v13394, %v13394
    %v13427 = vpack.c.bf16 %v13395, %v13395
    %v13428 = vrot.slane %v13404, 4
    %v13429 = vsel %vm12848, %v13428, %v13396
    %v13431 = vunpack.c.l.s4 1983009808
    %v13432 = vunpack.c.0.s8 %v13431
    %v13433 = vperm.slane %v13429, %v13432
    %v13434 = vrot.slane %v13408, 4
    %v13435 = vsel %vm12848, %v13434, %v13400
    %v13437 = vunpack.c.l.s4 1983009808
    %v13438 = vunpack.c.0.s8 %v13437
    %v13439 = vperm.slane %v13435, %v13438
    %v13440 = vrot.slane %v13439, 4
    %v13441 = vsel %vm12848, %v13440, %v13433
    %v13442 = vrot.slane %v13433, 4
    %v13443 = vsel %vm12848, %v13439, %v13442
    %v13445 = vunpack.c.l.s4 1934713408
    %v13446 = vunpack.c.0.s8 %v13445
    %v13447 = vperm.slane %v13441, %v13446
    %v13449 = vunpack.c.l.s4 1934713408
    %v13450 = vunpack.c.0.s8 %v13449
    %v13451 = vperm.slane %v13443, %v13450
    %v13452 = vrot.slane %v13447, 4
    %v13453 = vsel %vm12848, 0, %v13452
    %v13454 = vrot.slane %v13451, 4
    %v13455 = vsel %vm12848, 0, %v13454
    %v13456 = vrot.slane %v13406, 4
    %v13457 = vsel %vm12848, %v13456, %v13398
    %v13459 = vunpack.c.l.s4 1983009808
    %v13460 = vunpack.c.0.s8 %v13459
    %v13461 = vperm.slane %v13457, %v13460
    %v13462 = vrot.slane %v13410, 4
    %v13463 = vsel %vm12848, %v13462, %v13402
    %v13465 = vunpack.c.l.s4 1983009808
    %v13466 = vunpack.c.0.s8 %v13465
    %v13467 = vperm.slane %v13463, %v13466
    %v13468 = vrot.slane %v13467, 4
    %v13469 = vsel %vm12848, %v13468, %v13461
    %v13470 = vrot.slane %v13461, 4
    %v13471 = vsel %vm12848, %v13467, %v13470
    %v13473 = vunpack.c.l.s4 1934713408
    %v13474 = vunpack.c.0.s8 %v13473
    %v13475 = vperm.slane %v13469, %v13474
    %v13477 = vunpack.c.l.s4 1934713408
    %v13478 = vunpack.c.0.s8 %v13477
    %v13479 = vperm.slane %v13471, %v13478
    %v13480 = vrot.slane %v13475, 4
    %v13481 = vsel %vm12848, 0, %v13480
    %v13482 = vrot.slane %v13479, 4
    %v13483 = vsel %vm12848, 0, %v13482
    %v13484 = vrot.slane %v13420, 4
    %v13485 = vsel %vm12848, %v13484, %v13412
    %v13487 = vunpack.c.l.s4 1983009808
    %v13488 = vunpack.c.0.s8 %v13487
    %v13489 = vperm.slane %v13485, %v13488
    %v13490 = vrot.slane %v13424, 4
    %v13491 = vsel %vm12848, %v13490, %v13416
    %v13493 = vunpack.c.l.s4 1983009808
    %v13494 = vunpack.c.0.s8 %v13493
    %v13495 = vperm.slane %v13491, %v13494
    %v13496 = vrot.slane %v13495, 4
    %v13497 = vsel %vm12848, %v13496, %v13489
    %v13498 = vrot.slane %v13489, 4
    %v13499 = vsel %vm12848, %v13495, %v13498
    %v13501 = vunpack.c.l.s4 1934713408
    %v13502 = vunpack.c.0.s8 %v13501
    %v13503 = vperm.slane %v13497, %v13502
    %v13505 = vunpack.c.l.s4 1934713408
    %v13506 = vunpack.c.0.s8 %v13505
    %v13507 = vperm.slane %v13499, %v13506
    %v13508 = vrot.slane %v13503, 4
    %v13509 = vsel %vm12848, 0, %v13508
    %v13510 = vrot.slane %v13507, 4
    %v13511 = vsel %vm12848, 0, %v13510
    %v13512 = vrot.slane %v13422, 4
    %v13513 = vsel %vm12848, %v13512, %v13414
    %v13515 = vunpack.c.l.s4 1983009808
    %v13516 = vunpack.c.0.s8 %v13515
    %v13517 = vperm.slane %v13513, %v13516
    %v13518 = vrot.slane %v13426, 4
    %v13519 = vsel %vm12848, %v13518, %v13418
    %v13521 = vunpack.c.l.s4 1983009808
    %v13522 = vunpack.c.0.s8 %v13521
    %v13523 = vperm.slane %v13519, %v13522
    %v13524 = vrot.slane %v13523, 4
    %v13525 = vsel %vm12848, %v13524, %v13517
    %v13526 = vrot.slane %v13517, 4
    %v13527 = vsel %vm12848, %v13523, %v13526
    %v13529 = vunpack.c.l.s4 1934713408
    %v13530 = vunpack.c.0.s8 %v13529
    %v13531 = vperm.slane %v13525, %v13530
    %v13533 = vunpack.c.l.s4 1934713408
    %v13534 = vunpack.c.0.s8 %v13533
    %v13535 = vperm.slane %v13527, %v13534
    %v13536 = vrot.slane %v13531, 4
    %v13537 = vsel %vm12848, 0, %v13536
    %v13538 = vrot.slane %v13535, 4
    %v13539 = vsel %vm12848, 0, %v13538
    %v13540 = vrot.slane %v13405, 4
    %v13541 = vsel %vm12848, %v13540, %v13397
    %v13543 = vunpack.c.l.s4 1983009808
    %v13544 = vunpack.c.0.s8 %v13543
    %v13545 = vperm.slane %v13541, %v13544
    %v13546 = vrot.slane %v13409, 4
    %v13547 = vsel %vm12848, %v13546, %v13401
    %v13549 = vunpack.c.l.s4 1983009808
    %v13550 = vunpack.c.0.s8 %v13549
    %v13551 = vperm.slane %v13547, %v13550
    %v13552 = vrot.slane %v13551, 4
    %v13553 = vsel %vm12848, %v13552, %v13545
    %v13554 = vrot.slane %v13545, 4
    %v13555 = vsel %vm12848, %v13551, %v13554
    %v13557 = vunpack.c.l.s4 1934713408
    %v13558 = vunpack.c.0.s8 %v13557
    %v13559 = vperm.slane %v13553, %v13558
    %v13561 = vunpack.c.l.s4 1934713408
    %v13562 = vunpack.c.0.s8 %v13561
    %v13563 = vperm.slane %v13555, %v13562
    %v13564 = vrot.slane %v13559, 4
    %v13565 = vsel %vm12848, 0, %v13564
    %v13566 = vrot.slane %v13563, 4
    %v13567 = vsel %vm12848, 0, %v13566
    %v13568 = vrot.slane %v13407, 4
    %v13569 = vsel %vm12848, %v13568, %v13399
    %v13571 = vunpack.c.l.s4 1983009808
    %v13572 = vunpack.c.0.s8 %v13571
    %v13573 = vperm.slane %v13569, %v13572
    %v13574 = vrot.slane %v13411, 4
    %v13575 = vsel %vm12848, %v13574, %v13403
    %v13577 = vunpack.c.l.s4 1983009808
    %v13578 = vunpack.c.0.s8 %v13577
    %v13579 = vperm.slane %v13575, %v13578
    %v13580 = vrot.slane %v13579, 4
    %v13581 = vsel %vm12848, %v13580, %v13573
    %v13582 = vrot.slane %v13573, 4
    %v13583 = vsel %vm12848, %v13579, %v13582
    %v13585 = vunpack.c.l.s4 1934713408
    %v13586 = vunpack.c.0.s8 %v13585
    %v13587 = vperm.slane %v13581, %v13586
    %v13589 = vunpack.c.l.s4 1934713408
    %v13590 = vunpack.c.0.s8 %v13589
    %v13591 = vperm.slane %v13583, %v13590
    %v13592 = vrot.slane %v13587, 4
    %v13593 = vsel %vm12848, 0, %v13592
    %v13594 = vrot.slane %v13591, 4
    %v13595 = vsel %vm12848, 0, %v13594
    %v13596 = vrot.slane %v13421, 4
    %v13597 = vsel %vm12848, %v13596, %v13413
    %v13599 = vunpack.c.l.s4 1983009808
    %v13600 = vunpack.c.0.s8 %v13599
    %v13601 = vperm.slane %v13597, %v13600
    %v13602 = vrot.slane %v13425, 4
    %v13603 = vsel %vm12848, %v13602, %v13417
    %v13605 = vunpack.c.l.s4 1983009808
    %v13606 = vunpack.c.0.s8 %v13605
    %v13607 = vperm.slane %v13603, %v13606
    %v13608 = vrot.slane %v13607, 4
    %v13609 = vsel %vm12848, %v13608, %v13601
    %v13610 = vrot.slane %v13601, 4
    %v13611 = vsel %vm12848, %v13607, %v13610
    %v13613 = vunpack.c.l.s4 1934713408
    %v13614 = vunpack.c.0.s8 %v13613
    %v13615 = vperm.slane %v13609, %v13614
    %v13617 = vunpack.c.l.s4 1934713408
    %v13618 = vunpack.c.0.s8 %v13617
    %v13619 = vperm.slane %v13611, %v13618
    %v13620 = vrot.slane %v13615, 4
    %v13621 = vsel %vm12848, 0, %v13620
    %v13622 = vrot.slane %v13619, 4
    %v13623 = vsel %vm12848, 0, %v13622
    %v13624 = vrot.slane %v13423, 4
    %v13625 = vsel %vm12848, %v13624, %v13415
    %v13627 = vunpack.c.l.s4 1983009808
    %v13628 = vunpack.c.0.s8 %v13627
    %v13629 = vperm.slane %v13625, %v13628
    %v13630 = vrot.slane %v13427, 4
    %v13631 = vsel %vm12848, %v13630, %v13419
    %v13633 = vunpack.c.l.s4 1983009808
    %v13634 = vunpack.c.0.s8 %v13633
    %v13635 = vperm.slane %v13631, %v13634
    %v13636 = vrot.slane %v13635, 4
    %v13637 = vsel %vm12848, %v13636, %v13629
    %v13638 = vrot.slane %v13629, 4
    %v13639 = vsel %vm12848, %v13635, %v13638
    %v13641 = vunpack.c.l.s4 1934713408
    %v13642 = vunpack.c.0.s8 %v13641
    %v13643 = vperm.slane %v13637, %v13642
    %v13645 = vunpack.c.l.s4 1934713408
    %v13646 = vunpack.c.0.s8 %v13645
    %v13647 = vperm.slane %v13639, %v13646
    %v13648 = vrot.slane %v13643, 4
    %v13649 = vsel %vm12848, 0, %v13648
    %v13650 = vrot.slane %v13647, 4
    %v13651 = vsel %vm12848, 0, %v13650
    %v13654 = vpack.i.b16 %v13475, %v13447
    %v13655 = vshrl.u32 %v13447, 16
    %v13656 = vshrl.u32 %v13475, 16
    %v13657 = vpack.i.b16 %v13656, %v13655
    %v13660 = vpack.i.b16 %v13481, %v13453
    %v13661 = vshrl.u32 %v13453, 16
    %v13662 = vshrl.u32 %v13481, 16
    %v13663 = vpack.i.b16 %v13662, %v13661
    %v13666 = vpack.i.b16 %v13479, %v13451
    %v13667 = vshrl.u32 %v13451, 16
    %v13668 = vshrl.u32 %v13479, 16
    %v13669 = vpack.i.b16 %v13668, %v13667
    %v13672 = vpack.i.b16 %v13483, %v13455
    %v13673 = vshrl.u32 %v13455, 16
    %v13674 = vshrl.u32 %v13483, 16
    %v13675 = vpack.i.b16 %v13674, %v13673
    %v13678 = vpack.i.b16 %v13587, %v13559
    %v13679 = vshrl.u32 %v13559, 16
    %v13680 = vshrl.u32 %v13587, 16
    %v13681 = vpack.i.b16 %v13680, %v13679
    %v13684 = vpack.i.b16 %v13593, %v13565
    %v13685 = vshrl.u32 %v13565, 16
    %v13686 = vshrl.u32 %v13593, 16
    %v13687 = vpack.i.b16 %v13686, %v13685
    %v13690 = vpack.i.b16 %v13591, %v13563
    %v13691 = vshrl.u32 %v13563, 16
    %v13692 = vshrl.u32 %v13591, 16
    %v13693 = vpack.i.b16 %v13692, %v13691
    %v13696 = vpack.i.b16 %v13595, %v13567
    %v13697 = vshrl.u32 %v13567, 16
    %v13698 = vshrl.u32 %v13595, 16
    %v13699 = vpack.i.b16 %v13698, %v13697
    %v13702 = vpack.i.b16 %v13531, %v13503
    %v13703 = vshrl.u32 %v13503, 16
    %v13704 = vshrl.u32 %v13531, 16
    %v13705 = vpack.i.b16 %v13704, %v13703
    %v13708 = vpack.i.b16 %v13537, %v13509
    %v13709 = vshrl.u32 %v13509, 16
    %v13710 = vshrl.u32 %v13537, 16
    %v13711 = vpack.i.b16 %v13710, %v13709
    %v13714 = vpack.i.b16 %v13535, %v13507
    %v13715 = vshrl.u32 %v13507, 16
    %v13716 = vshrl.u32 %v13535, 16
    %v13717 = vpack.i.b16 %v13716, %v13715
    %v13720 = vpack.i.b16 %v13539, %v13511
    %v13721 = vshrl.u32 %v13511, 16
    %v13722 = vshrl.u32 %v13539, 16
    %v13723 = vpack.i.b16 %v13722, %v13721
    %v13726 = vpack.i.b16 %v13643, %v13615
    %v13727 = vshrl.u32 %v13615, 16
    %v13728 = vshrl.u32 %v13643, 16
    %v13729 = vpack.i.b16 %v13728, %v13727
    %v13732 = vpack.i.b16 %v13649, %v13621
    %v13733 = vshrl.u32 %v13621, 16
    %v13734 = vshrl.u32 %v13649, 16
    %v13735 = vpack.i.b16 %v13734, %v13733
    %v13738 = vpack.i.b16 %v13647, %v13619
    %v13739 = vshrl.u32 %v13619, 16
    %v13740 = vshrl.u32 %v13647, 16
    %v13741 = vpack.i.b16 %v13740, %v13739
    %v13744 = vpack.i.b16 %v13651, %v13623
    %v13745 = vshrl.u32 %v13623, 16
    %v13746 = vshrl.u32 %v13651, 16
    %v13747 = vpack.i.b16 %v13746, %v13745
    %v13748 = vunpack.c.l.b16 %v13654
    %v13749 = vunpack.c.l.b16 %v13702
    %v13750 = vpack.c.b16 %v13749, %v13748
    %v13751 = vunpack.c.l.b16 %v13657
    %v13752 = vunpack.c.l.b16 %v13705
    %v13753 = vpack.c.b16 %v13752, %v13751
    %13754 = vrot.lane.b32.xlu0 %v13753, 8
    %v13755 = vpop.permute.xlu0 %13754
    %v13756 = vunpack.c.l.b16 %v13660
    %v13757 = vunpack.c.l.b16 %v13708
    %v13758 = vpack.c.b16 %v13757, %v13756
    %13759 = vrot.lane.b32.xlu0 %v13758, 16
    %v13760 = vpop.permute.xlu0 %13759
    %v13761 = vunpack.c.l.b16 %v13663
    %v13762 = vunpack.c.l.b16 %v13711
    %v13763 = vpack.c.b16 %v13762, %v13761
    %13764 = vrot.lane.b32.xlu0 %v13763, 24
    %v13765 = vpop.permute.xlu0 %13764
    %v13766 = vunpack.c.l.b16 %v13666
    %v13767 = vunpack.c.l.b16 %v13714
    %v13768 = vpack.c.b16 %v13767, %v13766
    %13769 = vrot.lane.b32.xlu0 %v13768, 32
    %v13770 = vpop.permute.xlu0 %13769
    %v13771 = vunpack.c.l.b16 %v13669
    %v13772 = vunpack.c.l.b16 %v13717
    %v13773 = vpack.c.b16 %v13772, %v13771
    %13774 = vrot.lane.b32.xlu0 %v13773, 40
    %v13775 = vpop.permute.xlu0 %13774
    %v13776 = vunpack.c.l.b16 %v13672
    %v13777 = vunpack.c.l.b16 %v13720
    %v13778 = vpack.c.b16 %v13777, %v13776
    %13779 = vrot.lane.b32.xlu0 %v13778, 48
    %v13780 = vpop.permute.xlu0 %13779
    %v13781 = vunpack.c.l.b16 %v13675
    %v13782 = vunpack.c.l.b16 %v13723
    %v13783 = vpack.c.b16 %v13782, %v13781
    %13784 = vrot.lane.b32.xlu0 %v13783, 56
    %v13785 = vpop.permute.xlu0 %13784
    %v13786 = vunpack.c.l.b16 %v13678
    %v13787 = vunpack.c.l.b16 %v13726
    %v13788 = vpack.c.b16 %v13787, %v13786
    %13789 = vrot.lane.b32.xlu0 %v13788, 64
    %v13790 = vpop.permute.xlu0 %13789
    %v13791 = vunpack.c.l.b16 %v13681
    %v13792 = vunpack.c.l.b16 %v13729
    %v13793 = vpack.c.b16 %v13792, %v13791
    %13794 = vrot.lane.b32.xlu0 %v13793, 72
    %v13795 = vpop.permute.xlu0 %13794
    %v13796 = vunpack.c.l.b16 %v13684
    %v13797 = vunpack.c.l.b16 %v13732
    %v13798 = vpack.c.b16 %v13797, %v13796
    %13799 = vrot.lane.b32.xlu0 %v13798, 80
    %v13800 = vpop.permute.xlu0 %13799
    %v13801 = vunpack.c.l.b16 %v13687
    %v13802 = vunpack.c.l.b16 %v13735
    %v13803 = vpack.c.b16 %v13802, %v13801
    %13804 = vrot.lane.b32.xlu0 %v13803, 88
    %v13805 = vpop.permute.xlu0 %13804
    %v13806 = vunpack.c.l.b16 %v13690
    %v13807 = vunpack.c.l.b16 %v13738
    %v13808 = vpack.c.b16 %v13807, %v13806
    %13809 = vrot.lane.b32.xlu0 %v13808, 96
    %v13810 = vpop.permute.xlu0 %13809
    %v13811 = vunpack.c.l.b16 %v13693
    %v13812 = vunpack.c.l.b16 %v13741
    %v13813 = vpack.c.b16 %v13812, %v13811
    %13814 = vrot.lane.b32.xlu0 %v13813, 104
    %v13815 = vpop.permute.xlu0 %13814
    %v13816 = vunpack.c.l.b16 %v13696
    %v13817 = vunpack.c.l.b16 %v13744
    %v13818 = vpack.c.b16 %v13817, %v13816
    %13819 = vrot.lane.b32.xlu0 %v13818, 112
    %v13820 = vpop.permute.xlu0 %13819
    %v13821 = vunpack.c.l.b16 %v13699
    %v13822 = vunpack.c.l.b16 %v13747
    %v13823 = vpack.c.b16 %v13822, %v13821
    %13824 = vrot.lane.b32.xlu0 %v13823, 120
    %v13825 = vpop.permute.xlu0 %13824
    %v13828 = vsel %vm2016, %v13750, %v13755
    %v13830 = vsel %vm13249, %v13828, %v13760
    %v13832 = vsel %vm13252, %v13830, %v13765
    %v13834 = vsel %vm13255, %v13832, %v13770
    %v13836 = vsel %vm13258, %v13834, %v13775
    %v13838 = vsel %vm13261, %v13836, %v13780
    %v13840 = vsel %vm13264, %v13838, %v13785
    %v13842 = vsel %vm13267, %v13840, %v13790
    %v13844 = vsel %vm13270, %v13842, %v13795
    %v13846 = vsel %vm13273, %v13844, %v13800
    %v13848 = vsel %vm13276, %v13846, %v13805
    %v13850 = vsel %vm13279, %v13848, %v13810
    %v13852 = vsel %vm13282, %v13850, %v13815
    %v13854 = vsel %vm13285, %v13852, %v13820
    %v13856 = vsel %vm13288, %v13854, %v13825
    %v13858 = vunpack.c.l.b16 %v13856
    %v13859 = vunpack.c.h.b16 %v13856
    %v13860 = vpack.c.b16 %v13858, %v13858
    %v13861 = vpack.c.b16 %v13859, %v13859
    %s13864 = scalar_lea.vmem [#allocation4], 8
    %13865 = vst [vmem:[%s13864] sm:$0xf] %v13860
    %13866 = vst [vmem:[%s13864 + $0x4] sm:$0xf] %v13861
    // Predicated region
    $region30: #{tpu_custom_call.1} parent=1 // pred_check
      _
    $region31: #{tpu_custom_call.1} parent=1 // pred_check_branch
      %13868 = sbr.rel (0) target = $region33
    $region32: #{tpu_custom_call.1} parent=1 // pred_region
      %13870 = vsyncadd [#allocation5], 0
      %s13871 = sshll.u32 [#allocation4], 4
      %s13872 = int_to_ptr.vmem [resolvable:$true] %s13871
      %s13873 = sshll.u32 %s7, 4
      %s13874 = int_to_ptr.hbm [resolvable:$true] %s13873
      %13879 = dma.vmem_to_hbm [thread:$0]  %s13872, 256, %s13874, [#allocation5], 64, 64, 4
    $region33: #{tpu_custom_call.1} parent=1 // pred_fallthru
      _
    // Predicated region
    $region34: #{tpu_custom_call.1} parent=1 // pred_check
      _
    $region35: #{tpu_custom_call.1} parent=1 // pred_check_branch
      %13881 = sbr.rel (0) target = $region37
    $region36: #{tpu_custom_call.1} parent=1 // pred_region
      %13883 = dma.done [#allocation5], 256
    $region37: #{tpu_custom_call.1} parent=1 // pred_fallthru
      _
    %13884 = vsyncpa [#allocation5], 1

</llo_original>
